<compile_context>
chip_gen: v7x
topology: tpu7x:2x2x1
jax: 0.10.0
libtpu: 0.0.40
codegen_flags: <defaults>
</compile_context>

<pallas_src>
import functools

import jax
import jax.numpy as jnp
from jax.experimental import pallas as pl
from jax.experimental.pallas import tpu as pltpu

_LANES = 128
_EPS = 1e-8                       # module spec: BatchNorm3d(eps=1e-08)
_VMEM_LIMIT = 64 * 1024 * 1024


def _round_up(v, m):
    return ((v + m - 1) // m) * m


def _row_tile(m, cap=2048):
    for t in (cap, cap // 2, cap // 4, cap // 8, 128, 64, 32, 16, 8):
        if t <= m and m % t == 0:
            return t
    return m


def _pad_last(x, to):
    pad = to - x.shape[-1]
    if pad == 0:
        return x
    return jnp.pad(x, [(0, 0)] * (x.ndim - 1) + [(0, pad)])


# ----------------------------------------------------------------------------
# Kernel 1: BN batch statistics (sum, sum of squares) — tiled reduction over M.
# ----------------------------------------------------------------------------
def _bn_stats_kernel(x_ref, s_ref):
    @pl.when(pl.program_id(0) == 0)
    def _():
        s_ref[...] = jnp.zeros_like(s_ref)

    x = x_ref[...].astype(jnp.float32)
    s = jnp.sum(x, axis=0, keepdims=True)
    sq = jnp.sum(x * x, axis=0, keepdims=True)
    s_ref[...] += jnp.concatenate([s, sq], axis=0)


def bn_stats(x2d):
    """x2d: (M, C) -> (2, C) f32 rows [sum, sum of squares]."""
    m, c = x2d.shape
    mt = _row_tile(m)
    return pl.pallas_call(
        _bn_stats_kernel,
        out_shape=jax.ShapeDtypeStruct((2, c), jnp.float32),
        grid_spec=pltpu.PrefetchScalarGridSpec(
            num_scalar_prefetch=0,
            grid=(m // mt,),
            in_specs=[pl.BlockSpec((mt, c), lambda i: (i, 0))],
            out_specs=pl.BlockSpec((2, c), lambda i: (0, 0)),
        ),
        compiler_params=pltpu.CompilerParams(
            dimension_semantics=("arbitrary",),
            vmem_limit_bytes=_VMEM_LIMIT),
    )(x2d)


# ----------------------------------------------------------------------------
# Kernel 2: BN normalize + Swish apply (tiled over M), bf16 output for the MXU.
# ----------------------------------------------------------------------------
def _bn_apply_kernel(x_ref, s_ref, g_ref, b_ref, o_ref, *, m_total):
    x = x_ref[...].astype(jnp.float32)
    mean = s_ref[0:1, :] / m_total                             # (1, C)
    var = jnp.maximum(s_ref[1:2, :] / m_total - mean * mean, 0.0)
    inv = jax.lax.rsqrt(var + _EPS)
    xn = (x - mean) * inv * g_ref[...] + b_ref[...]
    o_ref[...] = (xn * jax.nn.sigmoid(xn)).astype(o_ref.dtype)  # Swish


def bn_swish_apply(x2d, stats, gamma, beta, m_total):
    m, c = x2d.shape
    mt = _row_tile(m)
    return pl.pallas_call(
        functools.partial(_bn_apply_kernel, m_total=float(m_total)),
        out_shape=jax.ShapeDtypeStruct((m, c), jnp.bfloat16),
        grid_spec=pltpu.PrefetchScalarGridSpec(
            num_scalar_prefetch=0,
            grid=(m // mt,),
            in_specs=[
                pl.BlockSpec((mt, c), lambda i: (i, 0)),
                pl.BlockSpec((2, c), lambda i: (0, 0)),
                pl.BlockSpec((1, c), lambda i: (0, 0)),
                pl.BlockSpec((1, c), lambda i: (0, 0)),
            ],
            out_specs=pl.BlockSpec((mt, c), lambda i: (i, 0)),
        ),
        compiler_params=pltpu.CompilerParams(
            dimension_semantics=("parallel",),
            vmem_limit_bytes=_VMEM_LIMIT),
    )(x2d, stats, gamma, beta)


# ----------------------------------------------------------------------------
# Kernel 3: fused BN + Swish + 1x1x1 conv (single matmul), tiled over M.
# ----------------------------------------------------------------------------
def _bn_swish_matmul_kernel(x_ref, s_ref, g_ref, b_ref, w_ref, o_ref, *, m_total):
    x = x_ref[...].astype(jnp.float32)
    mean = s_ref[0:1, :] / m_total
    var = jnp.maximum(s_ref[1:2, :] / m_total - mean * mean, 0.0)
    inv = jax.lax.rsqrt(var + _EPS)
    xn = (x - mean) * inv * g_ref[...] + b_ref[...]
    a = (xn * jax.nn.sigmoid(xn)).astype(jnp.bfloat16)
    o_ref[...] = jnp.dot(a, w_ref[...], preferred_element_type=jnp.float32)


def bn_swish_conv1x1(x2d, stats, gamma, beta, w, m_total):
    """x2d: (M, Cin) f32, w: (Cin, Cout) bf16 -> (M, Cout) f32."""
    m, cin = x2d.shape
    cout = w.shape[1]
    mt = _row_tile(m)
    return pl.pallas_call(
        functools.partial(_bn_swish_matmul_kernel, m_total=float(m_total)),
        out_shape=jax.ShapeDtypeStruct((m, cout), jnp.float32),
        grid_spec=pltpu.PrefetchScalarGridSpec(
            num_scalar_prefetch=0,
            grid=(m // mt,),
            in_specs=[
                pl.BlockSpec((mt, cin), lambda i: (i, 0)),
                pl.BlockSpec((2, cin), lambda i: (0, 0)),
                pl.BlockSpec((1, cin), lambda i: (0, 0)),
                pl.BlockSpec((1, cin), lambda i: (0, 0)),
                pl.BlockSpec((cin, cout), lambda i: (0, 0)),   # weights resident
            ],
            out_specs=pl.BlockSpec((mt, cout), lambda i: (i, 0)),
        ),
        compiler_params=pltpu.CompilerParams(
            dimension_semantics=("parallel",),
            vmem_limit_bytes=_VMEM_LIMIT),
    )(x2d, stats, gamma, beta, w)


# ----------------------------------------------------------------------------
# Kernel 4: 3x3x3 'same' conv (stride 1, no bias) without im2col.
#   grid = (N, D, kd).  Per step: DMA one padded (H+2, W+2, Cin) plane, run the
#   9 in-plane taps as sliced matmuls, accumulate over the 3 depth taps.
# ----------------------------------------------------------------------------
def _conv3_body(x_ref, w_ref, acc_ref, *, H, W):
    kd = pl.program_id(2)

    @pl.when(kd == 0)
    def _():
        acc_ref[...] = jnp.zeros_like(acc_ref)

    base = kd * 9
    acc = acc_ref[...]
    for t in range(9):
        kh, kw = t // 3, t % 3
        # (H, W, Cin) shifted window of the padded plane; go through f32 for a
        # tile-aligned (H*W, Cin) flatten, then back to bf16 for the MXU.
        xs = x_ref[0, 0, kh:kh + H, kw:kw + W, :].astype(jnp.float32)
        xs = xs.reshape(H * W, -1).astype(jnp.bfloat16)
        acc = acc + jnp.dot(xs, w_ref[base + t],
                            preferred_element_type=jnp.float32)
    acc_ref[...] = acc


def _conv3_kernel(x_ref, w_ref, o_ref, acc_ref, *, H, W):
    _conv3_body(x_ref, w_ref, acc_ref, H=H, W=W)

    @pl.when(pl.program_id(2) == pl.num_programs(2) - 1)
    def _():
        o_ref[...] = acc_ref[...][None, None]


def _conv3_res_kernel(x_ref, w_ref, r_ref, o_ref, acc_ref, *, H, W):
    _conv3_body(x_ref, w_ref, acc_ref, H=H, W=W)

    @pl.when(pl.program_id(2) == pl.num_programs(2) - 1)
    def _():
        res = r_ref[0, 0].astype(jnp.float32)
        o_ref[...] = (acc_ref[...] + res)[None, None]


def conv3x3x3(a_ndhwc, w27, residual=None):
    """a: (N,D,H,W,Cin) bf16 (post-activation), w27: (27,Cin,Cout) bf16 (kd,kh,kw
    tap-major), residual: optional (N,D,H*W,Cout) f32.  Returns (N,D,H*W,Cout) f32."""
    n, d, h, w, cin = a_ndhwc.shape
    cout = w27.shape[-1]
    # conv 'same' zero padding is applied to the post-activation tensor.
    ap = jnp.pad(a_ndhwc, ((0, 0), (1, 1), (1, 1), (1, 1), (0, 0)))

    x_spec = pl.BlockSpec((1, 1, h + 2, w + 2, cin),
                          lambda ni, di, kd: (ni, di + kd, 0, 0, 0))
    w_spec = pl.BlockSpec((27, cin, cout), lambda ni, di, kd: (0, 0, 0))
    out_spec = pl.BlockSpec((1, 1, h * w, cout), lambda ni, di, kd: (ni, di, 0, 0))

    in_specs = [x_spec, w_spec]
    args = [ap, w27]
    if residual is None:
        kernel = functools.partial(_conv3_kernel, H=h, W=w)
    else:
        in_specs.append(pl.BlockSpec((1, 1, h * w, cout),
                                     lambda ni, di, kd: (ni, di, 0, 0)))
        args.append(residual)
        kernel = functools.partial(_conv3_res_kernel, H=h, W=w)

    return pl.pallas_call(
        kernel,
        out_shape=jax.ShapeDtypeStruct((n, d, h * w, cout), jnp.float32),
        grid_spec=pltpu.PrefetchScalarGridSpec(
            num_scalar_prefetch=0,
            grid=(n, d, 3),
            in_specs=in_specs,
            out_specs=out_spec,
            scratch_shapes=[pltpu.VMEM((h * w, cout), jnp.float32)],
        ),
        compiler_params=pltpu.CompilerParams(
            dimension_semantics=("parallel", "parallel", "arbitrary"),
            vmem_limit_bytes=_VMEM_LIMIT),
    )(*args)


# ----------------------------------------------------------------------------
# Parameters + forward wrapper.
# ----------------------------------------------------------------------------
def init_params(key, in_depth):
    hidden = in_depth // 4
    out_depth = in_depth              # stride=1 default -> out_depth == in_depth
    ks = jax.random.split(key, 9)

    def conv_w(k, cin, cout, ksz):
        fan_in = cin * ksz ** 3
        return jax.random.normal(k, (ksz ** 3, cin, cout), jnp.float32) / jnp.sqrt(fan_in)

    return dict(
        g1=1.0 + 0.1 * jax.random.normal(ks[0], (in_depth,), jnp.float32),
        b1=0.1 * jax.random.normal(ks[1], (in_depth,), jnp.float32),
        w1=conv_w(ks[2], in_depth, hidden, 3),
        g2=1.0 + 0.1 * jax.random.normal(ks[3], (hidden,), jnp.float32),
        b2=0.1 * jax.random.normal(ks[4], (hidden,), jnp.float32),
        w2=conv_w(ks[5], hidden, hidden, 1),
        g3=1.0 + 0.1 * jax.random.normal(ks[6], (hidden,), jnp.float32),
        b3=0.1 * jax.random.normal(ks[7], (hidden,), jnp.float32),
        w3=conv_w(ks[8], hidden, out_depth, 3),
    )


@jax.jit
def resnet_block_forward(x_ncdhw, params):
    """x: (N, C, D, H, W) float32 -> (N, C, D, H, W)."""
    n, c, d, h, w = x_ncdhw.shape
    hidden = c // 4
    cp = _round_up(c, _LANES)
    hp = _round_up(hidden, _LANES)
    m = n * d * h * w

    # channels-last + lane-dense zero channel padding (numerically transparent).
    x = jnp.transpose(x_ncdhw, (0, 2, 3, 4, 1))                 # (N,D,H,W,C)
    xp = _pad_last(x, cp)                                       # (N,D,H,W,Cp)
    x2d = xp.reshape(m, cp)
    residual = xp.reshape(n, d, h * w, cp)                      # identity shortcut

    g1 = _pad_last(params["g1"][None, :], cp)
    b1 = _pad_last(params["b1"][None, :], cp)
    g2 = _pad_last(params["g2"][None, :], hp)
    b2 = _pad_last(params["b2"][None, :], hp)
    g3 = _pad_last(params["g3"][None, :], hp)
    b3 = _pad_last(params["b3"][None, :], hp)

    def pad_w(wt, cin_p, cout_p):
        return jnp.pad(wt, ((0, 0), (0, cin_p - wt.shape[1]),
                            (0, cout_p - wt.shape[2]))).astype(jnp.bfloat16)

    w1 = pad_w(params["w1"], cp, hp)           # (27, Cp, Hp)
    w2 = pad_w(params["w2"], hp, hp)[0]        # (Hp, Hp)
    w3 = pad_w(params["w3"], hp, cp)           # (27, Hp, Cp)

    # stage 1: BN + swish + conv3x3x3 (C -> hidden)
    s1 = bn_stats(x2d)
    a1 = bn_swish_apply(x2d, s1, g1, b1, m)                     # (M, Cp) bf16
    y1 = conv3x3x3(a1.reshape(n, d, h, w, cp), w1)              # (N,D,H*W,Hp) f32

    # stage 2: BN + swish + conv1x1x1 (hidden -> hidden), fully fused
    y1_2d = y1.reshape(m, hp)
    s2 = bn_stats(y1_2d)
    y2 = bn_swish_conv1x1(y1_2d, s2, g2, b2, w2, m)             # (M, Hp) f32

    # stage 3: BN + swish + conv3x3x3 (hidden -> C), residual add fused in-kernel
    s3 = bn_stats(y2)
    a3 = bn_swish_apply(y2, s3, g3, b3, m)                      # (M, Hp) bf16
    y3 = conv3x3x3(a3.reshape(n, d, h, w, hp), w3, residual=residual)

    out = y3.reshape(n, d, h, w, cp)[..., :c]
    return jnp.transpose(out, (0, 4, 1, 2, 3))


# ----------------------------------------------------------------------------
# Pure-JAX reference (same math, f32) for a correctness check.
# ----------------------------------------------------------------------------
def _ref_forward(x_ncdhw, params):
    x = jnp.transpose(x_ncdhw, (0, 2, 3, 4, 1)).astype(jnp.float32)

    def bn_swish_ref(hh, g, b):
        mu = jnp.mean(hh, axis=(0, 1, 2, 3), keepdims=True)
        var = jnp.mean((hh - mu) ** 2, axis=(0, 1, 2, 3), keepdims=True)
        hn = (hh - mu) * jax.lax.rsqrt(var + _EPS) * g + b
        return hn * jax.nn.sigmoid(hn)

    def conv_ref(hh, w_taps, ksz):
        wk = w_taps.reshape(ksz, ksz, ksz, w_taps.shape[1], w_taps.shape[2])
        return jax.lax.conv_general_dilated(
            hh, wk, window_strides=(1, 1, 1),
            padding=[(ksz // 2,) * 2] * 3,
            dimension_numbers=("NDHWC", "DHWIO", "NDHWC"))

    hh = conv_ref(bn_swish_ref(x, params["g1"], params["b1"]), params["w1"], 3)
    hh = conv_ref(bn_swish_ref(hh, params["g2"], params["b2"]), params["w2"], 1)
    hh = conv_ref(bn_swish_ref(hh, params["g3"], params["b3"]), params["w3"], 3)
    return jnp.transpose(x + hh, (0, 4, 1, 2, 3))


if __name__ == "__main__":
    key = jax.random.PRNGKey(0)
    k_x, k_p = jax.random.split(key)

    N, C, D, H, W = 2, 8, 8, 8, 8      # in_depth=8 -> hidden_depth=2, out_depth=8
    x = jax.random.normal(k_x, (N, C, D, H, W), jnp.float32)
    params = init_params(k_p, C)

    out = jax.block_until_ready(resnet_block_forward(x, params))
    ref = _ref_forward(x, params)

    assert out.shape == (N, C, D, H, W)
    err = float(jnp.max(jnp.abs(out - ref)))
    assert bool(jnp.allclose(out, ref, atol=5e-2, rtol=5e-2)), f"max abs err {err}"

    print("KERNEL_OK")
</pallas_src>

<mosaic_0001>
module attributes {stable_mosaic.version = 11 : i64} {
  func.func @_bn_stats_kernel(%arg0: i32, %arg1: memref<1024x128xf32, #tpu.memory_space<vmem>>, %arg2: memref<2x128xf32, #tpu.memory_space<vmem>>) attributes {dimension_semantics = [#tpu.dimension_semantics<arbitrary>], iteration_bounds = array<i64: 1>, scalar_prefetch = 0 : i64, scratch_operands = 0 : i64, tpu.core_type = #tpu.core_type<tc>, window_params = [{transform_indices = @transform_0, window_bounds = array<i64: 1024, 128>}, {pipeline_mode = #tpu.pipeline_mode<synchronous>, transform_indices = @transform_1, window_bounds = array<i64: 2, 128>}]} {
    %c0_i32 = arith.constant 0 : i32
    %0 = arith.cmpi eq, %arg0, %c0_i32 : i32
    %1 = arith.extui %0 : i1 to i32
    %c0_i32_0 = arith.constant 0 : i32
    %2 = arith.cmpi ne, %1, %c0_i32_0 : i32
    scf.if %2 {
      %cst_7 = arith.constant 0.000000e+00 : f32
      %13 = vector.broadcast %cst_7 : f32 to vector<2x128xf32>
      %c0_8 = arith.constant 0 : index
      %c0_9 = arith.constant 0 : index
      %14 = vector.load %arg2[%c0_8, %c0_9] : memref<2x128xf32, #tpu.memory_space<vmem>>, vector<2x128xf32>
      tpu.vector_store %arg2[%c0_8, %c0_9], %13 {strides = array<i32>} : memref<2x128xf32, #tpu.memory_space<vmem>>, vector<2x128xf32>,
    } else {
    }
    %c0 = arith.constant 0 : index
    %c0_1 = arith.constant 0 : index
    %3 = vector.load %arg1[%c0, %c0_1] : memref<1024x128xf32, #tpu.memory_space<vmem>>, vector<1024x128xf32>
    %cst = arith.constant dense<0.000000e+00> : vector<128xf32>
    %4 = vector.multi_reduction <add>, %3, %cst [0] : vector<1024x128xf32> to vector<128xf32>
    %5 = vector.shape_cast %4 : vector<128xf32> to vector<1x128xf32>
    %6 = arith.mulf %3, %3 : vector<1024x128xf32>
    %cst_2 = arith.constant dense<0.000000e+00> : vector<128xf32>
    %7 = vector.multi_reduction <add>, %6, %cst_2 [0] : vector<1024x128xf32> to vector<128xf32>
    %8 = vector.shape_cast %7 : vector<128xf32> to vector<1x128xf32>
    %c0_3 = arith.constant 0 : index
    %c0_4 = arith.constant 0 : index
    %9 = vector.load %arg2[%c0_3, %c0_4] : memref<2x128xf32, #tpu.memory_space<vmem>>, vector<2x128xf32>
    %10 = tpu.concatenate %5, %8 in 0 : vector<1x128xf32>, vector<1x128xf32> -> vector<2x128xf32>
    %11 = arith.addf %9, %10 : vector<2x128xf32>
    %c0_5 = arith.constant 0 : index
    %c0_6 = arith.constant 0 : index
    %12 = vector.load %arg2[%c0_5, %c0_6] : memref<2x128xf32, #tpu.memory_space<vmem>>, vector<2x128xf32>
    tpu.vector_store %arg2[%c0_5, %c0_6], %11 {strides = array<i32>} : memref<2x128xf32, #tpu.memory_space<vmem>>, vector<2x128xf32>,
    return
  }
  func.func @transform_0(%arg0: i32) -> (i32, i32) {
    %c0_i32 = arith.constant 0 : i32
    %c0_i32_0 = arith.constant 0 : i32
    return %arg0, %c0_i32 : i32, i32
  }
  func.func @transform_1(%arg0: i32) -> (i32, i32) {
    %c0_i32 = arith.constant 0 : i32
    %c0_i32_0 = arith.constant 0 : i32
    %c0_i32_1 = arith.constant 0 : i32
    return %c0_i32, %c0_i32_0 : i32, i32
  }
}

module attributes {stable_mosaic.version = 11 : i64} {
  func.func @_bn_apply_kernel(%arg0: i32, %arg1: memref<1024x128xf32, #tpu.memory_space<vmem>>, %arg2: memref<2x128xf32, #tpu.memory_space<vmem>>, %arg3: memref<1x128xf32, #tpu.memory_space<vmem>>, %arg4: memref<1x128xf32, #tpu.memory_space<vmem>>, %arg5: memref<1024x128xbf16, #tpu.memory_space<vmem>>) attributes {dimension_semantics = [#tpu.dimension_semantics<parallel>], iteration_bounds = array<i64: 1>, scalar_prefetch = 0 : i64, scratch_operands = 0 : i64, tpu.core_type = #tpu.core_type<tc>, window_params = [{transform_indices = @transform_0, window_bounds = array<i64: 1024, 128>}, {pipeline_mode = #tpu.pipeline_mode<synchronous>, transform_indices = @transform_1, window_bounds = array<i64: 2, 128>}, {pipeline_mode = #tpu.pipeline_mode<synchronous>, transform_indices = @transform_2, window_bounds = array<i64: 1, 128>}, {pipeline_mode = #tpu.pipeline_mode<synchronous>, transform_indices = @transform_3, window_bounds = array<i64: 1, 128>}, {transform_indices = @transform_4, window_bounds = array<i64: 1024, 128>}]} {
    %c0 = arith.constant 0 : index
    %c0_0 = arith.constant 0 : index
    %0 = vector.load %arg1[%c0, %c0_0] : memref<1024x128xf32, #tpu.memory_space<vmem>>, vector<1024x128xf32>
    %c0_1 = arith.constant 0 : index
    %c0_2 = arith.constant 0 : index
    %1 = vector.load %arg2[%c0_1, %c0_2] : memref<2x128xf32, #tpu.memory_space<vmem>>, vector<1x128xf32>
    %cst = arith.constant 1.024000e+03 : f32
    %2 = vector.broadcast %cst : f32 to vector<1x128xf32>
    %3 = arith.divf %1, %2 : vector<1x128xf32>
    %c1 = arith.constant 1 : index
    %c0_3 = arith.constant 0 : index
    %4 = vector.load %arg2[%c1, %c0_3] : memref<2x128xf32, #tpu.memory_space<vmem>>, vector<1x128xf32>
    %cst_4 = arith.constant 1.024000e+03 : f32
    %5 = vector.broadcast %cst_4 : f32 to vector<1x128xf32>
    %6 = arith.divf %4, %5 : vector<1x128xf32>
    %7 = arith.mulf %3, %3 : vector<1x128xf32>
    %8 = arith.subf %6, %7 : vector<1x128xf32>
    %cst_5 = arith.constant 0.000000e+00 : f32
    %9 = vector.broadcast %cst_5 : f32 to vector<1x128xf32>
    %10 = arith.maximumf %8, %9 : vector<1x128xf32>
    %cst_6 = arith.constant 9.99999993E-9 : f32
    %11 = vector.broadcast %cst_6 : f32 to vector<1x128xf32>
    %12 = arith.addf %10, %11 : vector<1x128xf32>
    %13 = math.rsqrt %12 : vector<1x128xf32>
    %14 = vector.broadcast %3 : vector<1x128xf32> to vector<1024x128xf32>
    %15 = arith.subf %0, %14 : vector<1024x128xf32>
    %16 = vector.broadcast %13 : vector<1x128xf32> to vector<1024x128xf32>
    %17 = arith.mulf %15, %16 : vector<1024x128xf32>
    %c0_7 = arith.constant 0 : index
    %c0_8 = arith.constant 0 : index
    %18 = vector.load %arg3[%c0_7, %c0_8] : memref<1x128xf32, #tpu.memory_space<vmem>>, vector<1x128xf32>
    %19 = vector.broadcast %18 : vector<1x128xf32> to vector<1024x128xf32>
    %20 = arith.mulf %17, %19 : vector<1024x128xf32>
    %c0_9 = arith.constant 0 : index
    %c0_10 = arith.constant 0 : index
    %21 = vector.load %arg4[%c0_9, %c0_10] : memref<1x128xf32, #tpu.memory_space<vmem>>, vector<1x128xf32>
    %22 = vector.broadcast %21 : vector<1x128xf32> to vector<1024x128xf32>
    %23 = arith.addf %20, %22 : vector<1024x128xf32>
    %24 = arith.negf %23 : vector<1024x128xf32>
    %25 = math.exp %24 : vector<1024x128xf32>
    %cst_11 = arith.constant 1.000000e+00 : f32
    %26 = vector.broadcast %cst_11 : f32 to vector<1024x128xf32>
    %27 = arith.addf %26, %25 : vector<1024x128xf32>
    %28 = arith.divf %26, %27 : vector<1024x128xf32>
    %29 = arith.mulf %23, %28 : vector<1024x128xf32>
    %30 = arith.truncf %29 : vector<1024x128xf32> to vector<1024x128xbf16>
    %c0_12 = arith.constant 0 : index
    %c0_13 = arith.constant 0 : index
    %31 = vector.load %arg5[%c0_12, %c0_13] : memref<1024x128xbf16, #tpu.memory_space<vmem>>, vector<1024x128xbf16>
    tpu.vector_store %arg5[%c0_12, %c0_13], %30 {strides = array<i32>} : memref<1024x128xbf16, #tpu.memory_space<vmem>>, vector<1024x128xbf16>,
    return
  }
  func.func @transform_0(%arg0: i32) -> (i32, i32) {
    %c0_i32 = arith.constant 0 : i32
    %c0_i32_0 = arith.constant 0 : i32
    return %arg0, %c0_i32 : i32, i32
  }
  func.func @transform_1(%arg0: i32) -> (i32, i32) {
    %c0_i32 = arith.constant 0 : i32
    %c0_i32_0 = arith.constant 0 : i32
    %c0_i32_1 = arith.constant 0 : i32
    return %c0_i32, %c0_i32_0 : i32, i32
  }
  func.func @transform_2(%arg0: i32) -> (i32, i32) {
    %c0_i32 = arith.constant 0 : i32
    %c0_i32_0 = arith.constant 0 : i32
    %c0_i32_1 = arith.constant 0 : i32
    return %c0_i32, %c0_i32_0 : i32, i32
  }
  func.func @transform_3(%arg0: i32) -> (i32, i32) {
    %c0_i32 = arith.constant 0 : i32
    %c0_i32_0 = arith.constant 0 : i32
    %c0_i32_1 = arith.constant 0 : i32
    return %c0_i32, %c0_i32_0 : i32, i32
  }
  func.func @transform_4(%arg0: i32) -> (i32, i32) {
    %c0_i32 = arith.constant 0 : i32
    %c0_i32_0 = arith.constant 0 : i32
    return %arg0, %c0_i32 : i32, i32
  }
}

module attributes {stable_mosaic.version = 11 : i64} {
  func.func @_conv3_kernel(%arg0: i32, %arg1: i32, %arg2: i32, %arg3: memref<1x1x10x10x128xbf16, #tpu.memory_space<vmem>>, %arg4: memref<27x128x128xbf16, #tpu.memory_space<vmem>>, %arg5: memref<1x1x64x128xf32, #tpu.memory_space<vmem>>, %arg6: memref<64x128xf32, #tpu.memory_space<vmem>>) attributes {dimension_semantics = [#tpu.dimension_semantics<parallel>, #tpu.dimension_semantics<parallel>, #tpu.dimension_semantics<arbitrary>], iteration_bounds = array<i64: 2, 8, 3>, scalar_prefetch = 0 : i64, scratch_operands = 1 : i64, tpu.core_type = #tpu.core_type<tc>, window_params = [{transform_indices = @transform_0, window_bounds = array<i64: 1, 1, 10, 10, 128>}, {pipeline_mode = #tpu.pipeline_mode<synchronous>, transform_indices = @transform_1, window_bounds = array<i64: 27, 128, 128>}, {transform_indices = @transform_2, window_bounds = array<i64: 1, 1, 64, 128>}]} {
    %c0_i32 = arith.constant 0 : i32
    %0 = arith.cmpi eq, %arg2, %c0_i32 : i32
    %1 = arith.extui %0 : i1 to i32
    %c0_i32_0 = arith.constant 0 : i32
    %2 = arith.cmpi ne, %1, %c0_i32_0 : i32
    scf.if %2 {
      %cst_76 = arith.constant 0.000000e+00 : f32
      %108 = vector.broadcast %cst_76 : f32 to vector<64x128xf32>
      %c0_77 = arith.constant 0 : index
      %c0_78 = arith.constant 0 : index
      %109 = vector.load %arg6[%c0_77, %c0_78] : memref<64x128xf32, #tpu.memory_space<vmem>>, vector<64x128xf32>
      tpu.vector_store %arg6[%c0_77, %c0_78], %108 {strides = array<i32>} : memref<64x128xf32, #tpu.memory_space<vmem>>, vector<64x128xf32>,
    } else {
    }
    %c9_i32 = arith.constant 9 : i32
    %3 = arith.muli %arg2, %c9_i32 : i32
    %c0 = arith.constant 0 : index
    %c0_1 = arith.constant 0 : index
    %4 = vector.load %arg6[%c0, %c0_1] : memref<64x128xf32, #tpu.memory_space<vmem>>, vector<64x128xf32>
    %c0_2 = arith.constant 0 : index
    %c0_3 = arith.constant 0 : index
    %c0_4 = arith.constant 0 : index
    %c0_5 = arith.constant 0 : index
    %c0_6 = arith.constant 0 : index
    %5 = vector.load %arg3[%c0_2, %c0_3, %c0_4, %c0_5, %c0_6] : memref<1x1x10x10x128xbf16, #tpu.memory_space<vmem>>, vector<1x1x8x8x128xbf16>
    %6 = vector.shape_cast %5 : vector<1x1x8x8x128xbf16> to vector<8x8x128xbf16>
    %7 = arith.extf %6 : vector<8x8x128xbf16> to vector<8x8x128xf32>
    %8 = vector.shape_cast %7 : vector<8x8x128xf32> to vector<64x128xf32>
    %9 = arith.truncf %8 : vector<64x128xf32> to vector<64x128xbf16>
    %c0_i32_7 = arith.constant 0 : i32
    %10 = arith.addi %3, %c0_i32_7 : i32
    %11 = arith.index_cast %10 : i32 to index
    %c0_8 = arith.constant 0 : index
    %c0_9 = arith.constant 0 : index
    %12 = vector.load %arg4[%11, %c0_8, %c0_9] : memref<27x128x128xbf16, #tpu.memory_space<vmem>>, vector<1x128x128xbf16>
    %13 = vector.shape_cast %12 : vector<1x128x128xbf16> to vector<128x128xbf16>
    %cst = arith.constant dense<0.000000e+00> : vector<64x128xf32>
    %14 = tpu.matmul %9, %13, %cst {dimension_numbers = #tpu.dot_dimension_numbers<[1], [0], [0], [1], [0, 0, 1, 1], [], []>} : vector<64x128xbf16>, vector<128x128xbf16>, vector<64x128xf32> -> vector<64x128xf32>
    %15 = arith.addf %4, %14 : vector<64x128xf32>
    %c0_10 = arith.constant 0 : index
    %c0_11 = arith.constant 0 : index
    %c0_12 = arith.constant 0 : index
    %c1 = arith.constant 1 : index
    %c0_13 = arith.constant 0 : index
    %16 = vector.load %arg3[%c0_10, %c0_11, %c0_12, %c1, %c0_13] : memref<1x1x10x10x128xbf16, #tpu.memory_space<vmem>>, vector<1x1x8x8x128xbf16>
    %17 = vector.shape_cast %16 : vector<1x1x8x8x128xbf16> to vector<8x8x128xbf16>
    %18 = arith.extf %17 : vector<8x8x128xbf16> to vector<8x8x128xf32>
    %19 = vector.shape_cast %18 : vector<8x8x128xf32> to vector<64x128xf32>
    %20 = arith.truncf %19 : vector<64x128xf32> to vector<64x128xbf16>
    %c1_i32 = arith.constant 1 : i32
    %21 = arith.addi %3, %c1_i32 : i32
    %22 = arith.index_cast %21 : i32 to index
    %c0_14 = arith.constant 0 : index
    %c0_15 = arith.constant 0 : index
    %23 = vector.load %arg4[%22, %c0_14, %c0_15] : memref<27x128x128xbf16, #tpu.memory_space<vmem>>, vector<1x128x128xbf16>
    %24 = vector.shape_cast %23 : vector<1x128x128xbf16> to vector<128x128xbf16>
    %cst_16 = arith.constant dense<0.000000e+00> : vector<64x128xf32>
    %25 = tpu.matmul %20, %24, %cst_16 {dimension_numbers = #tpu.dot_dimension_numbers<[1], [0], [0], [1], [0, 0, 1, 1], [], []>} : vector<64x128xbf16>, vector<128x128xbf16>, vector<64x128xf32> -> vector<64x128xf32>
    %26 = arith.addf %15, %25 : vector<64x128xf32>
    %c0_17 = arith.constant 0 : index
    %c0_18 = arith.constant 0 : index
    %c0_19 = arith.constant 0 : index
    %c2 = arith.constant 2 : index
    %c0_20 = arith.constant 0 : index
    %27 = vector.load %arg3[%c0_17, %c0_18, %c0_19, %c2, %c0_20] : memref<1x1x10x10x128xbf16, #tpu.memory_space<vmem>>, vector<1x1x8x8x128xbf16>
    %28 = vector.shape_cast %27 : vector<1x1x8x8x128xbf16> to vector<8x8x128xbf16>
    %29 = arith.extf %28 : vector<8x8x128xbf16> to vector<8x8x128xf32>
    %30 = vector.shape_cast %29 : vector<8x8x128xf32> to vector<64x128xf32>
    %31 = arith.truncf %30 : vector<64x128xf32> to vector<64x128xbf16>
    %c2_i32 = arith.constant 2 : i32
    %32 = arith.addi %3, %c2_i32 : i32
    %33 = arith.index_cast %32 : i32 to index
    %c0_21 = arith.constant 0 : index
    %c0_22 = arith.constant 0 : index
    %34 = vector.load %arg4[%33, %c0_21, %c0_22] : memref<27x128x128xbf16, #tpu.memory_space<vmem>>, vector<1x128x128xbf16>
    %35 = vector.shape_cast %34 : vector<1x128x128xbf16> to vector<128x128xbf16>
    %cst_23 = arith.constant dense<0.000000e+00> : vector<64x128xf32>
    %36 = tpu.matmul %31, %35, %cst_23 {dimension_numbers = #tpu.dot_dimension_numbers<[1], [0], [0], [1], [0, 0, 1, 1], [], []>} : vector<64x128xbf16>, vector<128x128xbf16>, vector<64x128xf32> -> vector<64x128xf32>
    %37 = arith.addf %26, %36 : vector<64x128xf32>
    %c0_24 = arith.constant 0 : index
    %c0_25 = arith.constant 0 : index
    %c1_26 = arith.constant 1 : index
    %c0_27 = arith.constant 0 : index
    %c0_28 = arith.constant 0 : index
    %38 = vector.load %arg3[%c0_24, %c0_25, %c1_26, %c0_27, %c0_28] : memref<1x1x10x10x128xbf16, #tpu.memory_space<vmem>>, vector<1x1x8x8x128xbf16>
    %39 = vector.shape_cast %38 : vector<1x1x8x8x128xbf16> to vector<8x8x128xbf16>
    %40 = arith.extf %39 : vector<8x8x128xbf16> to vector<8x8x128xf32>
    %41 = vector.shape_cast %40 : vector<8x8x128xf32> to vector<64x128xf32>
    %42 = arith.truncf %41 : vector<64x128xf32> to vector<64x128xbf16>
    %c3_i32 = arith.constant 3 : i32
    %43 = arith.addi %3, %c3_i32 : i32
    %44 = arith.index_cast %43 : i32 to index
    %c0_29 = arith.constant 0 : index
    %c0_30 = arith.constant 0 : index
    %45 = vector.load %arg4[%44, %c0_29, %c0_30] : memref<27x128x128xbf16, #tpu.memory_space<vmem>>, vector<1x128x128xbf16>
    %46 = vector.shape_cast %45 : vector<1x128x128xbf16> to vector<128x128xbf16>
    %cst_31 = arith.constant dense<0.000000e+00> : vector<64x128xf32>
    %47 = tpu.matmul %42, %46, %cst_31 {dimension_numbers = #tpu.dot_dimension_numbers<[1], [0], [0], [1], [0, 0, 1, 1], [], []>} : vector<64x128xbf16>, vector<128x128xbf16>, vector<64x128xf32> -> vector<64x128xf32>
    %48 = arith.addf %37, %47 : vector<64x128xf32>
    %c0_32 = arith.constant 0 : index
    %c0_33 = arith.constant 0 : index
    %c1_34 = arith.constant 1 : index
    %c1_35 = arith.constant 1 : index
    %c0_36 = arith.constant 0 : index
    %49 = vector.load %arg3[%c0_32, %c0_33, %c1_34, %c1_35, %c0_36] : memref<1x1x10x10x128xbf16, #tpu.memory_space<vmem>>, vector<1x1x8x8x128xbf16>
    %50 = vector.shape_cast %49 : vector<1x1x8x8x128xbf16> to vector<8x8x128xbf16>
    %51 = arith.extf %50 : vector<8x8x128xbf16> to vector<8x8x128xf32>
    %52 = vector.shape_cast %51 : vector<8x8x128xf32> to vector<64x128xf32>
    %53 = arith.truncf %52 : vector<64x128xf32> to vector<64x128xbf16>
    %c4_i32 = arith.constant 4 : i32
    %54 = arith.addi %3, %c4_i32 : i32
    %55 = arith.index_cast %54 : i32 to index
    %c0_37 = arith.constant 0 : index
    %c0_38 = arith.constant 0 : index
    %56 = vector.load %arg4[%55, %c0_37, %c0_38] : memref<27x128x128xbf16, #tpu.memory_space<vmem>>, vector<1x128x128xbf16>
    %57 = vector.shape_cast %56 : vector<1x128x128xbf16> to vector<128x128xbf16>
    %cst_39 = arith.constant dense<0.000000e+00> : vector<64x128xf32>
    %58 = tpu.matmul %53, %57, %cst_39 {dimension_numbers = #tpu.dot_dimension_numbers<[1], [0], [0], [1], [0, 0, 1, 1], [], []>} : vector<64x128xbf16>, vector<128x128xbf16>, vector<64x128xf32> -> vector<64x128xf32>
    %59 = arith.addf %48, %58 : vector<64x128xf32>
    %c0_40 = arith.constant 0 : index
    %c0_41 = arith.constant 0 : index
    %c1_42 = arith.constant 1 : index
    %c2_43 = arith.constant 2 : index
    %c0_44 = arith.constant 0 : index
    %60 = vector.load %arg3[%c0_40, %c0_41, %c1_42, %c2_43, %c0_44] : memref<1x1x10x10x128xbf16, #tpu.memory_space<vmem>>, vector<1x1x8x8x128xbf16>
    %61 = vector.shape_cast %60 : vector<1x1x8x8x128xbf16> to vector<8x8x128xbf16>
    %62 = arith.extf %61 : vector<8x8x128xbf16> to vector<8x8x128xf32>
    %63 = vector.shape_cast %62 : vector<8x8x128xf32> to vector<64x128xf32>
    %64 = arith.truncf %63 : vector<64x128xf32> to vector<64x128xbf16>
    %c5_i32 = arith.constant 5 : i32
    %65 = arith.addi %3, %c5_i32 : i32
    %66 = arith.index_cast %65 : i32 to index
    %c0_45 = arith.constant 0 : index
    %c0_46 = arith.constant 0 : index
    %67 = vector.load %arg4[%66, %c0_45, %c0_46] : memref<27x128x128xbf16, #tpu.memory_space<vmem>>, vector<1x128x128xbf16>
    %68 = vector.shape_cast %67 : vector<1x128x128xbf16> to vector<128x128xbf16>
    %cst_47 = arith.constant dense<0.000000e+00> : vector<64x128xf32>
    %69 = tpu.matmul %64, %68, %cst_47 {dimension_numbers = #tpu.dot_dimension_numbers<[1], [0], [0], [1], [0, 0, 1, 1], [], []>} : vector<64x128xbf16>, vector<128x128xbf16>, vector<64x128xf32> -> vector<64x128xf32>
    %70 = arith.addf %59, %69 : vector<64x128xf32>
    %c0_48 = arith.constant 0 : index
    %c0_49 = arith.constant 0 : index
    %c2_50 = arith.constant 2 : index
    %c0_51 = arith.constant 0 : index
    %c0_52 = arith.constant 0 : index
    %71 = vector.load %arg3[%c0_48, %c0_49, %c2_50, %c0_51, %c0_52] : memref<1x1x10x10x128xbf16, #tpu.memory_space<vmem>>, vector<1x1x8x8x128xbf16>
    %72 = vector.shape_cast %71 : vector<1x1x8x8x128xbf16> to vector<8x8x128xbf16>
    %73 = arith.extf %72 : vector<8x8x128xbf16> to vector<8x8x128xf32>
    %74 = vector.shape_cast %73 : vector<8x8x128xf32> to vector<64x128xf32>
    %75 = arith.truncf %74 : vector<64x128xf32> to vector<64x128xbf16>
    %c6_i32 = arith.constant 6 : i32
    %76 = arith.addi %3, %c6_i32 : i32
    %77 = arith.index_cast %76 : i32 to index
    %c0_53 = arith.constant 0 : index
    %c0_54 = arith.constant 0 : index
    %78 = vector.load %arg4[%77, %c0_53, %c0_54] : memref<27x128x128xbf16, #tpu.memory_space<vmem>>, vector<1x128x128xbf16>
    %79 = vector.shape_cast %78 : vector<1x128x128xbf16> to vector<128x128xbf16>
    %cst_55 = arith.constant dense<0.000000e+00> : vector<64x128xf32>
    %80 = tpu.matmul %75, %79, %cst_55 {dimension_numbers = #tpu.dot_dimension_numbers<[1], [0], [0], [1], [0, 0, 1, 1], [], []>} : vector<64x128xbf16>, vector<128x128xbf16>, vector<64x128xf32> -> vector<64x128xf32>
    %81 = arith.addf %70, %80 : vector<64x128xf32>
    %c0_56 = arith.constant 0 : index
    %c0_57 = arith.constant 0 : index
    %c2_58 = arith.constant 2 : index
    %c1_59 = arith.constant 1 : index
    %c0_60 = arith.constant 0 : index
    %82 = vector.load %arg3[%c0_56, %c0_57, %c2_58, %c1_59, %c0_60] : memref<1x1x10x10x128xbf16, #tpu.memory_space<vmem>>, vector<1x1x8x8x128xbf16>
    %83 = vector.shape_cast %82 : vector<1x1x8x8x128xbf16> to vector<8x8x128xbf16>
    %84 = arith.extf %83 : vector<8x8x128xbf16> to vector<8x8x128xf32>
    %85 = vector.shape_cast %84 : vector<8x8x128xf32> to vector<64x128xf32>
    %86 = arith.truncf %85 : vector<64x128xf32> to vector<64x128xbf16>
    %c7_i32 = arith.constant 7 : i32
    %87 = arith.addi %3, %c7_i32 : i32
    %88 = arith.index_cast %87 : i32 to index
    %c0_61 = arith.constant 0 : index
    %c0_62 = arith.constant 0 : index
    %89 = vector.load %arg4[%88, %c0_61, %c0_62] : memref<27x128x128xbf16, #tpu.memory_space<vmem>>, vector<1x128x128xbf16>
    %90 = vector.shape_cast %89 : vector<1x128x128xbf16> to vector<128x128xbf16>
    %cst_63 = arith.constant dense<0.000000e+00> : vector<64x128xf32>
    %91 = tpu.matmul %86, %90, %cst_63 {dimension_numbers = #tpu.dot_dimension_numbers<[1], [0], [0], [1], [0, 0, 1, 1], [], []>} : vector<64x128xbf16>, vector<128x128xbf16>, vector<64x128xf32> -> vector<64x128xf32>
    %92 = arith.addf %81, %91 : vector<64x128xf32>
    %c0_64 = arith.constant 0 : index
    %c0_65 = arith.constant 0 : index
    %c2_66 = arith.constant 2 : index
    %c2_67 = arith.constant 2 : index
    %c0_68 = arith.constant 0 : index
    %93 = vector.load %arg3[%c0_64, %c0_65, %c2_66, %c2_67, %c0_68] : memref<1x1x10x10x128xbf16, #tpu.memory_space<vmem>>, vector<1x1x8x8x128xbf16>
    %94 = vector.shape_cast %93 : vector<1x1x8x8x128xbf16> to vector<8x8x128xbf16>
    %95 = arith.extf %94 : vector<8x8x128xbf16> to vector<8x8x128xf32>
    %96 = vector.shape_cast %95 : vector<8x8x128xf32> to vector<64x128xf32>
    %97 = arith.truncf %96 : vector<64x128xf32> to vector<64x128xbf16>
    %c8_i32 = arith.constant 8 : i32
    %98 = arith.addi %3, %c8_i32 : i32
    %99 = arith.index_cast %98 : i32 to index
    %c0_69 = arith.constant 0 : index
    %c0_70 = arith.constant 0 : index
    %100 = vector.load %arg4[%99, %c0_69, %c0_70] : memref<27x128x128xbf16, #tpu.memory_space<vmem>>, vector<1x128x128xbf16>
    %101 = vector.shape_cast %100 : vector<1x128x128xbf16> to vector<128x128xbf16>
    %cst_71 = arith.constant dense<0.000000e+00> : vector<64x128xf32>
    %102 = tpu.matmul %97, %101, %cst_71 {dimension_numbers = #tpu.dot_dimension_numbers<[1], [0], [0], [1], [0, 0, 1, 1], [], []>} : vector<64x128xbf16>, vector<128x128xbf16>, vector<64x128xf32> -> vector<64x128xf32>
    %103 = arith.addf %92, %102 : vector<64x128xf32>
    %c0_72 = arith.constant 0 : index
    %c0_73 = arith.constant 0 : index
    %104 = vector.load %arg6[%c0_72, %c0_73] : memref<64x128xf32, #tpu.memory_space<vmem>>, vector<64x128xf32>
    tpu.vector_store %arg6[%c0_72, %c0_73], %103 {strides = array<i32>} : memref<64x128xf32, #tpu.memory_space<vmem>>, vector<64x128xf32>,
    %c2_i32_74 = arith.constant 2 : i32
    %105 = arith.cmpi eq, %arg2, %c2_i32_74 : i32
    %106 = arith.extui %105 : i1 to i32
    %c0_i32_75 = arith.constant 0 : i32
    %107 = arith.cmpi ne, %106, %c0_i32_75 : i32
    scf.if %107 {
      %c0_76 = arith.constant 0 : index
      %c0_77 = arith.constant 0 : index
      %108 = vector.load %arg6[%c0_76, %c0_77] : memref<64x128xf32, #tpu.memory_space<vmem>>, vector<64x128xf32>
      %109 = vector.shape_cast %108 : vector<64x128xf32> to vector<1x1x64x128xf32>
      %c0_78 = arith.constant 0 : index
      %c0_79 = arith.constant 0 : index
      %c0_80 = arith.constant 0 : index
      %c0_81 = arith.constant 0 : index
      %110 = vector.load %arg5[%c0_78, %c0_79, %c0_80, %c0_81] : memref<1x1x64x128xf32, #tpu.memory_space<vmem>>, vector<1x1x64x128xf32>
      tpu.vector_store %arg5[%c0_78, %c0_79, %c0_80, %c0_81], %109 {strides = array<i32>} : memref<1x1x64x128xf32, #tpu.memory_space<vmem>>, vector<1x1x64x128xf32>,
    } else {
    }
    return
  }
  func.func @transform_0(%arg0: i32, %arg1: i32, %arg2: i32) -> (i32, i32, i32, i32, i32) {
    %0 = arith.addi %arg1, %arg2 : i32
    %c0_i32 = arith.constant 0 : i32
    %c0_i32_0 = arith.constant 0 : i32
    %c0_i32_1 = arith.constant 0 : i32
    %c0_i32_2 = arith.constant 0 : i32
    return %arg0, %0, %c0_i32, %c0_i32_0, %c0_i32_1 : i32, i32, i32, i32, i32
  }
  func.func @transform_1(%arg0: i32, %arg1: i32, %arg2: i32) -> (i32, i32, i32) {
    %c0_i32 = arith.constant 0 : i32
    %c0_i32_0 = arith.constant 0 : i32
    %c0_i32_1 = arith.constant 0 : i32
    %c0_i32_2 = arith.constant 0 : i32
    return %c0_i32, %c0_i32_0, %c0_i32_1 : i32, i32, i32
  }
  func.func @transform_2(%arg0: i32, %arg1: i32, %arg2: i32) -> (i32, i32, i32, i32) {
    %c0_i32 = arith.constant 0 : i32
    %c0_i32_0 = arith.constant 0 : i32
    %c0_i32_1 = arith.constant 0 : i32
    return %arg0, %arg1, %c0_i32, %c0_i32_0 : i32, i32, i32, i32
  }
}

module attributes {stable_mosaic.version = 11 : i64} {
  func.func @_bn_swish_matmul_kernel(%arg0: i32, %arg1: memref<1024x128xf32, #tpu.memory_space<vmem>>, %arg2: memref<2x128xf32, #tpu.memory_space<vmem>>, %arg3: memref<1x128xf32, #tpu.memory_space<vmem>>, %arg4: memref<1x128xf32, #tpu.memory_space<vmem>>, %arg5: memref<128x128xbf16, #tpu.memory_space<vmem>>, %arg6: memref<1024x128xf32, #tpu.memory_space<vmem>>) attributes {dimension_semantics = [#tpu.dimension_semantics<parallel>], iteration_bounds = array<i64: 1>, scalar_prefetch = 0 : i64, scratch_operands = 0 : i64, tpu.core_type = #tpu.core_type<tc>, window_params = [{transform_indices = @transform_0, window_bounds = array<i64: 1024, 128>}, {pipeline_mode = #tpu.pipeline_mode<synchronous>, transform_indices = @transform_1, window_bounds = array<i64: 2, 128>}, {pipeline_mode = #tpu.pipeline_mode<synchronous>, transform_indices = @transform_2, window_bounds = array<i64: 1, 128>}, {pipeline_mode = #tpu.pipeline_mode<synchronous>, transform_indices = @transform_3, window_bounds = array<i64: 1, 128>}, {pipeline_mode = #tpu.pipeline_mode<synchronous>, transform_indices = @transform_4, window_bounds = array<i64: 128, 128>}, {transform_indices = @transform_5, window_bounds = array<i64: 1024, 128>}]} {
    %c0 = arith.constant 0 : index
    %c0_0 = arith.constant 0 : index
    %0 = vector.load %arg1[%c0, %c0_0] : memref<1024x128xf32, #tpu.memory_space<vmem>>, vector<1024x128xf32>
    %c0_1 = arith.constant 0 : index
    %c0_2 = arith.constant 0 : index
    %1 = vector.load %arg2[%c0_1, %c0_2] : memref<2x128xf32, #tpu.memory_space<vmem>>, vector<1x128xf32>
    %cst = arith.constant 1.024000e+03 : f32
    %2 = vector.broadcast %cst : f32 to vector<1x128xf32>
    %3 = arith.divf %1, %2 : vector<1x128xf32>
    %c1 = arith.constant 1 : index
    %c0_3 = arith.constant 0 : index
    %4 = vector.load %arg2[%c1, %c0_3] : memref<2x128xf32, #tpu.memory_space<vmem>>, vector<1x128xf32>
    %cst_4 = arith.constant 1.024000e+03 : f32
    %5 = vector.broadcast %cst_4 : f32 to vector<1x128xf32>
    %6 = arith.divf %4, %5 : vector<1x128xf32>
    %7 = arith.mulf %3, %3 : vector<1x128xf32>
    %8 = arith.subf %6, %7 : vector<1x128xf32>
    %cst_5 = arith.constant 0.000000e+00 : f32
    %9 = vector.broadcast %cst_5 : f32 to vector<1x128xf32>
    %10 = arith.maximumf %8, %9 : vector<1x128xf32>
    %cst_6 = arith.constant 9.99999993E-9 : f32
    %11 = vector.broadcast %cst_6 : f32 to vector<1x128xf32>
    %12 = arith.addf %10, %11 : vector<1x128xf32>
    %13 = math.rsqrt %12 : vector<1x128xf32>
    %14 = vector.broadcast %3 : vector<1x128xf32> to vector<1024x128xf32>
    %15 = arith.subf %0, %14 : vector<1024x128xf32>
    %16 = vector.broadcast %13 : vector<1x128xf32> to vector<1024x128xf32>
    %17 = arith.mulf %15, %16 : vector<1024x128xf32>
    %c0_7 = arith.constant 0 : index
    %c0_8 = arith.constant 0 : index
    %18 = vector.load %arg3[%c0_7, %c0_8] : memref<1x128xf32, #tpu.memory_space<vmem>>, vector<1x128xf32>
    %19 = vector.broadcast %18 : vector<1x128xf32> to vector<1024x128xf32>
    %20 = arith.mulf %17, %19 : vector<1024x128xf32>
    %c0_9 = arith.constant 0 : index
    %c0_10 = arith.constant 0 : index
    %21 = vector.load %arg4[%c0_9, %c0_10] : memref<1x128xf32, #tpu.memory_space<vmem>>, vector<1x128xf32>
    %22 = vector.broadcast %21 : vector<1x128xf32> to vector<1024x128xf32>
    %23 = arith.addf %20, %22 : vector<1024x128xf32>
    %24 = arith.negf %23 : vector<1024x128xf32>
    %25 = math.exp %24 : vector<1024x128xf32>
    %cst_11 = arith.constant 1.000000e+00 : f32
    %26 = vector.broadcast %cst_11 : f32 to vector<1024x128xf32>
    %27 = arith.addf %26, %25 : vector<1024x128xf32>
    %28 = arith.divf %26, %27 : vector<1024x128xf32>
    %29 = arith.mulf %23, %28 : vector<1024x128xf32>
    %30 = arith.truncf %29 : vector<1024x128xf32> to vector<1024x128xbf16>
    %c0_12 = arith.constant 0 : index
    %c0_13 = arith.constant 0 : index
    %31 = vector.load %arg5[%c0_12, %c0_13] : memref<128x128xbf16, #tpu.memory_space<vmem>>, vector<128x128xbf16>
    %cst_14 = arith.constant dense<0.000000e+00> : vector<1024x128xf32>
    %32 = tpu.matmul %30, %31, %cst_14 {dimension_numbers = #tpu.dot_dimension_numbers<[1], [0], [0], [1], [0, 0, 1, 1], [], []>} : vector<1024x128xbf16>, vector<128x128xbf16>, vector<1024x128xf32> -> vector<1024x128xf32>
    %c0_15 = arith.constant 0 : index
    %c0_16 = arith.constant 0 : index
    %33 = vector.load %arg6[%c0_15, %c0_16] : memref<1024x128xf32, #tpu.memory_space<vmem>>, vector<1024x128xf32>
    tpu.vector_store %arg6[%c0_15, %c0_16], %32 {strides = array<i32>} : memref<1024x128xf32, #tpu.memory_space<vmem>>, vector<1024x128xf32>,
    return
  }
  func.func @transform_0(%arg0: i32) -> (i32, i32) {
    %c0_i32 = arith.constant 0 : i32
    %c0_i32_0 = arith.constant 0 : i32
    return %arg0, %c0_i32 : i32, i32
  }
  func.func @transform_1(%arg0: i32) -> (i32, i32) {
    %c0_i32 = arith.constant 0 : i32
    %c0_i32_0 = arith.constant 0 : i32
    %c0_i32_1 = arith.constant 0 : i32
    return %c0_i32, %c0_i32_0 : i32, i32
  }
  func.func @transform_2(%arg0: i32) -> (i32, i32) {
    %c0_i32 = arith.constant 0 : i32
    %c0_i32_0 = arith.constant 0 : i32
    %c0_i32_1 = arith.constant 0 : i32
    return %c0_i32, %c0_i32_0 : i32, i32
  }
  func.func @transform_3(%arg0: i32) -> (i32, i32) {
    %c0_i32 = arith.constant 0 : i32
    %c0_i32_0 = arith.constant 0 : i32
    %c0_i32_1 = arith.constant 0 : i32
    return %c0_i32, %c0_i32_0 : i32, i32
  }
  func.func @transform_4(%arg0: i32) -> (i32, i32) {
    %c0_i32 = arith.constant 0 : i32
    %c0_i32_0 = arith.constant 0 : i32
    %c0_i32_1 = arith.constant 0 : i32
    return %c0_i32, %c0_i32_0 : i32, i32
  }
  func.func @transform_5(%arg0: i32) -> (i32, i32) {
    %c0_i32 = arith.constant 0 : i32
    %c0_i32_0 = arith.constant 0 : i32
    return %arg0, %c0_i32 : i32, i32
  }
}

module attributes {stable_mosaic.version = 11 : i64} {
  func.func @_conv3_res_kernel(%arg0: i32, %arg1: i32, %arg2: i32, %arg3: memref<1x1x10x10x128xbf16, #tpu.memory_space<vmem>>, %arg4: memref<27x128x128xbf16, #tpu.memory_space<vmem>>, %arg5: memref<1x1x64x128xf32, #tpu.memory_space<vmem>>, %arg6: memref<1x1x64x128xf32, #tpu.memory_space<vmem>>, %arg7: memref<64x128xf32, #tpu.memory_space<vmem>>) attributes {dimension_semantics = [#tpu.dimension_semantics<parallel>, #tpu.dimension_semantics<parallel>, #tpu.dimension_semantics<arbitrary>], iteration_bounds = array<i64: 2, 8, 3>, scalar_prefetch = 0 : i64, scratch_operands = 1 : i64, tpu.core_type = #tpu.core_type<tc>, window_params = [{transform_indices = @transform_0, window_bounds = array<i64: 1, 1, 10, 10, 128>}, {pipeline_mode = #tpu.pipeline_mode<synchronous>, transform_indices = @transform_1, window_bounds = array<i64: 27, 128, 128>}, {transform_indices = @transform_2, window_bounds = array<i64: 1, 1, 64, 128>}, {transform_indices = @transform_3, window_bounds = array<i64: 1, 1, 64, 128>}]} {
    %c0_i32 = arith.constant 0 : i32
    %0 = arith.cmpi eq, %arg2, %c0_i32 : i32
    %1 = arith.extui %0 : i1 to i32
    %c0_i32_0 = arith.constant 0 : i32
    %2 = arith.cmpi ne, %1, %c0_i32_0 : i32
    scf.if %2 {
      %cst_76 = arith.constant 0.000000e+00 : f32
      %108 = vector.broadcast %cst_76 : f32 to vector<64x128xf32>
      %c0_77 = arith.constant 0 : index
      %c0_78 = arith.constant 0 : index
      %109 = vector.load %arg7[%c0_77, %c0_78] : memref<64x128xf32, #tpu.memory_space<vmem>>, vector<64x128xf32>
      tpu.vector_store %arg7[%c0_77, %c0_78], %108 {strides = array<i32>} : memref<64x128xf32, #tpu.memory_space<vmem>>, vector<64x128xf32>,
    } else {
    }
    %c9_i32 = arith.constant 9 : i32
    %3 = arith.muli %arg2, %c9_i32 : i32
    %c0 = arith.constant 0 : index
    %c0_1 = arith.constant 0 : index
    %4 = vector.load %arg7[%c0, %c0_1] : memref<64x128xf32, #tpu.memory_space<vmem>>, vector<64x128xf32>
    %c0_2 = arith.constant 0 : index
    %c0_3 = arith.constant 0 : index
    %c0_4 = arith.constant 0 : index
    %c0_5 = arith.constant 0 : index
    %c0_6 = arith.constant 0 : index
    %5 = vector.load %arg3[%c0_2, %c0_3, %c0_4, %c0_5, %c0_6] : memref<1x1x10x10x128xbf16, #tpu.memory_space<vmem>>, vector<1x1x8x8x128xbf16>
    %6 = vector.shape_cast %5 : vector<1x1x8x8x128xbf16> to vector<8x8x128xbf16>
    %7 = arith.extf %6 : vector<8x8x128xbf16> to vector<8x8x128xf32>
    %8 = vector.shape_cast %7 : vector<8x8x128xf32> to vector<64x128xf32>
    %9 = arith.truncf %8 : vector<64x128xf32> to vector<64x128xbf16>
    %c0_i32_7 = arith.constant 0 : i32
    %10 = arith.addi %3, %c0_i32_7 : i32
    %11 = arith.index_cast %10 : i32 to index
    %c0_8 = arith.constant 0 : index
    %c0_9 = arith.constant 0 : index
    %12 = vector.load %arg4[%11, %c0_8, %c0_9] : memref<27x128x128xbf16, #tpu.memory_space<vmem>>, vector<1x128x128xbf16>
    %13 = vector.shape_cast %12 : vector<1x128x128xbf16> to vector<128x128xbf16>
    %cst = arith.constant dense<0.000000e+00> : vector<64x128xf32>
    %14 = tpu.matmul %9, %13, %cst {dimension_numbers = #tpu.dot_dimension_numbers<[1], [0], [0], [1], [0, 0, 1, 1], [], []>} : vector<64x128xbf16>, vector<128x128xbf16>, vector<64x128xf32> -> vector<64x128xf32>
    %15 = arith.addf %4, %14 : vector<64x128xf32>
    %c0_10 = arith.constant 0 : index
    %c0_11 = arith.constant 0 : index
    %c0_12 = arith.constant 0 : index
    %c1 = arith.constant 1 : index
    %c0_13 = arith.constant 0 : index
    %16 = vector.load %arg3[%c0_10, %c0_11, %c0_12, %c1, %c0_13] : memref<1x1x10x10x128xbf16, #tpu.memory_space<vmem>>, vector<1x1x8x8x128xbf16>
    %17 = vector.shape_cast %16 : vector<1x1x8x8x128xbf16> to vector<8x8x128xbf16>
    %18 = arith.extf %17 : vector<8x8x128xbf16> to vector<8x8x128xf32>
    %19 = vector.shape_cast %18 : vector<8x8x128xf32> to vector<64x128xf32>
    %20 = arith.truncf %19 : vector<64x128xf32> to vector<64x128xbf16>
    %c1_i32 = arith.constant 1 : i32
    %21 = arith.addi %3, %c1_i32 : i32
    %22 = arith.index_cast %21 : i32 to index
    %c0_14 = arith.constant 0 : index
    %c0_15 = arith.constant 0 : index
    %23 = vector.load %arg4[%22, %c0_14, %c0_15] : memref<27x128x128xbf16, #tpu.memory_space<vmem>>, vector<1x128x128xbf16>
    %24 = vector.shape_cast %23 : vector<1x128x128xbf16> to vector<128x128xbf16>
    %cst_16 = arith.constant dense<0.000000e+00> : vector<64x128xf32>
    %25 = tpu.matmul %20, %24, %cst_16 {dimension_numbers = #tpu.dot_dimension_numbers<[1], [0], [0], [1], [0, 0, 1, 1], [], []>} : vector<64x128xbf16>, vector<128x128xbf16>, vector<64x128xf32> -> vector<64x128xf32>
    %26 = arith.addf %15, %25 : vector<64x128xf32>
    %c0_17 = arith.constant 0 : index
    %c0_18 = arith.constant 0 : index
    %c0_19 = arith.constant 0 : index
    %c2 = arith.constant 2 : index
    %c0_20 = arith.constant 0 : index
    %27 = vector.load %arg3[%c0_17, %c0_18, %c0_19, %c2, %c0_20] : memref<1x1x10x10x128xbf16, #tpu.memory_space<vmem>>, vector<1x1x8x8x128xbf16>
    %28 = vector.shape_cast %27 : vector<1x1x8x8x128xbf16> to vector<8x8x128xbf16>
    %29 = arith.extf %28 : vector<8x8x128xbf16> to vector<8x8x128xf32>
    %30 = vector.shape_cast %29 : vector<8x8x128xf32> to vector<64x128xf32>
    %31 = arith.truncf %30 : vector<64x128xf32> to vector<64x128xbf16>
    %c2_i32 = arith.constant 2 : i32
    %32 = arith.addi %3, %c2_i32 : i32
    %33 = arith.index_cast %32 : i32 to index
    %c0_21 = arith.constant 0 : index
    %c0_22 = arith.constant 0 : index
    %34 = vector.load %arg4[%33, %c0_21, %c0_22] : memref<27x128x128xbf16, #tpu.memory_space<vmem>>, vector<1x128x128xbf16>
    %35 = vector.shape_cast %34 : vector<1x128x128xbf16> to vector<128x128xbf16>
    %cst_23 = arith.constant dense<0.000000e+00> : vector<64x128xf32>
    %36 = tpu.matmul %31, %35, %cst_23 {dimension_numbers = #tpu.dot_dimension_numbers<[1], [0], [0], [1], [0, 0, 1, 1], [], []>} : vector<64x128xbf16>, vector<128x128xbf16>, vector<64x128xf32> -> vector<64x128xf32>
    %37 = arith.addf %26, %36 : vector<64x128xf32>
    %c0_24 = arith.constant 0 : index
    %c0_25 = arith.constant 0 : index
    %c1_26 = arith.constant 1 : index
    %c0_27 = arith.constant 0 : index
    %c0_28 = arith.constant 0 : index
    %38 = vector.load %arg3[%c0_24, %c0_25, %c1_26, %c0_27, %c0_28] : memref<1x1x10x10x128xbf16, #tpu.memory_space<vmem>>, vector<1x1x8x8x128xbf16>
    %39 = vector.shape_cast %38 : vector<1x1x8x8x128xbf16> to vector<8x8x128xbf16>
    %40 = arith.extf %39 : vector<8x8x128xbf16> to vector<8x8x128xf32>
    %41 = vector.shape_cast %40 : vector<8x8x128xf32> to vector<64x128xf32>
    %42 = arith.truncf %41 : vector<64x128xf32> to vector<64x128xbf16>
    %c3_i32 = arith.constant 3 : i32
    %43 = arith.addi %3, %c3_i32 : i32
    %44 = arith.index_cast %43 : i32 to index
    %c0_29 = arith.constant 0 : index
    %c0_30 = arith.constant 0 : index
    %45 = vector.load %arg4[%44, %c0_29, %c0_30] : memref<27x128x128xbf16, #tpu.memory_space<vmem>>, vector<1x128x128xbf16>
    %46 = vector.shape_cast %45 : vector<1x128x128xbf16> to vector<128x128xbf16>
    %cst_31 = arith.constant dense<0.000000e+00> : vector<64x128xf32>
    %47 = tpu.matmul %42, %46, %cst_31 {dimension_numbers = #tpu.dot_dimension_numbers<[1], [0], [0], [1], [0, 0, 1, 1], [], []>} : vector<64x128xbf16>, vector<128x128xbf16>, vector<64x128xf32> -> vector<64x128xf32>
    %48 = arith.addf %37, %47 : vector<64x128xf32>
    %c0_32 = arith.constant 0 : index
    %c0_33 = arith.constant 0 : index
    %c1_34 = arith.constant 1 : index
    %c1_35 = arith.constant 1 : index
    %c0_36 = arith.constant 0 : index
    %49 = vector.load %arg3[%c0_32, %c0_33, %c1_34, %c1_35, %c0_36] : memref<1x1x10x10x128xbf16, #tpu.memory_space<vmem>>, vector<1x1x8x8x128xbf16>
    %50 = vector.shape_cast %49 : vector<1x1x8x8x128xbf16> to vector<8x8x128xbf16>
    %51 = arith.extf %50 : vector<8x8x128xbf16> to vector<8x8x128xf32>
    %52 = vector.shape_cast %51 : vector<8x8x128xf32> to vector<64x128xf32>
    %53 = arith.truncf %52 : vector<64x128xf32> to vector<64x128xbf16>
    %c4_i32 = arith.constant 4 : i32
    %54 = arith.addi %3, %c4_i32 : i32
    %55 = arith.index_cast %54 : i32 to index
    %c0_37 = arith.constant 0 : index
    %c0_38 = arith.constant 0 : index
    %56 = vector.load %arg4[%55, %c0_37, %c0_38] : memref<27x128x128xbf16, #tpu.memory_space<vmem>>, vector<1x128x128xbf16>
    %57 = vector.shape_cast %56 : vector<1x128x128xbf16> to vector<128x128xbf16>
    %cst_39 = arith.constant dense<0.000000e+00> : vector<64x128xf32>
    %58 = tpu.matmul %53, %57, %cst_39 {dimension_numbers = #tpu.dot_dimension_numbers<[1], [0], [0], [1], [0, 0, 1, 1], [], []>} : vector<64x128xbf16>, vector<128x128xbf16>, vector<64x128xf32> -> vector<64x128xf32>
    %59 = arith.addf %48, %58 : vector<64x128xf32>
    %c0_40 = arith.constant 0 : index
    %c0_41 = arith.constant 0 : index
    %c1_42 = arith.constant 1 : index
    %c2_43 = arith.constant 2 : index
    %c0_44 = arith.constant 0 : index
    %60 = vector.load %arg3[%c0_40, %c0_41, %c1_42, %c2_43, %c0_44] : memref<1x1x10x10x128xbf16, #tpu.memory_space<vmem>>, vector<1x1x8x8x128xbf16>
    %61 = vector.shape_cast %60 : vector<1x1x8x8x128xbf16> to vector<8x8x128xbf16>
    %62 = arith.extf %61 : vector<8x8x128xbf16> to vector<8x8x128xf32>
    %63 = vector.shape_cast %62 : vector<8x8x128xf32> to vector<64x128xf32>
    %64 = arith.truncf %63 : vector<64x128xf32> to vector<64x128xbf16>
    %c5_i32 = arith.constant 5 : i32
    %65 = arith.addi %3, %c5_i32 : i32
    %66 = arith.index_cast %65 : i32 to index
    %c0_45 = arith.constant 0 : index
    %c0_46 = arith.constant 0 : index
    %67 = vector.load %arg4[%66, %c0_45, %c0_46] : memref<27x128x128xbf16, #tpu.memory_space<vmem>>, vector<1x128x128xbf16>
    %68 = vector.shape_cast %67 : vector<1x128x128xbf16> to vector<128x128xbf16>
    %cst_47 = arith.constant dense<0.000000e+00> : vector<64x128xf32>
    %69 = tpu.matmul %64, %68, %cst_47 {dimension_numbers = #tpu.dot_dimension_numbers<[1], [0], [0], [1], [0, 0, 1, 1], [], []>} : vector<64x128xbf16>, vector<128x128xbf16>, vector<64x128xf32> -> vector<64x128xf32>
    %70 = arith.addf %59, %69 : vector<64x128xf32>
    %c0_48 = arith.constant 0 : index
    %c0_49 = arith.constant 0 : index
    %c2_50 = arith.constant 2 : index
    %c0_51 = arith.constant 0 : index
    %c0_52 = arith.constant 0 : index
    %71 = vector.load %arg3[%c0_48, %c0_49, %c2_50, %c0_51, %c0_52] : memref<1x1x10x10x128xbf16, #tpu.memory_space<vmem>>, vector<1x1x8x8x128xbf16>
    %72 = vector.shape_cast %71 : vector<1x1x8x8x128xbf16> to vector<8x8x128xbf16>
    %73 = arith.extf %72 : vector<8x8x128xbf16> to vector<8x8x128xf32>
    %74 = vector.shape_cast %73 : vector<8x8x128xf32> to vector<64x128xf32>
    %75 = arith.truncf %74 : vector<64x128xf32> to vector<64x128xbf16>
    %c6_i32 = arith.constant 6 : i32
    %76 = arith.addi %3, %c6_i32 : i32
    %77 = arith.index_cast %76 : i32 to index
    %c0_53 = arith.constant 0 : index
    %c0_54 = arith.constant 0 : index
    %78 = vector.load %arg4[%77, %c0_53, %c0_54] : memref<27x128x128xbf16, #tpu.memory_space<vmem>>, vector<1x128x128xbf16>
    %79 = vector.shape_cast %78 : vector<1x128x128xbf16> to vector<128x128xbf16>
    %cst_55 = arith.constant dense<0.000000e+00> : vector<64x128xf32>
    %80 = tpu.matmul %75, %79, %cst_55 {dimension_numbers = #tpu.dot_dimension_numbers<[1], [0], [0], [1], [0, 0, 1, 1], [], []>} : vector<64x128xbf16>, vector<128x128xbf16>, vector<64x128xf32> -> vector<64x128xf32>
    %81 = arith.addf %70, %80 : vector<64x128xf32>
    %c0_56 = arith.constant 0 : index
    %c0_57 = arith.constant 0 : index
    %c2_58 = arith.constant 2 : index
    %c1_59 = arith.constant 1 : index
    %c0_60 = arith.constant 0 : index
    %82 = vector.load %arg3[%c0_56, %c0_57, %c2_58, %c1_59, %c0_60] : memref<1x1x10x10x128xbf16, #tpu.memory_space<vmem>>, vector<1x1x8x8x128xbf16>
    %83 = vector.shape_cast %82 : vector<1x1x8x8x128xbf16> to vector<8x8x128xbf16>
    %84 = arith.extf %83 : vector<8x8x128xbf16> to vector<8x8x128xf32>
    %85 = vector.shape_cast %84 : vector<8x8x128xf32> to vector<64x128xf32>
    %86 = arith.truncf %85 : vector<64x128xf32> to vector<64x128xbf16>
    %c7_i32 = arith.constant 7 : i32
    %87 = arith.addi %3, %c7_i32 : i32
    %88 = arith.index_cast %87 : i32 to index
    %c0_61 = arith.constant 0 : index
    %c0_62 = arith.constant 0 : index
    %89 = vector.load %arg4[%88, %c0_61, %c0_62] : memref<27x128x128xbf16, #tpu.memory_space<vmem>>, vector<1x128x128xbf16>
    %90 = vector.shape_cast %89 : vector<1x128x128xbf16> to vector<128x128xbf16>
    %cst_63 = arith.constant dense<0.000000e+00> : vector<64x128xf32>
    %91 = tpu.matmul %86, %90, %cst_63 {dimension_numbers = #tpu.dot_dimension_numbers<[1], [0], [0], [1], [0, 0, 1, 1], [], []>} : vector<64x128xbf16>, vector<128x128xbf16>, vector<64x128xf32> -> vector<64x128xf32>
    %92 = arith.addf %81, %91 : vector<64x128xf32>
    %c0_64 = arith.constant 0 : index
    %c0_65 = arith.constant 0 : index
    %c2_66 = arith.constant 2 : index
    %c2_67 = arith.constant 2 : index
    %c0_68 = arith.constant 0 : index
    %93 = vector.load %arg3[%c0_64, %c0_65, %c2_66, %c2_67, %c0_68] : memref<1x1x10x10x128xbf16, #tpu.memory_space<vmem>>, vector<1x1x8x8x128xbf16>
    %94 = vector.shape_cast %93 : vector<1x1x8x8x128xbf16> to vector<8x8x128xbf16>
    %95 = arith.extf %94 : vector<8x8x128xbf16> to vector<8x8x128xf32>
    %96 = vector.shape_cast %95 : vector<8x8x128xf32> to vector<64x128xf32>
    %97 = arith.truncf %96 : vector<64x128xf32> to vector<64x128xbf16>
    %c8_i32 = arith.constant 8 : i32
    %98 = arith.addi %3, %c8_i32 : i32
    %99 = arith.index_cast %98 : i32 to index
    %c0_69 = arith.constant 0 : index
    %c0_70 = arith.constant 0 : index
    %100 = vector.load %arg4[%99, %c0_69, %c0_70] : memref<27x128x128xbf16, #tpu.memory_space<vmem>>, vector<1x128x128xbf16>
    %101 = vector.shape_cast %100 : vector<1x128x128xbf16> to vector<128x128xbf16>
    %cst_71 = arith.constant dense<0.000000e+00> : vector<64x128xf32>
    %102 = tpu.matmul %97, %101, %cst_71 {dimension_numbers = #tpu.dot_dimension_numbers<[1], [0], [0], [1], [0, 0, 1, 1], [], []>} : vector<64x128xbf16>, vector<128x128xbf16>, vector<64x128xf32> -> vector<64x128xf32>
    %103 = arith.addf %92, %102 : vector<64x128xf32>
    %c0_72 = arith.constant 0 : index
    %c0_73 = arith.constant 0 : index
    %104 = vector.load %arg7[%c0_72, %c0_73] : memref<64x128xf32, #tpu.memory_space<vmem>>, vector<64x128xf32>
    tpu.vector_store %arg7[%c0_72, %c0_73], %103 {strides = array<i32>} : memref<64x128xf32, #tpu.memory_space<vmem>>, vector<64x128xf32>,
    %c2_i32_74 = arith.constant 2 : i32
    %105 = arith.cmpi eq, %arg2, %c2_i32_74 : i32
    %106 = arith.extui %105 : i1 to i32
    %c0_i32_75 = arith.constant 0 : i32
    %107 = arith.cmpi ne, %106, %c0_i32_75 : i32
    scf.if %107 {
      %c0_76 = arith.constant 0 : index
      %c0_77 = arith.constant 0 : index
      %c0_78 = arith.constant 0 : index
      %c0_79 = arith.constant 0 : index
      %108 = vector.load %arg5[%c0_76, %c0_77, %c0_78, %c0_79] : memref<1x1x64x128xf32, #tpu.memory_space<vmem>>, vector<1x1x64x128xf32>
      %109 = vector.shape_cast %108 : vector<1x1x64x128xf32> to vector<64x128xf32>
      %c0_80 = arith.constant 0 : index
      %c0_81 = arith.constant 0 : index
      %110 = vector.load %arg7[%c0_80, %c0_81] : memref<64x128xf32, #tpu.memory_space<vmem>>, vector<64x128xf32>
      %111 = arith.addf %110, %109 : vector<64x128xf32>
      %112 = vector.shape_cast %111 : vector<64x128xf32> to vector<1x1x64x128xf32>
      %c0_82 = arith.constant 0 : index
      %c0_83 = arith.constant 0 : index
      %c0_84 = arith.constant 0 : index
      %c0_85 = arith.constant 0 : index
      %113 = vector.load %arg6[%c0_82, %c0_83, %c0_84, %c0_85] : memref<1x1x64x128xf32, #tpu.memory_space<vmem>>, vector<1x1x64x128xf32>
      tpu.vector_store %arg6[%c0_82, %c0_83, %c0_84, %c0_85], %112 {strides = array<i32>} : memref<1x1x64x128xf32, #tpu.memory_space<vmem>>, vector<1x1x64x128xf32>,
    } else {
    }
    return
  }
  func.func @transform_0(%arg0: i32, %arg1: i32, %arg2: i32) -> (i32, i32, i32, i32, i32) {
    %0 = arith.addi %arg1, %arg2 : i32
    %c0_i32 = arith.constant 0 : i32
    %c0_i32_0 = arith.constant 0 : i32
    %c0_i32_1 = arith.constant 0 : i32
    %c0_i32_2 = arith.constant 0 : i32
    return %arg0, %0, %c0_i32, %c0_i32_0, %c0_i32_1 : i32, i32, i32, i32, i32
  }
  func.func @transform_1(%arg0: i32, %arg1: i32, %arg2: i32) -> (i32, i32, i32) {
    %c0_i32 = arith.constant 0 : i32
    %c0_i32_0 = arith.constant 0 : i32
    %c0_i32_1 = arith.constant 0 : i32
    %c0_i32_2 = arith.constant 0 : i32
    return %c0_i32, %c0_i32_0, %c0_i32_1 : i32, i32, i32
  }
  func.func @transform_2(%arg0: i32, %arg1: i32, %arg2: i32) -> (i32, i32, i32, i32) {
    %c0_i32 = arith.constant 0 : i32
    %c0_i32_0 = arith.constant 0 : i32
    %c0_i32_1 = arith.constant 0 : i32
    return %arg0, %arg1, %c0_i32, %c0_i32_0 : i32, i32, i32, i32
  }
  func.func @transform_3(%arg0: i32, %arg1: i32, %arg2: i32) -> (i32, i32, i32, i32) {
    %c0_i32 = arith.constant 0 : i32
    %c0_i32_0 = arith.constant 0 : i32
    %c0_i32_1 = arith.constant 0 : i32
    return %arg0, %arg1, %c0_i32, %c0_i32_0 : i32, i32, i32, i32
  }
}

</mosaic_0001>

<llo_original>
// kernel: resnet_block_forward.8
$region0: #{resnet_block_forward.8}
  #allocation0 [shape = 'u32[]', space=smem, size = 0x4, offset = 0x4, fixed_abs, tag = 'smem constant byte address 0x4 - core index']
  #allocation1 [shape = 'u32[144,128]{1,0:T(1,128)}', space=vmem, size = 0x12000, scoped, tag = 'internal scratch']
  %s0 = inlined_call_operand.hbm [shape: f32[1024,128], index: 0, kind: input, shape index: {}]
  %s1 = inlined_call_operand.hbm [shape: f32[2,128], index: 1, kind: output, shape index: {}]
  %s2 = sld [smem:[#allocation0]]
  $region22: #{resnet_block_forward.8} parent=0
    _
  %s4 = ssub.s32 1, %s2
  %s5 = scalar_select 0, %s4, %s2
  $region1: #{resnet_block_forward.8} parent=0
    #allocation2 [shape = 'u8[524288]{0}', space=vmem, size = 0x80000, scoped, tag = 'input window, operand 0, single buffered']
    #allocation3 [shape = 's32[1]{0}', space=sflag, size = 0x4, scoped, tag = 'scoped memory for resnet_block_forward.8']
    #allocation4 [shape = 's32[1]{0}', space=sflag, size = 0x4, scoped, tag = 'scoped memory for resnet_block_forward.8']
    #allocation5 [shape = 'u8[1024]{0}', space=vmem, size = 0x400, scoped, tag = 'output window, operand 0, single buffered']
    %6 = vsyncpa [#allocation3], 0
    %7 = vsyncpa [#allocation4], 0
    // Predicated region
    $region2: #{resnet_block_forward.8} parent=1 // pred_check
      _
    $region3: #{resnet_block_forward.8} parent=1 // pred_check_branch
      %9 = sbr.rel (0) target = $region5
    $region4: #{resnet_block_forward.8} parent=1 // pred_region
      %s11 = ssub.s32 16384, 16384
      %12 = vsyncadd [#allocation3], %s11
      %s13 = sshll.u32 [#allocation2], 4
      %s14 = int_to_ptr.vmem [resolvable:$true] %s13
      %19 = dma.hbm_to_vmem [thread:$0]  %s0, 16384, %s14, [#allocation3], 128, 128, 8
    $region5: #{resnet_block_forward.8} parent=1 // pred_fallthru
      _
    // Predicated region
    $region6: #{resnet_block_forward.8} parent=1 // pred_check
      _
    $region7: #{resnet_block_forward.8} parent=1 // pred_check_branch
      %21 = sbr.rel (0) target = $region9
    $region8: #{resnet_block_forward.8} parent=1 // pred_region
      %22 = dma.done [#allocation3], 16384
    $region9: #{resnet_block_forward.8} parent=1 // pred_fallthru
      _
    %p23 = scmp.eq.s32.totalorder 0, 0
    // Predicated region
    $region10: #{resnet_block_forward.8} parent=1 // pred_check
      %p24 = pneg %p23
    $region11: #{resnet_block_forward.8} parent=1 // pred_check_branch
      %26 = sbr.rel (%p24) target = $region13
    $region12: #{resnet_block_forward.8} parent=1 // pred_region
      %27 = vst [vmem:[#allocation5] sm:$0x3] 0.0
    $region13: #{resnet_block_forward.8} parent=1 // pred_fallthru
      _
    %v28 = vld [vmem:[#allocation2] sm:$0xff]
    %v29 = vld [vmem:[#allocation2 + $0x8] sm:$0xff]
    %v30 = vld [vmem:[#allocation2 + $0x10] sm:$0xff]
    %v31 = vld [vmem:[#allocation2 + $0x18] sm:$0xff]
    %v32 = vld [vmem:[#allocation2 + $0x20] sm:$0xff]
    %v33 = vld [vmem:[#allocation2 + $0x28] sm:$0xff]
    %v34 = vld [vmem:[#allocation2 + $0x30] sm:$0xff]
    %v35 = vld [vmem:[#allocation2 + $0x38] sm:$0xff]
    %v36 = vld [vmem:[#allocation2 + $0x40] sm:$0xff]
    %v37 = vld [vmem:[#allocation2 + $0x48] sm:$0xff]
    %v38 = vld [vmem:[#allocation2 + $0x50] sm:$0xff]
    %v39 = vld [vmem:[#allocation2 + $0x58] sm:$0xff]
    %v40 = vld [vmem:[#allocation2 + $0x60] sm:$0xff]
    %v41 = vld [vmem:[#allocation2 + $0x68] sm:$0xff]
    %v42 = vld [vmem:[#allocation2 + $0x70] sm:$0xff]
    %v43 = vld [vmem:[#allocation2 + $0x78] sm:$0xff]
    %v44 = vld [vmem:[#allocation2 + $0x80] sm:$0xff]
    %v45 = vld [vmem:[#allocation2 + $0x88] sm:$0xff]
    %v46 = vld [vmem:[#allocation2 + $0x90] sm:$0xff]
    %v47 = vld [vmem:[#allocation2 + $0x98] sm:$0xff]
    %v48 = vld [vmem:[#allocation2 + $0xa0] sm:$0xff]
    %v49 = vld [vmem:[#allocation2 + $0xa8] sm:$0xff]
    %v50 = vld [vmem:[#allocation2 + $0xb0] sm:$0xff]
    %v51 = vld [vmem:[#allocation2 + $0xb8] sm:$0xff]
    %v52 = vld [vmem:[#allocation2 + $0xc0] sm:$0xff]
    %v53 = vld [vmem:[#allocation2 + $0xc8] sm:$0xff]
    %v54 = vld [vmem:[#allocation2 + $0xd0] sm:$0xff]
    %v55 = vld [vmem:[#allocation2 + $0xd8] sm:$0xff]
    %v56 = vld [vmem:[#allocation2 + $0xe0] sm:$0xff]
    %v57 = vld [vmem:[#allocation2 + $0xe8] sm:$0xff]
    %v58 = vld [vmem:[#allocation2 + $0xf0] sm:$0xff]
    %v59 = vld [vmem:[#allocation2 + $0xf8] sm:$0xff]
    %v60 = vld [vmem:[#allocation2 + $0x100] sm:$0xff]
    %v61 = vld [vmem:[#allocation2 + $0x108] sm:$0xff]
    %v62 = vld [vmem:[#allocation2 + $0x110] sm:$0xff]
    %v63 = vld [vmem:[#allocation2 + $0x118] sm:$0xff]
    %v64 = vld [vmem:[#allocation2 + $0x120] sm:$0xff]
    %v65 = vld [vmem:[#allocation2 + $0x128] sm:$0xff]
    %v66 = vld [vmem:[#allocation2 + $0x130] sm:$0xff]
    %v67 = vld [vmem:[#allocation2 + $0x138] sm:$0xff]
    %v68 = vld [vmem:[#allocation2 + $0x140] sm:$0xff]
    %v69 = vld [vmem:[#allocation2 + $0x148] sm:$0xff]
    %v70 = vld [vmem:[#allocation2 + $0x150] sm:$0xff]
    %v71 = vld [vmem:[#allocation2 + $0x158] sm:$0xff]
    %v72 = vld [vmem:[#allocation2 + $0x160] sm:$0xff]
    %v73 = vld [vmem:[#allocation2 + $0x168] sm:$0xff]
    %v74 = vld [vmem:[#allocation2 + $0x170] sm:$0xff]
    %v75 = vld [vmem:[#allocation2 + $0x178] sm:$0xff]
    %v76 = vld [vmem:[#allocation2 + $0x180] sm:$0xff]
    %v77 = vld [vmem:[#allocation2 + $0x188] sm:$0xff]
    %v78 = vld [vmem:[#allocation2 + $0x190] sm:$0xff]
    %v79 = vld [vmem:[#allocation2 + $0x198] sm:$0xff]
    %v80 = vld [vmem:[#allocation2 + $0x1a0] sm:$0xff]
    %v81 = vld [vmem:[#allocation2 + $0x1a8] sm:$0xff]
    %v82 = vld [vmem:[#allocation2 + $0x1b0] sm:$0xff]
    %v83 = vld [vmem:[#allocation2 + $0x1b8] sm:$0xff]
    %v84 = vld [vmem:[#allocation2 + $0x1c0] sm:$0xff]
    %v85 = vld [vmem:[#allocation2 + $0x1c8] sm:$0xff]
    %v86 = vld [vmem:[#allocation2 + $0x1d0] sm:$0xff]
    %v87 = vld [vmem:[#allocation2 + $0x1d8] sm:$0xff]
    %v88 = vld [vmem:[#allocation2 + $0x1e0] sm:$0xff]
    %v89 = vld [vmem:[#allocation2 + $0x1e8] sm:$0xff]
    %v90 = vld [vmem:[#allocation2 + $0x1f0] sm:$0xff]
    %v91 = vld [vmem:[#allocation2 + $0x1f8] sm:$0xff]
    %v92 = vld [vmem:[#allocation2 + $0x200] sm:$0xff]
    %v93 = vld [vmem:[#allocation2 + $0x208] sm:$0xff]
    %v94 = vld [vmem:[#allocation2 + $0x210] sm:$0xff]
    %v95 = vld [vmem:[#allocation2 + $0x218] sm:$0xff]
    %v96 = vld [vmem:[#allocation2 + $0x220] sm:$0xff]
    %v97 = vld [vmem:[#allocation2 + $0x228] sm:$0xff]
    %v98 = vld [vmem:[#allocation2 + $0x230] sm:$0xff]
    %v99 = vld [vmem:[#allocation2 + $0x238] sm:$0xff]
    %v100 = vld [vmem:[#allocation2 + $0x240] sm:$0xff]
    %v101 = vld [vmem:[#allocation2 + $0x248] sm:$0xff]
    %v102 = vld [vmem:[#allocation2 + $0x250] sm:$0xff]
    %v103 = vld [vmem:[#allocation2 + $0x258] sm:$0xff]
    %v104 = vld [vmem:[#allocation2 + $0x260] sm:$0xff]
    %v105 = vld [vmem:[#allocation2 + $0x268] sm:$0xff]
    %v106 = vld [vmem:[#allocation2 + $0x270] sm:$0xff]
    %v107 = vld [vmem:[#allocation2 + $0x278] sm:$0xff]
    %v108 = vld [vmem:[#allocation2 + $0x280] sm:$0xff]
    %v109 = vld [vmem:[#allocation2 + $0x288] sm:$0xff]
    %v110 = vld [vmem:[#allocation2 + $0x290] sm:$0xff]
    %v111 = vld [vmem:[#allocation2 + $0x298] sm:$0xff]
    %v112 = vld [vmem:[#allocation2 + $0x2a0] sm:$0xff]
    %v113 = vld [vmem:[#allocation2 + $0x2a8] sm:$0xff]
    %v114 = vld [vmem:[#allocation2 + $0x2b0] sm:$0xff]
    %v115 = vld [vmem:[#allocation2 + $0x2b8] sm:$0xff]
    %v116 = vld [vmem:[#allocation2 + $0x2c0] sm:$0xff]
    %v117 = vld [vmem:[#allocation2 + $0x2c8] sm:$0xff]
    %v118 = vld [vmem:[#allocation2 + $0x2d0] sm:$0xff]
    %v119 = vld [vmem:[#allocation2 + $0x2d8] sm:$0xff]
    %v120 = vld [vmem:[#allocation2 + $0x2e0] sm:$0xff]
    %v121 = vld [vmem:[#allocation2 + $0x2e8] sm:$0xff]
    %v122 = vld [vmem:[#allocation2 + $0x2f0] sm:$0xff]
    %v123 = vld [vmem:[#allocation2 + $0x2f8] sm:$0xff]
    %v124 = vld [vmem:[#allocation2 + $0x300] sm:$0xff]
    %v125 = vld [vmem:[#allocation2 + $0x308] sm:$0xff]
    %v126 = vld [vmem:[#allocation2 + $0x310] sm:$0xff]
    %v127 = vld [vmem:[#allocation2 + $0x318] sm:$0xff]
    %v128 = vld [vmem:[#allocation2 + $0x320] sm:$0xff]
    %v129 = vld [vmem:[#allocation2 + $0x328] sm:$0xff]
    %v130 = vld [vmem:[#allocation2 + $0x330] sm:$0xff]
    %v131 = vld [vmem:[#allocation2 + $0x338] sm:$0xff]
    %v132 = vld [vmem:[#allocation2 + $0x340] sm:$0xff]
    %v133 = vld [vmem:[#allocation2 + $0x348] sm:$0xff]
    %v134 = vld [vmem:[#allocation2 + $0x350] sm:$0xff]
    %v135 = vld [vmem:[#allocation2 + $0x358] sm:$0xff]
    %v136 = vld [vmem:[#allocation2 + $0x360] sm:$0xff]
    %v137 = vld [vmem:[#allocation2 + $0x368] sm:$0xff]
    %v138 = vld [vmem:[#allocation2 + $0x370] sm:$0xff]
    %v139 = vld [vmem:[#allocation2 + $0x378] sm:$0xff]
    %v140 = vld [vmem:[#allocation2 + $0x380] sm:$0xff]
    %v141 = vld [vmem:[#allocation2 + $0x388] sm:$0xff]
    %v142 = vld [vmem:[#allocation2 + $0x390] sm:$0xff]
    %v143 = vld [vmem:[#allocation2 + $0x398] sm:$0xff]
    %v144 = vld [vmem:[#allocation2 + $0x3a0] sm:$0xff]
    %v145 = vld [vmem:[#allocation2 + $0x3a8] sm:$0xff]
    %v146 = vld [vmem:[#allocation2 + $0x3b0] sm:$0xff]
    %v147 = vld [vmem:[#allocation2 + $0x3b8] sm:$0xff]
    %v148 = vld [vmem:[#allocation2 + $0x3c0] sm:$0xff]
    %v149 = vld [vmem:[#allocation2 + $0x3c8] sm:$0xff]
    %v150 = vld [vmem:[#allocation2 + $0x3d0] sm:$0xff]
    %v151 = vld [vmem:[#allocation2 + $0x3d8] sm:$0xff]
    %v152 = vld [vmem:[#allocation2 + $0x3e0] sm:$0xff]
    %v153 = vld [vmem:[#allocation2 + $0x3e8] sm:$0xff]
    %v154 = vld [vmem:[#allocation2 + $0x3f0] sm:$0xff]
    %v155 = vld [vmem:[#allocation2 + $0x3f8] sm:$0xff]
    %v156 = vadd.f32 %v28, %v29
    %v157 = vadd.f32 %v156, %v30
    %v158 = vadd.f32 %v157, %v31
    %v159 = vadd.f32 %v158, %v32
    %v160 = vadd.f32 %v159, %v33
    %v161 = vadd.f32 %v160, %v34
    %v162 = vadd.f32 %v161, %v35
    %v163 = vadd.f32 %v162, %v36
    %v164 = vadd.f32 %v163, %v37
    %v165 = vadd.f32 %v164, %v38
    %v166 = vadd.f32 %v165, %v39
    %v167 = vadd.f32 %v166, %v40
    %v168 = vadd.f32 %v167, %v41
    %v169 = vadd.f32 %v168, %v42
    %v170 = vadd.f32 %v169, %v43
    %v171 = vadd.f32 %v170, %v44
    %v172 = vadd.f32 %v171, %v45
    %v173 = vadd.f32 %v172, %v46
    %v174 = vadd.f32 %v173, %v47
    %v175 = vadd.f32 %v174, %v48
    %v176 = vadd.f32 %v175, %v49
    %v177 = vadd.f32 %v176, %v50
    %v178 = vadd.f32 %v177, %v51
    %v179 = vadd.f32 %v178, %v52
    %v180 = vadd.f32 %v179, %v53
    %v181 = vadd.f32 %v180, %v54
    %v182 = vadd.f32 %v181, %v55
    %v183 = vadd.f32 %v182, %v56
    %v184 = vadd.f32 %v183, %v57
    %v185 = vadd.f32 %v184, %v58
    %v186 = vadd.f32 %v185, %v59
    %v187 = vadd.f32 %v186, %v60
    %v188 = vadd.f32 %v187, %v61
    %v189 = vadd.f32 %v188, %v62
    %v190 = vadd.f32 %v189, %v63
    %v191 = vadd.f32 %v190, %v64
    %v192 = vadd.f32 %v191, %v65
    %v193 = vadd.f32 %v192, %v66
    %v194 = vadd.f32 %v193, %v67
    %v195 = vadd.f32 %v194, %v68
    %v196 = vadd.f32 %v195, %v69
    %v197 = vadd.f32 %v196, %v70
    %v198 = vadd.f32 %v197, %v71
    %v199 = vadd.f32 %v198, %v72
    %v200 = vadd.f32 %v199, %v73
    %v201 = vadd.f32 %v200, %v74
    %v202 = vadd.f32 %v201, %v75
    %v203 = vadd.f32 %v202, %v76
    %v204 = vadd.f32 %v203, %v77
    %v205 = vadd.f32 %v204, %v78
    %v206 = vadd.f32 %v205, %v79
    %v207 = vadd.f32 %v206, %v80
    %v208 = vadd.f32 %v207, %v81
    %v209 = vadd.f32 %v208, %v82
    %v210 = vadd.f32 %v209, %v83
    %v211 = vadd.f32 %v210, %v84
    %v212 = vadd.f32 %v211, %v85
    %v213 = vadd.f32 %v212, %v86
    %v214 = vadd.f32 %v213, %v87
    %v215 = vadd.f32 %v214, %v88
    %v216 = vadd.f32 %v215, %v89
    %v217 = vadd.f32 %v216, %v90
    %v218 = vadd.f32 %v217, %v91
    %v219 = vadd.f32 %v218, %v92
    %v220 = vadd.f32 %v219, %v93
    %v221 = vadd.f32 %v220, %v94
    %v222 = vadd.f32 %v221, %v95
    %v223 = vadd.f32 %v222, %v96
    %v224 = vadd.f32 %v223, %v97
    %v225 = vadd.f32 %v224, %v98
    %v226 = vadd.f32 %v225, %v99
    %v227 = vadd.f32 %v226, %v100
    %v228 = vadd.f32 %v227, %v101
    %v229 = vadd.f32 %v228, %v102
    %v230 = vadd.f32 %v229, %v103
    %v231 = vadd.f32 %v230, %v104
    %v232 = vadd.f32 %v231, %v105
    %v233 = vadd.f32 %v232, %v106
    %v234 = vadd.f32 %v233, %v107
    %v235 = vadd.f32 %v234, %v108
    %v236 = vadd.f32 %v235, %v109
    %v237 = vadd.f32 %v236, %v110
    %v238 = vadd.f32 %v237, %v111
    %v239 = vadd.f32 %v238, %v112
    %v240 = vadd.f32 %v239, %v113
    %v241 = vadd.f32 %v240, %v114
    %v242 = vadd.f32 %v241, %v115
    %v243 = vadd.f32 %v242, %v116
    %v244 = vadd.f32 %v243, %v117
    %v245 = vadd.f32 %v244, %v118
    %v246 = vadd.f32 %v245, %v119
    %v247 = vadd.f32 %v246, %v120
    %v248 = vadd.f32 %v247, %v121
    %v249 = vadd.f32 %v248, %v122
    %v250 = vadd.f32 %v249, %v123
    %v251 = vadd.f32 %v250, %v124
    %v252 = vadd.f32 %v251, %v125
    %v253 = vadd.f32 %v252, %v126
    %v254 = vadd.f32 %v253, %v127
    %v255 = vadd.f32 %v254, %v128
    %v256 = vadd.f32 %v255, %v129
    %v257 = vadd.f32 %v256, %v130
    %v258 = vadd.f32 %v257, %v131
    %v259 = vadd.f32 %v258, %v132
    %v260 = vadd.f32 %v259, %v133
    %v261 = vadd.f32 %v260, %v134
    %v262 = vadd.f32 %v261, %v135
    %v263 = vadd.f32 %v262, %v136
    %v264 = vadd.f32 %v263, %v137
    %v265 = vadd.f32 %v264, %v138
    %v266 = vadd.f32 %v265, %v139
    %v267 = vadd.f32 %v266, %v140
    %v268 = vadd.f32 %v267, %v141
    %v269 = vadd.f32 %v268, %v142
    %v270 = vadd.f32 %v269, %v143
    %v271 = vadd.f32 %v270, %v144
    %v272 = vadd.f32 %v271, %v145
    %v273 = vadd.f32 %v272, %v146
    %v274 = vadd.f32 %v273, %v147
    %v275 = vadd.f32 %v274, %v148
    %v276 = vadd.f32 %v275, %v149
    %v277 = vadd.f32 %v276, %v150
    %v278 = vadd.f32 %v277, %v151
    %v279 = vadd.f32 %v278, %v152
    %v280 = vadd.f32 %v279, %v153
    %v281 = vadd.f32 %v280, %v154
    %v282 = vadd.f32 %v281, %v155
    %v283 = vrot.slane %v282, 4
    %v284 = vadd.f32 %v282, %v283
    %v285 = vrot.slane %v284, 2
    %v286 = vadd.f32 %v284, %v285
    %v287 = vrot.slane %v286, 1
    %v288 = vadd.f32 %v286, %v287
    %v289 = vmul.f32 %v28, %v28
    %v290 = vmul.f32 %v29, %v29
    %v291 = vmul.f32 %v30, %v30
    %v292 = vmul.f32 %v31, %v31
    %v293 = vmul.f32 %v32, %v32
    %v294 = vmul.f32 %v33, %v33
    %v295 = vmul.f32 %v34, %v34
    %v296 = vmul.f32 %v35, %v35
    %v297 = vmul.f32 %v36, %v36
    %v298 = vmul.f32 %v37, %v37
    %v299 = vmul.f32 %v38, %v38
    %v300 = vmul.f32 %v39, %v39
    %v301 = vmul.f32 %v40, %v40
    %v302 = vmul.f32 %v41, %v41
    %v303 = vmul.f32 %v42, %v42
    %v304 = vmul.f32 %v43, %v43
    %v305 = vmul.f32 %v44, %v44
    %v306 = vmul.f32 %v45, %v45
    %v307 = vmul.f32 %v46, %v46
    %v308 = vmul.f32 %v47, %v47
    %v309 = vmul.f32 %v48, %v48
    %v310 = vmul.f32 %v49, %v49
    %v311 = vmul.f32 %v50, %v50
    %v312 = vmul.f32 %v51, %v51
    %v313 = vmul.f32 %v52, %v52
    %v314 = vmul.f32 %v53, %v53
    %v315 = vmul.f32 %v54, %v54
    %v316 = vmul.f32 %v55, %v55
    %v317 = vmul.f32 %v56, %v56
    %v318 = vmul.f32 %v57, %v57
    %v319 = vmul.f32 %v58, %v58
    %v320 = vmul.f32 %v59, %v59
    %v321 = vmul.f32 %v60, %v60
    %v322 = vmul.f32 %v61, %v61
    %v323 = vmul.f32 %v62, %v62
    %v324 = vmul.f32 %v63, %v63
    %v325 = vmul.f32 %v64, %v64
    %v326 = vmul.f32 %v65, %v65
    %v327 = vmul.f32 %v66, %v66
    %v328 = vmul.f32 %v67, %v67
    %v329 = vmul.f32 %v68, %v68
    %v330 = vmul.f32 %v69, %v69
    %v331 = vmul.f32 %v70, %v70
    %v332 = vmul.f32 %v71, %v71
    %v333 = vmul.f32 %v72, %v72
    %v334 = vmul.f32 %v73, %v73
    %v335 = vmul.f32 %v74, %v74
    %v336 = vmul.f32 %v75, %v75
    %v337 = vmul.f32 %v76, %v76
    %v338 = vmul.f32 %v77, %v77
    %v339 = vmul.f32 %v78, %v78
    %v340 = vmul.f32 %v79, %v79
    %v341 = vmul.f32 %v80, %v80
    %v342 = vmul.f32 %v81, %v81
    %v343 = vmul.f32 %v82, %v82
    %v344 = vmul.f32 %v83, %v83
    %v345 = vmul.f32 %v84, %v84
    %v346 = vmul.f32 %v85, %v85
    %v347 = vmul.f32 %v86, %v86
    %v348 = vmul.f32 %v87, %v87
    %v349 = vmul.f32 %v88, %v88
    %v350 = vmul.f32 %v89, %v89
    %v351 = vmul.f32 %v90, %v90
    %v352 = vmul.f32 %v91, %v91
    %v353 = vmul.f32 %v92, %v92
    %v354 = vmul.f32 %v93, %v93
    %v355 = vmul.f32 %v94, %v94
    %v356 = vmul.f32 %v95, %v95
    %v357 = vmul.f32 %v96, %v96
    %v358 = vmul.f32 %v97, %v97
    %v359 = vmul.f32 %v98, %v98
    %v360 = vmul.f32 %v99, %v99
    %v361 = vmul.f32 %v100, %v100
    %v362 = vmul.f32 %v101, %v101
    %v363 = vmul.f32 %v102, %v102
    %v364 = vmul.f32 %v103, %v103
    %v365 = vmul.f32 %v104, %v104
    %v366 = vmul.f32 %v105, %v105
    %v367 = vmul.f32 %v106, %v106
    %v368 = vmul.f32 %v107, %v107
    %v369 = vmul.f32 %v108, %v108
    %v370 = vmul.f32 %v109, %v109
    %v371 = vmul.f32 %v110, %v110
    %v372 = vmul.f32 %v111, %v111
    %v373 = vmul.f32 %v112, %v112
    %v374 = vmul.f32 %v113, %v113
    %v375 = vmul.f32 %v114, %v114
    %v376 = vmul.f32 %v115, %v115
    %v377 = vmul.f32 %v116, %v116
    %v378 = vmul.f32 %v117, %v117
    %v379 = vmul.f32 %v118, %v118
    %v380 = vmul.f32 %v119, %v119
    %v381 = vmul.f32 %v120, %v120
    %v382 = vmul.f32 %v121, %v121
    %v383 = vmul.f32 %v122, %v122
    %v384 = vmul.f32 %v123, %v123
    %v385 = vmul.f32 %v124, %v124
    %v386 = vmul.f32 %v125, %v125
    %v387 = vmul.f32 %v126, %v126
    %v388 = vmul.f32 %v127, %v127
    %v389 = vmul.f32 %v128, %v128
    %v390 = vmul.f32 %v129, %v129
    %v391 = vmul.f32 %v130, %v130
    %v392 = vmul.f32 %v131, %v131
    %v393 = vmul.f32 %v132, %v132
    %v394 = vmul.f32 %v133, %v133
    %v395 = vmul.f32 %v134, %v134
    %v396 = vmul.f32 %v135, %v135
    %v397 = vmul.f32 %v136, %v136
    %v398 = vmul.f32 %v137, %v137
    %v399 = vmul.f32 %v138, %v138
    %v400 = vmul.f32 %v139, %v139
    %v401 = vmul.f32 %v140, %v140
    %v402 = vmul.f32 %v141, %v141
    %v403 = vmul.f32 %v142, %v142
    %v404 = vmul.f32 %v143, %v143
    %v405 = vmul.f32 %v144, %v144
    %v406 = vmul.f32 %v145, %v145
    %v407 = vmul.f32 %v146, %v146
    %v408 = vmul.f32 %v147, %v147
    %v409 = vmul.f32 %v148, %v148
    %v410 = vmul.f32 %v149, %v149
    %v411 = vmul.f32 %v150, %v150
    %v412 = vmul.f32 %v151, %v151
    %v413 = vmul.f32 %v152, %v152
    %v414 = vmul.f32 %v153, %v153
    %v415 = vmul.f32 %v154, %v154
    %v416 = vmul.f32 %v155, %v155
    %v417 = vadd.f32 %v289, %v290
    %v418 = vadd.f32 %v417, %v291
    %v419 = vadd.f32 %v418, %v292
    %v420 = vadd.f32 %v419, %v293
    %v421 = vadd.f32 %v420, %v294
    %v422 = vadd.f32 %v421, %v295
    %v423 = vadd.f32 %v422, %v296
    %v424 = vadd.f32 %v423, %v297
    %v425 = vadd.f32 %v424, %v298
    %v426 = vadd.f32 %v425, %v299
    %v427 = vadd.f32 %v426, %v300
    %v428 = vadd.f32 %v427, %v301
    %v429 = vadd.f32 %v428, %v302
    %v430 = vadd.f32 %v429, %v303
    %v431 = vadd.f32 %v430, %v304
    %v432 = vadd.f32 %v431, %v305
    %v433 = vadd.f32 %v432, %v306
    %v434 = vadd.f32 %v433, %v307
    %v435 = vadd.f32 %v434, %v308
    %v436 = vadd.f32 %v435, %v309
    %v437 = vadd.f32 %v436, %v310
    %v438 = vadd.f32 %v437, %v311
    %v439 = vadd.f32 %v438, %v312
    %v440 = vadd.f32 %v439, %v313
    %v441 = vadd.f32 %v440, %v314
    %v442 = vadd.f32 %v441, %v315
    %v443 = vadd.f32 %v442, %v316
    %v444 = vadd.f32 %v443, %v317
    %v445 = vadd.f32 %v444, %v318
    %v446 = vadd.f32 %v445, %v319
    %v447 = vadd.f32 %v446, %v320
    %v448 = vadd.f32 %v447, %v321
    %v449 = vadd.f32 %v448, %v322
    %v450 = vadd.f32 %v449, %v323
    %v451 = vadd.f32 %v450, %v324
    %v452 = vadd.f32 %v451, %v325
    %v453 = vadd.f32 %v452, %v326
    %v454 = vadd.f32 %v453, %v327
    %v455 = vadd.f32 %v454, %v328
    %v456 = vadd.f32 %v455, %v329
    %v457 = vadd.f32 %v456, %v330
    %v458 = vadd.f32 %v457, %v331
    %v459 = vadd.f32 %v458, %v332
    %v460 = vadd.f32 %v459, %v333
    %v461 = vadd.f32 %v460, %v334
    %v462 = vadd.f32 %v461, %v335
    %v463 = vadd.f32 %v462, %v336
    %v464 = vadd.f32 %v463, %v337
    %v465 = vadd.f32 %v464, %v338
    %v466 = vadd.f32 %v465, %v339
    %v467 = vadd.f32 %v466, %v340
    %v468 = vadd.f32 %v467, %v341
    %v469 = vadd.f32 %v468, %v342
    %v470 = vadd.f32 %v469, %v343
    %v471 = vadd.f32 %v470, %v344
    %v472 = vadd.f32 %v471, %v345
    %v473 = vadd.f32 %v472, %v346
    %v474 = vadd.f32 %v473, %v347
    %v475 = vadd.f32 %v474, %v348
    %v476 = vadd.f32 %v475, %v349
    %v477 = vadd.f32 %v476, %v350
    %v478 = vadd.f32 %v477, %v351
    %v479 = vadd.f32 %v478, %v352
    %v480 = vadd.f32 %v479, %v353
    %v481 = vadd.f32 %v480, %v354
    %v482 = vadd.f32 %v481, %v355
    %v483 = vadd.f32 %v482, %v356
    %v484 = vadd.f32 %v483, %v357
    %v485 = vadd.f32 %v484, %v358
    %v486 = vadd.f32 %v485, %v359
    %v487 = vadd.f32 %v486, %v360
    %v488 = vadd.f32 %v487, %v361
    %v489 = vadd.f32 %v488, %v362
    %v490 = vadd.f32 %v489, %v363
    %v491 = vadd.f32 %v490, %v364
    %v492 = vadd.f32 %v491, %v365
    %v493 = vadd.f32 %v492, %v366
    %v494 = vadd.f32 %v493, %v367
    %v495 = vadd.f32 %v494, %v368
    %v496 = vadd.f32 %v495, %v369
    %v497 = vadd.f32 %v496, %v370
    %v498 = vadd.f32 %v497, %v371
    %v499 = vadd.f32 %v498, %v372
    %v500 = vadd.f32 %v499, %v373
    %v501 = vadd.f32 %v500, %v374
    %v502 = vadd.f32 %v501, %v375
    %v503 = vadd.f32 %v502, %v376
    %v504 = vadd.f32 %v503, %v377
    %v505 = vadd.f32 %v504, %v378
    %v506 = vadd.f32 %v505, %v379
    %v507 = vadd.f32 %v506, %v380
    %v508 = vadd.f32 %v507, %v381
    %v509 = vadd.f32 %v508, %v382
    %v510 = vadd.f32 %v509, %v383
    %v511 = vadd.f32 %v510, %v384
    %v512 = vadd.f32 %v511, %v385
    %v513 = vadd.f32 %v512, %v386
    %v514 = vadd.f32 %v513, %v387
    %v515 = vadd.f32 %v514, %v388
    %v516 = vadd.f32 %v515, %v389
    %v517 = vadd.f32 %v516, %v390
    %v518 = vadd.f32 %v517, %v391
    %v519 = vadd.f32 %v518, %v392
    %v520 = vadd.f32 %v519, %v393
    %v521 = vadd.f32 %v520, %v394
    %v522 = vadd.f32 %v521, %v395
    %v523 = vadd.f32 %v522, %v396
    %v524 = vadd.f32 %v523, %v397
    %v525 = vadd.f32 %v524, %v398
    %v526 = vadd.f32 %v525, %v399
    %v527 = vadd.f32 %v526, %v400
    %v528 = vadd.f32 %v527, %v401
    %v529 = vadd.f32 %v528, %v402
    %v530 = vadd.f32 %v529, %v403
    %v531 = vadd.f32 %v530, %v404
    %v532 = vadd.f32 %v531, %v405
    %v533 = vadd.f32 %v532, %v406
    %v534 = vadd.f32 %v533, %v407
    %v535 = vadd.f32 %v534, %v408
    %v536 = vadd.f32 %v535, %v409
    %v537 = vadd.f32 %v536, %v410
    %v538 = vadd.f32 %v537, %v411
    %v539 = vadd.f32 %v538, %v412
    %v540 = vadd.f32 %v539, %v413
    %v541 = vadd.f32 %v540, %v414
    %v542 = vadd.f32 %v541, %v415
    %v543 = vadd.f32 %v542, %v416
    %v544 = vrot.slane %v543, 4
    %v545 = vadd.f32 %v543, %v544
    %v546 = vrot.slane %v545, 2
    %v547 = vadd.f32 %v545, %v546
    %v548 = vrot.slane %v547, 1
    %v549 = vadd.f32 %v547, %v548
    %v550 = vld [vmem:[#allocation5] sm:$0x3]
    %vm551 = vcmask 1040384
    %v552 = vsel %vm551, %v288, %v549
    %v553 = vadd.f32 %v550, %v552
    %554 = vst [vmem:[#allocation5] sm:$0x3] %v553
    // Predicated region
    $region14: #{resnet_block_forward.8} parent=1 // pred_check
      _
    $region15: #{resnet_block_forward.8} parent=1 // pred_check_branch
      %556 = sbr.rel (0) target = $region17
    $region16: #{resnet_block_forward.8} parent=1 // pred_region
      %s558 = ssub.s32 32, 32
      %559 = vsyncadd [#allocation4], %s558
      %s561 = sshll.u32 [#allocation5], 4
      %s562 = int_to_ptr.vmem [resolvable:$true] %s561
      %564 = dma.vmem_to_hbm [thread:$0]  %s562, 32, %s1, [#allocation4]
    $region17: #{resnet_block_forward.8} parent=1 // pred_fallthru
      _
    // Predicated region
    $region18: #{resnet_block_forward.8} parent=1 // pred_check
      _
    $region19: #{resnet_block_forward.8} parent=1 // pred_check_branch
      %566 = sbr.rel (0) target = $region21
    $region20: #{resnet_block_forward.8} parent=1 // pred_region
      %567 = dma.done [#allocation4], 32
    $region21: #{resnet_block_forward.8} parent=1 // pred_fallthru
      _
    %568 = vsyncpa [#allocation3], 1
    %569 = vsyncpa [#allocation4], 1

// kernel: resnet_block_forward.9
$region0: #{resnet_block_forward.9}
  #allocation0 [shape = 'u32[]', space=smem, size = 0x4, offset = 0x4, fixed_abs, tag = 'smem constant byte address 0x4 - core index']
  #allocation1 [shape = 'u32[144,128]{1,0:T(1,128)}', space=vmem, size = 0x12000, scoped, tag = 'internal scratch']
  %s0 = inlined_call_operand.hbm [shape: f32[1024,128], index: 0, kind: input, shape index: {}]
  %s1 = inlined_call_operand.hbm [shape: f32[2,128], index: 1, kind: input, shape index: {}]
  %s2 = inlined_call_operand.hbm [shape: f32[1,128], index: 2, kind: input, shape index: {}]
  %s3 = inlined_call_operand.hbm [shape: f32[1,128], index: 3, kind: input, shape index: {}]
  %s4 = inlined_call_operand.hbm [shape: bf16[1024,128], index: 4, kind: output, shape index: {}]
  %s5 = sld [smem:[#allocation0]]
  $region42: #{resnet_block_forward.9} parent=0
    _
  %s7 = ssub.s32 1, %s5
  %s8 = scalar_select 0, %s7, %s5
  $region1: #{resnet_block_forward.9} parent=0
    #allocation2 [shape = 'u8[524288]{0}', space=vmem, size = 0x80000, scoped, tag = 'input window, operand 0, single buffered']
    #allocation3 [shape = 's32[1]{0}', space=sflag, size = 0x4, scoped, tag = 'scoped memory for resnet_block_forward.9']
    #allocation4 [shape = 's32[1]{0}', space=sflag, size = 0x4, scoped, tag = 'scoped memory for resnet_block_forward.9']
    #allocation5 [shape = 'u8[1024]{0}', space=vmem, size = 0x400, scoped, tag = 'input window, operand 1, single buffered']
    #allocation6 [shape = 's32[1]{0}', space=sflag, size = 0x4, scoped, tag = 'scoped memory for resnet_block_forward.9']
    #allocation7 [shape = 'u8[512]{0}', space=vmem, size = 0x400, scoped, tag = 'input window, operand 2, single buffered']
    #allocation8 [shape = 'u8[512]{0}', space=vmem, size = 0x400, scoped, tag = 'input window, operand 3, single buffered']
    #allocation9 [shape = 's32[1]{0}', space=sflag, size = 0x4, scoped, tag = 'scoped memory for resnet_block_forward.9']
    #allocation10 [shape = 'u8[262144]{0}', space=vmem, size = 0x40000, scoped, tag = 'output window, operand 0, single buffered']
    %9 = vsyncpa [#allocation3], 0
    %10 = vsyncpa [#allocation6], 0
    %11 = vsyncpa [#allocation9], 0
    %12 = vsyncpa [#allocation4], 0
    // Predicated region
    $region2: #{resnet_block_forward.9} parent=1 // pred_check
      _
    $region3: #{resnet_block_forward.9} parent=1 // pred_check_branch
      %14 = sbr.rel (0) target = $region5
    $region4: #{resnet_block_forward.9} parent=1 // pred_region
      %s16 = ssub.s32 16384, 16384
      %17 = vsyncadd [#allocation3], %s16
      %s18 = sshll.u32 [#allocation2], 4
      %s19 = int_to_ptr.vmem [resolvable:$true] %s18
      %24 = dma.hbm_to_vmem [thread:$0]  %s0, 16384, %s19, [#allocation3], 128, 128, 8
    $region5: #{resnet_block_forward.9} parent=1 // pred_fallthru
      _
    // Predicated region
    $region6: #{resnet_block_forward.9} parent=1 // pred_check
      _
    $region7: #{resnet_block_forward.9} parent=1 // pred_check_branch
      %26 = sbr.rel (0) target = $region9
    $region8: #{resnet_block_forward.9} parent=1 // pred_region
      %s28 = ssub.s32 32, 32
      %29 = vsyncadd [#allocation6], %s28
      %s31 = sshll.u32 [#allocation5], 4
      %s32 = int_to_ptr.vmem [resolvable:$true] %s31
      %34 = dma.hbm_to_vmem [thread:$0]  %s1, 32, %s32, [#allocation6]
    $region9: #{resnet_block_forward.9} parent=1 // pred_fallthru
      _
    // Predicated region
    $region10: #{resnet_block_forward.9} parent=1 // pred_check
      _
    $region11: #{resnet_block_forward.9} parent=1 // pred_check_branch
      %36 = sbr.rel (0) target = $region13
    $region12: #{resnet_block_forward.9} parent=1 // pred_region
      %s38 = ssub.s32 16, 16
      %39 = vsyncadd [#allocation6], %s38
      %s41 = sshll.u32 [#allocation7], 4
      %s42 = int_to_ptr.vmem [resolvable:$true] %s41
      %44 = dma.hbm_to_vmem [thread:$0]  %s2, 16, %s42, [#allocation6]
    $region13: #{resnet_block_forward.9} parent=1 // pred_fallthru
      _
    // Predicated region
    $region14: #{resnet_block_forward.9} parent=1 // pred_check
      _
    $region15: #{resnet_block_forward.9} parent=1 // pred_check_branch
      %46 = sbr.rel (0) target = $region17
    $region16: #{resnet_block_forward.9} parent=1 // pred_region
      %s48 = ssub.s32 16, 16
      %49 = vsyncadd [#allocation9], %s48
      %s51 = sshll.u32 [#allocation8], 4
      %s52 = int_to_ptr.vmem [resolvable:$true] %s51
      %54 = dma.hbm_to_vmem [thread:$0]  %s3, 16, %s52, [#allocation9]
    $region17: #{resnet_block_forward.9} parent=1 // pred_fallthru
      _
    // Predicated region
    $region18: #{resnet_block_forward.9} parent=1 // pred_check
      _
    $region19: #{resnet_block_forward.9} parent=1 // pred_check_branch
      %56 = sbr.rel (0) target = $region21
    $region20: #{resnet_block_forward.9} parent=1 // pred_region
      %57 = dma.done [#allocation3], 16384
    $region21: #{resnet_block_forward.9} parent=1 // pred_fallthru
      _
    // Predicated region
    $region22: #{resnet_block_forward.9} parent=1 // pred_check
      _
    $region23: #{resnet_block_forward.9} parent=1 // pred_check_branch
      %59 = sbr.rel (0) target = $region25
    $region24: #{resnet_block_forward.9} parent=1 // pred_region
      %60 = dma.done [#allocation6], 32
    $region25: #{resnet_block_forward.9} parent=1 // pred_fallthru
      _
    // Predicated region
    $region26: #{resnet_block_forward.9} parent=1 // pred_check
      _
    $region27: #{resnet_block_forward.9} parent=1 // pred_check_branch
      %62 = sbr.rel (0) target = $region29
    $region28: #{resnet_block_forward.9} parent=1 // pred_region
      %63 = dma.done [#allocation6], 16
    $region29: #{resnet_block_forward.9} parent=1 // pred_fallthru
      _
    // Predicated region
    $region30: #{resnet_block_forward.9} parent=1 // pred_check
      _
    $region31: #{resnet_block_forward.9} parent=1 // pred_check_branch
      %65 = sbr.rel (0) target = $region33
    $region32: #{resnet_block_forward.9} parent=1 // pred_region
      %66 = dma.done [#allocation9], 16
    $region33: #{resnet_block_forward.9} parent=1 // pred_fallthru
      _
    %v67 = vld [vmem:[#allocation2] sm:$0xff]
    %v68 = vld [vmem:[#allocation2 + $0x8] sm:$0xff]
    %v69 = vld [vmem:[#allocation2 + $0x10] sm:$0xff]
    %v70 = vld [vmem:[#allocation2 + $0x18] sm:$0xff]
    %v71 = vld [vmem:[#allocation2 + $0x20] sm:$0xff]
    %v72 = vld [vmem:[#allocation2 + $0x28] sm:$0xff]
    %v73 = vld [vmem:[#allocation2 + $0x30] sm:$0xff]
    %v74 = vld [vmem:[#allocation2 + $0x38] sm:$0xff]
    %v75 = vld [vmem:[#allocation2 + $0x40] sm:$0xff]
    %v76 = vld [vmem:[#allocation2 + $0x48] sm:$0xff]
    %v77 = vld [vmem:[#allocation2 + $0x50] sm:$0xff]
    %v78 = vld [vmem:[#allocation2 + $0x58] sm:$0xff]
    %v79 = vld [vmem:[#allocation2 + $0x60] sm:$0xff]
    %v80 = vld [vmem:[#allocation2 + $0x68] sm:$0xff]
    %v81 = vld [vmem:[#allocation2 + $0x70] sm:$0xff]
    %v82 = vld [vmem:[#allocation2 + $0x78] sm:$0xff]
    %v83 = vld [vmem:[#allocation2 + $0x80] sm:$0xff]
    %v84 = vld [vmem:[#allocation2 + $0x88] sm:$0xff]
    %v85 = vld [vmem:[#allocation2 + $0x90] sm:$0xff]
    %v86 = vld [vmem:[#allocation2 + $0x98] sm:$0xff]
    %v87 = vld [vmem:[#allocation2 + $0xa0] sm:$0xff]
    %v88 = vld [vmem:[#allocation2 + $0xa8] sm:$0xff]
    %v89 = vld [vmem:[#allocation2 + $0xb0] sm:$0xff]
    %v90 = vld [vmem:[#allocation2 + $0xb8] sm:$0xff]
    %v91 = vld [vmem:[#allocation2 + $0xc0] sm:$0xff]
    %v92 = vld [vmem:[#allocation2 + $0xc8] sm:$0xff]
    %v93 = vld [vmem:[#allocation2 + $0xd0] sm:$0xff]
    %v94 = vld [vmem:[#allocation2 + $0xd8] sm:$0xff]
    %v95 = vld [vmem:[#allocation2 + $0xe0] sm:$0xff]
    %v96 = vld [vmem:[#allocation2 + $0xe8] sm:$0xff]
    %v97 = vld [vmem:[#allocation2 + $0xf0] sm:$0xff]
    %v98 = vld [vmem:[#allocation2 + $0xf8] sm:$0xff]
    %v99 = vld [vmem:[#allocation2 + $0x100] sm:$0xff]
    %v100 = vld [vmem:[#allocation2 + $0x108] sm:$0xff]
    %v101 = vld [vmem:[#allocation2 + $0x110] sm:$0xff]
    %v102 = vld [vmem:[#allocation2 + $0x118] sm:$0xff]
    %v103 = vld [vmem:[#allocation2 + $0x120] sm:$0xff]
    %v104 = vld [vmem:[#allocation2 + $0x128] sm:$0xff]
    %v105 = vld [vmem:[#allocation2 + $0x130] sm:$0xff]
    %v106 = vld [vmem:[#allocation2 + $0x138] sm:$0xff]
    %v107 = vld [vmem:[#allocation2 + $0x140] sm:$0xff]
    %v108 = vld [vmem:[#allocation2 + $0x148] sm:$0xff]
    %v109 = vld [vmem:[#allocation2 + $0x150] sm:$0xff]
    %v110 = vld [vmem:[#allocation2 + $0x158] sm:$0xff]
    %v111 = vld [vmem:[#allocation2 + $0x160] sm:$0xff]
    %v112 = vld [vmem:[#allocation2 + $0x168] sm:$0xff]
    %v113 = vld [vmem:[#allocation2 + $0x170] sm:$0xff]
    %v114 = vld [vmem:[#allocation2 + $0x178] sm:$0xff]
    %v115 = vld [vmem:[#allocation2 + $0x180] sm:$0xff]
    %v116 = vld [vmem:[#allocation2 + $0x188] sm:$0xff]
    %v117 = vld [vmem:[#allocation2 + $0x190] sm:$0xff]
    %v118 = vld [vmem:[#allocation2 + $0x198] sm:$0xff]
    %v119 = vld [vmem:[#allocation2 + $0x1a0] sm:$0xff]
    %v120 = vld [vmem:[#allocation2 + $0x1a8] sm:$0xff]
    %v121 = vld [vmem:[#allocation2 + $0x1b0] sm:$0xff]
    %v122 = vld [vmem:[#allocation2 + $0x1b8] sm:$0xff]
    %v123 = vld [vmem:[#allocation2 + $0x1c0] sm:$0xff]
    %v124 = vld [vmem:[#allocation2 + $0x1c8] sm:$0xff]
    %v125 = vld [vmem:[#allocation2 + $0x1d0] sm:$0xff]
    %v126 = vld [vmem:[#allocation2 + $0x1d8] sm:$0xff]
    %v127 = vld [vmem:[#allocation2 + $0x1e0] sm:$0xff]
    %v128 = vld [vmem:[#allocation2 + $0x1e8] sm:$0xff]
    %v129 = vld [vmem:[#allocation2 + $0x1f0] sm:$0xff]
    %v130 = vld [vmem:[#allocation2 + $0x1f8] sm:$0xff]
    %v131 = vld [vmem:[#allocation2 + $0x200] sm:$0xff]
    %v132 = vld [vmem:[#allocation2 + $0x208] sm:$0xff]
    %v133 = vld [vmem:[#allocation2 + $0x210] sm:$0xff]
    %v134 = vld [vmem:[#allocation2 + $0x218] sm:$0xff]
    %v135 = vld [vmem:[#allocation2 + $0x220] sm:$0xff]
    %v136 = vld [vmem:[#allocation2 + $0x228] sm:$0xff]
    %v137 = vld [vmem:[#allocation2 + $0x230] sm:$0xff]
    %v138 = vld [vmem:[#allocation2 + $0x238] sm:$0xff]
    %v139 = vld [vmem:[#allocation2 + $0x240] sm:$0xff]
    %v140 = vld [vmem:[#allocation2 + $0x248] sm:$0xff]
    %v141 = vld [vmem:[#allocation2 + $0x250] sm:$0xff]
    %v142 = vld [vmem:[#allocation2 + $0x258] sm:$0xff]
    %v143 = vld [vmem:[#allocation2 + $0x260] sm:$0xff]
    %v144 = vld [vmem:[#allocation2 + $0x268] sm:$0xff]
    %v145 = vld [vmem:[#allocation2 + $0x270] sm:$0xff]
    %v146 = vld [vmem:[#allocation2 + $0x278] sm:$0xff]
    %v147 = vld [vmem:[#allocation2 + $0x280] sm:$0xff]
    %v148 = vld [vmem:[#allocation2 + $0x288] sm:$0xff]
    %v149 = vld [vmem:[#allocation2 + $0x290] sm:$0xff]
    %v150 = vld [vmem:[#allocation2 + $0x298] sm:$0xff]
    %v151 = vld [vmem:[#allocation2 + $0x2a0] sm:$0xff]
    %v152 = vld [vmem:[#allocation2 + $0x2a8] sm:$0xff]
    %v153 = vld [vmem:[#allocation2 + $0x2b0] sm:$0xff]
    %v154 = vld [vmem:[#allocation2 + $0x2b8] sm:$0xff]
    %v155 = vld [vmem:[#allocation2 + $0x2c0] sm:$0xff]
    %v156 = vld [vmem:[#allocation2 + $0x2c8] sm:$0xff]
    %v157 = vld [vmem:[#allocation2 + $0x2d0] sm:$0xff]
    %v158 = vld [vmem:[#allocation2 + $0x2d8] sm:$0xff]
    %v159 = vld [vmem:[#allocation2 + $0x2e0] sm:$0xff]
    %v160 = vld [vmem:[#allocation2 + $0x2e8] sm:$0xff]
    %v161 = vld [vmem:[#allocation2 + $0x2f0] sm:$0xff]
    %v162 = vld [vmem:[#allocation2 + $0x2f8] sm:$0xff]
    %v163 = vld [vmem:[#allocation2 + $0x300] sm:$0xff]
    %v164 = vld [vmem:[#allocation2 + $0x308] sm:$0xff]
    %v165 = vld [vmem:[#allocation2 + $0x310] sm:$0xff]
    %v166 = vld [vmem:[#allocation2 + $0x318] sm:$0xff]
    %v167 = vld [vmem:[#allocation2 + $0x320] sm:$0xff]
    %v168 = vld [vmem:[#allocation2 + $0x328] sm:$0xff]
    %v169 = vld [vmem:[#allocation2 + $0x330] sm:$0xff]
    %v170 = vld [vmem:[#allocation2 + $0x338] sm:$0xff]
    %v171 = vld [vmem:[#allocation2 + $0x340] sm:$0xff]
    %v172 = vld [vmem:[#allocation2 + $0x348] sm:$0xff]
    %v173 = vld [vmem:[#allocation2 + $0x350] sm:$0xff]
    %v174 = vld [vmem:[#allocation2 + $0x358] sm:$0xff]
    %v175 = vld [vmem:[#allocation2 + $0x360] sm:$0xff]
    %v176 = vld [vmem:[#allocation2 + $0x368] sm:$0xff]
    %v177 = vld [vmem:[#allocation2 + $0x370] sm:$0xff]
    %v178 = vld [vmem:[#allocation2 + $0x378] sm:$0xff]
    %v179 = vld [vmem:[#allocation2 + $0x380] sm:$0xff]
    %v180 = vld [vmem:[#allocation2 + $0x388] sm:$0xff]
    %v181 = vld [vmem:[#allocation2 + $0x390] sm:$0xff]
    %v182 = vld [vmem:[#allocation2 + $0x398] sm:$0xff]
    %v183 = vld [vmem:[#allocation2 + $0x3a0] sm:$0xff]
    %v184 = vld [vmem:[#allocation2 + $0x3a8] sm:$0xff]
    %v185 = vld [vmem:[#allocation2 + $0x3b0] sm:$0xff]
    %v186 = vld [vmem:[#allocation2 + $0x3b8] sm:$0xff]
    %v187 = vld [vmem:[#allocation2 + $0x3c0] sm:$0xff]
    %v188 = vld [vmem:[#allocation2 + $0x3c8] sm:$0xff]
    %v189 = vld [vmem:[#allocation2 + $0x3d0] sm:$0xff]
    %v190 = vld [vmem:[#allocation2 + $0x3d8] sm:$0xff]
    %v191 = vld [vmem:[#allocation2 + $0x3e0] sm:$0xff]
    %v192 = vld [vmem:[#allocation2 + $0x3e8] sm:$0xff]
    %v193 = vld [vmem:[#allocation2 + $0x3f0] sm:$0xff]
    %v194 = vld [vmem:[#allocation2 + $0x3f8] sm:$0xff]
    %v195 = vld [vmem:[#allocation5] sm:$0x1]
    %v196 = vrcp.pop 1024.0
    %v197 = vmul.f32 %v195, %v196
    %v198 = vld [vmem:[#allocation5 + $0x1] sm:$0x1]
    %v199 = vmul.f32 %v198, %v196
    %v200 = vmul.f32 %v197, %v197
    %v201 = vsub.f32 %v199, %v200
    %v202 = vmax.f32 %v201, 0.0
    %v203 = vadd.f32 %v202, 1e-08
    %v204 = vrsqrt.pop %v203
    %v205 = vlaneseq
    %v206 = vshrl.u32 %v205, 7
    %v207 = vsub.s32 0, %v206
    %v208 = vrot.slane %v197, %v207
    %v209 = vsub.f32 %v67, %v208
    %v210 = vsub.f32 %v68, %v208
    %v211 = vsub.f32 %v69, %v208
    %v212 = vsub.f32 %v70, %v208
    %v213 = vsub.f32 %v71, %v208
    %v214 = vsub.f32 %v72, %v208
    %v215 = vsub.f32 %v73, %v208
    %v216 = vsub.f32 %v74, %v208
    %v217 = vsub.f32 %v75, %v208
    %v218 = vsub.f32 %v76, %v208
    %v219 = vsub.f32 %v77, %v208
    %v220 = vsub.f32 %v78, %v208
    %v221 = vsub.f32 %v79, %v208
    %v222 = vsub.f32 %v80, %v208
    %v223 = vsub.f32 %v81, %v208
    %v224 = vsub.f32 %v82, %v208
    %v225 = vsub.f32 %v83, %v208
    %v226 = vsub.f32 %v84, %v208
    %v227 = vsub.f32 %v85, %v208
    %v228 = vsub.f32 %v86, %v208
    %v229 = vsub.f32 %v87, %v208
    %v230 = vsub.f32 %v88, %v208
    %v231 = vsub.f32 %v89, %v208
    %v232 = vsub.f32 %v90, %v208
    %v233 = vsub.f32 %v91, %v208
    %v234 = vsub.f32 %v92, %v208
    %v235 = vsub.f32 %v93, %v208
    %v236 = vsub.f32 %v94, %v208
    %v237 = vsub.f32 %v95, %v208
    %v238 = vsub.f32 %v96, %v208
    %v239 = vsub.f32 %v97, %v208
    %v240 = vsub.f32 %v98, %v208
    %v241 = vsub.f32 %v99, %v208
    %v242 = vsub.f32 %v100, %v208
    %v243 = vsub.f32 %v101, %v208
    %v244 = vsub.f32 %v102, %v208
    %v245 = vsub.f32 %v103, %v208
    %v246 = vsub.f32 %v104, %v208
    %v247 = vsub.f32 %v105, %v208
    %v248 = vsub.f32 %v106, %v208
    %v249 = vsub.f32 %v107, %v208
    %v250 = vsub.f32 %v108, %v208
    %v251 = vsub.f32 %v109, %v208
    %v252 = vsub.f32 %v110, %v208
    %v253 = vsub.f32 %v111, %v208
    %v254 = vsub.f32 %v112, %v208
    %v255 = vsub.f32 %v113, %v208
    %v256 = vsub.f32 %v114, %v208
    %v257 = vsub.f32 %v115, %v208
    %v258 = vsub.f32 %v116, %v208
    %v259 = vsub.f32 %v117, %v208
    %v260 = vsub.f32 %v118, %v208
    %v261 = vsub.f32 %v119, %v208
    %v262 = vsub.f32 %v120, %v208
    %v263 = vsub.f32 %v121, %v208
    %v264 = vsub.f32 %v122, %v208
    %v265 = vsub.f32 %v123, %v208
    %v266 = vsub.f32 %v124, %v208
    %v267 = vsub.f32 %v125, %v208
    %v268 = vsub.f32 %v126, %v208
    %v269 = vsub.f32 %v127, %v208
    %v270 = vsub.f32 %v128, %v208
    %v271 = vsub.f32 %v129, %v208
    %v272 = vsub.f32 %v130, %v208
    %v273 = vsub.f32 %v131, %v208
    %v274 = vsub.f32 %v132, %v208
    %v275 = vsub.f32 %v133, %v208
    %v276 = vsub.f32 %v134, %v208
    %v277 = vsub.f32 %v135, %v208
    %v278 = vsub.f32 %v136, %v208
    %v279 = vsub.f32 %v137, %v208
    %v280 = vsub.f32 %v138, %v208
    %v281 = vsub.f32 %v139, %v208
    %v282 = vsub.f32 %v140, %v208
    %v283 = vsub.f32 %v141, %v208
    %v284 = vsub.f32 %v142, %v208
    %v285 = vsub.f32 %v143, %v208
    %v286 = vsub.f32 %v144, %v208
    %v287 = vsub.f32 %v145, %v208
    %v288 = vsub.f32 %v146, %v208
    %v289 = vsub.f32 %v147, %v208
    %v290 = vsub.f32 %v148, %v208
    %v291 = vsub.f32 %v149, %v208
    %v292 = vsub.f32 %v150, %v208
    %v293 = vsub.f32 %v151, %v208
    %v294 = vsub.f32 %v152, %v208
    %v295 = vsub.f32 %v153, %v208
    %v296 = vsub.f32 %v154, %v208
    %v297 = vsub.f32 %v155, %v208
    %v298 = vsub.f32 %v156, %v208
    %v299 = vsub.f32 %v157, %v208
    %v300 = vsub.f32 %v158, %v208
    %v301 = vsub.f32 %v159, %v208
    %v302 = vsub.f32 %v160, %v208
    %v303 = vsub.f32 %v161, %v208
    %v304 = vsub.f32 %v162, %v208
    %v305 = vsub.f32 %v163, %v208
    %v306 = vsub.f32 %v164, %v208
    %v307 = vsub.f32 %v165, %v208
    %v308 = vsub.f32 %v166, %v208
    %v309 = vsub.f32 %v167, %v208
    %v310 = vsub.f32 %v168, %v208
    %v311 = vsub.f32 %v169, %v208
    %v312 = vsub.f32 %v170, %v208
    %v313 = vsub.f32 %v171, %v208
    %v314 = vsub.f32 %v172, %v208
    %v315 = vsub.f32 %v173, %v208
    %v316 = vsub.f32 %v174, %v208
    %v317 = vsub.f32 %v175, %v208
    %v318 = vsub.f32 %v176, %v208
    %v319 = vsub.f32 %v177, %v208
    %v320 = vsub.f32 %v178, %v208
    %v321 = vsub.f32 %v179, %v208
    %v322 = vsub.f32 %v180, %v208
    %v323 = vsub.f32 %v181, %v208
    %v324 = vsub.f32 %v182, %v208
    %v325 = vsub.f32 %v183, %v208
    %v326 = vsub.f32 %v184, %v208
    %v327 = vsub.f32 %v185, %v208
    %v328 = vsub.f32 %v186, %v208
    %v329 = vsub.f32 %v187, %v208
    %v330 = vsub.f32 %v188, %v208
    %v331 = vsub.f32 %v189, %v208
    %v332 = vsub.f32 %v190, %v208
    %v333 = vsub.f32 %v191, %v208
    %v334 = vsub.f32 %v192, %v208
    %v335 = vsub.f32 %v193, %v208
    %v336 = vsub.f32 %v194, %v208
    %v337 = vlaneseq
    %v338 = vshrl.u32 %v337, 7
    %v339 = vsub.s32 0, %v338
    %v340 = vrot.slane %v204, %v339
    %v341 = vmul.f32 %v209, %v340
    %v342 = vmul.f32 %v210, %v340
    %v343 = vmul.f32 %v211, %v340
    %v344 = vmul.f32 %v212, %v340
    %v345 = vmul.f32 %v213, %v340
    %v346 = vmul.f32 %v214, %v340
    %v347 = vmul.f32 %v215, %v340
    %v348 = vmul.f32 %v216, %v340
    %v349 = vmul.f32 %v217, %v340
    %v350 = vmul.f32 %v218, %v340
    %v351 = vmul.f32 %v219, %v340
    %v352 = vmul.f32 %v220, %v340
    %v353 = vmul.f32 %v221, %v340
    %v354 = vmul.f32 %v222, %v340
    %v355 = vmul.f32 %v223, %v340
    %v356 = vmul.f32 %v224, %v340
    %v357 = vmul.f32 %v225, %v340
    %v358 = vmul.f32 %v226, %v340
    %v359 = vmul.f32 %v227, %v340
    %v360 = vmul.f32 %v228, %v340
    %v361 = vmul.f32 %v229, %v340
    %v362 = vmul.f32 %v230, %v340
    %v363 = vmul.f32 %v231, %v340
    %v364 = vmul.f32 %v232, %v340
    %v365 = vmul.f32 %v233, %v340
    %v366 = vmul.f32 %v234, %v340
    %v367 = vmul.f32 %v235, %v340
    %v368 = vmul.f32 %v236, %v340
    %v369 = vmul.f32 %v237, %v340
    %v370 = vmul.f32 %v238, %v340
    %v371 = vmul.f32 %v239, %v340
    %v372 = vmul.f32 %v240, %v340
    %v373 = vmul.f32 %v241, %v340
    %v374 = vmul.f32 %v242, %v340
    %v375 = vmul.f32 %v243, %v340
    %v376 = vmul.f32 %v244, %v340
    %v377 = vmul.f32 %v245, %v340
    %v378 = vmul.f32 %v246, %v340
    %v379 = vmul.f32 %v247, %v340
    %v380 = vmul.f32 %v248, %v340
    %v381 = vmul.f32 %v249, %v340
    %v382 = vmul.f32 %v250, %v340
    %v383 = vmul.f32 %v251, %v340
    %v384 = vmul.f32 %v252, %v340
    %v385 = vmul.f32 %v253, %v340
    %v386 = vmul.f32 %v254, %v340
    %v387 = vmul.f32 %v255, %v340
    %v388 = vmul.f32 %v256, %v340
    %v389 = vmul.f32 %v257, %v340
    %v390 = vmul.f32 %v258, %v340
    %v391 = vmul.f32 %v259, %v340
    %v392 = vmul.f32 %v260, %v340
    %v393 = vmul.f32 %v261, %v340
    %v394 = vmul.f32 %v262, %v340
    %v395 = vmul.f32 %v263, %v340
    %v396 = vmul.f32 %v264, %v340
    %v397 = vmul.f32 %v265, %v340
    %v398 = vmul.f32 %v266, %v340
    %v399 = vmul.f32 %v267, %v340
    %v400 = vmul.f32 %v268, %v340
    %v401 = vmul.f32 %v269, %v340
    %v402 = vmul.f32 %v270, %v340
    %v403 = vmul.f32 %v271, %v340
    %v404 = vmul.f32 %v272, %v340
    %v405 = vmul.f32 %v273, %v340
    %v406 = vmul.f32 %v274, %v340
    %v407 = vmul.f32 %v275, %v340
    %v408 = vmul.f32 %v276, %v340
    %v409 = vmul.f32 %v277, %v340
    %v410 = vmul.f32 %v278, %v340
    %v411 = vmul.f32 %v279, %v340
    %v412 = vmul.f32 %v280, %v340
    %v413 = vmul.f32 %v281, %v340
    %v414 = vmul.f32 %v282, %v340
    %v415 = vmul.f32 %v283, %v340
    %v416 = vmul.f32 %v284, %v340
    %v417 = vmul.f32 %v285, %v340
    %v418 = vmul.f32 %v286, %v340
    %v419 = vmul.f32 %v287, %v340
    %v420 = vmul.f32 %v288, %v340
    %v421 = vmul.f32 %v289, %v340
    %v422 = vmul.f32 %v290, %v340
    %v423 = vmul.f32 %v291, %v340
    %v424 = vmul.f32 %v292, %v340
    %v425 = vmul.f32 %v293, %v340
    %v426 = vmul.f32 %v294, %v340
    %v427 = vmul.f32 %v295, %v340
    %v428 = vmul.f32 %v296, %v340
    %v429 = vmul.f32 %v297, %v340
    %v430 = vmul.f32 %v298, %v340
    %v431 = vmul.f32 %v299, %v340
    %v432 = vmul.f32 %v300, %v340
    %v433 = vmul.f32 %v301, %v340
    %v434 = vmul.f32 %v302, %v340
    %v435 = vmul.f32 %v303, %v340
    %v436 = vmul.f32 %v304, %v340
    %v437 = vmul.f32 %v305, %v340
    %v438 = vmul.f32 %v306, %v340
    %v439 = vmul.f32 %v307, %v340
    %v440 = vmul.f32 %v308, %v340
    %v441 = vmul.f32 %v309, %v340
    %v442 = vmul.f32 %v310, %v340
    %v443 = vmul.f32 %v311, %v340
    %v444 = vmul.f32 %v312, %v340
    %v445 = vmul.f32 %v313, %v340
    %v446 = vmul.f32 %v314, %v340
    %v447 = vmul.f32 %v315, %v340
    %v448 = vmul.f32 %v316, %v340
    %v449 = vmul.f32 %v317, %v340
    %v450 = vmul.f32 %v318, %v340
    %v451 = vmul.f32 %v319, %v340
    %v452 = vmul.f32 %v320, %v340
    %v453 = vmul.f32 %v321, %v340
    %v454 = vmul.f32 %v322, %v340
    %v455 = vmul.f32 %v323, %v340
    %v456 = vmul.f32 %v324, %v340
    %v457 = vmul.f32 %v325, %v340
    %v458 = vmul.f32 %v326, %v340
    %v459 = vmul.f32 %v327, %v340
    %v460 = vmul.f32 %v328, %v340
    %v461 = vmul.f32 %v329, %v340
    %v462 = vmul.f32 %v330, %v340
    %v463 = vmul.f32 %v331, %v340
    %v464 = vmul.f32 %v332, %v340
    %v465 = vmul.f32 %v333, %v340
    %v466 = vmul.f32 %v334, %v340
    %v467 = vmul.f32 %v335, %v340
    %v468 = vmul.f32 %v336, %v340
    %v469 = vld [vmem:[#allocation7] sm:$0x1]
    %v471 = vlaneseq
    %v472 = vshrl.u32 %v471, 7
    %v473 = vsub.s32 0, %v472
    %v474 = vrot.slane %v469, %v473
    %v476 = vmul.f32 %v341, %v474
    %v477 = vmul.f32 %v342, %v474
    %v478 = vmul.f32 %v343, %v474
    %v479 = vmul.f32 %v344, %v474
    %v480 = vmul.f32 %v345, %v474
    %v481 = vmul.f32 %v346, %v474
    %v482 = vmul.f32 %v347, %v474
    %v483 = vmul.f32 %v348, %v474
    %v484 = vmul.f32 %v349, %v474
    %v485 = vmul.f32 %v350, %v474
    %v486 = vmul.f32 %v351, %v474
    %v487 = vmul.f32 %v352, %v474
    %v488 = vmul.f32 %v353, %v474
    %v489 = vmul.f32 %v354, %v474
    %v490 = vmul.f32 %v355, %v474
    %v491 = vmul.f32 %v356, %v474
    %v492 = vmul.f32 %v357, %v474
    %v493 = vmul.f32 %v358, %v474
    %v494 = vmul.f32 %v359, %v474
    %v495 = vmul.f32 %v360, %v474
    %v496 = vmul.f32 %v361, %v474
    %v497 = vmul.f32 %v362, %v474
    %v498 = vmul.f32 %v363, %v474
    %v499 = vmul.f32 %v364, %v474
    %v500 = vmul.f32 %v365, %v474
    %v501 = vmul.f32 %v366, %v474
    %v502 = vmul.f32 %v367, %v474
    %v503 = vmul.f32 %v368, %v474
    %v504 = vmul.f32 %v369, %v474
    %v505 = vmul.f32 %v370, %v474
    %v506 = vmul.f32 %v371, %v474
    %v507 = vmul.f32 %v372, %v474
    %v508 = vmul.f32 %v373, %v474
    %v509 = vmul.f32 %v374, %v474
    %v510 = vmul.f32 %v375, %v474
    %v511 = vmul.f32 %v376, %v474
    %v512 = vmul.f32 %v377, %v474
    %v513 = vmul.f32 %v378, %v474
    %v514 = vmul.f32 %v379, %v474
    %v515 = vmul.f32 %v380, %v474
    %v516 = vmul.f32 %v381, %v474
    %v517 = vmul.f32 %v382, %v474
    %v518 = vmul.f32 %v383, %v474
    %v519 = vmul.f32 %v384, %v474
    %v520 = vmul.f32 %v385, %v474
    %v521 = vmul.f32 %v386, %v474
    %v522 = vmul.f32 %v387, %v474
    %v523 = vmul.f32 %v388, %v474
    %v524 = vmul.f32 %v389, %v474
    %v525 = vmul.f32 %v390, %v474
    %v526 = vmul.f32 %v391, %v474
    %v527 = vmul.f32 %v392, %v474
    %v528 = vmul.f32 %v393, %v474
    %v529 = vmul.f32 %v394, %v474
    %v530 = vmul.f32 %v395, %v474
    %v531 = vmul.f32 %v396, %v474
    %v532 = vmul.f32 %v397, %v474
    %v533 = vmul.f32 %v398, %v474
    %v534 = vmul.f32 %v399, %v474
    %v535 = vmul.f32 %v400, %v474
    %v536 = vmul.f32 %v401, %v474
    %v537 = vmul.f32 %v402, %v474
    %v538 = vmul.f32 %v403, %v474
    %v539 = vmul.f32 %v404, %v474
    %v540 = vmul.f32 %v405, %v474
    %v541 = vmul.f32 %v406, %v474
    %v542 = vmul.f32 %v407, %v474
    %v543 = vmul.f32 %v408, %v474
    %v544 = vmul.f32 %v409, %v474
    %v545 = vmul.f32 %v410, %v474
    %v546 = vmul.f32 %v411, %v474
    %v547 = vmul.f32 %v412, %v474
    %v548 = vmul.f32 %v413, %v474
    %v549 = vmul.f32 %v414, %v474
    %v550 = vmul.f32 %v415, %v474
    %v551 = vmul.f32 %v416, %v474
    %v552 = vmul.f32 %v417, %v474
    %v553 = vmul.f32 %v418, %v474
    %v554 = vmul.f32 %v419, %v474
    %v555 = vmul.f32 %v420, %v474
    %v556 = vmul.f32 %v421, %v474
    %v557 = vmul.f32 %v422, %v474
    %v558 = vmul.f32 %v423, %v474
    %v559 = vmul.f32 %v424, %v474
    %v560 = vmul.f32 %v425, %v474
    %v561 = vmul.f32 %v426, %v474
    %v562 = vmul.f32 %v427, %v474
    %v563 = vmul.f32 %v428, %v474
    %v564 = vmul.f32 %v429, %v474
    %v565 = vmul.f32 %v430, %v474
    %v566 = vmul.f32 %v431, %v474
    %v567 = vmul.f32 %v432, %v474
    %v568 = vmul.f32 %v433, %v474
    %v569 = vmul.f32 %v434, %v474
    %v570 = vmul.f32 %v435, %v474
    %v571 = vmul.f32 %v436, %v474
    %v572 = vmul.f32 %v437, %v474
    %v573 = vmul.f32 %v438, %v474
    %v574 = vmul.f32 %v439, %v474
    %v575 = vmul.f32 %v440, %v474
    %v576 = vmul.f32 %v441, %v474
    %v577 = vmul.f32 %v442, %v474
    %v578 = vmul.f32 %v443, %v474
    %v579 = vmul.f32 %v444, %v474
    %v580 = vmul.f32 %v445, %v474
    %v581 = vmul.f32 %v446, %v474
    %v582 = vmul.f32 %v447, %v474
    %v583 = vmul.f32 %v448, %v474
    %v584 = vmul.f32 %v449, %v474
    %v585 = vmul.f32 %v450, %v474
    %v586 = vmul.f32 %v451, %v474
    %v587 = vmul.f32 %v452, %v474
    %v588 = vmul.f32 %v453, %v474
    %v589 = vmul.f32 %v454, %v474
    %v590 = vmul.f32 %v455, %v474
    %v591 = vmul.f32 %v456, %v474
    %v592 = vmul.f32 %v457, %v474
    %v593 = vmul.f32 %v458, %v474
    %v594 = vmul.f32 %v459, %v474
    %v595 = vmul.f32 %v460, %v474
    %v596 = vmul.f32 %v461, %v474
    %v597 = vmul.f32 %v462, %v474
    %v598 = vmul.f32 %v463, %v474
    %v599 = vmul.f32 %v464, %v474
    %v600 = vmul.f32 %v465, %v474
    %v601 = vmul.f32 %v466, %v474
    %v602 = vmul.f32 %v467, %v474
    %v603 = vmul.f32 %v468, %v474
    %v604 = vld [vmem:[#allocation8] sm:$0x1]
    %v606 = vlaneseq
    %v607 = vshrl.u32 %v606, 7
    %v608 = vsub.s32 0, %v607
    %v609 = vrot.slane %v604, %v608
    %v611 = vadd.f32 %v476, %v609
    %v612 = vadd.f32 %v477, %v609
    %v613 = vadd.f32 %v478, %v609
    %v614 = vadd.f32 %v479, %v609
    %v615 = vadd.f32 %v480, %v609
    %v616 = vadd.f32 %v481, %v609
    %v617 = vadd.f32 %v482, %v609
    %v618 = vadd.f32 %v483, %v609
    %v619 = vadd.f32 %v484, %v609
    %v620 = vadd.f32 %v485, %v609
    %v621 = vadd.f32 %v486, %v609
    %v622 = vadd.f32 %v487, %v609
    %v623 = vadd.f32 %v488, %v609
    %v624 = vadd.f32 %v489, %v609
    %v625 = vadd.f32 %v490, %v609
    %v626 = vadd.f32 %v491, %v609
    %v627 = vadd.f32 %v492, %v609
    %v628 = vadd.f32 %v493, %v609
    %v629 = vadd.f32 %v494, %v609
    %v630 = vadd.f32 %v495, %v609
    %v631 = vadd.f32 %v496, %v609
    %v632 = vadd.f32 %v497, %v609
    %v633 = vadd.f32 %v498, %v609
    %v634 = vadd.f32 %v499, %v609
    %v635 = vadd.f32 %v500, %v609
    %v636 = vadd.f32 %v501, %v609
    %v637 = vadd.f32 %v502, %v609
    %v638 = vadd.f32 %v503, %v609
    %v639 = vadd.f32 %v504, %v609
    %v640 = vadd.f32 %v505, %v609
    %v641 = vadd.f32 %v506, %v609
    %v642 = vadd.f32 %v507, %v609
    %v643 = vadd.f32 %v508, %v609
    %v644 = vadd.f32 %v509, %v609
    %v645 = vadd.f32 %v510, %v609
    %v646 = vadd.f32 %v511, %v609
    %v647 = vadd.f32 %v512, %v609
    %v648 = vadd.f32 %v513, %v609
    %v649 = vadd.f32 %v514, %v609
    %v650 = vadd.f32 %v515, %v609
    %v651 = vadd.f32 %v516, %v609
    %v652 = vadd.f32 %v517, %v609
    %v653 = vadd.f32 %v518, %v609
    %v654 = vadd.f32 %v519, %v609
    %v655 = vadd.f32 %v520, %v609
    %v656 = vadd.f32 %v521, %v609
    %v657 = vadd.f32 %v522, %v609
    %v658 = vadd.f32 %v523, %v609
    %v659 = vadd.f32 %v524, %v609
    %v660 = vadd.f32 %v525, %v609
    %v661 = vadd.f32 %v526, %v609
    %v662 = vadd.f32 %v527, %v609
    %v663 = vadd.f32 %v528, %v609
    %v664 = vadd.f32 %v529, %v609
    %v665 = vadd.f32 %v530, %v609
    %v666 = vadd.f32 %v531, %v609
    %v667 = vadd.f32 %v532, %v609
    %v668 = vadd.f32 %v533, %v609
    %v669 = vadd.f32 %v534, %v609
    %v670 = vadd.f32 %v535, %v609
    %v671 = vadd.f32 %v536, %v609
    %v672 = vadd.f32 %v537, %v609
    %v673 = vadd.f32 %v538, %v609
    %v674 = vadd.f32 %v539, %v609
    %v675 = vadd.f32 %v540, %v609
    %v676 = vadd.f32 %v541, %v609
    %v677 = vadd.f32 %v542, %v609
    %v678 = vadd.f32 %v543, %v609
    %v679 = vadd.f32 %v544, %v609
    %v680 = vadd.f32 %v545, %v609
    %v681 = vadd.f32 %v546, %v609
    %v682 = vadd.f32 %v547, %v609
    %v683 = vadd.f32 %v548, %v609
    %v684 = vadd.f32 %v549, %v609
    %v685 = vadd.f32 %v550, %v609
    %v686 = vadd.f32 %v551, %v609
    %v687 = vadd.f32 %v552, %v609
    %v688 = vadd.f32 %v553, %v609
    %v689 = vadd.f32 %v554, %v609
    %v690 = vadd.f32 %v555, %v609
    %v691 = vadd.f32 %v556, %v609
    %v692 = vadd.f32 %v557, %v609
    %v693 = vadd.f32 %v558, %v609
    %v694 = vadd.f32 %v559, %v609
    %v695 = vadd.f32 %v560, %v609
    %v696 = vadd.f32 %v561, %v609
    %v697 = vadd.f32 %v562, %v609
    %v698 = vadd.f32 %v563, %v609
    %v699 = vadd.f32 %v564, %v609
    %v700 = vadd.f32 %v565, %v609
    %v701 = vadd.f32 %v566, %v609
    %v702 = vadd.f32 %v567, %v609
    %v703 = vadd.f32 %v568, %v609
    %v704 = vadd.f32 %v569, %v609
    %v705 = vadd.f32 %v570, %v609
    %v706 = vadd.f32 %v571, %v609
    %v707 = vadd.f32 %v572, %v609
    %v708 = vadd.f32 %v573, %v609
    %v709 = vadd.f32 %v574, %v609
    %v710 = vadd.f32 %v575, %v609
    %v711 = vadd.f32 %v576, %v609
    %v712 = vadd.f32 %v577, %v609
    %v713 = vadd.f32 %v578, %v609
    %v714 = vadd.f32 %v579, %v609
    %v715 = vadd.f32 %v580, %v609
    %v716 = vadd.f32 %v581, %v609
    %v717 = vadd.f32 %v582, %v609
    %v718 = vadd.f32 %v583, %v609
    %v719 = vadd.f32 %v584, %v609
    %v720 = vadd.f32 %v585, %v609
    %v721 = vadd.f32 %v586, %v609
    %v722 = vadd.f32 %v587, %v609
    %v723 = vadd.f32 %v588, %v609
    %v724 = vadd.f32 %v589, %v609
    %v725 = vadd.f32 %v590, %v609
    %v726 = vadd.f32 %v591, %v609
    %v727 = vadd.f32 %v592, %v609
    %v728 = vadd.f32 %v593, %v609
    %v729 = vadd.f32 %v594, %v609
    %v730 = vadd.f32 %v595, %v609
    %v731 = vadd.f32 %v596, %v609
    %v732 = vadd.f32 %v597, %v609
    %v733 = vadd.f32 %v598, %v609
    %v734 = vadd.f32 %v599, %v609
    %v735 = vadd.f32 %v600, %v609
    %v736 = vadd.f32 %v601, %v609
    %v737 = vadd.f32 %v602, %v609
    %v738 = vadd.f32 %v603, %v609
    %v739 = vxor.u32 %v611, 2147483648
    %v740 = vxor.u32 %v612, 2147483648
    %v741 = vxor.u32 %v613, 2147483648
    %v742 = vxor.u32 %v614, 2147483648
    %v743 = vxor.u32 %v615, 2147483648
    %v744 = vxor.u32 %v616, 2147483648
    %v745 = vxor.u32 %v617, 2147483648
    %v746 = vxor.u32 %v618, 2147483648
    %v747 = vxor.u32 %v619, 2147483648
    %v748 = vxor.u32 %v620, 2147483648
    %v749 = vxor.u32 %v621, 2147483648
    %v750 = vxor.u32 %v622, 2147483648
    %v751 = vxor.u32 %v623, 2147483648
    %v752 = vxor.u32 %v624, 2147483648
    %v753 = vxor.u32 %v625, 2147483648
    %v754 = vxor.u32 %v626, 2147483648
    %v755 = vxor.u32 %v627, 2147483648
    %v756 = vxor.u32 %v628, 2147483648
    %v757 = vxor.u32 %v629, 2147483648
    %v758 = vxor.u32 %v630, 2147483648
    %v759 = vxor.u32 %v631, 2147483648
    %v760 = vxor.u32 %v632, 2147483648
    %v761 = vxor.u32 %v633, 2147483648
    %v762 = vxor.u32 %v634, 2147483648
    %v763 = vxor.u32 %v635, 2147483648
    %v764 = vxor.u32 %v636, 2147483648
    %v765 = vxor.u32 %v637, 2147483648
    %v766 = vxor.u32 %v638, 2147483648
    %v767 = vxor.u32 %v639, 2147483648
    %v768 = vxor.u32 %v640, 2147483648
    %v769 = vxor.u32 %v641, 2147483648
    %v770 = vxor.u32 %v642, 2147483648
    %v771 = vxor.u32 %v643, 2147483648
    %v772 = vxor.u32 %v644, 2147483648
    %v773 = vxor.u32 %v645, 2147483648
    %v774 = vxor.u32 %v646, 2147483648
    %v775 = vxor.u32 %v647, 2147483648
    %v776 = vxor.u32 %v648, 2147483648
    %v777 = vxor.u32 %v649, 2147483648
    %v778 = vxor.u32 %v650, 2147483648
    %v779 = vxor.u32 %v651, 2147483648
    %v780 = vxor.u32 %v652, 2147483648
    %v781 = vxor.u32 %v653, 2147483648
    %v782 = vxor.u32 %v654, 2147483648
    %v783 = vxor.u32 %v655, 2147483648
    %v784 = vxor.u32 %v656, 2147483648
    %v785 = vxor.u32 %v657, 2147483648
    %v786 = vxor.u32 %v658, 2147483648
    %v787 = vxor.u32 %v659, 2147483648
    %v788 = vxor.u32 %v660, 2147483648
    %v789 = vxor.u32 %v661, 2147483648
    %v790 = vxor.u32 %v662, 2147483648
    %v791 = vxor.u32 %v663, 2147483648
    %v792 = vxor.u32 %v664, 2147483648
    %v793 = vxor.u32 %v665, 2147483648
    %v794 = vxor.u32 %v666, 2147483648
    %v795 = vxor.u32 %v667, 2147483648
    %v796 = vxor.u32 %v668, 2147483648
    %v797 = vxor.u32 %v669, 2147483648
    %v798 = vxor.u32 %v670, 2147483648
    %v799 = vxor.u32 %v671, 2147483648
    %v800 = vxor.u32 %v672, 2147483648
    %v801 = vxor.u32 %v673, 2147483648
    %v802 = vxor.u32 %v674, 2147483648
    %v803 = vxor.u32 %v675, 2147483648
    %v804 = vxor.u32 %v676, 2147483648
    %v805 = vxor.u32 %v677, 2147483648
    %v806 = vxor.u32 %v678, 2147483648
    %v807 = vxor.u32 %v679, 2147483648
    %v808 = vxor.u32 %v680, 2147483648
    %v809 = vxor.u32 %v681, 2147483648
    %v810 = vxor.u32 %v682, 2147483648
    %v811 = vxor.u32 %v683, 2147483648
    %v812 = vxor.u32 %v684, 2147483648
    %v813 = vxor.u32 %v685, 2147483648
    %v814 = vxor.u32 %v686, 2147483648
    %v815 = vxor.u32 %v687, 2147483648
    %v816 = vxor.u32 %v688, 2147483648
    %v817 = vxor.u32 %v689, 2147483648
    %v818 = vxor.u32 %v690, 2147483648
    %v819 = vxor.u32 %v691, 2147483648
    %v820 = vxor.u32 %v692, 2147483648
    %v821 = vxor.u32 %v693, 2147483648
    %v822 = vxor.u32 %v694, 2147483648
    %v823 = vxor.u32 %v695, 2147483648
    %v824 = vxor.u32 %v696, 2147483648
    %v825 = vxor.u32 %v697, 2147483648
    %v826 = vxor.u32 %v698, 2147483648
    %v827 = vxor.u32 %v699, 2147483648
    %v828 = vxor.u32 %v700, 2147483648
    %v829 = vxor.u32 %v701, 2147483648
    %v830 = vxor.u32 %v702, 2147483648
    %v831 = vxor.u32 %v703, 2147483648
    %v832 = vxor.u32 %v704, 2147483648
    %v833 = vxor.u32 %v705, 2147483648
    %v834 = vxor.u32 %v706, 2147483648
    %v835 = vxor.u32 %v707, 2147483648
    %v836 = vxor.u32 %v708, 2147483648
    %v837 = vxor.u32 %v709, 2147483648
    %v838 = vxor.u32 %v710, 2147483648
    %v839 = vxor.u32 %v711, 2147483648
    %v840 = vxor.u32 %v712, 2147483648
    %v841 = vxor.u32 %v713, 2147483648
    %v842 = vxor.u32 %v714, 2147483648
    %v843 = vxor.u32 %v715, 2147483648
    %v844 = vxor.u32 %v716, 2147483648
    %v845 = vxor.u32 %v717, 2147483648
    %v846 = vxor.u32 %v718, 2147483648
    %v847 = vxor.u32 %v719, 2147483648
    %v848 = vxor.u32 %v720, 2147483648
    %v849 = vxor.u32 %v721, 2147483648
    %v850 = vxor.u32 %v722, 2147483648
    %v851 = vxor.u32 %v723, 2147483648
    %v852 = vxor.u32 %v724, 2147483648
    %v853 = vxor.u32 %v725, 2147483648
    %v854 = vxor.u32 %v726, 2147483648
    %v855 = vxor.u32 %v727, 2147483648
    %v856 = vxor.u32 %v728, 2147483648
    %v857 = vxor.u32 %v729, 2147483648
    %v858 = vxor.u32 %v730, 2147483648
    %v859 = vxor.u32 %v731, 2147483648
    %v860 = vxor.u32 %v732, 2147483648
    %v861 = vxor.u32 %v733, 2147483648
    %v862 = vxor.u32 %v734, 2147483648
    %v863 = vxor.u32 %v735, 2147483648
    %v864 = vxor.u32 %v736, 2147483648
    %v865 = vxor.u32 %v737, 2147483648
    %v866 = vxor.u32 %v738, 2147483648
    %v867 = vmul.f32 %v739, 1.442695
    %v868 = vpow.pop %v867
    %v869 = vmul.f32 %v740, 1.442695
    %v870 = vpow.pop %v869
    %v871 = vmul.f32 %v741, 1.442695
    %v872 = vpow.pop %v871
    %v873 = vmul.f32 %v742, 1.442695
    %v874 = vpow.pop %v873
    %v875 = vmul.f32 %v743, 1.442695
    %v876 = vpow.pop %v875
    %v877 = vmul.f32 %v744, 1.442695
    %v878 = vpow.pop %v877
    %v879 = vmul.f32 %v745, 1.442695
    %v880 = vpow.pop %v879
    %v881 = vmul.f32 %v746, 1.442695
    %v882 = vpow.pop %v881
    %v883 = vmul.f32 %v747, 1.442695
    %v884 = vpow.pop %v883
    %v885 = vmul.f32 %v748, 1.442695
    %v886 = vpow.pop %v885
    %v887 = vmul.f32 %v749, 1.442695
    %v888 = vpow.pop %v887
    %v889 = vmul.f32 %v750, 1.442695
    %v890 = vpow.pop %v889
    %v891 = vmul.f32 %v751, 1.442695
    %v892 = vpow.pop %v891
    %v893 = vmul.f32 %v752, 1.442695
    %v894 = vpow.pop %v893
    %v895 = vmul.f32 %v753, 1.442695
    %v896 = vpow.pop %v895
    %v897 = vmul.f32 %v754, 1.442695
    %v898 = vpow.pop %v897
    %v899 = vmul.f32 %v755, 1.442695
    %v900 = vpow.pop %v899
    %v901 = vmul.f32 %v756, 1.442695
    %v902 = vpow.pop %v901
    %v903 = vmul.f32 %v757, 1.442695
    %v904 = vpow.pop %v903
    %v905 = vmul.f32 %v758, 1.442695
    %v906 = vpow.pop %v905
    %v907 = vmul.f32 %v759, 1.442695
    %v908 = vpow.pop %v907
    %v909 = vmul.f32 %v760, 1.442695
    %v910 = vpow.pop %v909
    %v911 = vmul.f32 %v761, 1.442695
    %v912 = vpow.pop %v911
    %v913 = vmul.f32 %v762, 1.442695
    %v914 = vpow.pop %v913
    %v915 = vmul.f32 %v763, 1.442695
    %v916 = vpow.pop %v915
    %v917 = vmul.f32 %v764, 1.442695
    %v918 = vpow.pop %v917
    %v919 = vmul.f32 %v765, 1.442695
    %v920 = vpow.pop %v919
    %v921 = vmul.f32 %v766, 1.442695
    %v922 = vpow.pop %v921
    %v923 = vmul.f32 %v767, 1.442695
    %v924 = vpow.pop %v923
    %v925 = vmul.f32 %v768, 1.442695
    %v926 = vpow.pop %v925
    %v927 = vmul.f32 %v769, 1.442695
    %v928 = vpow.pop %v927
    %v929 = vmul.f32 %v770, 1.442695
    %v930 = vpow.pop %v929
    %v931 = vmul.f32 %v771, 1.442695
    %v932 = vpow.pop %v931
    %v933 = vmul.f32 %v772, 1.442695
    %v934 = vpow.pop %v933
    %v935 = vmul.f32 %v773, 1.442695
    %v936 = vpow.pop %v935
    %v937 = vmul.f32 %v774, 1.442695
    %v938 = vpow.pop %v937
    %v939 = vmul.f32 %v775, 1.442695
    %v940 = vpow.pop %v939
    %v941 = vmul.f32 %v776, 1.442695
    %v942 = vpow.pop %v941
    %v943 = vmul.f32 %v777, 1.442695
    %v944 = vpow.pop %v943
    %v945 = vmul.f32 %v778, 1.442695
    %v946 = vpow.pop %v945
    %v947 = vmul.f32 %v779, 1.442695
    %v948 = vpow.pop %v947
    %v949 = vmul.f32 %v780, 1.442695
    %v950 = vpow.pop %v949
    %v951 = vmul.f32 %v781, 1.442695
    %v952 = vpow.pop %v951
    %v953 = vmul.f32 %v782, 1.442695
    %v954 = vpow.pop %v953
    %v955 = vmul.f32 %v783, 1.442695
    %v956 = vpow.pop %v955
    %v957 = vmul.f32 %v784, 1.442695
    %v958 = vpow.pop %v957
    %v959 = vmul.f32 %v785, 1.442695
    %v960 = vpow.pop %v959
    %v961 = vmul.f32 %v786, 1.442695
    %v962 = vpow.pop %v961
    %v963 = vmul.f32 %v787, 1.442695
    %v964 = vpow.pop %v963
    %v965 = vmul.f32 %v788, 1.442695
    %v966 = vpow.pop %v965
    %v967 = vmul.f32 %v789, 1.442695
    %v968 = vpow.pop %v967
    %v969 = vmul.f32 %v790, 1.442695
    %v970 = vpow.pop %v969
    %v971 = vmul.f32 %v791, 1.442695
    %v972 = vpow.pop %v971
    %v973 = vmul.f32 %v792, 1.442695
    %v974 = vpow.pop %v973
    %v975 = vmul.f32 %v793, 1.442695
    %v976 = vpow.pop %v975
    %v977 = vmul.f32 %v794, 1.442695
    %v978 = vpow.pop %v977
    %v979 = vmul.f32 %v795, 1.442695
    %v980 = vpow.pop %v979
    %v981 = vmul.f32 %v796, 1.442695
    %v982 = vpow.pop %v981
    %v983 = vmul.f32 %v797, 1.442695
    %v984 = vpow.pop %v983
    %v985 = vmul.f32 %v798, 1.442695
    %v986 = vpow.pop %v985
    %v987 = vmul.f32 %v799, 1.442695
    %v988 = vpow.pop %v987
    %v989 = vmul.f32 %v800, 1.442695
    %v990 = vpow.pop %v989
    %v991 = vmul.f32 %v801, 1.442695
    %v992 = vpow.pop %v991
    %v993 = vmul.f32 %v802, 1.442695
    %v994 = vpow.pop %v993
    %v995 = vmul.f32 %v803, 1.442695
    %v996 = vpow.pop %v995
    %v997 = vmul.f32 %v804, 1.442695
    %v998 = vpow.pop %v997
    %v999 = vmul.f32 %v805, 1.442695
    %v1000 = vpow.pop %v999
    %v1001 = vmul.f32 %v806, 1.442695
    %v1002 = vpow.pop %v1001
    %v1003 = vmul.f32 %v807, 1.442695
    %v1004 = vpow.pop %v1003
    %v1005 = vmul.f32 %v808, 1.442695
    %v1006 = vpow.pop %v1005
    %v1007 = vmul.f32 %v809, 1.442695
    %v1008 = vpow.pop %v1007
    %v1009 = vmul.f32 %v810, 1.442695
    %v1010 = vpow.pop %v1009
    %v1011 = vmul.f32 %v811, 1.442695
    %v1012 = vpow.pop %v1011
    %v1013 = vmul.f32 %v812, 1.442695
    %v1014 = vpow.pop %v1013
    %v1015 = vmul.f32 %v813, 1.442695
    %v1016 = vpow.pop %v1015
    %v1017 = vmul.f32 %v814, 1.442695
    %v1018 = vpow.pop %v1017
    %v1019 = vmul.f32 %v815, 1.442695
    %v1020 = vpow.pop %v1019
    %v1021 = vmul.f32 %v816, 1.442695
    %v1022 = vpow.pop %v1021
    %v1023 = vmul.f32 %v817, 1.442695
    %v1024 = vpow.pop %v1023
    %v1025 = vmul.f32 %v818, 1.442695
    %v1026 = vpow.pop %v1025
    %v1027 = vmul.f32 %v819, 1.442695
    %v1028 = vpow.pop %v1027
    %v1029 = vmul.f32 %v820, 1.442695
    %v1030 = vpow.pop %v1029
    %v1031 = vmul.f32 %v821, 1.442695
    %v1032 = vpow.pop %v1031
    %v1033 = vmul.f32 %v822, 1.442695
    %v1034 = vpow.pop %v1033
    %v1035 = vmul.f32 %v823, 1.442695
    %v1036 = vpow.pop %v1035
    %v1037 = vmul.f32 %v824, 1.442695
    %v1038 = vpow.pop %v1037
    %v1039 = vmul.f32 %v825, 1.442695
    %v1040 = vpow.pop %v1039
    %v1041 = vmul.f32 %v826, 1.442695
    %v1042 = vpow.pop %v1041
    %v1043 = vmul.f32 %v827, 1.442695
    %v1044 = vpow.pop %v1043
    %v1045 = vmul.f32 %v828, 1.442695
    %v1046 = vpow.pop %v1045
    %v1047 = vmul.f32 %v829, 1.442695
    %v1048 = vpow.pop %v1047
    %v1049 = vmul.f32 %v830, 1.442695
    %v1050 = vpow.pop %v1049
    %v1051 = vmul.f32 %v831, 1.442695
    %v1052 = vpow.pop %v1051
    %v1053 = vmul.f32 %v832, 1.442695
    %v1054 = vpow.pop %v1053
    %v1055 = vmul.f32 %v833, 1.442695
    %v1056 = vpow.pop %v1055
    %v1057 = vmul.f32 %v834, 1.442695
    %v1058 = vpow.pop %v1057
    %v1059 = vmul.f32 %v835, 1.442695
    %v1060 = vpow.pop %v1059
    %v1061 = vmul.f32 %v836, 1.442695
    %v1062 = vpow.pop %v1061
    %v1063 = vmul.f32 %v837, 1.442695
    %v1064 = vpow.pop %v1063
    %v1065 = vmul.f32 %v838, 1.442695
    %v1066 = vpow.pop %v1065
    %v1067 = vmul.f32 %v839, 1.442695
    %v1068 = vpow.pop %v1067
    %v1069 = vmul.f32 %v840, 1.442695
    %v1070 = vpow.pop %v1069
    %v1071 = vmul.f32 %v841, 1.442695
    %v1072 = vpow.pop %v1071
    %v1073 = vmul.f32 %v842, 1.442695
    %v1074 = vpow.pop %v1073
    %v1075 = vmul.f32 %v843, 1.442695
    %v1076 = vpow.pop %v1075
    %v1077 = vmul.f32 %v844, 1.442695
    %v1078 = vpow.pop %v1077
    %v1079 = vmul.f32 %v845, 1.442695
    %v1080 = vpow.pop %v1079
    %v1081 = vmul.f32 %v846, 1.442695
    %v1082 = vpow.pop %v1081
    %v1083 = vmul.f32 %v847, 1.442695
    %v1084 = vpow.pop %v1083
    %v1085 = vmul.f32 %v848, 1.442695
    %v1086 = vpow.pop %v1085
    %v1087 = vmul.f32 %v849, 1.442695
    %v1088 = vpow.pop %v1087
    %v1089 = vmul.f32 %v850, 1.442695
    %v1090 = vpow.pop %v1089
    %v1091 = vmul.f32 %v851, 1.442695
    %v1092 = vpow.pop %v1091
    %v1093 = vmul.f32 %v852, 1.442695
    %v1094 = vpow.pop %v1093
    %v1095 = vmul.f32 %v853, 1.442695
    %v1096 = vpow.pop %v1095
    %v1097 = vmul.f32 %v854, 1.442695
    %v1098 = vpow.pop %v1097
    %v1099 = vmul.f32 %v855, 1.442695
    %v1100 = vpow.pop %v1099
    %v1101 = vmul.f32 %v856, 1.442695
    %v1102 = vpow.pop %v1101
    %v1103 = vmul.f32 %v857, 1.442695
    %v1104 = vpow.pop %v1103
    %v1105 = vmul.f32 %v858, 1.442695
    %v1106 = vpow.pop %v1105
    %v1107 = vmul.f32 %v859, 1.442695
    %v1108 = vpow.pop %v1107
    %v1109 = vmul.f32 %v860, 1.442695
    %v1110 = vpow.pop %v1109
    %v1111 = vmul.f32 %v861, 1.442695
    %v1112 = vpow.pop %v1111
    %v1113 = vmul.f32 %v862, 1.442695
    %v1114 = vpow.pop %v1113
    %v1115 = vmul.f32 %v863, 1.442695
    %v1116 = vpow.pop %v1115
    %v1117 = vmul.f32 %v864, 1.442695
    %v1118 = vpow.pop %v1117
    %v1119 = vmul.f32 %v865, 1.442695
    %v1120 = vpow.pop %v1119
    %v1121 = vmul.f32 %v866, 1.442695
    %v1122 = vpow.pop %v1121
    %v1123 = vadd.f32 %v868, 1.0
    %v1124 = vadd.f32 %v870, 1.0
    %v1125 = vadd.f32 %v872, 1.0
    %v1126 = vadd.f32 %v874, 1.0
    %v1127 = vadd.f32 %v876, 1.0
    %v1128 = vadd.f32 %v878, 1.0
    %v1129 = vadd.f32 %v880, 1.0
    %v1130 = vadd.f32 %v882, 1.0
    %v1131 = vadd.f32 %v884, 1.0
    %v1132 = vadd.f32 %v886, 1.0
    %v1133 = vadd.f32 %v888, 1.0
    %v1134 = vadd.f32 %v890, 1.0
    %v1135 = vadd.f32 %v892, 1.0
    %v1136 = vadd.f32 %v894, 1.0
    %v1137 = vadd.f32 %v896, 1.0
    %v1138 = vadd.f32 %v898, 1.0
    %v1139 = vadd.f32 %v900, 1.0
    %v1140 = vadd.f32 %v902, 1.0
    %v1141 = vadd.f32 %v904, 1.0
    %v1142 = vadd.f32 %v906, 1.0
    %v1143 = vadd.f32 %v908, 1.0
    %v1144 = vadd.f32 %v910, 1.0
    %v1145 = vadd.f32 %v912, 1.0
    %v1146 = vadd.f32 %v914, 1.0
    %v1147 = vadd.f32 %v916, 1.0
    %v1148 = vadd.f32 %v918, 1.0
    %v1149 = vadd.f32 %v920, 1.0
    %v1150 = vadd.f32 %v922, 1.0
    %v1151 = vadd.f32 %v924, 1.0
    %v1152 = vadd.f32 %v926, 1.0
    %v1153 = vadd.f32 %v928, 1.0
    %v1154 = vadd.f32 %v930, 1.0
    %v1155 = vadd.f32 %v932, 1.0
    %v1156 = vadd.f32 %v934, 1.0
    %v1157 = vadd.f32 %v936, 1.0
    %v1158 = vadd.f32 %v938, 1.0
    %v1159 = vadd.f32 %v940, 1.0
    %v1160 = vadd.f32 %v942, 1.0
    %v1161 = vadd.f32 %v944, 1.0
    %v1162 = vadd.f32 %v946, 1.0
    %v1163 = vadd.f32 %v948, 1.0
    %v1164 = vadd.f32 %v950, 1.0
    %v1165 = vadd.f32 %v952, 1.0
    %v1166 = vadd.f32 %v954, 1.0
    %v1167 = vadd.f32 %v956, 1.0
    %v1168 = vadd.f32 %v958, 1.0
    %v1169 = vadd.f32 %v960, 1.0
    %v1170 = vadd.f32 %v962, 1.0
    %v1171 = vadd.f32 %v964, 1.0
    %v1172 = vadd.f32 %v966, 1.0
    %v1173 = vadd.f32 %v968, 1.0
    %v1174 = vadd.f32 %v970, 1.0
    %v1175 = vadd.f32 %v972, 1.0
    %v1176 = vadd.f32 %v974, 1.0
    %v1177 = vadd.f32 %v976, 1.0
    %v1178 = vadd.f32 %v978, 1.0
    %v1179 = vadd.f32 %v980, 1.0
    %v1180 = vadd.f32 %v982, 1.0
    %v1181 = vadd.f32 %v984, 1.0
    %v1182 = vadd.f32 %v986, 1.0
    %v1183 = vadd.f32 %v988, 1.0
    %v1184 = vadd.f32 %v990, 1.0
    %v1185 = vadd.f32 %v992, 1.0
    %v1186 = vadd.f32 %v994, 1.0
    %v1187 = vadd.f32 %v996, 1.0
    %v1188 = vadd.f32 %v998, 1.0
    %v1189 = vadd.f32 %v1000, 1.0
    %v1190 = vadd.f32 %v1002, 1.0
    %v1191 = vadd.f32 %v1004, 1.0
    %v1192 = vadd.f32 %v1006, 1.0
    %v1193 = vadd.f32 %v1008, 1.0
    %v1194 = vadd.f32 %v1010, 1.0
    %v1195 = vadd.f32 %v1012, 1.0
    %v1196 = vadd.f32 %v1014, 1.0
    %v1197 = vadd.f32 %v1016, 1.0
    %v1198 = vadd.f32 %v1018, 1.0
    %v1199 = vadd.f32 %v1020, 1.0
    %v1200 = vadd.f32 %v1022, 1.0
    %v1201 = vadd.f32 %v1024, 1.0
    %v1202 = vadd.f32 %v1026, 1.0
    %v1203 = vadd.f32 %v1028, 1.0
    %v1204 = vadd.f32 %v1030, 1.0
    %v1205 = vadd.f32 %v1032, 1.0
    %v1206 = vadd.f32 %v1034, 1.0
    %v1207 = vadd.f32 %v1036, 1.0
    %v1208 = vadd.f32 %v1038, 1.0
    %v1209 = vadd.f32 %v1040, 1.0
    %v1210 = vadd.f32 %v1042, 1.0
    %v1211 = vadd.f32 %v1044, 1.0
    %v1212 = vadd.f32 %v1046, 1.0
    %v1213 = vadd.f32 %v1048, 1.0
    %v1214 = vadd.f32 %v1050, 1.0
    %v1215 = vadd.f32 %v1052, 1.0
    %v1216 = vadd.f32 %v1054, 1.0
    %v1217 = vadd.f32 %v1056, 1.0
    %v1218 = vadd.f32 %v1058, 1.0
    %v1219 = vadd.f32 %v1060, 1.0
    %v1220 = vadd.f32 %v1062, 1.0
    %v1221 = vadd.f32 %v1064, 1.0
    %v1222 = vadd.f32 %v1066, 1.0
    %v1223 = vadd.f32 %v1068, 1.0
    %v1224 = vadd.f32 %v1070, 1.0
    %v1225 = vadd.f32 %v1072, 1.0
    %v1226 = vadd.f32 %v1074, 1.0
    %v1227 = vadd.f32 %v1076, 1.0
    %v1228 = vadd.f32 %v1078, 1.0
    %v1229 = vadd.f32 %v1080, 1.0
    %v1230 = vadd.f32 %v1082, 1.0
    %v1231 = vadd.f32 %v1084, 1.0
    %v1232 = vadd.f32 %v1086, 1.0
    %v1233 = vadd.f32 %v1088, 1.0
    %v1234 = vadd.f32 %v1090, 1.0
    %v1235 = vadd.f32 %v1092, 1.0
    %v1236 = vadd.f32 %v1094, 1.0
    %v1237 = vadd.f32 %v1096, 1.0
    %v1238 = vadd.f32 %v1098, 1.0
    %v1239 = vadd.f32 %v1100, 1.0
    %v1240 = vadd.f32 %v1102, 1.0
    %v1241 = vadd.f32 %v1104, 1.0
    %v1242 = vadd.f32 %v1106, 1.0
    %v1243 = vadd.f32 %v1108, 1.0
    %v1244 = vadd.f32 %v1110, 1.0
    %v1245 = vadd.f32 %v1112, 1.0
    %v1246 = vadd.f32 %v1114, 1.0
    %v1247 = vadd.f32 %v1116, 1.0
    %v1248 = vadd.f32 %v1118, 1.0
    %v1249 = vadd.f32 %v1120, 1.0
    %v1250 = vadd.f32 %v1122, 1.0
    %v1251 = vrcp.pop %v1123
    %v1252 = vmul.f32 1.0, %v1251
    %v1253 = vrcp.pop %v1124
    %v1254 = vmul.f32 1.0, %v1253
    %v1255 = vrcp.pop %v1125
    %v1256 = vmul.f32 1.0, %v1255
    %v1257 = vrcp.pop %v1126
    %v1258 = vmul.f32 1.0, %v1257
    %v1259 = vrcp.pop %v1127
    %v1260 = vmul.f32 1.0, %v1259
    %v1261 = vrcp.pop %v1128
    %v1262 = vmul.f32 1.0, %v1261
    %v1263 = vrcp.pop %v1129
    %v1264 = vmul.f32 1.0, %v1263
    %v1265 = vrcp.pop %v1130
    %v1266 = vmul.f32 1.0, %v1265
    %v1267 = vrcp.pop %v1131
    %v1268 = vmul.f32 1.0, %v1267
    %v1269 = vrcp.pop %v1132
    %v1270 = vmul.f32 1.0, %v1269
    %v1271 = vrcp.pop %v1133
    %v1272 = vmul.f32 1.0, %v1271
    %v1273 = vrcp.pop %v1134
    %v1274 = vmul.f32 1.0, %v1273
    %v1275 = vrcp.pop %v1135
    %v1276 = vmul.f32 1.0, %v1275
    %v1277 = vrcp.pop %v1136
    %v1278 = vmul.f32 1.0, %v1277
    %v1279 = vrcp.pop %v1137
    %v1280 = vmul.f32 1.0, %v1279
    %v1281 = vrcp.pop %v1138
    %v1282 = vmul.f32 1.0, %v1281
    %v1283 = vrcp.pop %v1139
    %v1284 = vmul.f32 1.0, %v1283
    %v1285 = vrcp.pop %v1140
    %v1286 = vmul.f32 1.0, %v1285
    %v1287 = vrcp.pop %v1141
    %v1288 = vmul.f32 1.0, %v1287
    %v1289 = vrcp.pop %v1142
    %v1290 = vmul.f32 1.0, %v1289
    %v1291 = vrcp.pop %v1143
    %v1292 = vmul.f32 1.0, %v1291
    %v1293 = vrcp.pop %v1144
    %v1294 = vmul.f32 1.0, %v1293
    %v1295 = vrcp.pop %v1145
    %v1296 = vmul.f32 1.0, %v1295
    %v1297 = vrcp.pop %v1146
    %v1298 = vmul.f32 1.0, %v1297
    %v1299 = vrcp.pop %v1147
    %v1300 = vmul.f32 1.0, %v1299
    %v1301 = vrcp.pop %v1148
    %v1302 = vmul.f32 1.0, %v1301
    %v1303 = vrcp.pop %v1149
    %v1304 = vmul.f32 1.0, %v1303
    %v1305 = vrcp.pop %v1150
    %v1306 = vmul.f32 1.0, %v1305
    %v1307 = vrcp.pop %v1151
    %v1308 = vmul.f32 1.0, %v1307
    %v1309 = vrcp.pop %v1152
    %v1310 = vmul.f32 1.0, %v1309
    %v1311 = vrcp.pop %v1153
    %v1312 = vmul.f32 1.0, %v1311
    %v1313 = vrcp.pop %v1154
    %v1314 = vmul.f32 1.0, %v1313
    %v1315 = vrcp.pop %v1155
    %v1316 = vmul.f32 1.0, %v1315
    %v1317 = vrcp.pop %v1156
    %v1318 = vmul.f32 1.0, %v1317
    %v1319 = vrcp.pop %v1157
    %v1320 = vmul.f32 1.0, %v1319
    %v1321 = vrcp.pop %v1158
    %v1322 = vmul.f32 1.0, %v1321
    %v1323 = vrcp.pop %v1159
    %v1324 = vmul.f32 1.0, %v1323
    %v1325 = vrcp.pop %v1160
    %v1326 = vmul.f32 1.0, %v1325
    %v1327 = vrcp.pop %v1161
    %v1328 = vmul.f32 1.0, %v1327
    %v1329 = vrcp.pop %v1162
    %v1330 = vmul.f32 1.0, %v1329
    %v1331 = vrcp.pop %v1163
    %v1332 = vmul.f32 1.0, %v1331
    %v1333 = vrcp.pop %v1164
    %v1334 = vmul.f32 1.0, %v1333
    %v1335 = vrcp.pop %v1165
    %v1336 = vmul.f32 1.0, %v1335
    %v1337 = vrcp.pop %v1166
    %v1338 = vmul.f32 1.0, %v1337
    %v1339 = vrcp.pop %v1167
    %v1340 = vmul.f32 1.0, %v1339
    %v1341 = vrcp.pop %v1168
    %v1342 = vmul.f32 1.0, %v1341
    %v1343 = vrcp.pop %v1169
    %v1344 = vmul.f32 1.0, %v1343
    %v1345 = vrcp.pop %v1170
    %v1346 = vmul.f32 1.0, %v1345
    %v1347 = vrcp.pop %v1171
    %v1348 = vmul.f32 1.0, %v1347
    %v1349 = vrcp.pop %v1172
    %v1350 = vmul.f32 1.0, %v1349
    %v1351 = vrcp.pop %v1173
    %v1352 = vmul.f32 1.0, %v1351
    %v1353 = vrcp.pop %v1174
    %v1354 = vmul.f32 1.0, %v1353
    %v1355 = vrcp.pop %v1175
    %v1356 = vmul.f32 1.0, %v1355
    %v1357 = vrcp.pop %v1176
    %v1358 = vmul.f32 1.0, %v1357
    %v1359 = vrcp.pop %v1177
    %v1360 = vmul.f32 1.0, %v1359
    %v1361 = vrcp.pop %v1178
    %v1362 = vmul.f32 1.0, %v1361
    %v1363 = vrcp.pop %v1179
    %v1364 = vmul.f32 1.0, %v1363
    %v1365 = vrcp.pop %v1180
    %v1366 = vmul.f32 1.0, %v1365
    %v1367 = vrcp.pop %v1181
    %v1368 = vmul.f32 1.0, %v1367
    %v1369 = vrcp.pop %v1182
    %v1370 = vmul.f32 1.0, %v1369
    %v1371 = vrcp.pop %v1183
    %v1372 = vmul.f32 1.0, %v1371
    %v1373 = vrcp.pop %v1184
    %v1374 = vmul.f32 1.0, %v1373
    %v1375 = vrcp.pop %v1185
    %v1376 = vmul.f32 1.0, %v1375
    %v1377 = vrcp.pop %v1186
    %v1378 = vmul.f32 1.0, %v1377
    %v1379 = vrcp.pop %v1187
    %v1380 = vmul.f32 1.0, %v1379
    %v1381 = vrcp.pop %v1188
    %v1382 = vmul.f32 1.0, %v1381
    %v1383 = vrcp.pop %v1189
    %v1384 = vmul.f32 1.0, %v1383
    %v1385 = vrcp.pop %v1190
    %v1386 = vmul.f32 1.0, %v1385
    %v1387 = vrcp.pop %v1191
    %v1388 = vmul.f32 1.0, %v1387
    %v1389 = vrcp.pop %v1192
    %v1390 = vmul.f32 1.0, %v1389
    %v1391 = vrcp.pop %v1193
    %v1392 = vmul.f32 1.0, %v1391
    %v1393 = vrcp.pop %v1194
    %v1394 = vmul.f32 1.0, %v1393
    %v1395 = vrcp.pop %v1195
    %v1396 = vmul.f32 1.0, %v1395
    %v1397 = vrcp.pop %v1196
    %v1398 = vmul.f32 1.0, %v1397
    %v1399 = vrcp.pop %v1197
    %v1400 = vmul.f32 1.0, %v1399
    %v1401 = vrcp.pop %v1198
    %v1402 = vmul.f32 1.0, %v1401
    %v1403 = vrcp.pop %v1199
    %v1404 = vmul.f32 1.0, %v1403
    %v1405 = vrcp.pop %v1200
    %v1406 = vmul.f32 1.0, %v1405
    %v1407 = vrcp.pop %v1201
    %v1408 = vmul.f32 1.0, %v1407
    %v1409 = vrcp.pop %v1202
    %v1410 = vmul.f32 1.0, %v1409
    %v1411 = vrcp.pop %v1203
    %v1412 = vmul.f32 1.0, %v1411
    %v1413 = vrcp.pop %v1204
    %v1414 = vmul.f32 1.0, %v1413
    %v1415 = vrcp.pop %v1205
    %v1416 = vmul.f32 1.0, %v1415
    %v1417 = vrcp.pop %v1206
    %v1418 = vmul.f32 1.0, %v1417
    %v1419 = vrcp.pop %v1207
    %v1420 = vmul.f32 1.0, %v1419
    %v1421 = vrcp.pop %v1208
    %v1422 = vmul.f32 1.0, %v1421
    %v1423 = vrcp.pop %v1209
    %v1424 = vmul.f32 1.0, %v1423
    %v1425 = vrcp.pop %v1210
    %v1426 = vmul.f32 1.0, %v1425
    %v1427 = vrcp.pop %v1211
    %v1428 = vmul.f32 1.0, %v1427
    %v1429 = vrcp.pop %v1212
    %v1430 = vmul.f32 1.0, %v1429
    %v1431 = vrcp.pop %v1213
    %v1432 = vmul.f32 1.0, %v1431
    %v1433 = vrcp.pop %v1214
    %v1434 = vmul.f32 1.0, %v1433
    %v1435 = vrcp.pop %v1215
    %v1436 = vmul.f32 1.0, %v1435
    %v1437 = vrcp.pop %v1216
    %v1438 = vmul.f32 1.0, %v1437
    %v1439 = vrcp.pop %v1217
    %v1440 = vmul.f32 1.0, %v1439
    %v1441 = vrcp.pop %v1218
    %v1442 = vmul.f32 1.0, %v1441
    %v1443 = vrcp.pop %v1219
    %v1444 = vmul.f32 1.0, %v1443
    %v1445 = vrcp.pop %v1220
    %v1446 = vmul.f32 1.0, %v1445
    %v1447 = vrcp.pop %v1221
    %v1448 = vmul.f32 1.0, %v1447
    %v1449 = vrcp.pop %v1222
    %v1450 = vmul.f32 1.0, %v1449
    %v1451 = vrcp.pop %v1223
    %v1452 = vmul.f32 1.0, %v1451
    %v1453 = vrcp.pop %v1224
    %v1454 = vmul.f32 1.0, %v1453
    %v1455 = vrcp.pop %v1225
    %v1456 = vmul.f32 1.0, %v1455
    %v1457 = vrcp.pop %v1226
    %v1458 = vmul.f32 1.0, %v1457
    %v1459 = vrcp.pop %v1227
    %v1460 = vmul.f32 1.0, %v1459
    %v1461 = vrcp.pop %v1228
    %v1462 = vmul.f32 1.0, %v1461
    %v1463 = vrcp.pop %v1229
    %v1464 = vmul.f32 1.0, %v1463
    %v1465 = vrcp.pop %v1230
    %v1466 = vmul.f32 1.0, %v1465
    %v1467 = vrcp.pop %v1231
    %v1468 = vmul.f32 1.0, %v1467
    %v1469 = vrcp.pop %v1232
    %v1470 = vmul.f32 1.0, %v1469
    %v1471 = vrcp.pop %v1233
    %v1472 = vmul.f32 1.0, %v1471
    %v1473 = vrcp.pop %v1234
    %v1474 = vmul.f32 1.0, %v1473
    %v1475 = vrcp.pop %v1235
    %v1476 = vmul.f32 1.0, %v1475
    %v1477 = vrcp.pop %v1236
    %v1478 = vmul.f32 1.0, %v1477
    %v1479 = vrcp.pop %v1237
    %v1480 = vmul.f32 1.0, %v1479
    %v1481 = vrcp.pop %v1238
    %v1482 = vmul.f32 1.0, %v1481
    %v1483 = vrcp.pop %v1239
    %v1484 = vmul.f32 1.0, %v1483
    %v1485 = vrcp.pop %v1240
    %v1486 = vmul.f32 1.0, %v1485
    %v1487 = vrcp.pop %v1241
    %v1488 = vmul.f32 1.0, %v1487
    %v1489 = vrcp.pop %v1242
    %v1490 = vmul.f32 1.0, %v1489
    %v1491 = vrcp.pop %v1243
    %v1492 = vmul.f32 1.0, %v1491
    %v1493 = vrcp.pop %v1244
    %v1494 = vmul.f32 1.0, %v1493
    %v1495 = vrcp.pop %v1245
    %v1496 = vmul.f32 1.0, %v1495
    %v1497 = vrcp.pop %v1246
    %v1498 = vmul.f32 1.0, %v1497
    %v1499 = vrcp.pop %v1247
    %v1500 = vmul.f32 1.0, %v1499
    %v1501 = vrcp.pop %v1248
    %v1502 = vmul.f32 1.0, %v1501
    %v1503 = vrcp.pop %v1249
    %v1504 = vmul.f32 1.0, %v1503
    %v1505 = vrcp.pop %v1250
    %v1506 = vmul.f32 1.0, %v1505
    %v1507 = vmul.f32 %v611, %v1252
    %v1508 = vmul.f32 %v612, %v1254
    %v1509 = vmul.f32 %v613, %v1256
    %v1510 = vmul.f32 %v614, %v1258
    %v1511 = vmul.f32 %v615, %v1260
    %v1512 = vmul.f32 %v616, %v1262
    %v1513 = vmul.f32 %v617, %v1264
    %v1514 = vmul.f32 %v618, %v1266
    %v1515 = vmul.f32 %v619, %v1268
    %v1516 = vmul.f32 %v620, %v1270
    %v1517 = vmul.f32 %v621, %v1272
    %v1518 = vmul.f32 %v622, %v1274
    %v1519 = vmul.f32 %v623, %v1276
    %v1520 = vmul.f32 %v624, %v1278
    %v1521 = vmul.f32 %v625, %v1280
    %v1522 = vmul.f32 %v626, %v1282
    %v1523 = vmul.f32 %v627, %v1284
    %v1524 = vmul.f32 %v628, %v1286
    %v1525 = vmul.f32 %v629, %v1288
    %v1526 = vmul.f32 %v630, %v1290
    %v1527 = vmul.f32 %v631, %v1292
    %v1528 = vmul.f32 %v632, %v1294
    %v1529 = vmul.f32 %v633, %v1296
    %v1530 = vmul.f32 %v634, %v1298
    %v1531 = vmul.f32 %v635, %v1300
    %v1532 = vmul.f32 %v636, %v1302
    %v1533 = vmul.f32 %v637, %v1304
    %v1534 = vmul.f32 %v638, %v1306
    %v1535 = vmul.f32 %v639, %v1308
    %v1536 = vmul.f32 %v640, %v1310
    %v1537 = vmul.f32 %v641, %v1312
    %v1538 = vmul.f32 %v642, %v1314
    %v1539 = vmul.f32 %v643, %v1316
    %v1540 = vmul.f32 %v644, %v1318
    %v1541 = vmul.f32 %v645, %v1320
    %v1542 = vmul.f32 %v646, %v1322
    %v1543 = vmul.f32 %v647, %v1324
    %v1544 = vmul.f32 %v648, %v1326
    %v1545 = vmul.f32 %v649, %v1328
    %v1546 = vmul.f32 %v650, %v1330
    %v1547 = vmul.f32 %v651, %v1332
    %v1548 = vmul.f32 %v652, %v1334
    %v1549 = vmul.f32 %v653, %v1336
    %v1550 = vmul.f32 %v654, %v1338
    %v1551 = vmul.f32 %v655, %v1340
    %v1552 = vmul.f32 %v656, %v1342
    %v1553 = vmul.f32 %v657, %v1344
    %v1554 = vmul.f32 %v658, %v1346
    %v1555 = vmul.f32 %v659, %v1348
    %v1556 = vmul.f32 %v660, %v1350
    %v1557 = vmul.f32 %v661, %v1352
    %v1558 = vmul.f32 %v662, %v1354
    %v1559 = vmul.f32 %v663, %v1356
    %v1560 = vmul.f32 %v664, %v1358
    %v1561 = vmul.f32 %v665, %v1360
    %v1562 = vmul.f32 %v666, %v1362
    %v1563 = vmul.f32 %v667, %v1364
    %v1564 = vmul.f32 %v668, %v1366
    %v1565 = vmul.f32 %v669, %v1368
    %v1566 = vmul.f32 %v670, %v1370
    %v1567 = vmul.f32 %v671, %v1372
    %v1568 = vmul.f32 %v672, %v1374
    %v1569 = vmul.f32 %v673, %v1376
    %v1570 = vmul.f32 %v674, %v1378
    %v1571 = vmul.f32 %v675, %v1380
    %v1572 = vmul.f32 %v676, %v1382
    %v1573 = vmul.f32 %v677, %v1384
    %v1574 = vmul.f32 %v678, %v1386
    %v1575 = vmul.f32 %v679, %v1388
    %v1576 = vmul.f32 %v680, %v1390
    %v1577 = vmul.f32 %v681, %v1392
    %v1578 = vmul.f32 %v682, %v1394
    %v1579 = vmul.f32 %v683, %v1396
    %v1580 = vmul.f32 %v684, %v1398
    %v1581 = vmul.f32 %v685, %v1400
    %v1582 = vmul.f32 %v686, %v1402
    %v1583 = vmul.f32 %v687, %v1404
    %v1584 = vmul.f32 %v688, %v1406
    %v1585 = vmul.f32 %v689, %v1408
    %v1586 = vmul.f32 %v690, %v1410
    %v1587 = vmul.f32 %v691, %v1412
    %v1588 = vmul.f32 %v692, %v1414
    %v1589 = vmul.f32 %v693, %v1416
    %v1590 = vmul.f32 %v694, %v1418
    %v1591 = vmul.f32 %v695, %v1420
    %v1592 = vmul.f32 %v696, %v1422
    %v1593 = vmul.f32 %v697, %v1424
    %v1594 = vmul.f32 %v698, %v1426
    %v1595 = vmul.f32 %v699, %v1428
    %v1596 = vmul.f32 %v700, %v1430
    %v1597 = vmul.f32 %v701, %v1432
    %v1598 = vmul.f32 %v702, %v1434
    %v1599 = vmul.f32 %v703, %v1436
    %v1600 = vmul.f32 %v704, %v1438
    %v1601 = vmul.f32 %v705, %v1440
    %v1602 = vmul.f32 %v706, %v1442
    %v1603 = vmul.f32 %v707, %v1444
    %v1604 = vmul.f32 %v708, %v1446
    %v1605 = vmul.f32 %v709, %v1448
    %v1606 = vmul.f32 %v710, %v1450
    %v1607 = vmul.f32 %v711, %v1452
    %v1608 = vmul.f32 %v712, %v1454
    %v1609 = vmul.f32 %v713, %v1456
    %v1610 = vmul.f32 %v714, %v1458
    %v1611 = vmul.f32 %v715, %v1460
    %v1612 = vmul.f32 %v716, %v1462
    %v1613 = vmul.f32 %v717, %v1464
    %v1614 = vmul.f32 %v718, %v1466
    %v1615 = vmul.f32 %v719, %v1468
    %v1616 = vmul.f32 %v720, %v1470
    %v1617 = vmul.f32 %v721, %v1472
    %v1618 = vmul.f32 %v722, %v1474
    %v1619 = vmul.f32 %v723, %v1476
    %v1620 = vmul.f32 %v724, %v1478
    %v1621 = vmul.f32 %v725, %v1480
    %v1622 = vmul.f32 %v726, %v1482
    %v1623 = vmul.f32 %v727, %v1484
    %v1624 = vmul.f32 %v728, %v1486
    %v1625 = vmul.f32 %v729, %v1488
    %v1626 = vmul.f32 %v730, %v1490
    %v1627 = vmul.f32 %v731, %v1492
    %v1628 = vmul.f32 %v732, %v1494
    %v1629 = vmul.f32 %v733, %v1496
    %v1630 = vmul.f32 %v734, %v1498
    %v1631 = vmul.f32 %v735, %v1500
    %v1632 = vmul.f32 %v736, %v1502
    %v1633 = vmul.f32 %v737, %v1504
    %v1634 = vmul.f32 %v738, %v1506
    %v1635 = vpack.c.bf16 %v1508, %v1507
    %v1636 = vpack.c.bf16 %v1510, %v1509
    %v1637 = vpack.c.bf16 %v1512, %v1511
    %v1638 = vpack.c.bf16 %v1514, %v1513
    %v1639 = vpack.c.bf16 %v1516, %v1515
    %v1640 = vpack.c.bf16 %v1518, %v1517
    %v1641 = vpack.c.bf16 %v1520, %v1519
    %v1642 = vpack.c.bf16 %v1522, %v1521
    %v1643 = vpack.c.bf16 %v1524, %v1523
    %v1644 = vpack.c.bf16 %v1526, %v1525
    %v1645 = vpack.c.bf16 %v1528, %v1527
    %v1646 = vpack.c.bf16 %v1530, %v1529
    %v1647 = vpack.c.bf16 %v1532, %v1531
    %v1648 = vpack.c.bf16 %v1534, %v1533
    %v1649 = vpack.c.bf16 %v1536, %v1535
    %v1650 = vpack.c.bf16 %v1538, %v1537
    %v1651 = vpack.c.bf16 %v1540, %v1539
    %v1652 = vpack.c.bf16 %v1542, %v1541
    %v1653 = vpack.c.bf16 %v1544, %v1543
    %v1654 = vpack.c.bf16 %v1546, %v1545
    %v1655 = vpack.c.bf16 %v1548, %v1547
    %v1656 = vpack.c.bf16 %v1550, %v1549
    %v1657 = vpack.c.bf16 %v1552, %v1551
    %v1658 = vpack.c.bf16 %v1554, %v1553
    %v1659 = vpack.c.bf16 %v1556, %v1555
    %v1660 = vpack.c.bf16 %v1558, %v1557
    %v1661 = vpack.c.bf16 %v1560, %v1559
    %v1662 = vpack.c.bf16 %v1562, %v1561
    %v1663 = vpack.c.bf16 %v1564, %v1563
    %v1664 = vpack.c.bf16 %v1566, %v1565
    %v1665 = vpack.c.bf16 %v1568, %v1567
    %v1666 = vpack.c.bf16 %v1570, %v1569
    %v1667 = vpack.c.bf16 %v1572, %v1571
    %v1668 = vpack.c.bf16 %v1574, %v1573
    %v1669 = vpack.c.bf16 %v1576, %v1575
    %v1670 = vpack.c.bf16 %v1578, %v1577
    %v1671 = vpack.c.bf16 %v1580, %v1579
    %v1672 = vpack.c.bf16 %v1582, %v1581
    %v1673 = vpack.c.bf16 %v1584, %v1583
    %v1674 = vpack.c.bf16 %v1586, %v1585
    %v1675 = vpack.c.bf16 %v1588, %v1587
    %v1676 = vpack.c.bf16 %v1590, %v1589
    %v1677 = vpack.c.bf16 %v1592, %v1591
    %v1678 = vpack.c.bf16 %v1594, %v1593
    %v1679 = vpack.c.bf16 %v1596, %v1595
    %v1680 = vpack.c.bf16 %v1598, %v1597
    %v1681 = vpack.c.bf16 %v1600, %v1599
    %v1682 = vpack.c.bf16 %v1602, %v1601
    %v1683 = vpack.c.bf16 %v1604, %v1603
    %v1684 = vpack.c.bf16 %v1606, %v1605
    %v1685 = vpack.c.bf16 %v1608, %v1607
    %v1686 = vpack.c.bf16 %v1610, %v1609
    %v1687 = vpack.c.bf16 %v1612, %v1611
    %v1688 = vpack.c.bf16 %v1614, %v1613
    %v1689 = vpack.c.bf16 %v1616, %v1615
    %v1690 = vpack.c.bf16 %v1618, %v1617
    %v1691 = vpack.c.bf16 %v1620, %v1619
    %v1692 = vpack.c.bf16 %v1622, %v1621
    %v1693 = vpack.c.bf16 %v1624, %v1623
    %v1694 = vpack.c.bf16 %v1626, %v1625
    %v1695 = vpack.c.bf16 %v1628, %v1627
    %v1696 = vpack.c.bf16 %v1630, %v1629
    %v1697 = vpack.c.bf16 %v1632, %v1631
    %v1698 = vpack.c.bf16 %v1634, %v1633
    %v1763 = vunpack.c.l.b16 %v1635
    %v1764 = vunpack.c.h.b16 %v1635
    %v1765 = vunpack.c.l.b16 %v1636
    %v1766 = vunpack.c.h.b16 %v1636
    %v1767 = vunpack.c.l.b16 %v1637
    %v1768 = vunpack.c.h.b16 %v1637
    %v1769 = vunpack.c.l.b16 %v1638
    %v1770 = vunpack.c.h.b16 %v1638
    %v1771 = vunpack.c.l.b16 %v1639
    %v1772 = vunpack.c.h.b16 %v1639
    %v1773 = vunpack.c.l.b16 %v1640
    %v1774 = vunpack.c.h.b16 %v1640
    %v1775 = vunpack.c.l.b16 %v1641
    %v1776 = vunpack.c.h.b16 %v1641
    %v1777 = vunpack.c.l.b16 %v1642
    %v1778 = vunpack.c.h.b16 %v1642
    %v1779 = vunpack.c.l.b16 %v1643
    %v1780 = vunpack.c.h.b16 %v1643
    %v1781 = vunpack.c.l.b16 %v1644
    %v1782 = vunpack.c.h.b16 %v1644
    %v1783 = vunpack.c.l.b16 %v1645
    %v1784 = vunpack.c.h.b16 %v1645
    %v1785 = vunpack.c.l.b16 %v1646
    %v1786 = vunpack.c.h.b16 %v1646
    %v1787 = vunpack.c.l.b16 %v1647
    %v1788 = vunpack.c.h.b16 %v1647
    %v1789 = vunpack.c.l.b16 %v1648
    %v1790 = vunpack.c.h.b16 %v1648
    %v1791 = vunpack.c.l.b16 %v1649
    %v1792 = vunpack.c.h.b16 %v1649
    %v1793 = vunpack.c.l.b16 %v1650
    %v1794 = vunpack.c.h.b16 %v1650
    %v1795 = vunpack.c.l.b16 %v1651
    %v1796 = vunpack.c.h.b16 %v1651
    %v1797 = vunpack.c.l.b16 %v1652
    %v1798 = vunpack.c.h.b16 %v1652
    %v1799 = vunpack.c.l.b16 %v1653
    %v1800 = vunpack.c.h.b16 %v1653
    %v1801 = vunpack.c.l.b16 %v1654
    %v1802 = vunpack.c.h.b16 %v1654
    %v1803 = vunpack.c.l.b16 %v1655
    %v1804 = vunpack.c.h.b16 %v1655
    %v1805 = vunpack.c.l.b16 %v1656
    %v1806 = vunpack.c.h.b16 %v1656
    %v1807 = vunpack.c.l.b16 %v1657
    %v1808 = vunpack.c.h.b16 %v1657
    %v1809 = vunpack.c.l.b16 %v1658
    %v1810 = vunpack.c.h.b16 %v1658
    %v1811 = vunpack.c.l.b16 %v1659
    %v1812 = vunpack.c.h.b16 %v1659
    %v1813 = vunpack.c.l.b16 %v1660
    %v1814 = vunpack.c.h.b16 %v1660
    %v1815 = vunpack.c.l.b16 %v1661
    %v1816 = vunpack.c.h.b16 %v1661
    %v1817 = vunpack.c.l.b16 %v1662
    %v1818 = vunpack.c.h.b16 %v1662
    %v1819 = vunpack.c.l.b16 %v1663
    %v1820 = vunpack.c.h.b16 %v1663
    %v1821 = vunpack.c.l.b16 %v1664
    %v1822 = vunpack.c.h.b16 %v1664
    %v1823 = vunpack.c.l.b16 %v1665
    %v1824 = vunpack.c.h.b16 %v1665
    %v1825 = vunpack.c.l.b16 %v1666
    %v1826 = vunpack.c.h.b16 %v1666
    %v1827 = vunpack.c.l.b16 %v1667
    %v1828 = vunpack.c.h.b16 %v1667
    %v1829 = vunpack.c.l.b16 %v1668
    %v1830 = vunpack.c.h.b16 %v1668
    %v1831 = vunpack.c.l.b16 %v1669
    %v1832 = vunpack.c.h.b16 %v1669
    %v1833 = vunpack.c.l.b16 %v1670
    %v1834 = vunpack.c.h.b16 %v1670
    %v1835 = vunpack.c.l.b16 %v1671
    %v1836 = vunpack.c.h.b16 %v1671
    %v1837 = vunpack.c.l.b16 %v1672
    %v1838 = vunpack.c.h.b16 %v1672
    %v1839 = vunpack.c.l.b16 %v1673
    %v1840 = vunpack.c.h.b16 %v1673
    %v1841 = vunpack.c.l.b16 %v1674
    %v1842 = vunpack.c.h.b16 %v1674
    %v1843 = vunpack.c.l.b16 %v1675
    %v1844 = vunpack.c.h.b16 %v1675
    %v1845 = vunpack.c.l.b16 %v1676
    %v1846 = vunpack.c.h.b16 %v1676
    %v1847 = vunpack.c.l.b16 %v1677
    %v1848 = vunpack.c.h.b16 %v1677
    %v1849 = vunpack.c.l.b16 %v1678
    %v1850 = vunpack.c.h.b16 %v1678
    %v1851 = vunpack.c.l.b16 %v1679
    %v1852 = vunpack.c.h.b16 %v1679
    %v1853 = vunpack.c.l.b16 %v1680
    %v1854 = vunpack.c.h.b16 %v1680
    %v1855 = vunpack.c.l.b16 %v1681
    %v1856 = vunpack.c.h.b16 %v1681
    %v1857 = vunpack.c.l.b16 %v1682
    %v1858 = vunpack.c.h.b16 %v1682
    %v1859 = vunpack.c.l.b16 %v1683
    %v1860 = vunpack.c.h.b16 %v1683
    %v1861 = vunpack.c.l.b16 %v1684
    %v1862 = vunpack.c.h.b16 %v1684
    %v1863 = vunpack.c.l.b16 %v1685
    %v1864 = vunpack.c.h.b16 %v1685
    %v1865 = vunpack.c.l.b16 %v1686
    %v1866 = vunpack.c.h.b16 %v1686
    %v1867 = vunpack.c.l.b16 %v1687
    %v1868 = vunpack.c.h.b16 %v1687
    %v1869 = vunpack.c.l.b16 %v1688
    %v1870 = vunpack.c.h.b16 %v1688
    %v1871 = vunpack.c.l.b16 %v1689
    %v1872 = vunpack.c.h.b16 %v1689
    %v1873 = vunpack.c.l.b16 %v1690
    %v1874 = vunpack.c.h.b16 %v1690
    %v1875 = vunpack.c.l.b16 %v1691
    %v1876 = vunpack.c.h.b16 %v1691
    %v1877 = vunpack.c.l.b16 %v1692
    %v1878 = vunpack.c.h.b16 %v1692
    %v1879 = vunpack.c.l.b16 %v1693
    %v1880 = vunpack.c.h.b16 %v1693
    %v1881 = vunpack.c.l.b16 %v1694
    %v1882 = vunpack.c.h.b16 %v1694
    %v1883 = vunpack.c.l.b16 %v1695
    %v1884 = vunpack.c.h.b16 %v1695
    %v1885 = vunpack.c.l.b16 %v1696
    %v1886 = vunpack.c.h.b16 %v1696
    %v1887 = vunpack.c.l.b16 %v1697
    %v1888 = vunpack.c.h.b16 %v1697
    %v1889 = vunpack.c.l.b16 %v1698
    %v1890 = vunpack.c.h.b16 %v1698
    %v1891 = vpack.c.b16 %v1763, %v1763
    %v1892 = vpack.c.b16 %v1764, %v1764
    %v1893 = vpack.c.b16 %v1765, %v1765
    %v1894 = vpack.c.b16 %v1766, %v1766
    %v1895 = vpack.c.b16 %v1767, %v1767
    %v1896 = vpack.c.b16 %v1768, %v1768
    %v1897 = vpack.c.b16 %v1769, %v1769
    %v1898 = vpack.c.b16 %v1770, %v1770
    %v1899 = vpack.c.b16 %v1771, %v1771
    %v1900 = vpack.c.b16 %v1772, %v1772
    %v1901 = vpack.c.b16 %v1773, %v1773
    %v1902 = vpack.c.b16 %v1774, %v1774
    %v1903 = vpack.c.b16 %v1775, %v1775
    %v1904 = vpack.c.b16 %v1776, %v1776
    %v1905 = vpack.c.b16 %v1777, %v1777
    %v1906 = vpack.c.b16 %v1778, %v1778
    %v1907 = vpack.c.b16 %v1779, %v1779
    %v1908 = vpack.c.b16 %v1780, %v1780
    %v1909 = vpack.c.b16 %v1781, %v1781
    %v1910 = vpack.c.b16 %v1782, %v1782
    %v1911 = vpack.c.b16 %v1783, %v1783
    %v1912 = vpack.c.b16 %v1784, %v1784
    %v1913 = vpack.c.b16 %v1785, %v1785
    %v1914 = vpack.c.b16 %v1786, %v1786
    %v1915 = vpack.c.b16 %v1787, %v1787
    %v1916 = vpack.c.b16 %v1788, %v1788
    %v1917 = vpack.c.b16 %v1789, %v1789
    %v1918 = vpack.c.b16 %v1790, %v1790
    %v1919 = vpack.c.b16 %v1791, %v1791
    %v1920 = vpack.c.b16 %v1792, %v1792
    %v1921 = vpack.c.b16 %v1793, %v1793
    %v1922 = vpack.c.b16 %v1794, %v1794
    %v1923 = vpack.c.b16 %v1795, %v1795
    %v1924 = vpack.c.b16 %v1796, %v1796
    %v1925 = vpack.c.b16 %v1797, %v1797
    %v1926 = vpack.c.b16 %v1798, %v1798
    %v1927 = vpack.c.b16 %v1799, %v1799
    %v1928 = vpack.c.b16 %v1800, %v1800
    %v1929 = vpack.c.b16 %v1801, %v1801
    %v1930 = vpack.c.b16 %v1802, %v1802
    %v1931 = vpack.c.b16 %v1803, %v1803
    %v1932 = vpack.c.b16 %v1804, %v1804
    %v1933 = vpack.c.b16 %v1805, %v1805
    %v1934 = vpack.c.b16 %v1806, %v1806
    %v1935 = vpack.c.b16 %v1807, %v1807
    %v1936 = vpack.c.b16 %v1808, %v1808
    %v1937 = vpack.c.b16 %v1809, %v1809
    %v1938 = vpack.c.b16 %v1810, %v1810
    %v1939 = vpack.c.b16 %v1811, %v1811
    %v1940 = vpack.c.b16 %v1812, %v1812
    %v1941 = vpack.c.b16 %v1813, %v1813
    %v1942 = vpack.c.b16 %v1814, %v1814
    %v1943 = vpack.c.b16 %v1815, %v1815
    %v1944 = vpack.c.b16 %v1816, %v1816
    %v1945 = vpack.c.b16 %v1817, %v1817
    %v1946 = vpack.c.b16 %v1818, %v1818
    %v1947 = vpack.c.b16 %v1819, %v1819
    %v1948 = vpack.c.b16 %v1820, %v1820
    %v1949 = vpack.c.b16 %v1821, %v1821
    %v1950 = vpack.c.b16 %v1822, %v1822
    %v1951 = vpack.c.b16 %v1823, %v1823
    %v1952 = vpack.c.b16 %v1824, %v1824
    %v1953 = vpack.c.b16 %v1825, %v1825
    %v1954 = vpack.c.b16 %v1826, %v1826
    %v1955 = vpack.c.b16 %v1827, %v1827
    %v1956 = vpack.c.b16 %v1828, %v1828
    %v1957 = vpack.c.b16 %v1829, %v1829
    %v1958 = vpack.c.b16 %v1830, %v1830
    %v1959 = vpack.c.b16 %v1831, %v1831
    %v1960 = vpack.c.b16 %v1832, %v1832
    %v1961 = vpack.c.b16 %v1833, %v1833
    %v1962 = vpack.c.b16 %v1834, %v1834
    %v1963 = vpack.c.b16 %v1835, %v1835
    %v1964 = vpack.c.b16 %v1836, %v1836
    %v1965 = vpack.c.b16 %v1837, %v1837
    %v1966 = vpack.c.b16 %v1838, %v1838
    %v1967 = vpack.c.b16 %v1839, %v1839
    %v1968 = vpack.c.b16 %v1840, %v1840
    %v1969 = vpack.c.b16 %v1841, %v1841
    %v1970 = vpack.c.b16 %v1842, %v1842
    %v1971 = vpack.c.b16 %v1843, %v1843
    %v1972 = vpack.c.b16 %v1844, %v1844
    %v1973 = vpack.c.b16 %v1845, %v1845
    %v1974 = vpack.c.b16 %v1846, %v1846
    %v1975 = vpack.c.b16 %v1847, %v1847
    %v1976 = vpack.c.b16 %v1848, %v1848
    %v1977 = vpack.c.b16 %v1849, %v1849
    %v1978 = vpack.c.b16 %v1850, %v1850
    %v1979 = vpack.c.b16 %v1851, %v1851
    %v1980 = vpack.c.b16 %v1852, %v1852
    %v1981 = vpack.c.b16 %v1853, %v1853
    %v1982 = vpack.c.b16 %v1854, %v1854
    %v1983 = vpack.c.b16 %v1855, %v1855
    %v1984 = vpack.c.b16 %v1856, %v1856
    %v1985 = vpack.c.b16 %v1857, %v1857
    %v1986 = vpack.c.b16 %v1858, %v1858
    %v1987 = vpack.c.b16 %v1859, %v1859
    %v1988 = vpack.c.b16 %v1860, %v1860
    %v1989 = vpack.c.b16 %v1861, %v1861
    %v1990 = vpack.c.b16 %v1862, %v1862
    %v1991 = vpack.c.b16 %v1863, %v1863
    %v1992 = vpack.c.b16 %v1864, %v1864
    %v1993 = vpack.c.b16 %v1865, %v1865
    %v1994 = vpack.c.b16 %v1866, %v1866
    %v1995 = vpack.c.b16 %v1867, %v1867
    %v1996 = vpack.c.b16 %v1868, %v1868
    %v1997 = vpack.c.b16 %v1869, %v1869
    %v1998 = vpack.c.b16 %v1870, %v1870
    %v1999 = vpack.c.b16 %v1871, %v1871
    %v2000 = vpack.c.b16 %v1872, %v1872
    %v2001 = vpack.c.b16 %v1873, %v1873
    %v2002 = vpack.c.b16 %v1874, %v1874
    %v2003 = vpack.c.b16 %v1875, %v1875
    %v2004 = vpack.c.b16 %v1876, %v1876
    %v2005 = vpack.c.b16 %v1877, %v1877
    %v2006 = vpack.c.b16 %v1878, %v1878
    %v2007 = vpack.c.b16 %v1879, %v1879
    %v2008 = vpack.c.b16 %v1880, %v1880
    %v2009 = vpack.c.b16 %v1881, %v1881
    %v2010 = vpack.c.b16 %v1882, %v1882
    %v2011 = vpack.c.b16 %v1883, %v1883
    %v2012 = vpack.c.b16 %v1884, %v1884
    %v2013 = vpack.c.b16 %v1885, %v1885
    %v2014 = vpack.c.b16 %v1886, %v1886
    %v2015 = vpack.c.b16 %v1887, %v1887
    %v2016 = vpack.c.b16 %v1888, %v1888
    %v2017 = vpack.c.b16 %v1889, %v1889
    %v2018 = vpack.c.b16 %v1890, %v1890
    %2147 = vst [vmem:[#allocation10] sm:$0xf] %v1891
    %2148 = vst [vmem:[#allocation10 + $0x4] sm:$0xf] %v1892
    %2149 = vst [vmem:[#allocation10 + $0x8] sm:$0xf] %v1893
    %2150 = vst [vmem:[#allocation10 + $0xc] sm:$0xf] %v1894
    %2151 = vst [vmem:[#allocation10 + $0x10] sm:$0xf] %v1895
    %2152 = vst [vmem:[#allocation10 + $0x14] sm:$0xf] %v1896
    %2153 = vst [vmem:[#allocation10 + $0x18] sm:$0xf] %v1897
    %2154 = vst [vmem:[#allocation10 + $0x1c] sm:$0xf] %v1898
    %2155 = vst [vmem:[#allocation10 + $0x20] sm:$0xf] %v1899
    %2156 = vst [vmem:[#allocation10 + $0x24] sm:$0xf] %v1900
    %2157 = vst [vmem:[#allocation10 + $0x28] sm:$0xf] %v1901
    %2158 = vst [vmem:[#allocation10 + $0x2c] sm:$0xf] %v1902
    %2159 = vst [vmem:[#allocation10 + $0x30] sm:$0xf] %v1903
    %2160 = vst [vmem:[#allocation10 + $0x34] sm:$0xf] %v1904
    %2161 = vst [vmem:[#allocation10 + $0x38] sm:$0xf] %v1905
    %2162 = vst [vmem:[#allocation10 + $0x3c] sm:$0xf] %v1906
    %2163 = vst [vmem:[#allocation10 + $0x40] sm:$0xf] %v1907
    %2164 = vst [vmem:[#allocation10 + $0x44] sm:$0xf] %v1908
    %2165 = vst [vmem:[#allocation10 + $0x48] sm:$0xf] %v1909
    %2166 = vst [vmem:[#allocation10 + $0x4c] sm:$0xf] %v1910
    %2167 = vst [vmem:[#allocation10 + $0x50] sm:$0xf] %v1911
    %2168 = vst [vmem:[#allocation10 + $0x54] sm:$0xf] %v1912
    %2169 = vst [vmem:[#allocation10 + $0x58] sm:$0xf] %v1913
    %2170 = vst [vmem:[#allocation10 + $0x5c] sm:$0xf] %v1914
    %2171 = vst [vmem:[#allocation10 + $0x60] sm:$0xf] %v1915
    %2172 = vst [vmem:[#allocation10 + $0x64] sm:$0xf] %v1916
    %2173 = vst [vmem:[#allocation10 + $0x68] sm:$0xf] %v1917
    %2174 = vst [vmem:[#allocation10 + $0x6c] sm:$0xf] %v1918
    %2175 = vst [vmem:[#allocation10 + $0x70] sm:$0xf] %v1919
    %2176 = vst [vmem:[#allocation10 + $0x74] sm:$0xf] %v1920
    %2177 = vst [vmem:[#allocation10 + $0x78] sm:$0xf] %v1921
    %2178 = vst [vmem:[#allocation10 + $0x7c] sm:$0xf] %v1922
    %2179 = vst [vmem:[#allocation10 + $0x80] sm:$0xf] %v1923
    %2180 = vst [vmem:[#allocation10 + $0x84] sm:$0xf] %v1924
    %2181 = vst [vmem:[#allocation10 + $0x88] sm:$0xf] %v1925
    %2182 = vst [vmem:[#allocation10 + $0x8c] sm:$0xf] %v1926
    %2183 = vst [vmem:[#allocation10 + $0x90] sm:$0xf] %v1927
    %2184 = vst [vmem:[#allocation10 + $0x94] sm:$0xf] %v1928
    %2185 = vst [vmem:[#allocation10 + $0x98] sm:$0xf] %v1929
    %2186 = vst [vmem:[#allocation10 + $0x9c] sm:$0xf] %v1930
    %2187 = vst [vmem:[#allocation10 + $0xa0] sm:$0xf] %v1931
    %2188 = vst [vmem:[#allocation10 + $0xa4] sm:$0xf] %v1932
    %2189 = vst [vmem:[#allocation10 + $0xa8] sm:$0xf] %v1933
    %2190 = vst [vmem:[#allocation10 + $0xac] sm:$0xf] %v1934
    %2191 = vst [vmem:[#allocation10 + $0xb0] sm:$0xf] %v1935
    %2192 = vst [vmem:[#allocation10 + $0xb4] sm:$0xf] %v1936
    %2193 = vst [vmem:[#allocation10 + $0xb8] sm:$0xf] %v1937
    %2194 = vst [vmem:[#allocation10 + $0xbc] sm:$0xf] %v1938
    %2195 = vst [vmem:[#allocation10 + $0xc0] sm:$0xf] %v1939
    %2196 = vst [vmem:[#allocation10 + $0xc4] sm:$0xf] %v1940
    %2197 = vst [vmem:[#allocation10 + $0xc8] sm:$0xf] %v1941
    %2198 = vst [vmem:[#allocation10 + $0xcc] sm:$0xf] %v1942
    %2199 = vst [vmem:[#allocation10 + $0xd0] sm:$0xf] %v1943
    %2200 = vst [vmem:[#allocation10 + $0xd4] sm:$0xf] %v1944
    %2201 = vst [vmem:[#allocation10 + $0xd8] sm:$0xf] %v1945
    %2202 = vst [vmem:[#allocation10 + $0xdc] sm:$0xf] %v1946
    %2203 = vst [vmem:[#allocation10 + $0xe0] sm:$0xf] %v1947
    %2204 = vst [vmem:[#allocation10 + $0xe4] sm:$0xf] %v1948
    %2205 = vst [vmem:[#allocation10 + $0xe8] sm:$0xf] %v1949
    %2206 = vst [vmem:[#allocation10 + $0xec] sm:$0xf] %v1950
    %2207 = vst [vmem:[#allocation10 + $0xf0] sm:$0xf] %v1951
    %2208 = vst [vmem:[#allocation10 + $0xf4] sm:$0xf] %v1952
    %2209 = vst [vmem:[#allocation10 + $0xf8] sm:$0xf] %v1953
    %2210 = vst [vmem:[#allocation10 + $0xfc] sm:$0xf] %v1954
    %2211 = vst [vmem:[#allocation10 + $0x100] sm:$0xf] %v1955
    %2212 = vst [vmem:[#allocation10 + $0x104] sm:$0xf] %v1956
    %2213 = vst [vmem:[#allocation10 + $0x108] sm:$0xf] %v1957
    %2214 = vst [vmem:[#allocation10 + $0x10c] sm:$0xf] %v1958
    %2215 = vst [vmem:[#allocation10 + $0x110] sm:$0xf] %v1959
    %2216 = vst [vmem:[#allocation10 + $0x114] sm:$0xf] %v1960
    %2217 = vst [vmem:[#allocation10 + $0x118] sm:$0xf] %v1961
    %2218 = vst [vmem:[#allocation10 + $0x11c] sm:$0xf] %v1962
    %2219 = vst [vmem:[#allocation10 + $0x120] sm:$0xf] %v1963
    %2220 = vst [vmem:[#allocation10 + $0x124] sm:$0xf] %v1964
    %2221 = vst [vmem:[#allocation10 + $0x128] sm:$0xf] %v1965
    %2222 = vst [vmem:[#allocation10 + $0x12c] sm:$0xf] %v1966
    %2223 = vst [vmem:[#allocation10 + $0x130] sm:$0xf] %v1967
    %2224 = vst [vmem:[#allocation10 + $0x134] sm:$0xf] %v1968
    %2225 = vst [vmem:[#allocation10 + $0x138] sm:$0xf] %v1969
    %2226 = vst [vmem:[#allocation10 + $0x13c] sm:$0xf] %v1970
    %2227 = vst [vmem:[#allocation10 + $0x140] sm:$0xf] %v1971
    %2228 = vst [vmem:[#allocation10 + $0x144] sm:$0xf] %v1972
    %2229 = vst [vmem:[#allocation10 + $0x148] sm:$0xf] %v1973
    %2230 = vst [vmem:[#allocation10 + $0x14c] sm:$0xf] %v1974
    %2231 = vst [vmem:[#allocation10 + $0x150] sm:$0xf] %v1975
    %2232 = vst [vmem:[#allocation10 + $0x154] sm:$0xf] %v1976
    %2233 = vst [vmem:[#allocation10 + $0x158] sm:$0xf] %v1977
    %2234 = vst [vmem:[#allocation10 + $0x15c] sm:$0xf] %v1978
    %2235 = vst [vmem:[#allocation10 + $0x160] sm:$0xf] %v1979
    %2236 = vst [vmem:[#allocation10 + $0x164] sm:$0xf] %v1980
    %2237 = vst [vmem:[#allocation10 + $0x168] sm:$0xf] %v1981
    %2238 = vst [vmem:[#allocation10 + $0x16c] sm:$0xf] %v1982
    %2239 = vst [vmem:[#allocation10 + $0x170] sm:$0xf] %v1983
    %2240 = vst [vmem:[#allocation10 + $0x174] sm:$0xf] %v1984
    %2241 = vst [vmem:[#allocation10 + $0x178] sm:$0xf] %v1985
    %2242 = vst [vmem:[#allocation10 + $0x17c] sm:$0xf] %v1986
    %2243 = vst [vmem:[#allocation10 + $0x180] sm:$0xf] %v1987
    %2244 = vst [vmem:[#allocation10 + $0x184] sm:$0xf] %v1988
    %2245 = vst [vmem:[#allocation10 + $0x188] sm:$0xf] %v1989
    %2246 = vst [vmem:[#allocation10 + $0x18c] sm:$0xf] %v1990
    %2247 = vst [vmem:[#allocation10 + $0x190] sm:$0xf] %v1991
    %2248 = vst [vmem:[#allocation10 + $0x194] sm:$0xf] %v1992
    %2249 = vst [vmem:[#allocation10 + $0x198] sm:$0xf] %v1993
    %2250 = vst [vmem:[#allocation10 + $0x19c] sm:$0xf] %v1994
    %2251 = vst [vmem:[#allocation10 + $0x1a0] sm:$0xf] %v1995
    %2252 = vst [vmem:[#allocation10 + $0x1a4] sm:$0xf] %v1996
    %2253 = vst [vmem:[#allocation10 + $0x1a8] sm:$0xf] %v1997
    %2254 = vst [vmem:[#allocation10 + $0x1ac] sm:$0xf] %v1998
    %2255 = vst [vmem:[#allocation10 + $0x1b0] sm:$0xf] %v1999
    %2256 = vst [vmem:[#allocation10 + $0x1b4] sm:$0xf] %v2000
    %2257 = vst [vmem:[#allocation10 + $0x1b8] sm:$0xf] %v2001
    %2258 = vst [vmem:[#allocation10 + $0x1bc] sm:$0xf] %v2002
    %2259 = vst [vmem:[#allocation10 + $0x1c0] sm:$0xf] %v2003
    %2260 = vst [vmem:[#allocation10 + $0x1c4] sm:$0xf] %v2004
    %2261 = vst [vmem:[#allocation10 + $0x1c8] sm:$0xf] %v2005
    %2262 = vst [vmem:[#allocation10 + $0x1cc] sm:$0xf] %v2006
    %2263 = vst [vmem:[#allocation10 + $0x1d0] sm:$0xf] %v2007
    %2264 = vst [vmem:[#allocation10 + $0x1d4] sm:$0xf] %v2008
    %2265 = vst [vmem:[#allocation10 + $0x1d8] sm:$0xf] %v2009
    %2266 = vst [vmem:[#allocation10 + $0x1dc] sm:$0xf] %v2010
    %2267 = vst [vmem:[#allocation10 + $0x1e0] sm:$0xf] %v2011
    %2268 = vst [vmem:[#allocation10 + $0x1e4] sm:$0xf] %v2012
    %2269 = vst [vmem:[#allocation10 + $0x1e8] sm:$0xf] %v2013
    %2270 = vst [vmem:[#allocation10 + $0x1ec] sm:$0xf] %v2014
    %2271 = vst [vmem:[#allocation10 + $0x1f0] sm:$0xf] %v2015
    %2272 = vst [vmem:[#allocation10 + $0x1f4] sm:$0xf] %v2016
    %2273 = vst [vmem:[#allocation10 + $0x1f8] sm:$0xf] %v2017
    %2274 = vst [vmem:[#allocation10 + $0x1fc] sm:$0xf] %v2018
    // Predicated region
    $region34: #{resnet_block_forward.9} parent=1 // pred_check
      _
    $region35: #{resnet_block_forward.9} parent=1 // pred_check_branch
      %2276 = sbr.rel (0) target = $region37
    $region36: #{resnet_block_forward.9} parent=1 // pred_region
      %s2278 = ssub.s32 8192, 8192
      %2279 = vsyncadd [#allocation4], %s2278
      %s2280 = sshll.u32 [#allocation10], 4
      %s2281 = int_to_ptr.vmem [resolvable:$true] %s2280
      %2286 = dma.vmem_to_hbm [thread:$0]  %s2281, 8192, %s4, [#allocation4], 64, 64, 4
    $region37: #{resnet_block_forward.9} parent=1 // pred_fallthru
      _
    // Predicated region
    $region38: #{resnet_block_forward.9} parent=1 // pred_check
      _
    $region39: #{resnet_block_forward.9} parent=1 // pred_check_branch
      %2288 = sbr.rel (0) target = $region41
    $region40: #{resnet_block_forward.9} parent=1 // pred_region
      %2289 = dma.done [#allocation4], 8192
    $region41: #{resnet_block_forward.9} parent=1 // pred_fallthru
      _
    %2290 = vsyncpa [#allocation3], 1
    %2291 = vsyncpa [#allocation6], 1
    %2292 = vsyncpa [#allocation9], 1
    %2293 = vsyncpa [#allocation4], 1

// kernel: resnet_block_forward.12
$region0: #{resnet_block_forward.12}
  #allocation0 [shape = 'u32[]', space=smem, size = 0x4, offset = 0x4, fixed_abs, tag = 'smem constant byte address 0x4 - core index']
  #allocation1 [shape = 'u32[144,128]{1,0:T(1,128)}', space=vmem, size = 0x12000, scoped, tag = 'internal scratch']
  %s0 = inlined_call_operand.hbm [shape: f32[1024,128], index: 0, kind: input, shape index: {}]
  %s1 = inlined_call_operand.hbm [shape: f32[2,128], index: 1, kind: input, shape index: {}]
  %s2 = inlined_call_operand.hbm [shape: f32[1,128], index: 2, kind: input, shape index: {}]
  %s3 = inlined_call_operand.hbm [shape: f32[1,128], index: 3, kind: input, shape index: {}]
  %s4 = inlined_call_operand.hbm [shape: bf16[128,128], index: 4, kind: input, shape index: {}]
  %s5 = inlined_call_operand.hbm [shape: f32[1024,128], index: 5, kind: output, shape index: {}]
  %s6 = sld [smem:[#allocation0]]
  $region50: #{resnet_block_forward.12} parent=0
    _
  %s8 = ssub.s32 1, %s6
  %s9 = scalar_select 0, %s8, %s6
  $region1: #{resnet_block_forward.12} parent=0
    #allocation2 [shape = 'u8[524288]{0}', space=vmem, size = 0x80000, scoped, tag = 'input window, operand 0, single buffered']
    #allocation3 [shape = 's32[1]{0}', space=sflag, size = 0x4, scoped, tag = 'scoped memory for resnet_block_forward.12']
    #allocation4 [shape = 's32[1]{0}', space=sflag, size = 0x4, scoped, tag = 'scoped memory for resnet_block_forward.12']
    #allocation5 [shape = 'u8[1024]{0}', space=vmem, size = 0x400, scoped, tag = 'input window, operand 1, single buffered']
    #allocation6 [shape = 's32[1]{0}', space=sflag, size = 0x4, scoped, tag = 'scoped memory for resnet_block_forward.12']
    #allocation7 [shape = 'u8[512]{0}', space=vmem, size = 0x400, scoped, tag = 'input window, operand 2, single buffered']
    #allocation8 [shape = 'u8[512]{0}', space=vmem, size = 0x400, scoped, tag = 'input window, operand 3, single buffered']
    #allocation9 [shape = 's32[1]{0}', space=sflag, size = 0x4, scoped, tag = 'scoped memory for resnet_block_forward.12']
    #allocation10 [shape = 'u8[32768]{0}', space=vmem, size = 0x8000, scoped, tag = 'input window, operand 4, single buffered']
    #allocation11 [shape = 'u8[524288]{0}', space=vmem, size = 0x80000, scoped, tag = 'output window, operand 0, single buffered']
    %10 = vsyncpa [#allocation3], 0
    %11 = vsyncpa [#allocation6], 0
    %12 = vsyncpa [#allocation9], 0
    %13 = vsyncpa [#allocation4], 0
    // Predicated region
    $region2: #{resnet_block_forward.12} parent=1 // pred_check
      _
    $region3: #{resnet_block_forward.12} parent=1 // pred_check_branch
      %15 = sbr.rel (0) target = $region5
    $region4: #{resnet_block_forward.12} parent=1 // pred_region
      %s17 = ssub.s32 16384, 16384
      %18 = vsyncadd [#allocation3], %s17
      %s19 = sshll.u32 [#allocation2], 4
      %s20 = int_to_ptr.vmem [resolvable:$true] %s19
      %25 = dma.hbm_to_vmem [thread:$0]  %s0, 16384, %s20, [#allocation3], 128, 128, 8
    $region5: #{resnet_block_forward.12} parent=1 // pred_fallthru
      _
    // Predicated region
    $region6: #{resnet_block_forward.12} parent=1 // pred_check
      _
    $region7: #{resnet_block_forward.12} parent=1 // pred_check_branch
      %27 = sbr.rel (0) target = $region9
    $region8: #{resnet_block_forward.12} parent=1 // pred_region
      %s29 = ssub.s32 32, 32
      %30 = vsyncadd [#allocation6], %s29
      %s32 = sshll.u32 [#allocation5], 4
      %s33 = int_to_ptr.vmem [resolvable:$true] %s32
      %35 = dma.hbm_to_vmem [thread:$0]  %s1, 32, %s33, [#allocation6]
    $region9: #{resnet_block_forward.12} parent=1 // pred_fallthru
      _
    // Predicated region
    $region10: #{resnet_block_forward.12} parent=1 // pred_check
      _
    $region11: #{resnet_block_forward.12} parent=1 // pred_check_branch
      %37 = sbr.rel (0) target = $region13
    $region12: #{resnet_block_forward.12} parent=1 // pred_region
      %s39 = ssub.s32 16, 16
      %40 = vsyncadd [#allocation6], %s39
      %s42 = sshll.u32 [#allocation7], 4
      %s43 = int_to_ptr.vmem [resolvable:$true] %s42
      %45 = dma.hbm_to_vmem [thread:$0]  %s2, 16, %s43, [#allocation6]
    $region13: #{resnet_block_forward.12} parent=1 // pred_fallthru
      _
    // Predicated region
    $region14: #{resnet_block_forward.12} parent=1 // pred_check
      _
    $region15: #{resnet_block_forward.12} parent=1 // pred_check_branch
      %47 = sbr.rel (0) target = $region17
    $region16: #{resnet_block_forward.12} parent=1 // pred_region
      %s49 = ssub.s32 16, 16
      %50 = vsyncadd [#allocation9], %s49
      %s52 = sshll.u32 [#allocation8], 4
      %s53 = int_to_ptr.vmem [resolvable:$true] %s52
      %55 = dma.hbm_to_vmem [thread:$0]  %s3, 16, %s53, [#allocation9]
    $region17: #{resnet_block_forward.12} parent=1 // pred_fallthru
      _
    // Predicated region
    $region18: #{resnet_block_forward.12} parent=1 // pred_check
      _
    $region19: #{resnet_block_forward.12} parent=1 // pred_check_branch
      %57 = sbr.rel (0) target = $region21
    $region20: #{resnet_block_forward.12} parent=1 // pred_region
      %s59 = ssub.s32 1024, 1024
      %60 = vsyncadd [#allocation9], %s59
      %s61 = sshll.u32 [#allocation10], 4
      %s62 = int_to_ptr.vmem [resolvable:$true] %s61
      %67 = dma.hbm_to_vmem [thread:$0]  %s4, 1024, %s62, [#allocation9], 64, 64, 4
    $region21: #{resnet_block_forward.12} parent=1 // pred_fallthru
      _
    // Predicated region
    $region22: #{resnet_block_forward.12} parent=1 // pred_check
      _
    $region23: #{resnet_block_forward.12} parent=1 // pred_check_branch
      %69 = sbr.rel (0) target = $region25
    $region24: #{resnet_block_forward.12} parent=1 // pred_region
      %70 = dma.done [#allocation3], 16384
    $region25: #{resnet_block_forward.12} parent=1 // pred_fallthru
      _
    // Predicated region
    $region26: #{resnet_block_forward.12} parent=1 // pred_check
      _
    $region27: #{resnet_block_forward.12} parent=1 // pred_check_branch
      %72 = sbr.rel (0) target = $region29
    $region28: #{resnet_block_forward.12} parent=1 // pred_region
      %73 = dma.done [#allocation6], 32
    $region29: #{resnet_block_forward.12} parent=1 // pred_fallthru
      _
    // Predicated region
    $region30: #{resnet_block_forward.12} parent=1 // pred_check
      _
    $region31: #{resnet_block_forward.12} parent=1 // pred_check_branch
      %75 = sbr.rel (0) target = $region33
    $region32: #{resnet_block_forward.12} parent=1 // pred_region
      %76 = dma.done [#allocation6], 16
    $region33: #{resnet_block_forward.12} parent=1 // pred_fallthru
      _
    // Predicated region
    $region34: #{resnet_block_forward.12} parent=1 // pred_check
      _
    $region35: #{resnet_block_forward.12} parent=1 // pred_check_branch
      %78 = sbr.rel (0) target = $region37
    $region36: #{resnet_block_forward.12} parent=1 // pred_region
      %79 = dma.done [#allocation9], 16
    $region37: #{resnet_block_forward.12} parent=1 // pred_fallthru
      _
    // Predicated region
    $region38: #{resnet_block_forward.12} parent=1 // pred_check
      _
    $region39: #{resnet_block_forward.12} parent=1 // pred_check_branch
      %81 = sbr.rel (0) target = $region41
    $region40: #{resnet_block_forward.12} parent=1 // pred_region
      %82 = dma.done [#allocation9], 1024
    $region41: #{resnet_block_forward.12} parent=1 // pred_fallthru
      _
    %v84 = vld [vmem:[#allocation2] sm:$0xff]
    %v85 = vld [vmem:[#allocation2 + $0x8] sm:$0xff]
    %v86 = vld [vmem:[#allocation2 + $0x10] sm:$0xff]
    %v87 = vld [vmem:[#allocation2 + $0x18] sm:$0xff]
    %v88 = vld [vmem:[#allocation2 + $0x20] sm:$0xff]
    %v89 = vld [vmem:[#allocation2 + $0x28] sm:$0xff]
    %v90 = vld [vmem:[#allocation2 + $0x30] sm:$0xff]
    %v91 = vld [vmem:[#allocation2 + $0x38] sm:$0xff]
    %v92 = vld [vmem:[#allocation2 + $0x40] sm:$0xff]
    %v93 = vld [vmem:[#allocation2 + $0x48] sm:$0xff]
    %v94 = vld [vmem:[#allocation2 + $0x50] sm:$0xff]
    %v95 = vld [vmem:[#allocation2 + $0x58] sm:$0xff]
    %v96 = vld [vmem:[#allocation2 + $0x60] sm:$0xff]
    %v97 = vld [vmem:[#allocation2 + $0x68] sm:$0xff]
    %v98 = vld [vmem:[#allocation2 + $0x70] sm:$0xff]
    %v99 = vld [vmem:[#allocation2 + $0x78] sm:$0xff]
    %v100 = vld [vmem:[#allocation2 + $0x80] sm:$0xff]
    %v101 = vld [vmem:[#allocation2 + $0x88] sm:$0xff]
    %v102 = vld [vmem:[#allocation2 + $0x90] sm:$0xff]
    %v103 = vld [vmem:[#allocation2 + $0x98] sm:$0xff]
    %v104 = vld [vmem:[#allocation2 + $0xa0] sm:$0xff]
    %v105 = vld [vmem:[#allocation2 + $0xa8] sm:$0xff]
    %v106 = vld [vmem:[#allocation2 + $0xb0] sm:$0xff]
    %v107 = vld [vmem:[#allocation2 + $0xb8] sm:$0xff]
    %v108 = vld [vmem:[#allocation2 + $0xc0] sm:$0xff]
    %v109 = vld [vmem:[#allocation2 + $0xc8] sm:$0xff]
    %v110 = vld [vmem:[#allocation2 + $0xd0] sm:$0xff]
    %v111 = vld [vmem:[#allocation2 + $0xd8] sm:$0xff]
    %v112 = vld [vmem:[#allocation2 + $0xe0] sm:$0xff]
    %v113 = vld [vmem:[#allocation2 + $0xe8] sm:$0xff]
    %v114 = vld [vmem:[#allocation2 + $0xf0] sm:$0xff]
    %v115 = vld [vmem:[#allocation2 + $0xf8] sm:$0xff]
    %v116 = vld [vmem:[#allocation2 + $0x100] sm:$0xff]
    %v117 = vld [vmem:[#allocation2 + $0x108] sm:$0xff]
    %v118 = vld [vmem:[#allocation2 + $0x110] sm:$0xff]
    %v119 = vld [vmem:[#allocation2 + $0x118] sm:$0xff]
    %v120 = vld [vmem:[#allocation2 + $0x120] sm:$0xff]
    %v121 = vld [vmem:[#allocation2 + $0x128] sm:$0xff]
    %v122 = vld [vmem:[#allocation2 + $0x130] sm:$0xff]
    %v123 = vld [vmem:[#allocation2 + $0x138] sm:$0xff]
    %v124 = vld [vmem:[#allocation2 + $0x140] sm:$0xff]
    %v125 = vld [vmem:[#allocation2 + $0x148] sm:$0xff]
    %v126 = vld [vmem:[#allocation2 + $0x150] sm:$0xff]
    %v127 = vld [vmem:[#allocation2 + $0x158] sm:$0xff]
    %v128 = vld [vmem:[#allocation2 + $0x160] sm:$0xff]
    %v129 = vld [vmem:[#allocation2 + $0x168] sm:$0xff]
    %v130 = vld [vmem:[#allocation2 + $0x170] sm:$0xff]
    %v131 = vld [vmem:[#allocation2 + $0x178] sm:$0xff]
    %v132 = vld [vmem:[#allocation2 + $0x180] sm:$0xff]
    %v133 = vld [vmem:[#allocation2 + $0x188] sm:$0xff]
    %v134 = vld [vmem:[#allocation2 + $0x190] sm:$0xff]
    %v135 = vld [vmem:[#allocation2 + $0x198] sm:$0xff]
    %v136 = vld [vmem:[#allocation2 + $0x1a0] sm:$0xff]
    %v137 = vld [vmem:[#allocation2 + $0x1a8] sm:$0xff]
    %v138 = vld [vmem:[#allocation2 + $0x1b0] sm:$0xff]
    %v139 = vld [vmem:[#allocation2 + $0x1b8] sm:$0xff]
    %v140 = vld [vmem:[#allocation2 + $0x1c0] sm:$0xff]
    %v141 = vld [vmem:[#allocation2 + $0x1c8] sm:$0xff]
    %v142 = vld [vmem:[#allocation2 + $0x1d0] sm:$0xff]
    %v143 = vld [vmem:[#allocation2 + $0x1d8] sm:$0xff]
    %v144 = vld [vmem:[#allocation2 + $0x1e0] sm:$0xff]
    %v145 = vld [vmem:[#allocation2 + $0x1e8] sm:$0xff]
    %v146 = vld [vmem:[#allocation2 + $0x1f0] sm:$0xff]
    %v147 = vld [vmem:[#allocation2 + $0x1f8] sm:$0xff]
    %v148 = vld [vmem:[#allocation2 + $0x200] sm:$0xff]
    %v149 = vld [vmem:[#allocation2 + $0x208] sm:$0xff]
    %v150 = vld [vmem:[#allocation2 + $0x210] sm:$0xff]
    %v151 = vld [vmem:[#allocation2 + $0x218] sm:$0xff]
    %v152 = vld [vmem:[#allocation2 + $0x220] sm:$0xff]
    %v153 = vld [vmem:[#allocation2 + $0x228] sm:$0xff]
    %v154 = vld [vmem:[#allocation2 + $0x230] sm:$0xff]
    %v155 = vld [vmem:[#allocation2 + $0x238] sm:$0xff]
    %v156 = vld [vmem:[#allocation2 + $0x240] sm:$0xff]
    %v157 = vld [vmem:[#allocation2 + $0x248] sm:$0xff]
    %v158 = vld [vmem:[#allocation2 + $0x250] sm:$0xff]
    %v159 = vld [vmem:[#allocation2 + $0x258] sm:$0xff]
    %v160 = vld [vmem:[#allocation2 + $0x260] sm:$0xff]
    %v161 = vld [vmem:[#allocation2 + $0x268] sm:$0xff]
    %v162 = vld [vmem:[#allocation2 + $0x270] sm:$0xff]
    %v163 = vld [vmem:[#allocation2 + $0x278] sm:$0xff]
    %v164 = vld [vmem:[#allocation2 + $0x280] sm:$0xff]
    %v165 = vld [vmem:[#allocation2 + $0x288] sm:$0xff]
    %v166 = vld [vmem:[#allocation2 + $0x290] sm:$0xff]
    %v167 = vld [vmem:[#allocation2 + $0x298] sm:$0xff]
    %v168 = vld [vmem:[#allocation2 + $0x2a0] sm:$0xff]
    %v169 = vld [vmem:[#allocation2 + $0x2a8] sm:$0xff]
    %v170 = vld [vmem:[#allocation2 + $0x2b0] sm:$0xff]
    %v171 = vld [vmem:[#allocation2 + $0x2b8] sm:$0xff]
    %v172 = vld [vmem:[#allocation2 + $0x2c0] sm:$0xff]
    %v173 = vld [vmem:[#allocation2 + $0x2c8] sm:$0xff]
    %v174 = vld [vmem:[#allocation2 + $0x2d0] sm:$0xff]
    %v175 = vld [vmem:[#allocation2 + $0x2d8] sm:$0xff]
    %v176 = vld [vmem:[#allocation2 + $0x2e0] sm:$0xff]
    %v177 = vld [vmem:[#allocation2 + $0x2e8] sm:$0xff]
    %v178 = vld [vmem:[#allocation2 + $0x2f0] sm:$0xff]
    %v179 = vld [vmem:[#allocation2 + $0x2f8] sm:$0xff]
    %v180 = vld [vmem:[#allocation2 + $0x300] sm:$0xff]
    %v181 = vld [vmem:[#allocation2 + $0x308] sm:$0xff]
    %v182 = vld [vmem:[#allocation2 + $0x310] sm:$0xff]
    %v183 = vld [vmem:[#allocation2 + $0x318] sm:$0xff]
    %v184 = vld [vmem:[#allocation2 + $0x320] sm:$0xff]
    %v185 = vld [vmem:[#allocation2 + $0x328] sm:$0xff]
    %v186 = vld [vmem:[#allocation2 + $0x330] sm:$0xff]
    %v187 = vld [vmem:[#allocation2 + $0x338] sm:$0xff]
    %v188 = vld [vmem:[#allocation2 + $0x340] sm:$0xff]
    %v189 = vld [vmem:[#allocation2 + $0x348] sm:$0xff]
    %v190 = vld [vmem:[#allocation2 + $0x350] sm:$0xff]
    %v191 = vld [vmem:[#allocation2 + $0x358] sm:$0xff]
    %v192 = vld [vmem:[#allocation2 + $0x360] sm:$0xff]
    %v193 = vld [vmem:[#allocation2 + $0x368] sm:$0xff]
    %v194 = vld [vmem:[#allocation2 + $0x370] sm:$0xff]
    %v195 = vld [vmem:[#allocation2 + $0x378] sm:$0xff]
    %v196 = vld [vmem:[#allocation2 + $0x380] sm:$0xff]
    %v197 = vld [vmem:[#allocation2 + $0x388] sm:$0xff]
    %v198 = vld [vmem:[#allocation2 + $0x390] sm:$0xff]
    %v199 = vld [vmem:[#allocation2 + $0x398] sm:$0xff]
    %v200 = vld [vmem:[#allocation2 + $0x3a0] sm:$0xff]
    %v201 = vld [vmem:[#allocation2 + $0x3a8] sm:$0xff]
    %v202 = vld [vmem:[#allocation2 + $0x3b0] sm:$0xff]
    %v203 = vld [vmem:[#allocation2 + $0x3b8] sm:$0xff]
    %v204 = vld [vmem:[#allocation2 + $0x3c0] sm:$0xff]
    %v205 = vld [vmem:[#allocation2 + $0x3c8] sm:$0xff]
    %v206 = vld [vmem:[#allocation2 + $0x3d0] sm:$0xff]
    %v207 = vld [vmem:[#allocation2 + $0x3d8] sm:$0xff]
    %v208 = vld [vmem:[#allocation2 + $0x3e0] sm:$0xff]
    %v209 = vld [vmem:[#allocation2 + $0x3e8] sm:$0xff]
    %v210 = vld [vmem:[#allocation2 + $0x3f0] sm:$0xff]
    %v211 = vld [vmem:[#allocation2 + $0x3f8] sm:$0xff]
    %v212 = vld [vmem:[#allocation5] sm:$0x1]
    %v213 = vrcp.pop 1024.0
    %v214 = vmul.f32 %v212, %v213
    %v215 = vld [vmem:[#allocation5 + $0x1] sm:$0x1]
    %v216 = vmul.f32 %v215, %v213
    %v217 = vmul.f32 %v214, %v214
    %v218 = vsub.f32 %v216, %v217
    %v219 = vmax.f32 %v218, 0.0
    %v220 = vadd.f32 %v219, 1e-08
    %v221 = vrsqrt.pop %v220
    %v222 = vlaneseq
    %v223 = vshrl.u32 %v222, 7
    %v224 = vsub.s32 0, %v223
    %v225 = vrot.slane %v214, %v224
    %v226 = vsub.f32 %v84, %v225
    %v227 = vsub.f32 %v85, %v225
    %v228 = vsub.f32 %v86, %v225
    %v229 = vsub.f32 %v87, %v225
    %v230 = vsub.f32 %v88, %v225
    %v231 = vsub.f32 %v89, %v225
    %v232 = vsub.f32 %v90, %v225
    %v233 = vsub.f32 %v91, %v225
    %v234 = vsub.f32 %v92, %v225
    %v235 = vsub.f32 %v93, %v225
    %v236 = vsub.f32 %v94, %v225
    %v237 = vsub.f32 %v95, %v225
    %v238 = vsub.f32 %v96, %v225
    %v239 = vsub.f32 %v97, %v225
    %v240 = vsub.f32 %v98, %v225
    %v241 = vsub.f32 %v99, %v225
    %v242 = vsub.f32 %v100, %v225
    %v243 = vsub.f32 %v101, %v225
    %v244 = vsub.f32 %v102, %v225
    %v245 = vsub.f32 %v103, %v225
    %v246 = vsub.f32 %v104, %v225
    %v247 = vsub.f32 %v105, %v225
    %v248 = vsub.f32 %v106, %v225
    %v249 = vsub.f32 %v107, %v225
    %v250 = vsub.f32 %v108, %v225
    %v251 = vsub.f32 %v109, %v225
    %v252 = vsub.f32 %v110, %v225
    %v253 = vsub.f32 %v111, %v225
    %v254 = vsub.f32 %v112, %v225
    %v255 = vsub.f32 %v113, %v225
    %v256 = vsub.f32 %v114, %v225
    %v257 = vsub.f32 %v115, %v225
    %v258 = vsub.f32 %v116, %v225
    %v259 = vsub.f32 %v117, %v225
    %v260 = vsub.f32 %v118, %v225
    %v261 = vsub.f32 %v119, %v225
    %v262 = vsub.f32 %v120, %v225
    %v263 = vsub.f32 %v121, %v225
    %v264 = vsub.f32 %v122, %v225
    %v265 = vsub.f32 %v123, %v225
    %v266 = vsub.f32 %v124, %v225
    %v267 = vsub.f32 %v125, %v225
    %v268 = vsub.f32 %v126, %v225
    %v269 = vsub.f32 %v127, %v225
    %v270 = vsub.f32 %v128, %v225
    %v271 = vsub.f32 %v129, %v225
    %v272 = vsub.f32 %v130, %v225
    %v273 = vsub.f32 %v131, %v225
    %v274 = vsub.f32 %v132, %v225
    %v275 = vsub.f32 %v133, %v225
    %v276 = vsub.f32 %v134, %v225
    %v277 = vsub.f32 %v135, %v225
    %v278 = vsub.f32 %v136, %v225
    %v279 = vsub.f32 %v137, %v225
    %v280 = vsub.f32 %v138, %v225
    %v281 = vsub.f32 %v139, %v225
    %v282 = vsub.f32 %v140, %v225
    %v283 = vsub.f32 %v141, %v225
    %v284 = vsub.f32 %v142, %v225
    %v285 = vsub.f32 %v143, %v225
    %v286 = vsub.f32 %v144, %v225
    %v287 = vsub.f32 %v145, %v225
    %v288 = vsub.f32 %v146, %v225
    %v289 = vsub.f32 %v147, %v225
    %v290 = vsub.f32 %v148, %v225
    %v291 = vsub.f32 %v149, %v225
    %v292 = vsub.f32 %v150, %v225
    %v293 = vsub.f32 %v151, %v225
    %v294 = vsub.f32 %v152, %v225
    %v295 = vsub.f32 %v153, %v225
    %v296 = vsub.f32 %v154, %v225
    %v297 = vsub.f32 %v155, %v225
    %v298 = vsub.f32 %v156, %v225
    %v299 = vsub.f32 %v157, %v225
    %v300 = vsub.f32 %v158, %v225
    %v301 = vsub.f32 %v159, %v225
    %v302 = vsub.f32 %v160, %v225
    %v303 = vsub.f32 %v161, %v225
    %v304 = vsub.f32 %v162, %v225
    %v305 = vsub.f32 %v163, %v225
    %v306 = vsub.f32 %v164, %v225
    %v307 = vsub.f32 %v165, %v225
    %v308 = vsub.f32 %v166, %v225
    %v309 = vsub.f32 %v167, %v225
    %v310 = vsub.f32 %v168, %v225
    %v311 = vsub.f32 %v169, %v225
    %v312 = vsub.f32 %v170, %v225
    %v313 = vsub.f32 %v171, %v225
    %v314 = vsub.f32 %v172, %v225
    %v315 = vsub.f32 %v173, %v225
    %v316 = vsub.f32 %v174, %v225
    %v317 = vsub.f32 %v175, %v225
    %v318 = vsub.f32 %v176, %v225
    %v319 = vsub.f32 %v177, %v225
    %v320 = vsub.f32 %v178, %v225
    %v321 = vsub.f32 %v179, %v225
    %v322 = vsub.f32 %v180, %v225
    %v323 = vsub.f32 %v181, %v225
    %v324 = vsub.f32 %v182, %v225
    %v325 = vsub.f32 %v183, %v225
    %v326 = vsub.f32 %v184, %v225
    %v327 = vsub.f32 %v185, %v225
    %v328 = vsub.f32 %v186, %v225
    %v329 = vsub.f32 %v187, %v225
    %v330 = vsub.f32 %v188, %v225
    %v331 = vsub.f32 %v189, %v225
    %v332 = vsub.f32 %v190, %v225
    %v333 = vsub.f32 %v191, %v225
    %v334 = vsub.f32 %v192, %v225
    %v335 = vsub.f32 %v193, %v225
    %v336 = vsub.f32 %v194, %v225
    %v337 = vsub.f32 %v195, %v225
    %v338 = vsub.f32 %v196, %v225
    %v339 = vsub.f32 %v197, %v225
    %v340 = vsub.f32 %v198, %v225
    %v341 = vsub.f32 %v199, %v225
    %v342 = vsub.f32 %v200, %v225
    %v343 = vsub.f32 %v201, %v225
    %v344 = vsub.f32 %v202, %v225
    %v345 = vsub.f32 %v203, %v225
    %v346 = vsub.f32 %v204, %v225
    %v347 = vsub.f32 %v205, %v225
    %v348 = vsub.f32 %v206, %v225
    %v349 = vsub.f32 %v207, %v225
    %v350 = vsub.f32 %v208, %v225
    %v351 = vsub.f32 %v209, %v225
    %v352 = vsub.f32 %v210, %v225
    %v353 = vsub.f32 %v211, %v225
    %v354 = vlaneseq
    %v355 = vshrl.u32 %v354, 7
    %v356 = vsub.s32 0, %v355
    %v357 = vrot.slane %v221, %v356
    %v358 = vmul.f32 %v226, %v357
    %v359 = vmul.f32 %v227, %v357
    %v360 = vmul.f32 %v228, %v357
    %v361 = vmul.f32 %v229, %v357
    %v362 = vmul.f32 %v230, %v357
    %v363 = vmul.f32 %v231, %v357
    %v364 = vmul.f32 %v232, %v357
    %v365 = vmul.f32 %v233, %v357
    %v366 = vmul.f32 %v234, %v357
    %v367 = vmul.f32 %v235, %v357
    %v368 = vmul.f32 %v236, %v357
    %v369 = vmul.f32 %v237, %v357
    %v370 = vmul.f32 %v238, %v357
    %v371 = vmul.f32 %v239, %v357
    %v372 = vmul.f32 %v240, %v357
    %v373 = vmul.f32 %v241, %v357
    %v374 = vmul.f32 %v242, %v357
    %v375 = vmul.f32 %v243, %v357
    %v376 = vmul.f32 %v244, %v357
    %v377 = vmul.f32 %v245, %v357
    %v378 = vmul.f32 %v246, %v357
    %v379 = vmul.f32 %v247, %v357
    %v380 = vmul.f32 %v248, %v357
    %v381 = vmul.f32 %v249, %v357
    %v382 = vmul.f32 %v250, %v357
    %v383 = vmul.f32 %v251, %v357
    %v384 = vmul.f32 %v252, %v357
    %v385 = vmul.f32 %v253, %v357
    %v386 = vmul.f32 %v254, %v357
    %v387 = vmul.f32 %v255, %v357
    %v388 = vmul.f32 %v256, %v357
    %v389 = vmul.f32 %v257, %v357
    %v390 = vmul.f32 %v258, %v357
    %v391 = vmul.f32 %v259, %v357
    %v392 = vmul.f32 %v260, %v357
    %v393 = vmul.f32 %v261, %v357
    %v394 = vmul.f32 %v262, %v357
    %v395 = vmul.f32 %v263, %v357
    %v396 = vmul.f32 %v264, %v357
    %v397 = vmul.f32 %v265, %v357
    %v398 = vmul.f32 %v266, %v357
    %v399 = vmul.f32 %v267, %v357
    %v400 = vmul.f32 %v268, %v357
    %v401 = vmul.f32 %v269, %v357
    %v402 = vmul.f32 %v270, %v357
    %v403 = vmul.f32 %v271, %v357
    %v404 = vmul.f32 %v272, %v357
    %v405 = vmul.f32 %v273, %v357
    %v406 = vmul.f32 %v274, %v357
    %v407 = vmul.f32 %v275, %v357
    %v408 = vmul.f32 %v276, %v357
    %v409 = vmul.f32 %v277, %v357
    %v410 = vmul.f32 %v278, %v357
    %v411 = vmul.f32 %v279, %v357
    %v412 = vmul.f32 %v280, %v357
    %v413 = vmul.f32 %v281, %v357
    %v414 = vmul.f32 %v282, %v357
    %v415 = vmul.f32 %v283, %v357
    %v416 = vmul.f32 %v284, %v357
    %v417 = vmul.f32 %v285, %v357
    %v418 = vmul.f32 %v286, %v357
    %v419 = vmul.f32 %v287, %v357
    %v420 = vmul.f32 %v288, %v357
    %v421 = vmul.f32 %v289, %v357
    %v422 = vmul.f32 %v290, %v357
    %v423 = vmul.f32 %v291, %v357
    %v424 = vmul.f32 %v292, %v357
    %v425 = vmul.f32 %v293, %v357
    %v426 = vmul.f32 %v294, %v357
    %v427 = vmul.f32 %v295, %v357
    %v428 = vmul.f32 %v296, %v357
    %v429 = vmul.f32 %v297, %v357
    %v430 = vmul.f32 %v298, %v357
    %v431 = vmul.f32 %v299, %v357
    %v432 = vmul.f32 %v300, %v357
    %v433 = vmul.f32 %v301, %v357
    %v434 = vmul.f32 %v302, %v357
    %v435 = vmul.f32 %v303, %v357
    %v436 = vmul.f32 %v304, %v357
    %v437 = vmul.f32 %v305, %v357
    %v438 = vmul.f32 %v306, %v357
    %v439 = vmul.f32 %v307, %v357
    %v440 = vmul.f32 %v308, %v357
    %v441 = vmul.f32 %v309, %v357
    %v442 = vmul.f32 %v310, %v357
    %v443 = vmul.f32 %v311, %v357
    %v444 = vmul.f32 %v312, %v357
    %v445 = vmul.f32 %v313, %v357
    %v446 = vmul.f32 %v314, %v357
    %v447 = vmul.f32 %v315, %v357
    %v448 = vmul.f32 %v316, %v357
    %v449 = vmul.f32 %v317, %v357
    %v450 = vmul.f32 %v318, %v357
    %v451 = vmul.f32 %v319, %v357
    %v452 = vmul.f32 %v320, %v357
    %v453 = vmul.f32 %v321, %v357
    %v454 = vmul.f32 %v322, %v357
    %v455 = vmul.f32 %v323, %v357
    %v456 = vmul.f32 %v324, %v357
    %v457 = vmul.f32 %v325, %v357
    %v458 = vmul.f32 %v326, %v357
    %v459 = vmul.f32 %v327, %v357
    %v460 = vmul.f32 %v328, %v357
    %v461 = vmul.f32 %v329, %v357
    %v462 = vmul.f32 %v330, %v357
    %v463 = vmul.f32 %v331, %v357
    %v464 = vmul.f32 %v332, %v357
    %v465 = vmul.f32 %v333, %v357
    %v466 = vmul.f32 %v334, %v357
    %v467 = vmul.f32 %v335, %v357
    %v468 = vmul.f32 %v336, %v357
    %v469 = vmul.f32 %v337, %v357
    %v470 = vmul.f32 %v338, %v357
    %v471 = vmul.f32 %v339, %v357
    %v472 = vmul.f32 %v340, %v357
    %v473 = vmul.f32 %v341, %v357
    %v474 = vmul.f32 %v342, %v357
    %v475 = vmul.f32 %v343, %v357
    %v476 = vmul.f32 %v344, %v357
    %v477 = vmul.f32 %v345, %v357
    %v478 = vmul.f32 %v346, %v357
    %v479 = vmul.f32 %v347, %v357
    %v480 = vmul.f32 %v348, %v357
    %v481 = vmul.f32 %v349, %v357
    %v482 = vmul.f32 %v350, %v357
    %v483 = vmul.f32 %v351, %v357
    %v484 = vmul.f32 %v352, %v357
    %v485 = vmul.f32 %v353, %v357
    %v486 = vld [vmem:[#allocation7] sm:$0x1]
    %v488 = vlaneseq
    %v489 = vshrl.u32 %v488, 7
    %v490 = vsub.s32 0, %v489
    %v491 = vrot.slane %v486, %v490
    %v493 = vmul.f32 %v358, %v491
    %v494 = vmul.f32 %v359, %v491
    %v495 = vmul.f32 %v360, %v491
    %v496 = vmul.f32 %v361, %v491
    %v497 = vmul.f32 %v362, %v491
    %v498 = vmul.f32 %v363, %v491
    %v499 = vmul.f32 %v364, %v491
    %v500 = vmul.f32 %v365, %v491
    %v501 = vmul.f32 %v366, %v491
    %v502 = vmul.f32 %v367, %v491
    %v503 = vmul.f32 %v368, %v491
    %v504 = vmul.f32 %v369, %v491
    %v505 = vmul.f32 %v370, %v491
    %v506 = vmul.f32 %v371, %v491
    %v507 = vmul.f32 %v372, %v491
    %v508 = vmul.f32 %v373, %v491
    %v509 = vmul.f32 %v374, %v491
    %v510 = vmul.f32 %v375, %v491
    %v511 = vmul.f32 %v376, %v491
    %v512 = vmul.f32 %v377, %v491
    %v513 = vmul.f32 %v378, %v491
    %v514 = vmul.f32 %v379, %v491
    %v515 = vmul.f32 %v380, %v491
    %v516 = vmul.f32 %v381, %v491
    %v517 = vmul.f32 %v382, %v491
    %v518 = vmul.f32 %v383, %v491
    %v519 = vmul.f32 %v384, %v491
    %v520 = vmul.f32 %v385, %v491
    %v521 = vmul.f32 %v386, %v491
    %v522 = vmul.f32 %v387, %v491
    %v523 = vmul.f32 %v388, %v491
    %v524 = vmul.f32 %v389, %v491
    %v525 = vmul.f32 %v390, %v491
    %v526 = vmul.f32 %v391, %v491
    %v527 = vmul.f32 %v392, %v491
    %v528 = vmul.f32 %v393, %v491
    %v529 = vmul.f32 %v394, %v491
    %v530 = vmul.f32 %v395, %v491
    %v531 = vmul.f32 %v396, %v491
    %v532 = vmul.f32 %v397, %v491
    %v533 = vmul.f32 %v398, %v491
    %v534 = vmul.f32 %v399, %v491
    %v535 = vmul.f32 %v400, %v491
    %v536 = vmul.f32 %v401, %v491
    %v537 = vmul.f32 %v402, %v491
    %v538 = vmul.f32 %v403, %v491
    %v539 = vmul.f32 %v404, %v491
    %v540 = vmul.f32 %v405, %v491
    %v541 = vmul.f32 %v406, %v491
    %v542 = vmul.f32 %v407, %v491
    %v543 = vmul.f32 %v408, %v491
    %v544 = vmul.f32 %v409, %v491
    %v545 = vmul.f32 %v410, %v491
    %v546 = vmul.f32 %v411, %v491
    %v547 = vmul.f32 %v412, %v491
    %v548 = vmul.f32 %v413, %v491
    %v549 = vmul.f32 %v414, %v491
    %v550 = vmul.f32 %v415, %v491
    %v551 = vmul.f32 %v416, %v491
    %v552 = vmul.f32 %v417, %v491
    %v553 = vmul.f32 %v418, %v491
    %v554 = vmul.f32 %v419, %v491
    %v555 = vmul.f32 %v420, %v491
    %v556 = vmul.f32 %v421, %v491
    %v557 = vmul.f32 %v422, %v491
    %v558 = vmul.f32 %v423, %v491
    %v559 = vmul.f32 %v424, %v491
    %v560 = vmul.f32 %v425, %v491
    %v561 = vmul.f32 %v426, %v491
    %v562 = vmul.f32 %v427, %v491
    %v563 = vmul.f32 %v428, %v491
    %v564 = vmul.f32 %v429, %v491
    %v565 = vmul.f32 %v430, %v491
    %v566 = vmul.f32 %v431, %v491
    %v567 = vmul.f32 %v432, %v491
    %v568 = vmul.f32 %v433, %v491
    %v569 = vmul.f32 %v434, %v491
    %v570 = vmul.f32 %v435, %v491
    %v571 = vmul.f32 %v436, %v491
    %v572 = vmul.f32 %v437, %v491
    %v573 = vmul.f32 %v438, %v491
    %v574 = vmul.f32 %v439, %v491
    %v575 = vmul.f32 %v440, %v491
    %v576 = vmul.f32 %v441, %v491
    %v577 = vmul.f32 %v442, %v491
    %v578 = vmul.f32 %v443, %v491
    %v579 = vmul.f32 %v444, %v491
    %v580 = vmul.f32 %v445, %v491
    %v581 = vmul.f32 %v446, %v491
    %v582 = vmul.f32 %v447, %v491
    %v583 = vmul.f32 %v448, %v491
    %v584 = vmul.f32 %v449, %v491
    %v585 = vmul.f32 %v450, %v491
    %v586 = vmul.f32 %v451, %v491
    %v587 = vmul.f32 %v452, %v491
    %v588 = vmul.f32 %v453, %v491
    %v589 = vmul.f32 %v454, %v491
    %v590 = vmul.f32 %v455, %v491
    %v591 = vmul.f32 %v456, %v491
    %v592 = vmul.f32 %v457, %v491
    %v593 = vmul.f32 %v458, %v491
    %v594 = vmul.f32 %v459, %v491
    %v595 = vmul.f32 %v460, %v491
    %v596 = vmul.f32 %v461, %v491
    %v597 = vmul.f32 %v462, %v491
    %v598 = vmul.f32 %v463, %v491
    %v599 = vmul.f32 %v464, %v491
    %v600 = vmul.f32 %v465, %v491
    %v601 = vmul.f32 %v466, %v491
    %v602 = vmul.f32 %v467, %v491
    %v603 = vmul.f32 %v468, %v491
    %v604 = vmul.f32 %v469, %v491
    %v605 = vmul.f32 %v470, %v491
    %v606 = vmul.f32 %v471, %v491
    %v607 = vmul.f32 %v472, %v491
    %v608 = vmul.f32 %v473, %v491
    %v609 = vmul.f32 %v474, %v491
    %v610 = vmul.f32 %v475, %v491
    %v611 = vmul.f32 %v476, %v491
    %v612 = vmul.f32 %v477, %v491
    %v613 = vmul.f32 %v478, %v491
    %v614 = vmul.f32 %v479, %v491
    %v615 = vmul.f32 %v480, %v491
    %v616 = vmul.f32 %v481, %v491
    %v617 = vmul.f32 %v482, %v491
    %v618 = vmul.f32 %v483, %v491
    %v619 = vmul.f32 %v484, %v491
    %v620 = vmul.f32 %v485, %v491
    %v621 = vld [vmem:[#allocation8] sm:$0x1]
    %v623 = vlaneseq
    %v624 = vshrl.u32 %v623, 7
    %v625 = vsub.s32 0, %v624
    %v626 = vrot.slane %v621, %v625
    %v628 = vadd.f32 %v493, %v626
    %v629 = vadd.f32 %v494, %v626
    %v630 = vadd.f32 %v495, %v626
    %v631 = vadd.f32 %v496, %v626
    %v632 = vadd.f32 %v497, %v626
    %v633 = vadd.f32 %v498, %v626
    %v634 = vadd.f32 %v499, %v626
    %v635 = vadd.f32 %v500, %v626
    %v636 = vadd.f32 %v501, %v626
    %v637 = vadd.f32 %v502, %v626
    %v638 = vadd.f32 %v503, %v626
    %v639 = vadd.f32 %v504, %v626
    %v640 = vadd.f32 %v505, %v626
    %v641 = vadd.f32 %v506, %v626
    %v642 = vadd.f32 %v507, %v626
    %v643 = vadd.f32 %v508, %v626
    %v644 = vadd.f32 %v509, %v626
    %v645 = vadd.f32 %v510, %v626
    %v646 = vadd.f32 %v511, %v626
    %v647 = vadd.f32 %v512, %v626
    %v648 = vadd.f32 %v513, %v626
    %v649 = vadd.f32 %v514, %v626
    %v650 = vadd.f32 %v515, %v626
    %v651 = vadd.f32 %v516, %v626
    %v652 = vadd.f32 %v517, %v626
    %v653 = vadd.f32 %v518, %v626
    %v654 = vadd.f32 %v519, %v626
    %v655 = vadd.f32 %v520, %v626
    %v656 = vadd.f32 %v521, %v626
    %v657 = vadd.f32 %v522, %v626
    %v658 = vadd.f32 %v523, %v626
    %v659 = vadd.f32 %v524, %v626
    %v660 = vadd.f32 %v525, %v626
    %v661 = vadd.f32 %v526, %v626
    %v662 = vadd.f32 %v527, %v626
    %v663 = vadd.f32 %v528, %v626
    %v664 = vadd.f32 %v529, %v626
    %v665 = vadd.f32 %v530, %v626
    %v666 = vadd.f32 %v531, %v626
    %v667 = vadd.f32 %v532, %v626
    %v668 = vadd.f32 %v533, %v626
    %v669 = vadd.f32 %v534, %v626
    %v670 = vadd.f32 %v535, %v626
    %v671 = vadd.f32 %v536, %v626
    %v672 = vadd.f32 %v537, %v626
    %v673 = vadd.f32 %v538, %v626
    %v674 = vadd.f32 %v539, %v626
    %v675 = vadd.f32 %v540, %v626
    %v676 = vadd.f32 %v541, %v626
    %v677 = vadd.f32 %v542, %v626
    %v678 = vadd.f32 %v543, %v626
    %v679 = vadd.f32 %v544, %v626
    %v680 = vadd.f32 %v545, %v626
    %v681 = vadd.f32 %v546, %v626
    %v682 = vadd.f32 %v547, %v626
    %v683 = vadd.f32 %v548, %v626
    %v684 = vadd.f32 %v549, %v626
    %v685 = vadd.f32 %v550, %v626
    %v686 = vadd.f32 %v551, %v626
    %v687 = vadd.f32 %v552, %v626
    %v688 = vadd.f32 %v553, %v626
    %v689 = vadd.f32 %v554, %v626
    %v690 = vadd.f32 %v555, %v626
    %v691 = vadd.f32 %v556, %v626
    %v692 = vadd.f32 %v557, %v626
    %v693 = vadd.f32 %v558, %v626
    %v694 = vadd.f32 %v559, %v626
    %v695 = vadd.f32 %v560, %v626
    %v696 = vadd.f32 %v561, %v626
    %v697 = vadd.f32 %v562, %v626
    %v698 = vadd.f32 %v563, %v626
    %v699 = vadd.f32 %v564, %v626
    %v700 = vadd.f32 %v565, %v626
    %v701 = vadd.f32 %v566, %v626
    %v702 = vadd.f32 %v567, %v626
    %v703 = vadd.f32 %v568, %v626
    %v704 = vadd.f32 %v569, %v626
    %v705 = vadd.f32 %v570, %v626
    %v706 = vadd.f32 %v571, %v626
    %v707 = vadd.f32 %v572, %v626
    %v708 = vadd.f32 %v573, %v626
    %v709 = vadd.f32 %v574, %v626
    %v710 = vadd.f32 %v575, %v626
    %v711 = vadd.f32 %v576, %v626
    %v712 = vadd.f32 %v577, %v626
    %v713 = vadd.f32 %v578, %v626
    %v714 = vadd.f32 %v579, %v626
    %v715 = vadd.f32 %v580, %v626
    %v716 = vadd.f32 %v581, %v626
    %v717 = vadd.f32 %v582, %v626
    %v718 = vadd.f32 %v583, %v626
    %v719 = vadd.f32 %v584, %v626
    %v720 = vadd.f32 %v585, %v626
    %v721 = vadd.f32 %v586, %v626
    %v722 = vadd.f32 %v587, %v626
    %v723 = vadd.f32 %v588, %v626
    %v724 = vadd.f32 %v589, %v626
    %v725 = vadd.f32 %v590, %v626
    %v726 = vadd.f32 %v591, %v626
    %v727 = vadd.f32 %v592, %v626
    %v728 = vadd.f32 %v593, %v626
    %v729 = vadd.f32 %v594, %v626
    %v730 = vadd.f32 %v595, %v626
    %v731 = vadd.f32 %v596, %v626
    %v732 = vadd.f32 %v597, %v626
    %v733 = vadd.f32 %v598, %v626
    %v734 = vadd.f32 %v599, %v626
    %v735 = vadd.f32 %v600, %v626
    %v736 = vadd.f32 %v601, %v626
    %v737 = vadd.f32 %v602, %v626
    %v738 = vadd.f32 %v603, %v626
    %v739 = vadd.f32 %v604, %v626
    %v740 = vadd.f32 %v605, %v626
    %v741 = vadd.f32 %v606, %v626
    %v742 = vadd.f32 %v607, %v626
    %v743 = vadd.f32 %v608, %v626
    %v744 = vadd.f32 %v609, %v626
    %v745 = vadd.f32 %v610, %v626
    %v746 = vadd.f32 %v611, %v626
    %v747 = vadd.f32 %v612, %v626
    %v748 = vadd.f32 %v613, %v626
    %v749 = vadd.f32 %v614, %v626
    %v750 = vadd.f32 %v615, %v626
    %v751 = vadd.f32 %v616, %v626
    %v752 = vadd.f32 %v617, %v626
    %v753 = vadd.f32 %v618, %v626
    %v754 = vadd.f32 %v619, %v626
    %v755 = vadd.f32 %v620, %v626
    %v756 = vxor.u32 %v628, 2147483648
    %v757 = vxor.u32 %v629, 2147483648
    %v758 = vxor.u32 %v630, 2147483648
    %v759 = vxor.u32 %v631, 2147483648
    %v760 = vxor.u32 %v632, 2147483648
    %v761 = vxor.u32 %v633, 2147483648
    %v762 = vxor.u32 %v634, 2147483648
    %v763 = vxor.u32 %v635, 2147483648
    %v764 = vxor.u32 %v636, 2147483648
    %v765 = vxor.u32 %v637, 2147483648
    %v766 = vxor.u32 %v638, 2147483648
    %v767 = vxor.u32 %v639, 2147483648
    %v768 = vxor.u32 %v640, 2147483648
    %v769 = vxor.u32 %v641, 2147483648
    %v770 = vxor.u32 %v642, 2147483648
    %v771 = vxor.u32 %v643, 2147483648
    %v772 = vxor.u32 %v644, 2147483648
    %v773 = vxor.u32 %v645, 2147483648
    %v774 = vxor.u32 %v646, 2147483648
    %v775 = vxor.u32 %v647, 2147483648
    %v776 = vxor.u32 %v648, 2147483648
    %v777 = vxor.u32 %v649, 2147483648
    %v778 = vxor.u32 %v650, 2147483648
    %v779 = vxor.u32 %v651, 2147483648
    %v780 = vxor.u32 %v652, 2147483648
    %v781 = vxor.u32 %v653, 2147483648
    %v782 = vxor.u32 %v654, 2147483648
    %v783 = vxor.u32 %v655, 2147483648
    %v784 = vxor.u32 %v656, 2147483648
    %v785 = vxor.u32 %v657, 2147483648
    %v786 = vxor.u32 %v658, 2147483648
    %v787 = vxor.u32 %v659, 2147483648
    %v788 = vxor.u32 %v660, 2147483648
    %v789 = vxor.u32 %v661, 2147483648
    %v790 = vxor.u32 %v662, 2147483648
    %v791 = vxor.u32 %v663, 2147483648
    %v792 = vxor.u32 %v664, 2147483648
    %v793 = vxor.u32 %v665, 2147483648
    %v794 = vxor.u32 %v666, 2147483648
    %v795 = vxor.u32 %v667, 2147483648
    %v796 = vxor.u32 %v668, 2147483648
    %v797 = vxor.u32 %v669, 2147483648
    %v798 = vxor.u32 %v670, 2147483648
    %v799 = vxor.u32 %v671, 2147483648
    %v800 = vxor.u32 %v672, 2147483648
    %v801 = vxor.u32 %v673, 2147483648
    %v802 = vxor.u32 %v674, 2147483648
    %v803 = vxor.u32 %v675, 2147483648
    %v804 = vxor.u32 %v676, 2147483648
    %v805 = vxor.u32 %v677, 2147483648
    %v806 = vxor.u32 %v678, 2147483648
    %v807 = vxor.u32 %v679, 2147483648
    %v808 = vxor.u32 %v680, 2147483648
    %v809 = vxor.u32 %v681, 2147483648
    %v810 = vxor.u32 %v682, 2147483648
    %v811 = vxor.u32 %v683, 2147483648
    %v812 = vxor.u32 %v684, 2147483648
    %v813 = vxor.u32 %v685, 2147483648
    %v814 = vxor.u32 %v686, 2147483648
    %v815 = vxor.u32 %v687, 2147483648
    %v816 = vxor.u32 %v688, 2147483648
    %v817 = vxor.u32 %v689, 2147483648
    %v818 = vxor.u32 %v690, 2147483648
    %v819 = vxor.u32 %v691, 2147483648
    %v820 = vxor.u32 %v692, 2147483648
    %v821 = vxor.u32 %v693, 2147483648
    %v822 = vxor.u32 %v694, 2147483648
    %v823 = vxor.u32 %v695, 2147483648
    %v824 = vxor.u32 %v696, 2147483648
    %v825 = vxor.u32 %v697, 2147483648
    %v826 = vxor.u32 %v698, 2147483648
    %v827 = vxor.u32 %v699, 2147483648
    %v828 = vxor.u32 %v700, 2147483648
    %v829 = vxor.u32 %v701, 2147483648
    %v830 = vxor.u32 %v702, 2147483648
    %v831 = vxor.u32 %v703, 2147483648
    %v832 = vxor.u32 %v704, 2147483648
    %v833 = vxor.u32 %v705, 2147483648
    %v834 = vxor.u32 %v706, 2147483648
    %v835 = vxor.u32 %v707, 2147483648
    %v836 = vxor.u32 %v708, 2147483648
    %v837 = vxor.u32 %v709, 2147483648
    %v838 = vxor.u32 %v710, 2147483648
    %v839 = vxor.u32 %v711, 2147483648
    %v840 = vxor.u32 %v712, 2147483648
    %v841 = vxor.u32 %v713, 2147483648
    %v842 = vxor.u32 %v714, 2147483648
    %v843 = vxor.u32 %v715, 2147483648
    %v844 = vxor.u32 %v716, 2147483648
    %v845 = vxor.u32 %v717, 2147483648
    %v846 = vxor.u32 %v718, 2147483648
    %v847 = vxor.u32 %v719, 2147483648
    %v848 = vxor.u32 %v720, 2147483648
    %v849 = vxor.u32 %v721, 2147483648
    %v850 = vxor.u32 %v722, 2147483648
    %v851 = vxor.u32 %v723, 2147483648
    %v852 = vxor.u32 %v724, 2147483648
    %v853 = vxor.u32 %v725, 2147483648
    %v854 = vxor.u32 %v726, 2147483648
    %v855 = vxor.u32 %v727, 2147483648
    %v856 = vxor.u32 %v728, 2147483648
    %v857 = vxor.u32 %v729, 2147483648
    %v858 = vxor.u32 %v730, 2147483648
    %v859 = vxor.u32 %v731, 2147483648
    %v860 = vxor.u32 %v732, 2147483648
    %v861 = vxor.u32 %v733, 2147483648
    %v862 = vxor.u32 %v734, 2147483648
    %v863 = vxor.u32 %v735, 2147483648
    %v864 = vxor.u32 %v736, 2147483648
    %v865 = vxor.u32 %v737, 2147483648
    %v866 = vxor.u32 %v738, 2147483648
    %v867 = vxor.u32 %v739, 2147483648
    %v868 = vxor.u32 %v740, 2147483648
    %v869 = vxor.u32 %v741, 2147483648
    %v870 = vxor.u32 %v742, 2147483648
    %v871 = vxor.u32 %v743, 2147483648
    %v872 = vxor.u32 %v744, 2147483648
    %v873 = vxor.u32 %v745, 2147483648
    %v874 = vxor.u32 %v746, 2147483648
    %v875 = vxor.u32 %v747, 2147483648
    %v876 = vxor.u32 %v748, 2147483648
    %v877 = vxor.u32 %v749, 2147483648
    %v878 = vxor.u32 %v750, 2147483648
    %v879 = vxor.u32 %v751, 2147483648
    %v880 = vxor.u32 %v752, 2147483648
    %v881 = vxor.u32 %v753, 2147483648
    %v882 = vxor.u32 %v754, 2147483648
    %v883 = vxor.u32 %v755, 2147483648
    %v884 = vmul.f32 %v756, 1.442695
    %v885 = vpow.pop %v884
    %v886 = vmul.f32 %v757, 1.442695
    %v887 = vpow.pop %v886
    %v888 = vmul.f32 %v758, 1.442695
    %v889 = vpow.pop %v888
    %v890 = vmul.f32 %v759, 1.442695
    %v891 = vpow.pop %v890
    %v892 = vmul.f32 %v760, 1.442695
    %v893 = vpow.pop %v892
    %v894 = vmul.f32 %v761, 1.442695
    %v895 = vpow.pop %v894
    %v896 = vmul.f32 %v762, 1.442695
    %v897 = vpow.pop %v896
    %v898 = vmul.f32 %v763, 1.442695
    %v899 = vpow.pop %v898
    %v900 = vmul.f32 %v764, 1.442695
    %v901 = vpow.pop %v900
    %v902 = vmul.f32 %v765, 1.442695
    %v903 = vpow.pop %v902
    %v904 = vmul.f32 %v766, 1.442695
    %v905 = vpow.pop %v904
    %v906 = vmul.f32 %v767, 1.442695
    %v907 = vpow.pop %v906
    %v908 = vmul.f32 %v768, 1.442695
    %v909 = vpow.pop %v908
    %v910 = vmul.f32 %v769, 1.442695
    %v911 = vpow.pop %v910
    %v912 = vmul.f32 %v770, 1.442695
    %v913 = vpow.pop %v912
    %v914 = vmul.f32 %v771, 1.442695
    %v915 = vpow.pop %v914
    %v916 = vmul.f32 %v772, 1.442695
    %v917 = vpow.pop %v916
    %v918 = vmul.f32 %v773, 1.442695
    %v919 = vpow.pop %v918
    %v920 = vmul.f32 %v774, 1.442695
    %v921 = vpow.pop %v920
    %v922 = vmul.f32 %v775, 1.442695
    %v923 = vpow.pop %v922
    %v924 = vmul.f32 %v776, 1.442695
    %v925 = vpow.pop %v924
    %v926 = vmul.f32 %v777, 1.442695
    %v927 = vpow.pop %v926
    %v928 = vmul.f32 %v778, 1.442695
    %v929 = vpow.pop %v928
    %v930 = vmul.f32 %v779, 1.442695
    %v931 = vpow.pop %v930
    %v932 = vmul.f32 %v780, 1.442695
    %v933 = vpow.pop %v932
    %v934 = vmul.f32 %v781, 1.442695
    %v935 = vpow.pop %v934
    %v936 = vmul.f32 %v782, 1.442695
    %v937 = vpow.pop %v936
    %v938 = vmul.f32 %v783, 1.442695
    %v939 = vpow.pop %v938
    %v940 = vmul.f32 %v784, 1.442695
    %v941 = vpow.pop %v940
    %v942 = vmul.f32 %v785, 1.442695
    %v943 = vpow.pop %v942
    %v944 = vmul.f32 %v786, 1.442695
    %v945 = vpow.pop %v944
    %v946 = vmul.f32 %v787, 1.442695
    %v947 = vpow.pop %v946
    %v948 = vmul.f32 %v788, 1.442695
    %v949 = vpow.pop %v948
    %v950 = vmul.f32 %v789, 1.442695
    %v951 = vpow.pop %v950
    %v952 = vmul.f32 %v790, 1.442695
    %v953 = vpow.pop %v952
    %v954 = vmul.f32 %v791, 1.442695
    %v955 = vpow.pop %v954
    %v956 = vmul.f32 %v792, 1.442695
    %v957 = vpow.pop %v956
    %v958 = vmul.f32 %v793, 1.442695
    %v959 = vpow.pop %v958
    %v960 = vmul.f32 %v794, 1.442695
    %v961 = vpow.pop %v960
    %v962 = vmul.f32 %v795, 1.442695
    %v963 = vpow.pop %v962
    %v964 = vmul.f32 %v796, 1.442695
    %v965 = vpow.pop %v964
    %v966 = vmul.f32 %v797, 1.442695
    %v967 = vpow.pop %v966
    %v968 = vmul.f32 %v798, 1.442695
    %v969 = vpow.pop %v968
    %v970 = vmul.f32 %v799, 1.442695
    %v971 = vpow.pop %v970
    %v972 = vmul.f32 %v800, 1.442695
    %v973 = vpow.pop %v972
    %v974 = vmul.f32 %v801, 1.442695
    %v975 = vpow.pop %v974
    %v976 = vmul.f32 %v802, 1.442695
    %v977 = vpow.pop %v976
    %v978 = vmul.f32 %v803, 1.442695
    %v979 = vpow.pop %v978
    %v980 = vmul.f32 %v804, 1.442695
    %v981 = vpow.pop %v980
    %v982 = vmul.f32 %v805, 1.442695
    %v983 = vpow.pop %v982
    %v984 = vmul.f32 %v806, 1.442695
    %v985 = vpow.pop %v984
    %v986 = vmul.f32 %v807, 1.442695
    %v987 = vpow.pop %v986
    %v988 = vmul.f32 %v808, 1.442695
    %v989 = vpow.pop %v988
    %v990 = vmul.f32 %v809, 1.442695
    %v991 = vpow.pop %v990
    %v992 = vmul.f32 %v810, 1.442695
    %v993 = vpow.pop %v992
    %v994 = vmul.f32 %v811, 1.442695
    %v995 = vpow.pop %v994
    %v996 = vmul.f32 %v812, 1.442695
    %v997 = vpow.pop %v996
    %v998 = vmul.f32 %v813, 1.442695
    %v999 = vpow.pop %v998
    %v1000 = vmul.f32 %v814, 1.442695
    %v1001 = vpow.pop %v1000
    %v1002 = vmul.f32 %v815, 1.442695
    %v1003 = vpow.pop %v1002
    %v1004 = vmul.f32 %v816, 1.442695
    %v1005 = vpow.pop %v1004
    %v1006 = vmul.f32 %v817, 1.442695
    %v1007 = vpow.pop %v1006
    %v1008 = vmul.f32 %v818, 1.442695
    %v1009 = vpow.pop %v1008
    %v1010 = vmul.f32 %v819, 1.442695
    %v1011 = vpow.pop %v1010
    %v1012 = vmul.f32 %v820, 1.442695
    %v1013 = vpow.pop %v1012
    %v1014 = vmul.f32 %v821, 1.442695
    %v1015 = vpow.pop %v1014
    %v1016 = vmul.f32 %v822, 1.442695
    %v1017 = vpow.pop %v1016
    %v1018 = vmul.f32 %v823, 1.442695
    %v1019 = vpow.pop %v1018
    %v1020 = vmul.f32 %v824, 1.442695
    %v1021 = vpow.pop %v1020
    %v1022 = vmul.f32 %v825, 1.442695
    %v1023 = vpow.pop %v1022
    %v1024 = vmul.f32 %v826, 1.442695
    %v1025 = vpow.pop %v1024
    %v1026 = vmul.f32 %v827, 1.442695
    %v1027 = vpow.pop %v1026
    %v1028 = vmul.f32 %v828, 1.442695
    %v1029 = vpow.pop %v1028
    %v1030 = vmul.f32 %v829, 1.442695
    %v1031 = vpow.pop %v1030
    %v1032 = vmul.f32 %v830, 1.442695
    %v1033 = vpow.pop %v1032
    %v1034 = vmul.f32 %v831, 1.442695
    %v1035 = vpow.pop %v1034
    %v1036 = vmul.f32 %v832, 1.442695
    %v1037 = vpow.pop %v1036
    %v1038 = vmul.f32 %v833, 1.442695
    %v1039 = vpow.pop %v1038
    %v1040 = vmul.f32 %v834, 1.442695
    %v1041 = vpow.pop %v1040
    %v1042 = vmul.f32 %v835, 1.442695
    %v1043 = vpow.pop %v1042
    %v1044 = vmul.f32 %v836, 1.442695
    %v1045 = vpow.pop %v1044
    %v1046 = vmul.f32 %v837, 1.442695
    %v1047 = vpow.pop %v1046
    %v1048 = vmul.f32 %v838, 1.442695
    %v1049 = vpow.pop %v1048
    %v1050 = vmul.f32 %v839, 1.442695
    %v1051 = vpow.pop %v1050
    %v1052 = vmul.f32 %v840, 1.442695
    %v1053 = vpow.pop %v1052
    %v1054 = vmul.f32 %v841, 1.442695
    %v1055 = vpow.pop %v1054
    %v1056 = vmul.f32 %v842, 1.442695
    %v1057 = vpow.pop %v1056
    %v1058 = vmul.f32 %v843, 1.442695
    %v1059 = vpow.pop %v1058
    %v1060 = vmul.f32 %v844, 1.442695
    %v1061 = vpow.pop %v1060
    %v1062 = vmul.f32 %v845, 1.442695
    %v1063 = vpow.pop %v1062
    %v1064 = vmul.f32 %v846, 1.442695
    %v1065 = vpow.pop %v1064
    %v1066 = vmul.f32 %v847, 1.442695
    %v1067 = vpow.pop %v1066
    %v1068 = vmul.f32 %v848, 1.442695
    %v1069 = vpow.pop %v1068
    %v1070 = vmul.f32 %v849, 1.442695
    %v1071 = vpow.pop %v1070
    %v1072 = vmul.f32 %v850, 1.442695
    %v1073 = vpow.pop %v1072
    %v1074 = vmul.f32 %v851, 1.442695
    %v1075 = vpow.pop %v1074
    %v1076 = vmul.f32 %v852, 1.442695
    %v1077 = vpow.pop %v1076
    %v1078 = vmul.f32 %v853, 1.442695
    %v1079 = vpow.pop %v1078
    %v1080 = vmul.f32 %v854, 1.442695
    %v1081 = vpow.pop %v1080
    %v1082 = vmul.f32 %v855, 1.442695
    %v1083 = vpow.pop %v1082
    %v1084 = vmul.f32 %v856, 1.442695
    %v1085 = vpow.pop %v1084
    %v1086 = vmul.f32 %v857, 1.442695
    %v1087 = vpow.pop %v1086
    %v1088 = vmul.f32 %v858, 1.442695
    %v1089 = vpow.pop %v1088
    %v1090 = vmul.f32 %v859, 1.442695
    %v1091 = vpow.pop %v1090
    %v1092 = vmul.f32 %v860, 1.442695
    %v1093 = vpow.pop %v1092
    %v1094 = vmul.f32 %v861, 1.442695
    %v1095 = vpow.pop %v1094
    %v1096 = vmul.f32 %v862, 1.442695
    %v1097 = vpow.pop %v1096
    %v1098 = vmul.f32 %v863, 1.442695
    %v1099 = vpow.pop %v1098
    %v1100 = vmul.f32 %v864, 1.442695
    %v1101 = vpow.pop %v1100
    %v1102 = vmul.f32 %v865, 1.442695
    %v1103 = vpow.pop %v1102
    %v1104 = vmul.f32 %v866, 1.442695
    %v1105 = vpow.pop %v1104
    %v1106 = vmul.f32 %v867, 1.442695
    %v1107 = vpow.pop %v1106
    %v1108 = vmul.f32 %v868, 1.442695
    %v1109 = vpow.pop %v1108
    %v1110 = vmul.f32 %v869, 1.442695
    %v1111 = vpow.pop %v1110
    %v1112 = vmul.f32 %v870, 1.442695
    %v1113 = vpow.pop %v1112
    %v1114 = vmul.f32 %v871, 1.442695
    %v1115 = vpow.pop %v1114
    %v1116 = vmul.f32 %v872, 1.442695
    %v1117 = vpow.pop %v1116
    %v1118 = vmul.f32 %v873, 1.442695
    %v1119 = vpow.pop %v1118
    %v1120 = vmul.f32 %v874, 1.442695
    %v1121 = vpow.pop %v1120
    %v1122 = vmul.f32 %v875, 1.442695
    %v1123 = vpow.pop %v1122
    %v1124 = vmul.f32 %v876, 1.442695
    %v1125 = vpow.pop %v1124
    %v1126 = vmul.f32 %v877, 1.442695
    %v1127 = vpow.pop %v1126
    %v1128 = vmul.f32 %v878, 1.442695
    %v1129 = vpow.pop %v1128
    %v1130 = vmul.f32 %v879, 1.442695
    %v1131 = vpow.pop %v1130
    %v1132 = vmul.f32 %v880, 1.442695
    %v1133 = vpow.pop %v1132
    %v1134 = vmul.f32 %v881, 1.442695
    %v1135 = vpow.pop %v1134
    %v1136 = vmul.f32 %v882, 1.442695
    %v1137 = vpow.pop %v1136
    %v1138 = vmul.f32 %v883, 1.442695
    %v1139 = vpow.pop %v1138
    %v1140 = vadd.f32 %v885, 1.0
    %v1141 = vadd.f32 %v887, 1.0
    %v1142 = vadd.f32 %v889, 1.0
    %v1143 = vadd.f32 %v891, 1.0
    %v1144 = vadd.f32 %v893, 1.0
    %v1145 = vadd.f32 %v895, 1.0
    %v1146 = vadd.f32 %v897, 1.0
    %v1147 = vadd.f32 %v899, 1.0
    %v1148 = vadd.f32 %v901, 1.0
    %v1149 = vadd.f32 %v903, 1.0
    %v1150 = vadd.f32 %v905, 1.0
    %v1151 = vadd.f32 %v907, 1.0
    %v1152 = vadd.f32 %v909, 1.0
    %v1153 = vadd.f32 %v911, 1.0
    %v1154 = vadd.f32 %v913, 1.0
    %v1155 = vadd.f32 %v915, 1.0
    %v1156 = vadd.f32 %v917, 1.0
    %v1157 = vadd.f32 %v919, 1.0
    %v1158 = vadd.f32 %v921, 1.0
    %v1159 = vadd.f32 %v923, 1.0
    %v1160 = vadd.f32 %v925, 1.0
    %v1161 = vadd.f32 %v927, 1.0
    %v1162 = vadd.f32 %v929, 1.0
    %v1163 = vadd.f32 %v931, 1.0
    %v1164 = vadd.f32 %v933, 1.0
    %v1165 = vadd.f32 %v935, 1.0
    %v1166 = vadd.f32 %v937, 1.0
    %v1167 = vadd.f32 %v939, 1.0
    %v1168 = vadd.f32 %v941, 1.0
    %v1169 = vadd.f32 %v943, 1.0
    %v1170 = vadd.f32 %v945, 1.0
    %v1171 = vadd.f32 %v947, 1.0
    %v1172 = vadd.f32 %v949, 1.0
    %v1173 = vadd.f32 %v951, 1.0
    %v1174 = vadd.f32 %v953, 1.0
    %v1175 = vadd.f32 %v955, 1.0
    %v1176 = vadd.f32 %v957, 1.0
    %v1177 = vadd.f32 %v959, 1.0
    %v1178 = vadd.f32 %v961, 1.0
    %v1179 = vadd.f32 %v963, 1.0
    %v1180 = vadd.f32 %v965, 1.0
    %v1181 = vadd.f32 %v967, 1.0
    %v1182 = vadd.f32 %v969, 1.0
    %v1183 = vadd.f32 %v971, 1.0
    %v1184 = vadd.f32 %v973, 1.0
    %v1185 = vadd.f32 %v975, 1.0
    %v1186 = vadd.f32 %v977, 1.0
    %v1187 = vadd.f32 %v979, 1.0
    %v1188 = vadd.f32 %v981, 1.0
    %v1189 = vadd.f32 %v983, 1.0
    %v1190 = vadd.f32 %v985, 1.0
    %v1191 = vadd.f32 %v987, 1.0
    %v1192 = vadd.f32 %v989, 1.0
    %v1193 = vadd.f32 %v991, 1.0
    %v1194 = vadd.f32 %v993, 1.0
    %v1195 = vadd.f32 %v995, 1.0
    %v1196 = vadd.f32 %v997, 1.0
    %v1197 = vadd.f32 %v999, 1.0
    %v1198 = vadd.f32 %v1001, 1.0
    %v1199 = vadd.f32 %v1003, 1.0
    %v1200 = vadd.f32 %v1005, 1.0
    %v1201 = vadd.f32 %v1007, 1.0
    %v1202 = vadd.f32 %v1009, 1.0
    %v1203 = vadd.f32 %v1011, 1.0
    %v1204 = vadd.f32 %v1013, 1.0
    %v1205 = vadd.f32 %v1015, 1.0
    %v1206 = vadd.f32 %v1017, 1.0
    %v1207 = vadd.f32 %v1019, 1.0
    %v1208 = vadd.f32 %v1021, 1.0
    %v1209 = vadd.f32 %v1023, 1.0
    %v1210 = vadd.f32 %v1025, 1.0
    %v1211 = vadd.f32 %v1027, 1.0
    %v1212 = vadd.f32 %v1029, 1.0
    %v1213 = vadd.f32 %v1031, 1.0
    %v1214 = vadd.f32 %v1033, 1.0
    %v1215 = vadd.f32 %v1035, 1.0
    %v1216 = vadd.f32 %v1037, 1.0
    %v1217 = vadd.f32 %v1039, 1.0
    %v1218 = vadd.f32 %v1041, 1.0
    %v1219 = vadd.f32 %v1043, 1.0
    %v1220 = vadd.f32 %v1045, 1.0
    %v1221 = vadd.f32 %v1047, 1.0
    %v1222 = vadd.f32 %v1049, 1.0
    %v1223 = vadd.f32 %v1051, 1.0
    %v1224 = vadd.f32 %v1053, 1.0
    %v1225 = vadd.f32 %v1055, 1.0
    %v1226 = vadd.f32 %v1057, 1.0
    %v1227 = vadd.f32 %v1059, 1.0
    %v1228 = vadd.f32 %v1061, 1.0
    %v1229 = vadd.f32 %v1063, 1.0
    %v1230 = vadd.f32 %v1065, 1.0
    %v1231 = vadd.f32 %v1067, 1.0
    %v1232 = vadd.f32 %v1069, 1.0
    %v1233 = vadd.f32 %v1071, 1.0
    %v1234 = vadd.f32 %v1073, 1.0
    %v1235 = vadd.f32 %v1075, 1.0
    %v1236 = vadd.f32 %v1077, 1.0
    %v1237 = vadd.f32 %v1079, 1.0
    %v1238 = vadd.f32 %v1081, 1.0
    %v1239 = vadd.f32 %v1083, 1.0
    %v1240 = vadd.f32 %v1085, 1.0
    %v1241 = vadd.f32 %v1087, 1.0
    %v1242 = vadd.f32 %v1089, 1.0
    %v1243 = vadd.f32 %v1091, 1.0
    %v1244 = vadd.f32 %v1093, 1.0
    %v1245 = vadd.f32 %v1095, 1.0
    %v1246 = vadd.f32 %v1097, 1.0
    %v1247 = vadd.f32 %v1099, 1.0
    %v1248 = vadd.f32 %v1101, 1.0
    %v1249 = vadd.f32 %v1103, 1.0
    %v1250 = vadd.f32 %v1105, 1.0
    %v1251 = vadd.f32 %v1107, 1.0
    %v1252 = vadd.f32 %v1109, 1.0
    %v1253 = vadd.f32 %v1111, 1.0
    %v1254 = vadd.f32 %v1113, 1.0
    %v1255 = vadd.f32 %v1115, 1.0
    %v1256 = vadd.f32 %v1117, 1.0
    %v1257 = vadd.f32 %v1119, 1.0
    %v1258 = vadd.f32 %v1121, 1.0
    %v1259 = vadd.f32 %v1123, 1.0
    %v1260 = vadd.f32 %v1125, 1.0
    %v1261 = vadd.f32 %v1127, 1.0
    %v1262 = vadd.f32 %v1129, 1.0
    %v1263 = vadd.f32 %v1131, 1.0
    %v1264 = vadd.f32 %v1133, 1.0
    %v1265 = vadd.f32 %v1135, 1.0
    %v1266 = vadd.f32 %v1137, 1.0
    %v1267 = vadd.f32 %v1139, 1.0
    %v1268 = vrcp.pop %v1140
    %v1269 = vmul.f32 1.0, %v1268
    %v1270 = vrcp.pop %v1141
    %v1271 = vmul.f32 1.0, %v1270
    %v1272 = vrcp.pop %v1142
    %v1273 = vmul.f32 1.0, %v1272
    %v1274 = vrcp.pop %v1143
    %v1275 = vmul.f32 1.0, %v1274
    %v1276 = vrcp.pop %v1144
    %v1277 = vmul.f32 1.0, %v1276
    %v1278 = vrcp.pop %v1145
    %v1279 = vmul.f32 1.0, %v1278
    %v1280 = vrcp.pop %v1146
    %v1281 = vmul.f32 1.0, %v1280
    %v1282 = vrcp.pop %v1147
    %v1283 = vmul.f32 1.0, %v1282
    %v1284 = vrcp.pop %v1148
    %v1285 = vmul.f32 1.0, %v1284
    %v1286 = vrcp.pop %v1149
    %v1287 = vmul.f32 1.0, %v1286
    %v1288 = vrcp.pop %v1150
    %v1289 = vmul.f32 1.0, %v1288
    %v1290 = vrcp.pop %v1151
    %v1291 = vmul.f32 1.0, %v1290
    %v1292 = vrcp.pop %v1152
    %v1293 = vmul.f32 1.0, %v1292
    %v1294 = vrcp.pop %v1153
    %v1295 = vmul.f32 1.0, %v1294
    %v1296 = vrcp.pop %v1154
    %v1297 = vmul.f32 1.0, %v1296
    %v1298 = vrcp.pop %v1155
    %v1299 = vmul.f32 1.0, %v1298
    %v1300 = vrcp.pop %v1156
    %v1301 = vmul.f32 1.0, %v1300
    %v1302 = vrcp.pop %v1157
    %v1303 = vmul.f32 1.0, %v1302
    %v1304 = vrcp.pop %v1158
    %v1305 = vmul.f32 1.0, %v1304
    %v1306 = vrcp.pop %v1159
    %v1307 = vmul.f32 1.0, %v1306
    %v1308 = vrcp.pop %v1160
    %v1309 = vmul.f32 1.0, %v1308
    %v1310 = vrcp.pop %v1161
    %v1311 = vmul.f32 1.0, %v1310
    %v1312 = vrcp.pop %v1162
    %v1313 = vmul.f32 1.0, %v1312
    %v1314 = vrcp.pop %v1163
    %v1315 = vmul.f32 1.0, %v1314
    %v1316 = vrcp.pop %v1164
    %v1317 = vmul.f32 1.0, %v1316
    %v1318 = vrcp.pop %v1165
    %v1319 = vmul.f32 1.0, %v1318
    %v1320 = vrcp.pop %v1166
    %v1321 = vmul.f32 1.0, %v1320
    %v1322 = vrcp.pop %v1167
    %v1323 = vmul.f32 1.0, %v1322
    %v1324 = vrcp.pop %v1168
    %v1325 = vmul.f32 1.0, %v1324
    %v1326 = vrcp.pop %v1169
    %v1327 = vmul.f32 1.0, %v1326
    %v1328 = vrcp.pop %v1170
    %v1329 = vmul.f32 1.0, %v1328
    %v1330 = vrcp.pop %v1171
    %v1331 = vmul.f32 1.0, %v1330
    %v1332 = vrcp.pop %v1172
    %v1333 = vmul.f32 1.0, %v1332
    %v1334 = vrcp.pop %v1173
    %v1335 = vmul.f32 1.0, %v1334
    %v1336 = vrcp.pop %v1174
    %v1337 = vmul.f32 1.0, %v1336
    %v1338 = vrcp.pop %v1175
    %v1339 = vmul.f32 1.0, %v1338
    %v1340 = vrcp.pop %v1176
    %v1341 = vmul.f32 1.0, %v1340
    %v1342 = vrcp.pop %v1177
    %v1343 = vmul.f32 1.0, %v1342
    %v1344 = vrcp.pop %v1178
    %v1345 = vmul.f32 1.0, %v1344
    %v1346 = vrcp.pop %v1179
    %v1347 = vmul.f32 1.0, %v1346
    %v1348 = vrcp.pop %v1180
    %v1349 = vmul.f32 1.0, %v1348
    %v1350 = vrcp.pop %v1181
    %v1351 = vmul.f32 1.0, %v1350
    %v1352 = vrcp.pop %v1182
    %v1353 = vmul.f32 1.0, %v1352
    %v1354 = vrcp.pop %v1183
    %v1355 = vmul.f32 1.0, %v1354
    %v1356 = vrcp.pop %v1184
    %v1357 = vmul.f32 1.0, %v1356
    %v1358 = vrcp.pop %v1185
    %v1359 = vmul.f32 1.0, %v1358
    %v1360 = vrcp.pop %v1186
    %v1361 = vmul.f32 1.0, %v1360
    %v1362 = vrcp.pop %v1187
    %v1363 = vmul.f32 1.0, %v1362
    %v1364 = vrcp.pop %v1188
    %v1365 = vmul.f32 1.0, %v1364
    %v1366 = vrcp.pop %v1189
    %v1367 = vmul.f32 1.0, %v1366
    %v1368 = vrcp.pop %v1190
    %v1369 = vmul.f32 1.0, %v1368
    %v1370 = vrcp.pop %v1191
    %v1371 = vmul.f32 1.0, %v1370
    %v1372 = vrcp.pop %v1192
    %v1373 = vmul.f32 1.0, %v1372
    %v1374 = vrcp.pop %v1193
    %v1375 = vmul.f32 1.0, %v1374
    %v1376 = vrcp.pop %v1194
    %v1377 = vmul.f32 1.0, %v1376
    %v1378 = vrcp.pop %v1195
    %v1379 = vmul.f32 1.0, %v1378
    %v1380 = vrcp.pop %v1196
    %v1381 = vmul.f32 1.0, %v1380
    %v1382 = vrcp.pop %v1197
    %v1383 = vmul.f32 1.0, %v1382
    %v1384 = vrcp.pop %v1198
    %v1385 = vmul.f32 1.0, %v1384
    %v1386 = vrcp.pop %v1199
    %v1387 = vmul.f32 1.0, %v1386
    %v1388 = vrcp.pop %v1200
    %v1389 = vmul.f32 1.0, %v1388
    %v1390 = vrcp.pop %v1201
    %v1391 = vmul.f32 1.0, %v1390
    %v1392 = vrcp.pop %v1202
    %v1393 = vmul.f32 1.0, %v1392
    %v1394 = vrcp.pop %v1203
    %v1395 = vmul.f32 1.0, %v1394
    %v1396 = vrcp.pop %v1204
    %v1397 = vmul.f32 1.0, %v1396
    %v1398 = vrcp.pop %v1205
    %v1399 = vmul.f32 1.0, %v1398
    %v1400 = vrcp.pop %v1206
    %v1401 = vmul.f32 1.0, %v1400
    %v1402 = vrcp.pop %v1207
    %v1403 = vmul.f32 1.0, %v1402
    %v1404 = vrcp.pop %v1208
    %v1405 = vmul.f32 1.0, %v1404
    %v1406 = vrcp.pop %v1209
    %v1407 = vmul.f32 1.0, %v1406
    %v1408 = vrcp.pop %v1210
    %v1409 = vmul.f32 1.0, %v1408
    %v1410 = vrcp.pop %v1211
    %v1411 = vmul.f32 1.0, %v1410
    %v1412 = vrcp.pop %v1212
    %v1413 = vmul.f32 1.0, %v1412
    %v1414 = vrcp.pop %v1213
    %v1415 = vmul.f32 1.0, %v1414
    %v1416 = vrcp.pop %v1214
    %v1417 = vmul.f32 1.0, %v1416
    %v1418 = vrcp.pop %v1215
    %v1419 = vmul.f32 1.0, %v1418
    %v1420 = vrcp.pop %v1216
    %v1421 = vmul.f32 1.0, %v1420
    %v1422 = vrcp.pop %v1217
    %v1423 = vmul.f32 1.0, %v1422
    %v1424 = vrcp.pop %v1218
    %v1425 = vmul.f32 1.0, %v1424
    %v1426 = vrcp.pop %v1219
    %v1427 = vmul.f32 1.0, %v1426
    %v1428 = vrcp.pop %v1220
    %v1429 = vmul.f32 1.0, %v1428
    %v1430 = vrcp.pop %v1221
    %v1431 = vmul.f32 1.0, %v1430
    %v1432 = vrcp.pop %v1222
    %v1433 = vmul.f32 1.0, %v1432
    %v1434 = vrcp.pop %v1223
    %v1435 = vmul.f32 1.0, %v1434
    %v1436 = vrcp.pop %v1224
    %v1437 = vmul.f32 1.0, %v1436
    %v1438 = vrcp.pop %v1225
    %v1439 = vmul.f32 1.0, %v1438
    %v1440 = vrcp.pop %v1226
    %v1441 = vmul.f32 1.0, %v1440
    %v1442 = vrcp.pop %v1227
    %v1443 = vmul.f32 1.0, %v1442
    %v1444 = vrcp.pop %v1228
    %v1445 = vmul.f32 1.0, %v1444
    %v1446 = vrcp.pop %v1229
    %v1447 = vmul.f32 1.0, %v1446
    %v1448 = vrcp.pop %v1230
    %v1449 = vmul.f32 1.0, %v1448
    %v1450 = vrcp.pop %v1231
    %v1451 = vmul.f32 1.0, %v1450
    %v1452 = vrcp.pop %v1232
    %v1453 = vmul.f32 1.0, %v1452
    %v1454 = vrcp.pop %v1233
    %v1455 = vmul.f32 1.0, %v1454
    %v1456 = vrcp.pop %v1234
    %v1457 = vmul.f32 1.0, %v1456
    %v1458 = vrcp.pop %v1235
    %v1459 = vmul.f32 1.0, %v1458
    %v1460 = vrcp.pop %v1236
    %v1461 = vmul.f32 1.0, %v1460
    %v1462 = vrcp.pop %v1237
    %v1463 = vmul.f32 1.0, %v1462
    %v1464 = vrcp.pop %v1238
    %v1465 = vmul.f32 1.0, %v1464
    %v1466 = vrcp.pop %v1239
    %v1467 = vmul.f32 1.0, %v1466
    %v1468 = vrcp.pop %v1240
    %v1469 = vmul.f32 1.0, %v1468
    %v1470 = vrcp.pop %v1241
    %v1471 = vmul.f32 1.0, %v1470
    %v1472 = vrcp.pop %v1242
    %v1473 = vmul.f32 1.0, %v1472
    %v1474 = vrcp.pop %v1243
    %v1475 = vmul.f32 1.0, %v1474
    %v1476 = vrcp.pop %v1244
    %v1477 = vmul.f32 1.0, %v1476
    %v1478 = vrcp.pop %v1245
    %v1479 = vmul.f32 1.0, %v1478
    %v1480 = vrcp.pop %v1246
    %v1481 = vmul.f32 1.0, %v1480
    %v1482 = vrcp.pop %v1247
    %v1483 = vmul.f32 1.0, %v1482
    %v1484 = vrcp.pop %v1248
    %v1485 = vmul.f32 1.0, %v1484
    %v1486 = vrcp.pop %v1249
    %v1487 = vmul.f32 1.0, %v1486
    %v1488 = vrcp.pop %v1250
    %v1489 = vmul.f32 1.0, %v1488
    %v1490 = vrcp.pop %v1251
    %v1491 = vmul.f32 1.0, %v1490
    %v1492 = vrcp.pop %v1252
    %v1493 = vmul.f32 1.0, %v1492
    %v1494 = vrcp.pop %v1253
    %v1495 = vmul.f32 1.0, %v1494
    %v1496 = vrcp.pop %v1254
    %v1497 = vmul.f32 1.0, %v1496
    %v1498 = vrcp.pop %v1255
    %v1499 = vmul.f32 1.0, %v1498
    %v1500 = vrcp.pop %v1256
    %v1501 = vmul.f32 1.0, %v1500
    %v1502 = vrcp.pop %v1257
    %v1503 = vmul.f32 1.0, %v1502
    %v1504 = vrcp.pop %v1258
    %v1505 = vmul.f32 1.0, %v1504
    %v1506 = vrcp.pop %v1259
    %v1507 = vmul.f32 1.0, %v1506
    %v1508 = vrcp.pop %v1260
    %v1509 = vmul.f32 1.0, %v1508
    %v1510 = vrcp.pop %v1261
    %v1511 = vmul.f32 1.0, %v1510
    %v1512 = vrcp.pop %v1262
    %v1513 = vmul.f32 1.0, %v1512
    %v1514 = vrcp.pop %v1263
    %v1515 = vmul.f32 1.0, %v1514
    %v1516 = vrcp.pop %v1264
    %v1517 = vmul.f32 1.0, %v1516
    %v1518 = vrcp.pop %v1265
    %v1519 = vmul.f32 1.0, %v1518
    %v1520 = vrcp.pop %v1266
    %v1521 = vmul.f32 1.0, %v1520
    %v1522 = vrcp.pop %v1267
    %v1523 = vmul.f32 1.0, %v1522
    %v1524 = vmul.f32 %v628, %v1269
    %v1525 = vmul.f32 %v629, %v1271
    %v1526 = vmul.f32 %v630, %v1273
    %v1527 = vmul.f32 %v631, %v1275
    %v1528 = vmul.f32 %v632, %v1277
    %v1529 = vmul.f32 %v633, %v1279
    %v1530 = vmul.f32 %v634, %v1281
    %v1531 = vmul.f32 %v635, %v1283
    %v1532 = vmul.f32 %v636, %v1285
    %v1533 = vmul.f32 %v637, %v1287
    %v1534 = vmul.f32 %v638, %v1289
    %v1535 = vmul.f32 %v639, %v1291
    %v1536 = vmul.f32 %v640, %v1293
    %v1537 = vmul.f32 %v641, %v1295
    %v1538 = vmul.f32 %v642, %v1297
    %v1539 = vmul.f32 %v643, %v1299
    %v1540 = vmul.f32 %v644, %v1301
    %v1541 = vmul.f32 %v645, %v1303
    %v1542 = vmul.f32 %v646, %v1305
    %v1543 = vmul.f32 %v647, %v1307
    %v1544 = vmul.f32 %v648, %v1309
    %v1545 = vmul.f32 %v649, %v1311
    %v1546 = vmul.f32 %v650, %v1313
    %v1547 = vmul.f32 %v651, %v1315
    %v1548 = vmul.f32 %v652, %v1317
    %v1549 = vmul.f32 %v653, %v1319
    %v1550 = vmul.f32 %v654, %v1321
    %v1551 = vmul.f32 %v655, %v1323
    %v1552 = vmul.f32 %v656, %v1325
    %v1553 = vmul.f32 %v657, %v1327
    %v1554 = vmul.f32 %v658, %v1329
    %v1555 = vmul.f32 %v659, %v1331
    %v1556 = vmul.f32 %v660, %v1333
    %v1557 = vmul.f32 %v661, %v1335
    %v1558 = vmul.f32 %v662, %v1337
    %v1559 = vmul.f32 %v663, %v1339
    %v1560 = vmul.f32 %v664, %v1341
    %v1561 = vmul.f32 %v665, %v1343
    %v1562 = vmul.f32 %v666, %v1345
    %v1563 = vmul.f32 %v667, %v1347
    %v1564 = vmul.f32 %v668, %v1349
    %v1565 = vmul.f32 %v669, %v1351
    %v1566 = vmul.f32 %v670, %v1353
    %v1567 = vmul.f32 %v671, %v1355
    %v1568 = vmul.f32 %v672, %v1357
    %v1569 = vmul.f32 %v673, %v1359
    %v1570 = vmul.f32 %v674, %v1361
    %v1571 = vmul.f32 %v675, %v1363
    %v1572 = vmul.f32 %v676, %v1365
    %v1573 = vmul.f32 %v677, %v1367
    %v1574 = vmul.f32 %v678, %v1369
    %v1575 = vmul.f32 %v679, %v1371
    %v1576 = vmul.f32 %v680, %v1373
    %v1577 = vmul.f32 %v681, %v1375
    %v1578 = vmul.f32 %v682, %v1377
    %v1579 = vmul.f32 %v683, %v1379
    %v1580 = vmul.f32 %v684, %v1381
    %v1581 = vmul.f32 %v685, %v1383
    %v1582 = vmul.f32 %v686, %v1385
    %v1583 = vmul.f32 %v687, %v1387
    %v1584 = vmul.f32 %v688, %v1389
    %v1585 = vmul.f32 %v689, %v1391
    %v1586 = vmul.f32 %v690, %v1393
    %v1587 = vmul.f32 %v691, %v1395
    %v1588 = vmul.f32 %v692, %v1397
    %v1589 = vmul.f32 %v693, %v1399
    %v1590 = vmul.f32 %v694, %v1401
    %v1591 = vmul.f32 %v695, %v1403
    %v1592 = vmul.f32 %v696, %v1405
    %v1593 = vmul.f32 %v697, %v1407
    %v1594 = vmul.f32 %v698, %v1409
    %v1595 = vmul.f32 %v699, %v1411
    %v1596 = vmul.f32 %v700, %v1413
    %v1597 = vmul.f32 %v701, %v1415
    %v1598 = vmul.f32 %v702, %v1417
    %v1599 = vmul.f32 %v703, %v1419
    %v1600 = vmul.f32 %v704, %v1421
    %v1601 = vmul.f32 %v705, %v1423
    %v1602 = vmul.f32 %v706, %v1425
    %v1603 = vmul.f32 %v707, %v1427
    %v1604 = vmul.f32 %v708, %v1429
    %v1605 = vmul.f32 %v709, %v1431
    %v1606 = vmul.f32 %v710, %v1433
    %v1607 = vmul.f32 %v711, %v1435
    %v1608 = vmul.f32 %v712, %v1437
    %v1609 = vmul.f32 %v713, %v1439
    %v1610 = vmul.f32 %v714, %v1441
    %v1611 = vmul.f32 %v715, %v1443
    %v1612 = vmul.f32 %v716, %v1445
    %v1613 = vmul.f32 %v717, %v1447
    %v1614 = vmul.f32 %v718, %v1449
    %v1615 = vmul.f32 %v719, %v1451
    %v1616 = vmul.f32 %v720, %v1453
    %v1617 = vmul.f32 %v721, %v1455
    %v1618 = vmul.f32 %v722, %v1457
    %v1619 = vmul.f32 %v723, %v1459
    %v1620 = vmul.f32 %v724, %v1461
    %v1621 = vmul.f32 %v725, %v1463
    %v1622 = vmul.f32 %v726, %v1465
    %v1623 = vmul.f32 %v727, %v1467
    %v1624 = vmul.f32 %v728, %v1469
    %v1625 = vmul.f32 %v729, %v1471
    %v1626 = vmul.f32 %v730, %v1473
    %v1627 = vmul.f32 %v731, %v1475
    %v1628 = vmul.f32 %v732, %v1477
    %v1629 = vmul.f32 %v733, %v1479
    %v1630 = vmul.f32 %v734, %v1481
    %v1631 = vmul.f32 %v735, %v1483
    %v1632 = vmul.f32 %v736, %v1485
    %v1633 = vmul.f32 %v737, %v1487
    %v1634 = vmul.f32 %v738, %v1489
    %v1635 = vmul.f32 %v739, %v1491
    %v1636 = vmul.f32 %v740, %v1493
    %v1637 = vmul.f32 %v741, %v1495
    %v1638 = vmul.f32 %v742, %v1497
    %v1639 = vmul.f32 %v743, %v1499
    %v1640 = vmul.f32 %v744, %v1501
    %v1641 = vmul.f32 %v745, %v1503
    %v1642 = vmul.f32 %v746, %v1505
    %v1643 = vmul.f32 %v747, %v1507
    %v1644 = vmul.f32 %v748, %v1509
    %v1645 = vmul.f32 %v749, %v1511
    %v1646 = vmul.f32 %v750, %v1513
    %v1647 = vmul.f32 %v751, %v1515
    %v1648 = vmul.f32 %v752, %v1517
    %v1649 = vmul.f32 %v753, %v1519
    %v1650 = vmul.f32 %v754, %v1521
    %v1651 = vmul.f32 %v755, %v1523
    %v1652 = vpack.c.bf16 %v1525, %v1524
    %v1653 = vpack.c.bf16 %v1527, %v1526
    %v1654 = vpack.c.bf16 %v1529, %v1528
    %v1655 = vpack.c.bf16 %v1531, %v1530
    %v1656 = vpack.c.bf16 %v1533, %v1532
    %v1657 = vpack.c.bf16 %v1535, %v1534
    %v1658 = vpack.c.bf16 %v1537, %v1536
    %v1659 = vpack.c.bf16 %v1539, %v1538
    %v1660 = vpack.c.bf16 %v1541, %v1540
    %v1661 = vpack.c.bf16 %v1543, %v1542
    %v1662 = vpack.c.bf16 %v1545, %v1544
    %v1663 = vpack.c.bf16 %v1547, %v1546
    %v1664 = vpack.c.bf16 %v1549, %v1548
    %v1665 = vpack.c.bf16 %v1551, %v1550
    %v1666 = vpack.c.bf16 %v1553, %v1552
    %v1667 = vpack.c.bf16 %v1555, %v1554
    %v1668 = vpack.c.bf16 %v1557, %v1556
    %v1669 = vpack.c.bf16 %v1559, %v1558
    %v1670 = vpack.c.bf16 %v1561, %v1560
    %v1671 = vpack.c.bf16 %v1563, %v1562
    %v1672 = vpack.c.bf16 %v1565, %v1564
    %v1673 = vpack.c.bf16 %v1567, %v1566
    %v1674 = vpack.c.bf16 %v1569, %v1568
    %v1675 = vpack.c.bf16 %v1571, %v1570
    %v1676 = vpack.c.bf16 %v1573, %v1572
    %v1677 = vpack.c.bf16 %v1575, %v1574
    %v1678 = vpack.c.bf16 %v1577, %v1576
    %v1679 = vpack.c.bf16 %v1579, %v1578
    %v1680 = vpack.c.bf16 %v1581, %v1580
    %v1681 = vpack.c.bf16 %v1583, %v1582
    %v1682 = vpack.c.bf16 %v1585, %v1584
    %v1683 = vpack.c.bf16 %v1587, %v1586
    %v1684 = vpack.c.bf16 %v1589, %v1588
    %v1685 = vpack.c.bf16 %v1591, %v1590
    %v1686 = vpack.c.bf16 %v1593, %v1592
    %v1687 = vpack.c.bf16 %v1595, %v1594
    %v1688 = vpack.c.bf16 %v1597, %v1596
    %v1689 = vpack.c.bf16 %v1599, %v1598
    %v1690 = vpack.c.bf16 %v1601, %v1600
    %v1691 = vpack.c.bf16 %v1603, %v1602
    %v1692 = vpack.c.bf16 %v1605, %v1604
    %v1693 = vpack.c.bf16 %v1607, %v1606
    %v1694 = vpack.c.bf16 %v1609, %v1608
    %v1695 = vpack.c.bf16 %v1611, %v1610
    %v1696 = vpack.c.bf16 %v1613, %v1612
    %v1697 = vpack.c.bf16 %v1615, %v1614
    %v1698 = vpack.c.bf16 %v1617, %v1616
    %v1699 = vpack.c.bf16 %v1619, %v1618
    %v1700 = vpack.c.bf16 %v1621, %v1620
    %v1701 = vpack.c.bf16 %v1623, %v1622
    %v1702 = vpack.c.bf16 %v1625, %v1624
    %v1703 = vpack.c.bf16 %v1627, %v1626
    %v1704 = vpack.c.bf16 %v1629, %v1628
    %v1705 = vpack.c.bf16 %v1631, %v1630
    %v1706 = vpack.c.bf16 %v1633, %v1632
    %v1707 = vpack.c.bf16 %v1635, %v1634
    %v1708 = vpack.c.bf16 %v1637, %v1636
    %v1709 = vpack.c.bf16 %v1639, %v1638
    %v1710 = vpack.c.bf16 %v1641, %v1640
    %v1711 = vpack.c.bf16 %v1643, %v1642
    %v1712 = vpack.c.bf16 %v1645, %v1644
    %v1713 = vpack.c.bf16 %v1647, %v1646
    %v1714 = vpack.c.bf16 %v1649, %v1648
    %v1715 = vpack.c.bf16 %v1651, %v1650
    %v1716 = vld [vmem:[#allocation10] sm:$0xf]
    %v1717 = vld [vmem:[#allocation10 + $0x4] sm:$0xf]
    %v1718 = vld [vmem:[#allocation10 + $0x8] sm:$0xf]
    %v1719 = vld [vmem:[#allocation10 + $0xc] sm:$0xf]
    %v1720 = vld [vmem:[#allocation10 + $0x10] sm:$0xf]
    %v1721 = vld [vmem:[#allocation10 + $0x14] sm:$0xf]
    %v1722 = vld [vmem:[#allocation10 + $0x18] sm:$0xf]
    %v1723 = vld [vmem:[#allocation10 + $0x1c] sm:$0xf]
    %v1724 = vld [vmem:[#allocation10 + $0x20] sm:$0xf]
    %v1725 = vld [vmem:[#allocation10 + $0x24] sm:$0xf]
    %v1726 = vld [vmem:[#allocation10 + $0x28] sm:$0xf]
    %v1727 = vld [vmem:[#allocation10 + $0x2c] sm:$0xf]
    %v1728 = vld [vmem:[#allocation10 + $0x30] sm:$0xf]
    %v1729 = vld [vmem:[#allocation10 + $0x34] sm:$0xf]
    %v1730 = vld [vmem:[#allocation10 + $0x38] sm:$0xf]
    %v1731 = vld [vmem:[#allocation10 + $0x3c] sm:$0xf]
    %v1748 = vunpack.c.l.b16 %v1716
    %v1749 = vunpack.c.l.b16 %v1717
    %v1750 = vunpack.c.l.b16 %v1718
    %v1751 = vunpack.c.l.b16 %v1719
    %v1752 = vunpack.c.l.b16 %v1720
    %v1753 = vunpack.c.l.b16 %v1721
    %v1754 = vunpack.c.l.b16 %v1722
    %v1755 = vunpack.c.l.b16 %v1723
    %v1756 = vunpack.c.l.b16 %v1724
    %v1757 = vunpack.c.l.b16 %v1725
    %v1758 = vunpack.c.l.b16 %v1726
    %v1759 = vunpack.c.l.b16 %v1727
    %v1760 = vunpack.c.l.b16 %v1728
    %v1761 = vunpack.c.l.b16 %v1729
    %v1762 = vunpack.c.l.b16 %v1730
    %v1763 = vunpack.c.l.b16 %v1731
    %v1764 = vpack.c.b16 %v1749, %v1748
    %v1765 = vpack.c.b16 %v1751, %v1750
    %v1766 = vpack.c.b16 %v1753, %v1752
    %v1767 = vpack.c.b16 %v1755, %v1754
    %v1768 = vpack.c.b16 %v1757, %v1756
    %v1769 = vpack.c.b16 %v1759, %v1758
    %v1770 = vpack.c.b16 %v1761, %v1760
    %v1771 = vpack.c.b16 %v1763, %v1762
    %1780 = vmatprep.subr.bf16.mxu0 0
    %1781 = vmatpush1.bf16.msra.mxu0 %v1764
    %1782 = vmatprep.subr.bf16.mxu0 0
    %1783 = vmatpush1.bf16.msra.mxu0 %v1765
    %1784 = vmatprep.subr.bf16.mxu0 0
    %1785 = vmatpush1.bf16.msra.mxu0 %v1766
    %1786 = vmatprep.subr.bf16.mxu0 0
    %1787 = vmatpush1.bf16.msra.mxu0 %v1767
    %1788 = vmatprep.subr.bf16.mxu0 0
    %1789 = vmatpush1.bf16.msra.mxu0 %v1768
    %1790 = vmatprep.subr.bf16.mxu0 0
    %1791 = vmatpush1.bf16.msra.mxu0 %v1769
    %1792 = vmatprep.subr.bf16.mxu0 0
    %1793 = vmatpush1.bf16.msra.mxu0 %v1770
    %1794 = vmatprep.subr.bf16.mxu0 0
    %1795 = vmatpush1.bf16.msra.mxu0 %v1771
    %1796 = vmatprep.subr.bf16.mxu0 0
    %1797 = vmatpush1.bf16.msra.mxu0 0
    %1798 = vmatprep.subr.bf16.mxu0 0
    %1799 = vmatpush1.bf16.msra.mxu0 0
    %1800 = vmatprep.subr.bf16.mxu0 0
    %1801 = vmatpush1.bf16.msra.mxu0 0
    %1802 = vmatprep.subr.bf16.mxu0 0
    %1803 = vmatpush1.bf16.msra.mxu0 0
    %1804 = vmatprep.subr.bf16.mxu0 0
    %1805 = vmatpush1.bf16.msra.mxu0 0
    %1806 = vmatprep.subr.bf16.mxu0 0
    %1807 = vmatpush1.bf16.msra.mxu0 0
    %1808 = vmatprep.subr.bf16.mxu0 0
    %1809 = vmatpush1.bf16.msra.mxu0 0
    %1810 = vmatprep.subr.bf16.mxu0 0
    %1811 = vmatpush1.bf16.msra.mxu0 0
    %1812 = vmatprep.mubr.bf16.mxu0 0
    %1813 = vmatmul.mubr.bf16.gmra.mrb[0].mxu0 %v1652
    %v1814 = vpop.f32.mrb[0].mxu0
    %v1815 = vadd.f32 0.0, %v1814
    %v1816 = vpop.f32.mrb[0].mxu0
    %v1817 = vpop.f32.mrb[0].mxu0
    %v1818 = vadd.f32 0.0, %v1817
    %v1819 = vpop.f32.mrb[0].mxu0
    %1820 = vmatprep.mubr.bf16.mxu0 0
    %1821 = vmatmul.mubr.bf16.gmra.mrb[0].mxu0 %v1653
    %v1822 = vpop.f32.mrb[0].mxu0
    %v1823 = vadd.f32 0.0, %v1822
    %v1824 = vpop.f32.mrb[0].mxu0
    %v1825 = vpop.f32.mrb[0].mxu0
    %v1826 = vadd.f32 0.0, %v1825
    %v1827 = vpop.f32.mrb[0].mxu0
    %1828 = vmatprep.mubr.bf16.mxu0 0
    %1829 = vmatmul.mubr.bf16.gmra.mrb[0].mxu0 %v1654
    %v1830 = vpop.f32.mrb[0].mxu0
    %v1831 = vadd.f32 0.0, %v1830
    %v1832 = vpop.f32.mrb[0].mxu0
    %v1833 = vpop.f32.mrb[0].mxu0
    %v1834 = vadd.f32 0.0, %v1833
    %v1835 = vpop.f32.mrb[0].mxu0
    %1836 = vmatprep.mubr.bf16.mxu0 0
    %1837 = vmatmul.mubr.bf16.gmra.mrb[0].mxu0 %v1655
    %v1838 = vpop.f32.mrb[0].mxu0
    %v1839 = vadd.f32 0.0, %v1838
    %v1840 = vpop.f32.mrb[0].mxu0
    %v1841 = vpop.f32.mrb[0].mxu0
    %v1842 = vadd.f32 0.0, %v1841
    %v1843 = vpop.f32.mrb[0].mxu0
    %1844 = vmatprep.mubr.bf16.mxu0 0
    %1845 = vmatmul.mubr.bf16.gmra.mrb[0].mxu0 %v1656
    %v1846 = vpop.f32.mrb[0].mxu0
    %v1847 = vadd.f32 0.0, %v1846
    %v1848 = vpop.f32.mrb[0].mxu0
    %v1849 = vpop.f32.mrb[0].mxu0
    %v1850 = vadd.f32 0.0, %v1849
    %v1851 = vpop.f32.mrb[0].mxu0
    %1852 = vmatprep.mubr.bf16.mxu0 0
    %1853 = vmatmul.mubr.bf16.gmra.mrb[0].mxu0 %v1657
    %v1854 = vpop.f32.mrb[0].mxu0
    %v1855 = vadd.f32 0.0, %v1854
    %v1856 = vpop.f32.mrb[0].mxu0
    %v1857 = vpop.f32.mrb[0].mxu0
    %v1858 = vadd.f32 0.0, %v1857
    %v1859 = vpop.f32.mrb[0].mxu0
    %1860 = vmatprep.mubr.bf16.mxu0 0
    %1861 = vmatmul.mubr.bf16.gmra.mrb[0].mxu0 %v1658
    %v1862 = vpop.f32.mrb[0].mxu0
    %v1863 = vadd.f32 0.0, %v1862
    %v1864 = vpop.f32.mrb[0].mxu0
    %v1865 = vpop.f32.mrb[0].mxu0
    %v1866 = vadd.f32 0.0, %v1865
    %v1867 = vpop.f32.mrb[0].mxu0
    %1868 = vmatprep.mubr.bf16.mxu0 0
    %1869 = vmatmul.mubr.bf16.gmra.mrb[0].mxu0 %v1659
    %v1870 = vpop.f32.mrb[0].mxu0
    %v1871 = vadd.f32 0.0, %v1870
    %v1872 = vpop.f32.mrb[0].mxu0
    %v1873 = vpop.f32.mrb[0].mxu0
    %v1874 = vadd.f32 0.0, %v1873
    %v1875 = vpop.f32.mrb[0].mxu0
    %1876 = vmatprep.mubr.bf16.mxu0 0
    %1877 = vmatmul.mubr.bf16.gmra.mrb[0].mxu0 %v1660
    %v1878 = vpop.f32.mrb[0].mxu0
    %v1879 = vadd.f32 0.0, %v1878
    %v1880 = vpop.f32.mrb[0].mxu0
    %v1881 = vpop.f32.mrb[0].mxu0
    %v1882 = vadd.f32 0.0, %v1881
    %v1883 = vpop.f32.mrb[0].mxu0
    %1884 = vmatprep.mubr.bf16.mxu0 0
    %1885 = vmatmul.mubr.bf16.gmra.mrb[0].mxu0 %v1661
    %v1886 = vpop.f32.mrb[0].mxu0
    %v1887 = vadd.f32 0.0, %v1886
    %v1888 = vpop.f32.mrb[0].mxu0
    %v1889 = vpop.f32.mrb[0].mxu0
    %v1890 = vadd.f32 0.0, %v1889
    %v1891 = vpop.f32.mrb[0].mxu0
    %1892 = vmatprep.mubr.bf16.mxu0 0
    %1893 = vmatmul.mubr.bf16.gmra.mrb[0].mxu0 %v1662
    %v1894 = vpop.f32.mrb[0].mxu0
    %v1895 = vadd.f32 0.0, %v1894
    %v1896 = vpop.f32.mrb[0].mxu0
    %v1897 = vpop.f32.mrb[0].mxu0
    %v1898 = vadd.f32 0.0, %v1897
    %v1899 = vpop.f32.mrb[0].mxu0
    %1900 = vmatprep.mubr.bf16.mxu0 0
    %1901 = vmatmul.mubr.bf16.gmra.mrb[0].mxu0 %v1663
    %v1902 = vpop.f32.mrb[0].mxu0
    %v1903 = vadd.f32 0.0, %v1902
    %v1904 = vpop.f32.mrb[0].mxu0
    %v1905 = vpop.f32.mrb[0].mxu0
    %v1906 = vadd.f32 0.0, %v1905
    %v1907 = vpop.f32.mrb[0].mxu0
    %1908 = vmatprep.mubr.bf16.mxu0 0
    %1909 = vmatmul.mubr.bf16.gmra.mrb[0].mxu0 %v1664
    %v1910 = vpop.f32.mrb[0].mxu0
    %v1911 = vadd.f32 0.0, %v1910
    %v1912 = vpop.f32.mrb[0].mxu0
    %v1913 = vpop.f32.mrb[0].mxu0
    %v1914 = vadd.f32 0.0, %v1913
    %v1915 = vpop.f32.mrb[0].mxu0
    %1916 = vmatprep.mubr.bf16.mxu0 0
    %1917 = vmatmul.mubr.bf16.gmra.mrb[0].mxu0 %v1665
    %v1918 = vpop.f32.mrb[0].mxu0
    %v1919 = vadd.f32 0.0, %v1918
    %v1920 = vpop.f32.mrb[0].mxu0
    %v1921 = vpop.f32.mrb[0].mxu0
    %v1922 = vadd.f32 0.0, %v1921
    %v1923 = vpop.f32.mrb[0].mxu0
    %1924 = vmatprep.mubr.bf16.mxu0 0
    %1925 = vmatmul.mubr.bf16.gmra.mrb[0].mxu0 %v1666
    %v1926 = vpop.f32.mrb[0].mxu0
    %v1927 = vadd.f32 0.0, %v1926
    %v1928 = vpop.f32.mrb[0].mxu0
    %v1929 = vpop.f32.mrb[0].mxu0
    %v1930 = vadd.f32 0.0, %v1929
    %v1931 = vpop.f32.mrb[0].mxu0
    %1932 = vmatprep.mubr.bf16.mxu0 0
    %1933 = vmatmul.mubr.bf16.gmra.mrb[0].mxu0 %v1667
    %v1934 = vpop.f32.mrb[0].mxu0
    %v1935 = vadd.f32 0.0, %v1934
    %v1936 = vpop.f32.mrb[0].mxu0
    %v1937 = vpop.f32.mrb[0].mxu0
    %v1938 = vadd.f32 0.0, %v1937
    %v1939 = vpop.f32.mrb[0].mxu0
    %1940 = vmatprep.mubr.bf16.mxu0 0
    %1941 = vmatmul.mubr.bf16.gmra.mrb[0].mxu0 %v1668
    %v1942 = vpop.f32.mrb[0].mxu0
    %v1943 = vadd.f32 0.0, %v1942
    %v1944 = vpop.f32.mrb[0].mxu0
    %v1945 = vpop.f32.mrb[0].mxu0
    %v1946 = vadd.f32 0.0, %v1945
    %v1947 = vpop.f32.mrb[0].mxu0
    %1948 = vmatprep.mubr.bf16.mxu0 0
    %1949 = vmatmul.mubr.bf16.gmra.mrb[0].mxu0 %v1669
    %v1950 = vpop.f32.mrb[0].mxu0
    %v1951 = vadd.f32 0.0, %v1950
    %v1952 = vpop.f32.mrb[0].mxu0
    %v1953 = vpop.f32.mrb[0].mxu0
    %v1954 = vadd.f32 0.0, %v1953
    %v1955 = vpop.f32.mrb[0].mxu0
    %1956 = vmatprep.mubr.bf16.mxu0 0
    %1957 = vmatmul.mubr.bf16.gmra.mrb[0].mxu0 %v1670
    %v1958 = vpop.f32.mrb[0].mxu0
    %v1959 = vadd.f32 0.0, %v1958
    %v1960 = vpop.f32.mrb[0].mxu0
    %v1961 = vpop.f32.mrb[0].mxu0
    %v1962 = vadd.f32 0.0, %v1961
    %v1963 = vpop.f32.mrb[0].mxu0
    %1964 = vmatprep.mubr.bf16.mxu0 0
    %1965 = vmatmul.mubr.bf16.gmra.mrb[0].mxu0 %v1671
    %v1966 = vpop.f32.mrb[0].mxu0
    %v1967 = vadd.f32 0.0, %v1966
    %v1968 = vpop.f32.mrb[0].mxu0
    %v1969 = vpop.f32.mrb[0].mxu0
    %v1970 = vadd.f32 0.0, %v1969
    %v1971 = vpop.f32.mrb[0].mxu0
    %1972 = vmatprep.mubr.bf16.mxu0 0
    %1973 = vmatmul.mubr.bf16.gmra.mrb[0].mxu0 %v1672
    %v1974 = vpop.f32.mrb[0].mxu0
    %v1975 = vadd.f32 0.0, %v1974
    %v1976 = vpop.f32.mrb[0].mxu0
    %v1977 = vpop.f32.mrb[0].mxu0
    %v1978 = vadd.f32 0.0, %v1977
    %v1979 = vpop.f32.mrb[0].mxu0
    %1980 = vmatprep.mubr.bf16.mxu0 0
    %1981 = vmatmul.mubr.bf16.gmra.mrb[0].mxu0 %v1673
    %v1982 = vpop.f32.mrb[0].mxu0
    %v1983 = vadd.f32 0.0, %v1982
    %v1984 = vpop.f32.mrb[0].mxu0
    %v1985 = vpop.f32.mrb[0].mxu0
    %v1986 = vadd.f32 0.0, %v1985
    %v1987 = vpop.f32.mrb[0].mxu0
    %1988 = vmatprep.mubr.bf16.mxu0 0
    %1989 = vmatmul.mubr.bf16.gmra.mrb[0].mxu0 %v1674
    %v1990 = vpop.f32.mrb[0].mxu0
    %v1991 = vadd.f32 0.0, %v1990
    %v1992 = vpop.f32.mrb[0].mxu0
    %v1993 = vpop.f32.mrb[0].mxu0
    %v1994 = vadd.f32 0.0, %v1993
    %v1995 = vpop.f32.mrb[0].mxu0
    %1996 = vmatprep.mubr.bf16.mxu0 0
    %1997 = vmatmul.mubr.bf16.gmra.mrb[0].mxu0 %v1675
    %v1998 = vpop.f32.mrb[0].mxu0
    %v1999 = vadd.f32 0.0, %v1998
    %v2000 = vpop.f32.mrb[0].mxu0
    %v2001 = vpop.f32.mrb[0].mxu0
    %v2002 = vadd.f32 0.0, %v2001
    %v2003 = vpop.f32.mrb[0].mxu0
    %2004 = vmatprep.mubr.bf16.mxu0 0
    %2005 = vmatmul.mubr.bf16.gmra.mrb[0].mxu0 %v1676
    %v2006 = vpop.f32.mrb[0].mxu0
    %v2007 = vadd.f32 0.0, %v2006
    %v2008 = vpop.f32.mrb[0].mxu0
    %v2009 = vpop.f32.mrb[0].mxu0
    %v2010 = vadd.f32 0.0, %v2009
    %v2011 = vpop.f32.mrb[0].mxu0
    %2012 = vmatprep.mubr.bf16.mxu0 0
    %2013 = vmatmul.mubr.bf16.gmra.mrb[0].mxu0 %v1677
    %v2014 = vpop.f32.mrb[0].mxu0
    %v2015 = vadd.f32 0.0, %v2014
    %v2016 = vpop.f32.mrb[0].mxu0
    %v2017 = vpop.f32.mrb[0].mxu0
    %v2018 = vadd.f32 0.0, %v2017
    %v2019 = vpop.f32.mrb[0].mxu0
    %2020 = vmatprep.mubr.bf16.mxu0 0
    %2021 = vmatmul.mubr.bf16.gmra.mrb[0].mxu0 %v1678
    %v2022 = vpop.f32.mrb[0].mxu0
    %v2023 = vadd.f32 0.0, %v2022
    %v2024 = vpop.f32.mrb[0].mxu0
    %v2025 = vpop.f32.mrb[0].mxu0
    %v2026 = vadd.f32 0.0, %v2025
    %v2027 = vpop.f32.mrb[0].mxu0
    %2028 = vmatprep.mubr.bf16.mxu0 0
    %2029 = vmatmul.mubr.bf16.gmra.mrb[0].mxu0 %v1679
    %v2030 = vpop.f32.mrb[0].mxu0
    %v2031 = vadd.f32 0.0, %v2030
    %v2032 = vpop.f32.mrb[0].mxu0
    %v2033 = vpop.f32.mrb[0].mxu0
    %v2034 = vadd.f32 0.0, %v2033
    %v2035 = vpop.f32.mrb[0].mxu0
    %2036 = vmatprep.mubr.bf16.mxu0 0
    %2037 = vmatmul.mubr.bf16.gmra.mrb[0].mxu0 %v1680
    %v2038 = vpop.f32.mrb[0].mxu0
    %v2039 = vadd.f32 0.0, %v2038
    %v2040 = vpop.f32.mrb[0].mxu0
    %v2041 = vpop.f32.mrb[0].mxu0
    %v2042 = vadd.f32 0.0, %v2041
    %v2043 = vpop.f32.mrb[0].mxu0
    %2044 = vmatprep.mubr.bf16.mxu0 0
    %2045 = vmatmul.mubr.bf16.gmra.mrb[0].mxu0 %v1681
    %v2046 = vpop.f32.mrb[0].mxu0
    %v2047 = vadd.f32 0.0, %v2046
    %v2048 = vpop.f32.mrb[0].mxu0
    %v2049 = vpop.f32.mrb[0].mxu0
    %v2050 = vadd.f32 0.0, %v2049
    %v2051 = vpop.f32.mrb[0].mxu0
    %2052 = vmatprep.mubr.bf16.mxu0 0
    %2053 = vmatmul.mubr.bf16.gmra.mrb[0].mxu0 %v1682
    %v2054 = vpop.f32.mrb[0].mxu0
    %v2055 = vadd.f32 0.0, %v2054
    %v2056 = vpop.f32.mrb[0].mxu0
    %v2057 = vpop.f32.mrb[0].mxu0
    %v2058 = vadd.f32 0.0, %v2057
    %v2059 = vpop.f32.mrb[0].mxu0
    %2060 = vmatprep.mubr.bf16.mxu0 0
    %2061 = vmatmul.mubr.bf16.gmra.mrb[0].mxu0 %v1683
    %v2062 = vpop.f32.mrb[0].mxu0
    %v2063 = vadd.f32 0.0, %v2062
    %v2064 = vpop.f32.mrb[0].mxu0
    %v2065 = vpop.f32.mrb[0].mxu0
    %v2066 = vadd.f32 0.0, %v2065
    %v2067 = vpop.f32.mrb[0].mxu0
    %2068 = vmatprep.mubr.bf16.mxu0 0
    %2069 = vmatmul.mubr.bf16.gmra.mrb[0].mxu0 %v1684
    %v2070 = vpop.f32.mrb[0].mxu0
    %v2071 = vadd.f32 0.0, %v2070
    %v2072 = vpop.f32.mrb[0].mxu0
    %v2073 = vpop.f32.mrb[0].mxu0
    %v2074 = vadd.f32 0.0, %v2073
    %v2075 = vpop.f32.mrb[0].mxu0
    %2076 = vmatprep.mubr.bf16.mxu0 0
    %2077 = vmatmul.mubr.bf16.gmra.mrb[0].mxu0 %v1685
    %v2078 = vpop.f32.mrb[0].mxu0
    %v2079 = vadd.f32 0.0, %v2078
    %v2080 = vpop.f32.mrb[0].mxu0
    %v2081 = vpop.f32.mrb[0].mxu0
    %v2082 = vadd.f32 0.0, %v2081
    %v2083 = vpop.f32.mrb[0].mxu0
    %2084 = vmatprep.mubr.bf16.mxu0 0
    %2085 = vmatmul.mubr.bf16.gmra.mrb[0].mxu0 %v1686
    %v2086 = vpop.f32.mrb[0].mxu0
    %v2087 = vadd.f32 0.0, %v2086
    %v2088 = vpop.f32.mrb[0].mxu0
    %v2089 = vpop.f32.mrb[0].mxu0
    %v2090 = vadd.f32 0.0, %v2089
    %v2091 = vpop.f32.mrb[0].mxu0
    %2092 = vmatprep.mubr.bf16.mxu0 0
    %2093 = vmatmul.mubr.bf16.gmra.mrb[0].mxu0 %v1687
    %v2094 = vpop.f32.mrb[0].mxu0
    %v2095 = vadd.f32 0.0, %v2094
    %v2096 = vpop.f32.mrb[0].mxu0
    %v2097 = vpop.f32.mrb[0].mxu0
    %v2098 = vadd.f32 0.0, %v2097
    %v2099 = vpop.f32.mrb[0].mxu0
    %2100 = vmatprep.mubr.bf16.mxu0 0
    %2101 = vmatmul.mubr.bf16.gmra.mrb[0].mxu0 %v1688
    %v2102 = vpop.f32.mrb[0].mxu0
    %v2103 = vadd.f32 0.0, %v2102
    %v2104 = vpop.f32.mrb[0].mxu0
    %v2105 = vpop.f32.mrb[0].mxu0
    %v2106 = vadd.f32 0.0, %v2105
    %v2107 = vpop.f32.mrb[0].mxu0
    %2108 = vmatprep.mubr.bf16.mxu0 0
    %2109 = vmatmul.mubr.bf16.gmra.mrb[0].mxu0 %v1689
    %v2110 = vpop.f32.mrb[0].mxu0
    %v2111 = vadd.f32 0.0, %v2110
    %v2112 = vpop.f32.mrb[0].mxu0
    %v2113 = vpop.f32.mrb[0].mxu0
    %v2114 = vadd.f32 0.0, %v2113
    %v2115 = vpop.f32.mrb[0].mxu0
    %2116 = vmatprep.mubr.bf16.mxu0 0
    %2117 = vmatmul.mubr.bf16.gmra.mrb[0].mxu0 %v1690
    %v2118 = vpop.f32.mrb[0].mxu0
    %v2119 = vadd.f32 0.0, %v2118
    %v2120 = vpop.f32.mrb[0].mxu0
    %v2121 = vpop.f32.mrb[0].mxu0
    %v2122 = vadd.f32 0.0, %v2121
    %v2123 = vpop.f32.mrb[0].mxu0
    %2124 = vmatprep.mubr.bf16.mxu0 0
    %2125 = vmatmul.mubr.bf16.gmra.mrb[0].mxu0 %v1691
    %v2126 = vpop.f32.mrb[0].mxu0
    %v2127 = vadd.f32 0.0, %v2126
    %v2128 = vpop.f32.mrb[0].mxu0
    %v2129 = vpop.f32.mrb[0].mxu0
    %v2130 = vadd.f32 0.0, %v2129
    %v2131 = vpop.f32.mrb[0].mxu0
    %2132 = vmatprep.mubr.bf16.mxu0 0
    %2133 = vmatmul.mubr.bf16.gmra.mrb[0].mxu0 %v1692
    %v2134 = vpop.f32.mrb[0].mxu0
    %v2135 = vadd.f32 0.0, %v2134
    %v2136 = vpop.f32.mrb[0].mxu0
    %v2137 = vpop.f32.mrb[0].mxu0
    %v2138 = vadd.f32 0.0, %v2137
    %v2139 = vpop.f32.mrb[0].mxu0
    %2140 = vmatprep.mubr.bf16.mxu0 0
    %2141 = vmatmul.mubr.bf16.gmra.mrb[0].mxu0 %v1693
    %v2142 = vpop.f32.mrb[0].mxu0
    %v2143 = vadd.f32 0.0, %v2142
    %v2144 = vpop.f32.mrb[0].mxu0
    %v2145 = vpop.f32.mrb[0].mxu0
    %v2146 = vadd.f32 0.0, %v2145
    %v2147 = vpop.f32.mrb[0].mxu0
    %2148 = vmatprep.mubr.bf16.mxu0 0
    %2149 = vmatmul.mubr.bf16.gmra.mrb[0].mxu0 %v1694
    %v2150 = vpop.f32.mrb[0].mxu0
    %v2151 = vadd.f32 0.0, %v2150
    %v2152 = vpop.f32.mrb[0].mxu0
    %v2153 = vpop.f32.mrb[0].mxu0
    %v2154 = vadd.f32 0.0, %v2153
    %v2155 = vpop.f32.mrb[0].mxu0
    %2156 = vmatprep.mubr.bf16.mxu0 0
    %2157 = vmatmul.mubr.bf16.gmra.mrb[0].mxu0 %v1695
    %v2158 = vpop.f32.mrb[0].mxu0
    %v2159 = vadd.f32 0.0, %v2158
    %v2160 = vpop.f32.mrb[0].mxu0
    %v2161 = vpop.f32.mrb[0].mxu0
    %v2162 = vadd.f32 0.0, %v2161
    %v2163 = vpop.f32.mrb[0].mxu0
    %2164 = vmatprep.mubr.bf16.mxu0 0
    %2165 = vmatmul.mubr.bf16.gmra.mrb[0].mxu0 %v1696
    %v2166 = vpop.f32.mrb[0].mxu0
    %v2167 = vadd.f32 0.0, %v2166
    %v2168 = vpop.f32.mrb[0].mxu0
    %v2169 = vpop.f32.mrb[0].mxu0
    %v2170 = vadd.f32 0.0, %v2169
    %v2171 = vpop.f32.mrb[0].mxu0
    %2172 = vmatprep.mubr.bf16.mxu0 0
    %2173 = vmatmul.mubr.bf16.gmra.mrb[0].mxu0 %v1697
    %v2174 = vpop.f32.mrb[0].mxu0
    %v2175 = vadd.f32 0.0, %v2174
    %v2176 = vpop.f32.mrb[0].mxu0
    %v2177 = vpop.f32.mrb[0].mxu0
    %v2178 = vadd.f32 0.0, %v2177
    %v2179 = vpop.f32.mrb[0].mxu0
    %2180 = vmatprep.mubr.bf16.mxu0 0
    %2181 = vmatmul.mubr.bf16.gmra.mrb[0].mxu0 %v1698
    %v2182 = vpop.f32.mrb[0].mxu0
    %v2183 = vadd.f32 0.0, %v2182
    %v2184 = vpop.f32.mrb[0].mxu0
    %v2185 = vpop.f32.mrb[0].mxu0
    %v2186 = vadd.f32 0.0, %v2185
    %v2187 = vpop.f32.mrb[0].mxu0
    %2188 = vmatprep.mubr.bf16.mxu0 0
    %2189 = vmatmul.mubr.bf16.gmra.mrb[0].mxu0 %v1699
    %v2190 = vpop.f32.mrb[0].mxu0
    %v2191 = vadd.f32 0.0, %v2190
    %v2192 = vpop.f32.mrb[0].mxu0
    %v2193 = vpop.f32.mrb[0].mxu0
    %v2194 = vadd.f32 0.0, %v2193
    %v2195 = vpop.f32.mrb[0].mxu0
    %2196 = vmatprep.mubr.bf16.mxu0 0
    %2197 = vmatmul.mubr.bf16.gmra.mrb[0].mxu0 %v1700
    %v2198 = vpop.f32.mrb[0].mxu0
    %v2199 = vadd.f32 0.0, %v2198
    %v2200 = vpop.f32.mrb[0].mxu0
    %v2201 = vpop.f32.mrb[0].mxu0
    %v2202 = vadd.f32 0.0, %v2201
    %v2203 = vpop.f32.mrb[0].mxu0
    %2204 = vmatprep.mubr.bf16.mxu0 0
    %2205 = vmatmul.mubr.bf16.gmra.mrb[0].mxu0 %v1701
    %v2206 = vpop.f32.mrb[0].mxu0
    %v2207 = vadd.f32 0.0, %v2206
    %v2208 = vpop.f32.mrb[0].mxu0
    %v2209 = vpop.f32.mrb[0].mxu0
    %v2210 = vadd.f32 0.0, %v2209
    %v2211 = vpop.f32.mrb[0].mxu0
    %2212 = vmatprep.mubr.bf16.mxu0 0
    %2213 = vmatmul.mubr.bf16.gmra.mrb[0].mxu0 %v1702
    %v2214 = vpop.f32.mrb[0].mxu0
    %v2215 = vadd.f32 0.0, %v2214
    %v2216 = vpop.f32.mrb[0].mxu0
    %v2217 = vpop.f32.mrb[0].mxu0
    %v2218 = vadd.f32 0.0, %v2217
    %v2219 = vpop.f32.mrb[0].mxu0
    %2220 = vmatprep.mubr.bf16.mxu0 0
    %2221 = vmatmul.mubr.bf16.gmra.mrb[0].mxu0 %v1703
    %v2222 = vpop.f32.mrb[0].mxu0
    %v2223 = vadd.f32 0.0, %v2222
    %v2224 = vpop.f32.mrb[0].mxu0
    %v2225 = vpop.f32.mrb[0].mxu0
    %v2226 = vadd.f32 0.0, %v2225
    %v2227 = vpop.f32.mrb[0].mxu0
    %2228 = vmatprep.mubr.bf16.mxu0 0
    %2229 = vmatmul.mubr.bf16.gmra.mrb[0].mxu0 %v1704
    %v2230 = vpop.f32.mrb[0].mxu0
    %v2231 = vadd.f32 0.0, %v2230
    %v2232 = vpop.f32.mrb[0].mxu0
    %v2233 = vpop.f32.mrb[0].mxu0
    %v2234 = vadd.f32 0.0, %v2233
    %v2235 = vpop.f32.mrb[0].mxu0
    %2236 = vmatprep.mubr.bf16.mxu0 0
    %2237 = vmatmul.mubr.bf16.gmra.mrb[0].mxu0 %v1705
    %v2238 = vpop.f32.mrb[0].mxu0
    %v2239 = vadd.f32 0.0, %v2238
    %v2240 = vpop.f32.mrb[0].mxu0
    %v2241 = vpop.f32.mrb[0].mxu0
    %v2242 = vadd.f32 0.0, %v2241
    %v2243 = vpop.f32.mrb[0].mxu0
    %2244 = vmatprep.mubr.bf16.mxu0 0
    %2245 = vmatmul.mubr.bf16.gmra.mrb[0].mxu0 %v1706
    %v2246 = vpop.f32.mrb[0].mxu0
    %v2247 = vadd.f32 0.0, %v2246
    %v2248 = vpop.f32.mrb[0].mxu0
    %v2249 = vpop.f32.mrb[0].mxu0
    %v2250 = vadd.f32 0.0, %v2249
    %v2251 = vpop.f32.mrb[0].mxu0
    %2252 = vmatprep.mubr.bf16.mxu0 0
    %2253 = vmatmul.mubr.bf16.gmra.mrb[0].mxu0 %v1707
    %v2254 = vpop.f32.mrb[0].mxu0
    %v2255 = vadd.f32 0.0, %v2254
    %v2256 = vpop.f32.mrb[0].mxu0
    %v2257 = vpop.f32.mrb[0].mxu0
    %v2258 = vadd.f32 0.0, %v2257
    %v2259 = vpop.f32.mrb[0].mxu0
    %2260 = vmatprep.mubr.bf16.mxu0 0
    %2261 = vmatmul.mubr.bf16.gmra.mrb[0].mxu0 %v1708
    %v2262 = vpop.f32.mrb[0].mxu0
    %v2263 = vadd.f32 0.0, %v2262
    %v2264 = vpop.f32.mrb[0].mxu0
    %v2265 = vpop.f32.mrb[0].mxu0
    %v2266 = vadd.f32 0.0, %v2265
    %v2267 = vpop.f32.mrb[0].mxu0
    %2268 = vmatprep.mubr.bf16.mxu0 0
    %2269 = vmatmul.mubr.bf16.gmra.mrb[0].mxu0 %v1709
    %v2270 = vpop.f32.mrb[0].mxu0
    %v2271 = vadd.f32 0.0, %v2270
    %v2272 = vpop.f32.mrb[0].mxu0
    %v2273 = vpop.f32.mrb[0].mxu0
    %v2274 = vadd.f32 0.0, %v2273
    %v2275 = vpop.f32.mrb[0].mxu0
    %2276 = vmatprep.mubr.bf16.mxu0 0
    %2277 = vmatmul.mubr.bf16.gmra.mrb[0].mxu0 %v1710
    %v2278 = vpop.f32.mrb[0].mxu0
    %v2279 = vadd.f32 0.0, %v2278
    %v2280 = vpop.f32.mrb[0].mxu0
    %v2281 = vpop.f32.mrb[0].mxu0
    %v2282 = vadd.f32 0.0, %v2281
    %v2283 = vpop.f32.mrb[0].mxu0
    %2284 = vmatprep.mubr.bf16.mxu0 0
    %2285 = vmatmul.mubr.bf16.gmra.mrb[0].mxu0 %v1711
    %v2286 = vpop.f32.mrb[0].mxu0
    %v2287 = vadd.f32 0.0, %v2286
    %v2288 = vpop.f32.mrb[0].mxu0
    %v2289 = vpop.f32.mrb[0].mxu0
    %v2290 = vadd.f32 0.0, %v2289
    %v2291 = vpop.f32.mrb[0].mxu0
    %2292 = vmatprep.mubr.bf16.mxu0 0
    %2293 = vmatmul.mubr.bf16.gmra.mrb[0].mxu0 %v1712
    %v2294 = vpop.f32.mrb[0].mxu0
    %v2295 = vadd.f32 0.0, %v2294
    %v2296 = vpop.f32.mrb[0].mxu0
    %v2297 = vpop.f32.mrb[0].mxu0
    %v2298 = vadd.f32 0.0, %v2297
    %v2299 = vpop.f32.mrb[0].mxu0
    %2300 = vmatprep.mubr.bf16.mxu0 0
    %2301 = vmatmul.mubr.bf16.gmra.mrb[0].mxu0 %v1713
    %v2302 = vpop.f32.mrb[0].mxu0
    %v2303 = vadd.f32 0.0, %v2302
    %v2304 = vpop.f32.mrb[0].mxu0
    %v2305 = vpop.f32.mrb[0].mxu0
    %v2306 = vadd.f32 0.0, %v2305
    %v2307 = vpop.f32.mrb[0].mxu0
    %2308 = vmatprep.mubr.bf16.mxu0 0
    %2309 = vmatmul.mubr.bf16.gmra.mrb[0].mxu0 %v1714
    %v2310 = vpop.f32.mrb[0].mxu0
    %v2311 = vadd.f32 0.0, %v2310
    %v2312 = vpop.f32.mrb[0].mxu0
    %v2313 = vpop.f32.mrb[0].mxu0
    %v2314 = vadd.f32 0.0, %v2313
    %v2315 = vpop.f32.mrb[0].mxu0
    %2316 = vmatprep.mubr.bf16.mxu0 0
    %2317 = vmatmul.mubr.bf16.gmra.mrb[0].mxu0 %v1715
    %v2318 = vpop.f32.mrb[0].mxu0
    %v2319 = vadd.f32 0.0, %v2318
    %v2320 = vpop.f32.mrb[0].mxu0
    %v2321 = vpop.f32.mrb[0].mxu0
    %v2322 = vadd.f32 0.0, %v2321
    %v2323 = vpop.f32.mrb[0].mxu0
    %2324 = vdwg.mxu0
    %2325 = vst [vmem:[#allocation11] sm:$0xff] %v1815
    %2326 = vst [vmem:[#allocation11 + $0x8] sm:$0xff] %v1818
    %2327 = vst [vmem:[#allocation11 + $0x10] sm:$0xff] %v1823
    %2328 = vst [vmem:[#allocation11 + $0x18] sm:$0xff] %v1826
    %2329 = vst [vmem:[#allocation11 + $0x20] sm:$0xff] %v1831
    %2330 = vst [vmem:[#allocation11 + $0x28] sm:$0xff] %v1834
    %2331 = vst [vmem:[#allocation11 + $0x30] sm:$0xff] %v1839
    %2332 = vst [vmem:[#allocation11 + $0x38] sm:$0xff] %v1842
    %2333 = vst [vmem:[#allocation11 + $0x40] sm:$0xff] %v1847
    %2334 = vst [vmem:[#allocation11 + $0x48] sm:$0xff] %v1850
    %2335 = vst [vmem:[#allocation11 + $0x50] sm:$0xff] %v1855
    %2336 = vst [vmem:[#allocation11 + $0x58] sm:$0xff] %v1858
    %2337 = vst [vmem:[#allocation11 + $0x60] sm:$0xff] %v1863
    %2338 = vst [vmem:[#allocation11 + $0x68] sm:$0xff] %v1866
    %2339 = vst [vmem:[#allocation11 + $0x70] sm:$0xff] %v1871
    %2340 = vst [vmem:[#allocation11 + $0x78] sm:$0xff] %v1874
    %2341 = vst [vmem:[#allocation11 + $0x80] sm:$0xff] %v1879
    %2342 = vst [vmem:[#allocation11 + $0x88] sm:$0xff] %v1882
    %2343 = vst [vmem:[#allocation11 + $0x90] sm:$0xff] %v1887
    %2344 = vst [vmem:[#allocation11 + $0x98] sm:$0xff] %v1890
    %2345 = vst [vmem:[#allocation11 + $0xa0] sm:$0xff] %v1895
    %2346 = vst [vmem:[#allocation11 + $0xa8] sm:$0xff] %v1898
    %2347 = vst [vmem:[#allocation11 + $0xb0] sm:$0xff] %v1903
    %2348 = vst [vmem:[#allocation11 + $0xb8] sm:$0xff] %v1906
    %2349 = vst [vmem:[#allocation11 + $0xc0] sm:$0xff] %v1911
    %2350 = vst [vmem:[#allocation11 + $0xc8] sm:$0xff] %v1914
    %2351 = vst [vmem:[#allocation11 + $0xd0] sm:$0xff] %v1919
    %2352 = vst [vmem:[#allocation11 + $0xd8] sm:$0xff] %v1922
    %2353 = vst [vmem:[#allocation11 + $0xe0] sm:$0xff] %v1927
    %2354 = vst [vmem:[#allocation11 + $0xe8] sm:$0xff] %v1930
    %2355 = vst [vmem:[#allocation11 + $0xf0] sm:$0xff] %v1935
    %2356 = vst [vmem:[#allocation11 + $0xf8] sm:$0xff] %v1938
    %2357 = vst [vmem:[#allocation11 + $0x100] sm:$0xff] %v1943
    %2358 = vst [vmem:[#allocation11 + $0x108] sm:$0xff] %v1946
    %2359 = vst [vmem:[#allocation11 + $0x110] sm:$0xff] %v1951
    %2360 = vst [vmem:[#allocation11 + $0x118] sm:$0xff] %v1954
    %2361 = vst [vmem:[#allocation11 + $0x120] sm:$0xff] %v1959
    %2362 = vst [vmem:[#allocation11 + $0x128] sm:$0xff] %v1962
    %2363 = vst [vmem:[#allocation11 + $0x130] sm:$0xff] %v1967
    %2364 = vst [vmem:[#allocation11 + $0x138] sm:$0xff] %v1970
    %2365 = vst [vmem:[#allocation11 + $0x140] sm:$0xff] %v1975
    %2366 = vst [vmem:[#allocation11 + $0x148] sm:$0xff] %v1978
    %2367 = vst [vmem:[#allocation11 + $0x150] sm:$0xff] %v1983
    %2368 = vst [vmem:[#allocation11 + $0x158] sm:$0xff] %v1986
    %2369 = vst [vmem:[#allocation11 + $0x160] sm:$0xff] %v1991
    %2370 = vst [vmem:[#allocation11 + $0x168] sm:$0xff] %v1994
    %2371 = vst [vmem:[#allocation11 + $0x170] sm:$0xff] %v1999
    %2372 = vst [vmem:[#allocation11 + $0x178] sm:$0xff] %v2002
    %2373 = vst [vmem:[#allocation11 + $0x180] sm:$0xff] %v2007
    %2374 = vst [vmem:[#allocation11 + $0x188] sm:$0xff] %v2010
    %2375 = vst [vmem:[#allocation11 + $0x190] sm:$0xff] %v2015
    %2376 = vst [vmem:[#allocation11 + $0x198] sm:$0xff] %v2018
    %2377 = vst [vmem:[#allocation11 + $0x1a0] sm:$0xff] %v2023
    %2378 = vst [vmem:[#allocation11 + $0x1a8] sm:$0xff] %v2026
    %2379 = vst [vmem:[#allocation11 + $0x1b0] sm:$0xff] %v2031
    %2380 = vst [vmem:[#allocation11 + $0x1b8] sm:$0xff] %v2034
    %2381 = vst [vmem:[#allocation11 + $0x1c0] sm:$0xff] %v2039
    %2382 = vst [vmem:[#allocation11 + $0x1c8] sm:$0xff] %v2042
    %2383 = vst [vmem:[#allocation11 + $0x1d0] sm:$0xff] %v2047
    %2384 = vst [vmem:[#allocation11 + $0x1d8] sm:$0xff] %v2050
    %2385 = vst [vmem:[#allocation11 + $0x1e0] sm:$0xff] %v2055
    %2386 = vst [vmem:[#allocation11 + $0x1e8] sm:$0xff] %v2058
    %2387 = vst [vmem:[#allocation11 + $0x1f0] sm:$0xff] %v2063
    %2388 = vst [vmem:[#allocation11 + $0x1f8] sm:$0xff] %v2066
    %2389 = vst [vmem:[#allocation11 + $0x200] sm:$0xff] %v2071
    %2390 = vst [vmem:[#allocation11 + $0x208] sm:$0xff] %v2074
    %2391 = vst [vmem:[#allocation11 + $0x210] sm:$0xff] %v2079
    %2392 = vst [vmem:[#allocation11 + $0x218] sm:$0xff] %v2082
    %2393 = vst [vmem:[#allocation11 + $0x220] sm:$0xff] %v2087
    %2394 = vst [vmem:[#allocation11 + $0x228] sm:$0xff] %v2090
    %2395 = vst [vmem:[#allocation11 + $0x230] sm:$0xff] %v2095
    %2396 = vst [vmem:[#allocation11 + $0x238] sm:$0xff] %v2098
    %2397 = vst [vmem:[#allocation11 + $0x240] sm:$0xff] %v2103
    %2398 = vst [vmem:[#allocation11 + $0x248] sm:$0xff] %v2106
    %2399 = vst [vmem:[#allocation11 + $0x250] sm:$0xff] %v2111
    %2400 = vst [vmem:[#allocation11 + $0x258] sm:$0xff] %v2114
    %2401 = vst [vmem:[#allocation11 + $0x260] sm:$0xff] %v2119
    %2402 = vst [vmem:[#allocation11 + $0x268] sm:$0xff] %v2122
    %2403 = vst [vmem:[#allocation11 + $0x270] sm:$0xff] %v2127
    %2404 = vst [vmem:[#allocation11 + $0x278] sm:$0xff] %v2130
    %2405 = vst [vmem:[#allocation11 + $0x280] sm:$0xff] %v2135
    %2406 = vst [vmem:[#allocation11 + $0x288] sm:$0xff] %v2138
    %2407 = vst [vmem:[#allocation11 + $0x290] sm:$0xff] %v2143
    %2408 = vst [vmem:[#allocation11 + $0x298] sm:$0xff] %v2146
    %2409 = vst [vmem:[#allocation11 + $0x2a0] sm:$0xff] %v2151
    %2410 = vst [vmem:[#allocation11 + $0x2a8] sm:$0xff] %v2154
    %2411 = vst [vmem:[#allocation11 + $0x2b0] sm:$0xff] %v2159
    %2412 = vst [vmem:[#allocation11 + $0x2b8] sm:$0xff] %v2162
    %2413 = vst [vmem:[#allocation11 + $0x2c0] sm:$0xff] %v2167
    %2414 = vst [vmem:[#allocation11 + $0x2c8] sm:$0xff] %v2170
    %2415 = vst [vmem:[#allocation11 + $0x2d0] sm:$0xff] %v2175
    %2416 = vst [vmem:[#allocation11 + $0x2d8] sm:$0xff] %v2178
    %2417 = vst [vmem:[#allocation11 + $0x2e0] sm:$0xff] %v2183
    %2418 = vst [vmem:[#allocation11 + $0x2e8] sm:$0xff] %v2186
    %2419 = vst [vmem:[#allocation11 + $0x2f0] sm:$0xff] %v2191
    %2420 = vst [vmem:[#allocation11 + $0x2f8] sm:$0xff] %v2194
    %2421 = vst [vmem:[#allocation11 + $0x300] sm:$0xff] %v2199
    %2422 = vst [vmem:[#allocation11 + $0x308] sm:$0xff] %v2202
    %2423 = vst [vmem:[#allocation11 + $0x310] sm:$0xff] %v2207
    %2424 = vst [vmem:[#allocation11 + $0x318] sm:$0xff] %v2210
    %2425 = vst [vmem:[#allocation11 + $0x320] sm:$0xff] %v2215
    %2426 = vst [vmem:[#allocation11 + $0x328] sm:$0xff] %v2218
    %2427 = vst [vmem:[#allocation11 + $0x330] sm:$0xff] %v2223
    %2428 = vst [vmem:[#allocation11 + $0x338] sm:$0xff] %v2226
    %2429 = vst [vmem:[#allocation11 + $0x340] sm:$0xff] %v2231
    %2430 = vst [vmem:[#allocation11 + $0x348] sm:$0xff] %v2234
    %2431 = vst [vmem:[#allocation11 + $0x350] sm:$0xff] %v2239
    %2432 = vst [vmem:[#allocation11 + $0x358] sm:$0xff] %v2242
    %2433 = vst [vmem:[#allocation11 + $0x360] sm:$0xff] %v2247
    %2434 = vst [vmem:[#allocation11 + $0x368] sm:$0xff] %v2250
    %2435 = vst [vmem:[#allocation11 + $0x370] sm:$0xff] %v2255
    %2436 = vst [vmem:[#allocation11 + $0x378] sm:$0xff] %v2258
    %2437 = vst [vmem:[#allocation11 + $0x380] sm:$0xff] %v2263
    %2438 = vst [vmem:[#allocation11 + $0x388] sm:$0xff] %v2266
    %2439 = vst [vmem:[#allocation11 + $0x390] sm:$0xff] %v2271
    %2440 = vst [vmem:[#allocation11 + $0x398] sm:$0xff] %v2274
    %2441 = vst [vmem:[#allocation11 + $0x3a0] sm:$0xff] %v2279
    %2442 = vst [vmem:[#allocation11 + $0x3a8] sm:$0xff] %v2282
    %2443 = vst [vmem:[#allocation11 + $0x3b0] sm:$0xff] %v2287
    %2444 = vst [vmem:[#allocation11 + $0x3b8] sm:$0xff] %v2290
    %2445 = vst [vmem:[#allocation11 + $0x3c0] sm:$0xff] %v2295
    %2446 = vst [vmem:[#allocation11 + $0x3c8] sm:$0xff] %v2298
    %2447 = vst [vmem:[#allocation11 + $0x3d0] sm:$0xff] %v2303
    %2448 = vst [vmem:[#allocation11 + $0x3d8] sm:$0xff] %v2306
    %2449 = vst [vmem:[#allocation11 + $0x3e0] sm:$0xff] %v2311
    %2450 = vst [vmem:[#allocation11 + $0x3e8] sm:$0xff] %v2314
    %2451 = vst [vmem:[#allocation11 + $0x3f0] sm:$0xff] %v2319
    %2452 = vst [vmem:[#allocation11 + $0x3f8] sm:$0xff] %v2322
    // Predicated region
    $region42: #{resnet_block_forward.12} parent=1 // pred_check
      _
    $region43: #{resnet_block_forward.12} parent=1 // pred_check_branch
      %2454 = sbr.rel (0) target = $region45
    $region44: #{resnet_block_forward.12} parent=1 // pred_region
      %s2456 = ssub.s32 16384, 16384
      %2457 = vsyncadd [#allocation4], %s2456
      %s2458 = sshll.u32 [#allocation11], 4
      %s2459 = int_to_ptr.vmem [resolvable:$true] %s2458
      %2464 = dma.vmem_to_hbm [thread:$0]  %s2459, 16384, %s5, [#allocation4], 128, 128, 8
    $region45: #{resnet_block_forward.12} parent=1 // pred_fallthru
      _
    // Predicated region
    $region46: #{resnet_block_forward.12} parent=1 // pred_check
      _
    $region47: #{resnet_block_forward.12} parent=1 // pred_check_branch
      %2466 = sbr.rel (0) target = $region49
    $region48: #{resnet_block_forward.12} parent=1 // pred_region
      %2467 = dma.done [#allocation4], 16384
    $region49: #{resnet_block_forward.12} parent=1 // pred_fallthru
      _
    %2468 = vsyncpa [#allocation3], 1
    %2469 = vsyncpa [#allocation6], 1
    %2470 = vsyncpa [#allocation9], 1
    %2471 = vsyncpa [#allocation4], 1

// kernel: resnet_block_forward.10
$region0: #{resnet_block_forward.10}
  #allocation0 [shape = 'u32[]', space=smem, size = 0x4, offset = 0x4, fixed_abs, tag = 'smem constant byte address 0x4 - core index']
  #allocation1 [shape = 'u32[144,128]{1,0:T(1,128)}', space=vmem, size = 0x12000, scoped, tag = 'internal scratch']
  #allocation2 [shape = 'f32[64,128]{1,0:T(8,128)}', space=vmem, size = 0x8000, scoped, tag = 'scratch operand']
  %s0 = inlined_call_operand.hbm [shape: bf16[2,10,10,10,128], index: 0, kind: input, shape index: {}]
  %s1 = inlined_call_operand.hbm [shape: bf16[27,128,128], index: 1, kind: input, shape index: {}]
  %s2 = inlined_call_operand.hbm [shape: f32[2,8,64,128], index: 2, kind: output, shape index: {}]
  %s3 = sld [smem:[#allocation0]]
  $region57: #{resnet_block_forward.10} parent=0
    _
  %s5 = ssub.s32 1, %s3
  %s6 = scalar_select 0, %s5, %s3
  $region1: #{resnet_block_forward.10} parent=0
    #allocation3 [shape = 'u8[81920]{0}', space=vmem, size = 0x14000, scoped, tag = 'input window, operand 0']
    #allocation4 [shape = 's32[2]{0}', space=sflag, size = 0x8, scoped, tag = 'scoped memory for resnet_block_forward.10']
    #allocation5 [shape = 's32[2]{0}', space=sflag, size = 0x8, scoped, tag = 'scoped memory for resnet_block_forward.10']
    #allocation6 [shape = 'u8[884736]{0}', space=vmem, size = 0xd8000, scoped, tag = 'input window, operand 1, single buffered']
    #allocation7 [shape = 's32[1]{0}', space=sflag, size = 0x4, scoped, tag = 'scoped memory for resnet_block_forward.10']
    #allocation8 [shape = 'u8[65536]{0}', space=vmem, size = 0x10000, scoped, tag = 'output window, operand 0']
    %7 = vsyncpa [#allocation4], 0
    %s8 = scalar_lea.sflag [#allocation4], 1
    %9 = vsyncpa %s8, 0
    %10 = vsyncpa [#allocation7], 0
    %11 = vsyncpa [#allocation5], 0
    %s12 = scalar_lea.sflag [#allocation5], 1
    %13 = vsyncpa %s12, 0
    loop: start=0, step=1, limit=50
    $region2: #{resnet_block_forward.10} parent=1 // loop_pre_header
      _
    $region3: #{resnet_block_forward.10} parent=1 // loop_header
      %s15 = sphi 0, %s19
      %p16 = scmp.ge.s32.totalorder %s15, 50
      %s22 = sphi 0, %s41
      %s23 = sphi 0, %s37
      %s24 = sphi 0, %s33
      %s25 = sphi 0, %s22
      %s26 = sphi 0, %s23
      %s27 = sphi 0, %s24
      %s28 = sphi 0, %s25
      %s29 = sphi 0, %s26
      %s30 = sphi 0, %s27
      %s48 = sphi 0, %s50
      %s51 = sphi 0, %s48
      %s52 = sphi 0, %s51
      %s68 = sphi 0, %s52
      %s72 = sphi 0, %s72
      %s74 = sphi 0, %s72
      %s75 = sphi 0, %s74
      %s89 = sphi 0, %s75
      %s97 = sphi 0, %s99
      %s100 = sphi 0, %s97
      %s101 = sphi 0, %s100
      %s117 = sphi 0, %s101
    $region4: #{resnet_block_forward.10} parent=1 // loop_header_branch
      %18 = sbr.rel (%p16) target = $region8
    $region5: #{resnet_block_forward.10} parent=1 // loop_body
      %s20 = ssub.s32 %s15, 1
      %s21 = ssub.s32 %s15, 2
      %s31 = sadd.s32 1, %s24
      %p32 = scmp.ge.s32.totalorder %s31, 3
      %s33 = scalar_select %p32, 0, %s31
      %s34 = sadd.s32 1, %s23
      %s35 = scalar_select %p32, %s34, %s23
      %p36 = scmp.ge.s32.totalorder %s35, 8
      %s37 = scalar_select %p36, 0, %s35
      %s38 = sadd.s32 1, %s22
      %s39 = scalar_select %p36, %s38, %s22
      %p40 = scmp.ge.s32.totalorder %s39, 2
      %s41 = scalar_select %p40, 0, %s39
      %s42 = sadd.s32 %s23, %s24
      %s43 = sadd.s32 %s37, %s33
      %s44 = ssub.s32 %s22, %s41
      %s45 = ssub.s32 %s42, %s43
      %s46 = sor.u32 %s44, %s45
      %p47 = scmp.eq.s32.totalorder %s46, 0
      %s49 = sadd.s32 %s48, 1
      %s50 = scalar_select %p47, %s48, %s49
      %p53 = pneg %p47
      %p54 = scmp.eq.s32.totalorder %s15, 47
      %p55 = por %p53, %p54
      %p56 = scmp.ne.s32.totalorder %s48, %s51
      %p57 = scmp.eq.s32.totalorder %s15, 0
      %p58 = por %p56, %p57
      %p59 = scmp.ne.s32.totalorder %s48, %s51
      %p60 = scmp.eq.s32.totalorder %s20, 47
      %p61 = por %p59, %p60
      %p62 = scmp.ne.s32.totalorder %s51, %s52
      %p63 = scmp.eq.s32.totalorder %s20, 0
      %p64 = por %p62, %p63
      %p65 = scmp.ne.s32.totalorder %s51, %s52
      %p66 = scmp.eq.s32.totalorder %s21, 47
      %p67 = por %p65, %p66
      %p69 = scmp.ne.s32.totalorder %s52, %s68
      %p70 = scmp.eq.s32.totalorder %s21, 0
      %p71 = por %p69, %p70
      %s73 = sadd.s32 %s72, 1
      %p76 = scmp.eq.s32.totalorder %s15, 47
      %p77 = scmp.ne.s32.totalorder %s72, %s74
      %p78 = scmp.eq.s32.totalorder %s15, 0
      %p79 = por %p77, %p78
      %p80 = scmp.ne.s32.totalorder %s72, %s74
      %p81 = scmp.eq.s32.totalorder %s20, 47
      %p82 = por %p80, %p81
      %p83 = scmp.ne.s32.totalorder %s74, %s75
      %p84 = scmp.eq.s32.totalorder %s20, 0
      %p85 = por %p83, %p84
      %p86 = scmp.ne.s32.totalorder %s74, %s75
      %p87 = scmp.eq.s32.totalorder %s21, 47
      %p88 = por %p86, %p87
      %p90 = scmp.ne.s32.totalorder %s75, %s89
      %p91 = scmp.eq.s32.totalorder %s21, 0
      %p92 = por %p90, %p91
      %s93 = ssub.s32 %s22, %s41
      %s94 = ssub.s32 %s23, %s37
      %s95 = sor.u32 %s93, %s94
      %p96 = scmp.eq.s32.totalorder %s95, 0
      %s98 = sadd.s32 %s97, 1
      %s99 = scalar_select %p96, %s97, %s98
      %p102 = pneg %p96
      %p103 = scmp.eq.s32.totalorder %s15, 47
      %p104 = por %p102, %p103
      %p105 = scmp.ne.s32.totalorder %s97, %s100
      %p106 = scmp.eq.s32.totalorder %s15, 0
      %p107 = por %p105, %p106
      %p108 = scmp.ne.s32.totalorder %s97, %s100
      %p109 = scmp.eq.s32.totalorder %s20, 47
      %p110 = por %p108, %p109
      %p111 = scmp.ne.s32.totalorder %s100, %s101
      %p112 = scmp.eq.s32.totalorder %s20, 0
      %p113 = por %p111, %p112
      %p114 = scmp.ne.s32.totalorder %s100, %s101
      %p115 = scmp.eq.s32.totalorder %s21, 47
      %p116 = por %p114, %p115
      %p118 = scmp.ne.s32.totalorder %s101, %s117
      %p119 = scmp.eq.s32.totalorder %s21, 0
      %p120 = por %p118, %p119
      %p121 = scmp.le.s32.totalorder 1, %s15
      %p122 = scmp.lt.s32.totalorder %s15, 49
      %p123 = pnand %p121, %p122
      %p124 = pneg %p123
      // Predicated region
      $region9: #{resnet_block_forward.10} parent=5 // pred_check
        _
      $region10: #{resnet_block_forward.10} parent=5 // pred_check_branch
        %126 = sbr.rel (%p123) target = $region12
      $region11: #{resnet_block_forward.10} parent=5 // pred_region
        %s127 = ssub.s32 %s15, 1
        // Predicated region
        $region13: #{resnet_block_forward.10} parent=11 // pred_check
          %p128 = pneg %p85
        $region14: #{resnet_block_forward.10} parent=11 // pred_check_branch
          %130 = sbr.rel (%p128) target = $region16
        $region15: #{resnet_block_forward.10} parent=11 // pred_region
          %s132 = ssub.s32 27648, 27648
          %133 = vsyncadd [#allocation7], %s132
          %s134 = sshll.u32 [#allocation6], 4
          %s135 = int_to_ptr.vmem [resolvable:$true] %s134
          %140 = dma.hbm_to_vmem [thread:$0]  %s1, 27648, %s135, [#allocation7], 64, 64, 4
        $region16: #{resnet_block_forward.10} parent=11 // pred_fallthru
          _
      $region12: #{resnet_block_forward.10} parent=5 // pred_fallthru
        _
      %p141 = scmp.lt.s32.totalorder %s15, 48
      // Predicated region
      $region17: #{resnet_block_forward.10} parent=5 // pred_check
        %p142 = pneg %p141
      $region18: #{resnet_block_forward.10} parent=5 // pred_check_branch
        %144 = sbr.rel (%p142) target = $region20
      $region19: #{resnet_block_forward.10} parent=5 // pred_region
        // Predicated region
        $region21: #{resnet_block_forward.10} parent=19 // pred_check
          %p145 = pneg %p58
        $region22: #{resnet_block_forward.10} parent=19 // pred_check_branch
          %147 = sbr.rel (%p145) target = $region24
        $region23: #{resnet_block_forward.10} parent=19 // pred_region
          %s148 = sand.u32 %s48, 1
          %s149 = scalar_lea.sflag [#allocation4], %s148
          %s150 = sand.u32 %s48, 1
          %s151 = smul.addr %s150, 80
          %s152 = scalar_lea.vmem [#allocation3], %s151
          %s153 = sadd.s32 %s23, %s24
          %s155 = ssub.s32 1280, 1280
          %156 = vsyncadd %s149, %s155
          %s157 = smul.addr %s153, 20
          %s158 = smul.addr %s22, 200
          %s159 = sadd.s32 %s157, %s158
          %s160 = smul.addr %s159, 64
          %s161 = scalar_lea.hbm %s0, %s160
          %s162 = sshll.u32 %s152, 4
          %s163 = int_to_ptr.vmem [resolvable:$true] %s162
          %168 = dma.hbm_to_vmem [thread:$0]  %s161, 1280, %s163, %s149, 64, 64, 4
        $region24: #{resnet_block_forward.10} parent=19 // pred_fallthru
          _
      $region20: #{resnet_block_forward.10} parent=5 // pred_fallthru
        _
      %p169 = scmp.le.s32.totalorder 1, %s15
      %p170 = scmp.lt.s32.totalorder %s15, 49
      %p171 = pnand %p169, %p170
      %p172 = pneg %p171
      // Predicated region
      $region25: #{resnet_block_forward.10} parent=5 // pred_check
        _
      $region26: #{resnet_block_forward.10} parent=5 // pred_check_branch
        %174 = sbr.rel (%p171) target = $region28
      $region27: #{resnet_block_forward.10} parent=5 // pred_region
        %s175 = ssub.s32 %s15, 1
        %s176 = sand.u32 %s51, 1
        %s177 = scalar_lea.sflag [#allocation4], %s176
        %s178 = sand.u32 %s51, 1
        %s179 = smul.addr %s178, 80
        %s180 = scalar_lea.vmem [#allocation3], %s179
        // Predicated region
        $region29: #{resnet_block_forward.10} parent=27 // pred_check
          %p181 = pneg %p64
        $region30: #{resnet_block_forward.10} parent=27 // pred_check_branch
          %183 = sbr.rel (%p181) target = $region32
        $region31: #{resnet_block_forward.10} parent=27 // pred_region
          %184 = dma.done %s177, 1280
        $region32: #{resnet_block_forward.10} parent=27 // pred_fallthru
          _
        // Predicated region
        $region33: #{resnet_block_forward.10} parent=27 // pred_check
          %p185 = pneg %p85
        $region34: #{resnet_block_forward.10} parent=27 // pred_check_branch
          %187 = sbr.rel (%p185) target = $region36
        $region35: #{resnet_block_forward.10} parent=27 // pred_region
          %188 = dma.done [#allocation7], 27648
        $region36: #{resnet_block_forward.10} parent=27 // pred_fallthru
          _
        %s189 = sand.u32 %s51, 1
        %s190 = scalar_lea.sflag [#allocation4], %s189
        %s191 = sand.u32 %s51, 1
        %s192 = smul.addr %s191, 80
        %s193 = scalar_lea.vmem [#allocation3], %s192
        %p194 = pneg %p64
        %p195 = pneg %p61
        %p196 = pneg %p85
        %p197 = pneg %p82
        %p198 = pneg %p113
        %p199 = pneg %p110
        %s200 = sand.u32 %s100, 1
        %s201 = scalar_lea.sflag [#allocation5], %s200
        %s202 = sand.u32 %s100, 1
        %s203 = smul.addr %s202, 64
        %s204 = scalar_lea.vmem [#allocation8], %s203
        %s205 = sadd.s32 %s26, %s27
        %p207 = scmp.eq.s32.totalorder %s27, 0
        // Predicated region
        $region37: #{resnet_block_forward.10} parent=27 // pred_check
          %p208 = pneg %p207
        $region38: #{resnet_block_forward.10} parent=27 // pred_check_branch
          %210 = sbr.rel (%p208) target = $region40
        $region39: #{resnet_block_forward.10} parent=27 // pred_region
          %211 = vst [vmem:[#allocation2] sm:$0xff] 0.0
          %212 = vst [vmem:[#allocation2 + $0x8] sm:$0xff] 0.0
          %213 = vst [vmem:[#allocation2 + $0x10] sm:$0xff] 0.0
          %214 = vst [vmem:[#allocation2 + $0x18] sm:$0xff] 0.0
          %215 = vst [vmem:[#allocation2 + $0x20] sm:$0xff] 0.0
          %216 = vst [vmem:[#allocation2 + $0x28] sm:$0xff] 0.0
          %217 = vst [vmem:[#allocation2 + $0x30] sm:$0xff] 0.0
          %218 = vst [vmem:[#allocation2 + $0x38] sm:$0xff] 0.0
        $region40: #{resnet_block_forward.10} parent=27 // pred_fallthru
          _
        %s219 = smul.u32 %s27, 9
        %v220 = vld [vmem:[#allocation2] sm:$0xff]
        %v221 = vld [vmem:[#allocation2 + $0x8] sm:$0xff]
        %v222 = vld [vmem:[#allocation2 + $0x10] sm:$0xff]
        %v223 = vld [vmem:[#allocation2 + $0x18] sm:$0xff]
        %v224 = vld [vmem:[#allocation2 + $0x20] sm:$0xff]
        %v225 = vld [vmem:[#allocation2 + $0x28] sm:$0xff]
        %v226 = vld [vmem:[#allocation2 + $0x30] sm:$0xff]
        %v227 = vld [vmem:[#allocation2 + $0x38] sm:$0xff]
        %v228 = vld [vmem:[%s180] sm:$0xf]
        %v229 = vld [vmem:[%s180 + $0x8] sm:$0xf]
        %v230 = vld [vmem:[%s180 + $0x10] sm:$0xf]
        %v231 = vld [vmem:[%s180 + $0x18] sm:$0xf]
        %v232 = vld [vmem:[%s180 + $0x20] sm:$0xf]
        %v233 = vld [vmem:[%s180 + $0x28] sm:$0xf]
        %v234 = vld [vmem:[%s180 + $0x30] sm:$0xf]
        %v235 = vld [vmem:[%s180 + $0x38] sm:$0xf]
        %v236 = vunpack.c.l.bf16 %v228
        %v237 = vunpack.c.l.bf16 %v229
        %v238 = vunpack.c.l.bf16 %v230
        %v239 = vunpack.c.l.bf16 %v231
        %v240 = vunpack.c.l.bf16 %v232
        %v241 = vunpack.c.l.bf16 %v233
        %v242 = vunpack.c.l.bf16 %v234
        %v243 = vunpack.c.l.bf16 %v235
        %v244 = vpack.c.bf16 %v237, %v236
        %v245 = vpack.c.bf16 %v239, %v238
        %v246 = vpack.c.bf16 %v241, %v240
        %v247 = vpack.c.bf16 %v243, %v242
        %s248 = smul.u32 %s219, 16
        %s249 = smul.addr %s248, 4
        %s250 = scalar_lea.vmem [#allocation6], %s249
        %v251 = vld [vmem:[%s250] sm:$0xf]
        %v252 = vld [vmem:[%s250 + $0x4] sm:$0xf]
        %v253 = vld [vmem:[%s250 + $0x8] sm:$0xf]
        %v254 = vld [vmem:[%s250 + $0xc] sm:$0xf]
        %v255 = vld [vmem:[%s250 + $0x10] sm:$0xf]
        %v256 = vld [vmem:[%s250 + $0x14] sm:$0xf]
        %v257 = vld [vmem:[%s250 + $0x18] sm:$0xf]
        %v258 = vld [vmem:[%s250 + $0x1c] sm:$0xf]
        %v259 = vld [vmem:[%s250 + $0x20] sm:$0xf]
        %v260 = vld [vmem:[%s250 + $0x24] sm:$0xf]
        %v261 = vld [vmem:[%s250 + $0x28] sm:$0xf]
        %v262 = vld [vmem:[%s250 + $0x2c] sm:$0xf]
        %v263 = vld [vmem:[%s250 + $0x30] sm:$0xf]
        %v264 = vld [vmem:[%s250 + $0x34] sm:$0xf]
        %v265 = vld [vmem:[%s250 + $0x38] sm:$0xf]
        %v266 = vld [vmem:[%s250 + $0x3c] sm:$0xf]
        %v283 = vunpack.c.l.b16 %v251
        %v284 = vunpack.c.l.b16 %v252
        %v285 = vunpack.c.l.b16 %v253
        %v286 = vunpack.c.l.b16 %v254
        %v287 = vunpack.c.l.b16 %v255
        %v288 = vunpack.c.l.b16 %v256
        %v289 = vunpack.c.l.b16 %v257
        %v290 = vunpack.c.l.b16 %v258
        %v291 = vunpack.c.l.b16 %v259
        %v292 = vunpack.c.l.b16 %v260
        %v293 = vunpack.c.l.b16 %v261
        %v294 = vunpack.c.l.b16 %v262
        %v295 = vunpack.c.l.b16 %v263
        %v296 = vunpack.c.l.b16 %v264
        %v297 = vunpack.c.l.b16 %v265
        %v298 = vunpack.c.l.b16 %v266
        %v299 = vpack.c.b16 %v284, %v283
        %v300 = vpack.c.b16 %v286, %v285
        %v301 = vpack.c.b16 %v288, %v287
        %v302 = vpack.c.b16 %v290, %v289
        %v303 = vpack.c.b16 %v292, %v291
        %v304 = vpack.c.b16 %v294, %v293
        %v305 = vpack.c.b16 %v296, %v295
        %v306 = vpack.c.b16 %v298, %v297
        %315 = vmatprep.subr.bf16.mxu0 0
        %316 = vmatpush1.bf16.msra.mxu0 %v299
        %317 = vmatprep.subr.bf16.mxu0 0
        %318 = vmatpush1.bf16.msra.mxu0 %v300
        %319 = vmatprep.subr.bf16.mxu0 0
        %320 = vmatpush1.bf16.msra.mxu0 %v301
        %321 = vmatprep.subr.bf16.mxu0 0
        %322 = vmatpush1.bf16.msra.mxu0 %v302
        %323 = vmatprep.subr.bf16.mxu0 0
        %324 = vmatpush1.bf16.msra.mxu0 %v303
        %325 = vmatprep.subr.bf16.mxu0 0
        %326 = vmatpush1.bf16.msra.mxu0 %v304
        %327 = vmatprep.subr.bf16.mxu0 0
        %328 = vmatpush1.bf16.msra.mxu0 %v305
        %329 = vmatprep.subr.bf16.mxu0 0
        %330 = vmatpush1.bf16.msra.mxu0 %v306
        %331 = vmatprep.subr.bf16.mxu0 0
        %332 = vmatpush1.bf16.msra.mxu0 0
        %333 = vmatprep.subr.bf16.mxu0 0
        %334 = vmatpush1.bf16.msra.mxu0 0
        %335 = vmatprep.subr.bf16.mxu0 0
        %336 = vmatpush1.bf16.msra.mxu0 0
        %337 = vmatprep.subr.bf16.mxu0 0
        %338 = vmatpush1.bf16.msra.mxu0 0
        %339 = vmatprep.subr.bf16.mxu0 0
        %340 = vmatpush1.bf16.msra.mxu0 0
        %341 = vmatprep.subr.bf16.mxu0 0
        %342 = vmatpush1.bf16.msra.mxu0 0
        %343 = vmatprep.subr.bf16.mxu0 0
        %344 = vmatpush1.bf16.msra.mxu0 0
        %345 = vmatprep.subr.bf16.mxu0 0
        %346 = vmatpush1.bf16.msra.mxu0 0
        %347 = vmatprep.mubr.bf16.mxu0 0
        %348 = vmatmul.mubr.bf16.gmra.mrb[0].mxu0 %v244
        %v349 = vpop.f32.mrb[0].mxu0
        %v350 = vadd.f32 0.0, %v349
        %v351 = vpop.f32.mrb[0].mxu0
        %v352 = vpop.f32.mrb[0].mxu0
        %v353 = vadd.f32 0.0, %v352
        %v354 = vpop.f32.mrb[0].mxu0
        %355 = vmatprep.mubr.bf16.mxu0 0
        %356 = vmatmul.mubr.bf16.gmra.mrb[0].mxu0 %v245
        %v357 = vpop.f32.mrb[0].mxu0
        %v358 = vadd.f32 0.0, %v357
        %v359 = vpop.f32.mrb[0].mxu0
        %v360 = vpop.f32.mrb[0].mxu0
        %v361 = vadd.f32 0.0, %v360
        %v362 = vpop.f32.mrb[0].mxu0
        %363 = vmatprep.mubr.bf16.mxu0 0
        %364 = vmatmul.mubr.bf16.gmra.mrb[0].mxu0 %v246
        %v365 = vpop.f32.mrb[0].mxu0
        %v366 = vadd.f32 0.0, %v365
        %v367 = vpop.f32.mrb[0].mxu0
        %v368 = vpop.f32.mrb[0].mxu0
        %v369 = vadd.f32 0.0, %v368
        %v370 = vpop.f32.mrb[0].mxu0
        %371 = vmatprep.mubr.bf16.mxu0 0
        %372 = vmatmul.mubr.bf16.gmra.mrb[0].mxu0 %v247
        %v373 = vpop.f32.mrb[0].mxu0
        %v374 = vadd.f32 0.0, %v373
        %v375 = vpop.f32.mrb[0].mxu0
        %v376 = vpop.f32.mrb[0].mxu0
        %v377 = vadd.f32 0.0, %v376
        %v378 = vpop.f32.mrb[0].mxu0
        %379 = vdwg.mxu0
        %v380 = vadd.f32 %v220, %v350
        %v381 = vadd.f32 %v221, %v353
        %v382 = vadd.f32 %v222, %v358
        %v383 = vadd.f32 %v223, %v361
        %v384 = vadd.f32 %v224, %v366
        %v385 = vadd.f32 %v225, %v369
        %v386 = vadd.f32 %v226, %v374
        %v387 = vadd.f32 %v227, %v377
        %v388 = vld [vmem:[%s180] sm:$0xf]
        %v389 = vld [vmem:[%s180 + $0x4] sm:$0x1]
        %v390 = vld [vmem:[%s180 + $0x8] sm:$0xf]
        %v391 = vld [vmem:[%s180 + $0xc] sm:$0x1]
        %v392 = vld [vmem:[%s180 + $0x10] sm:$0xf]
        %v393 = vld [vmem:[%s180 + $0x14] sm:$0x1]
        %v394 = vld [vmem:[%s180 + $0x18] sm:$0xf]
        %v395 = vld [vmem:[%s180 + $0x1c] sm:$0x1]
        %v396 = vld [vmem:[%s180 + $0x20] sm:$0xf]
        %v397 = vld [vmem:[%s180 + $0x24] sm:$0x1]
        %v398 = vld [vmem:[%s180 + $0x28] sm:$0xf]
        %v399 = vld [vmem:[%s180 + $0x2c] sm:$0x1]
        %v400 = vld [vmem:[%s180 + $0x30] sm:$0xf]
        %v401 = vld [vmem:[%s180 + $0x34] sm:$0x1]
        %v402 = vld [vmem:[%s180 + $0x38] sm:$0xf]
        %v403 = vld [vmem:[%s180 + $0x3c] sm:$0x1]
        %v404 = vunpack.c.l.bf16 %v388
        %v405 = vunpack.c.l.bf16 %v389
        %v406 = vunpack.c.l.bf16 %v390
        %v407 = vunpack.c.l.bf16 %v391
        %v408 = vunpack.c.l.bf16 %v392
        %v409 = vunpack.c.l.bf16 %v393
        %v410 = vunpack.c.l.bf16 %v394
        %v411 = vunpack.c.l.bf16 %v395
        %v412 = vunpack.c.l.bf16 %v396
        %v413 = vunpack.c.l.bf16 %v397
        %v414 = vunpack.c.l.bf16 %v398
        %v415 = vunpack.c.l.bf16 %v399
        %v416 = vunpack.c.l.bf16 %v400
        %v417 = vunpack.c.l.bf16 %v401
        %v418 = vunpack.c.l.bf16 %v402
        %v419 = vunpack.c.l.bf16 %v403
        %vm436 = vcmask 1046528
        %v437 = vrot.slane %v404, 1
        %v438 = vrot.slane %v405, 1
        %v439 = vsel %vm436, %v437, %v438
        %v440 = vrot.slane %v406, 1
        %v441 = vrot.slane %v407, 1
        %v442 = vsel %vm436, %v440, %v441
        %v443 = vrot.slane %v408, 1
        %v444 = vrot.slane %v409, 1
        %v445 = vsel %vm436, %v443, %v444
        %v446 = vrot.slane %v410, 1
        %v447 = vrot.slane %v411, 1
        %v448 = vsel %vm436, %v446, %v447
        %v449 = vrot.slane %v412, 1
        %v450 = vrot.slane %v413, 1
        %v451 = vsel %vm436, %v449, %v450
        %v452 = vrot.slane %v414, 1
        %v453 = vrot.slane %v415, 1
        %v454 = vsel %vm436, %v452, %v453
        %v455 = vrot.slane %v416, 1
        %v456 = vrot.slane %v417, 1
        %v457 = vsel %vm436, %v455, %v456
        %v458 = vrot.slane %v418, 1
        %v459 = vrot.slane %v419, 1
        %v460 = vsel %vm436, %v458, %v459
        %v469 = vpack.c.bf16 %v442, %v439
        %v470 = vpack.c.bf16 %v448, %v445
        %v471 = vpack.c.bf16 %v454, %v451
        %v472 = vpack.c.bf16 %v460, %v457
        %s473 = sadd.s32 %s219, 1
        %s474 = smul.u32 %s473, 16
        %s475 = smul.addr %s474, 4
        %s476 = scalar_lea.vmem [#allocation6], %s475
        %v477 = vld [vmem:[%s476] sm:$0xf]
        %v478 = vld [vmem:[%s476 + $0x4] sm:$0xf]
        %v479 = vld [vmem:[%s476 + $0x8] sm:$0xf]
        %v480 = vld [vmem:[%s476 + $0xc] sm:$0xf]
        %v481 = vld [vmem:[%s476 + $0x10] sm:$0xf]
        %v482 = vld [vmem:[%s476 + $0x14] sm:$0xf]
        %v483 = vld [vmem:[%s476 + $0x18] sm:$0xf]
        %v484 = vld [vmem:[%s476 + $0x1c] sm:$0xf]
        %v485 = vld [vmem:[%s476 + $0x20] sm:$0xf]
        %v486 = vld [vmem:[%s476 + $0x24] sm:$0xf]
        %v487 = vld [vmem:[%s476 + $0x28] sm:$0xf]
        %v488 = vld [vmem:[%s476 + $0x2c] sm:$0xf]
        %v489 = vld [vmem:[%s476 + $0x30] sm:$0xf]
        %v490 = vld [vmem:[%s476 + $0x34] sm:$0xf]
        %v491 = vld [vmem:[%s476 + $0x38] sm:$0xf]
        %v492 = vld [vmem:[%s476 + $0x3c] sm:$0xf]
        %v509 = vunpack.c.l.b16 %v477
        %v510 = vunpack.c.l.b16 %v478
        %v511 = vunpack.c.l.b16 %v479
        %v512 = vunpack.c.l.b16 %v480
        %v513 = vunpack.c.l.b16 %v481
        %v514 = vunpack.c.l.b16 %v482
        %v515 = vunpack.c.l.b16 %v483
        %v516 = vunpack.c.l.b16 %v484
        %v517 = vunpack.c.l.b16 %v485
        %v518 = vunpack.c.l.b16 %v486
        %v519 = vunpack.c.l.b16 %v487
        %v520 = vunpack.c.l.b16 %v488
        %v521 = vunpack.c.l.b16 %v489
        %v522 = vunpack.c.l.b16 %v490
        %v523 = vunpack.c.l.b16 %v491
        %v524 = vunpack.c.l.b16 %v492
        %v525 = vpack.c.b16 %v510, %v509
        %v526 = vpack.c.b16 %v512, %v511
        %v527 = vpack.c.b16 %v514, %v513
        %v528 = vpack.c.b16 %v516, %v515
        %v529 = vpack.c.b16 %v518, %v517
        %v530 = vpack.c.b16 %v520, %v519
        %v531 = vpack.c.b16 %v522, %v521
        %v532 = vpack.c.b16 %v524, %v523
        %541 = vmatprep.subr.bf16.mxu0 0
        %542 = vmatpush1.bf16.msra.mxu0 %v525
        %543 = vmatprep.subr.bf16.mxu0 0
        %544 = vmatpush1.bf16.msra.mxu0 %v526
        %545 = vmatprep.subr.bf16.mxu0 0
        %546 = vmatpush1.bf16.msra.mxu0 %v527
        %547 = vmatprep.subr.bf16.mxu0 0
        %548 = vmatpush1.bf16.msra.mxu0 %v528
        %549 = vmatprep.subr.bf16.mxu0 0
        %550 = vmatpush1.bf16.msra.mxu0 %v529
        %551 = vmatprep.subr.bf16.mxu0 0
        %552 = vmatpush1.bf16.msra.mxu0 %v530
        %553 = vmatprep.subr.bf16.mxu0 0
        %554 = vmatpush1.bf16.msra.mxu0 %v531
        %555 = vmatprep.subr.bf16.mxu0 0
        %556 = vmatpush1.bf16.msra.mxu0 %v532
        %557 = vmatprep.subr.bf16.mxu0 0
        %558 = vmatpush1.bf16.msra.mxu0 0
        %559 = vmatprep.subr.bf16.mxu0 0
        %560 = vmatpush1.bf16.msra.mxu0 0
        %561 = vmatprep.subr.bf16.mxu0 0
        %562 = vmatpush1.bf16.msra.mxu0 0
        %563 = vmatprep.subr.bf16.mxu0 0
        %564 = vmatpush1.bf16.msra.mxu0 0
        %565 = vmatprep.subr.bf16.mxu0 0
        %566 = vmatpush1.bf16.msra.mxu0 0
        %567 = vmatprep.subr.bf16.mxu0 0
        %568 = vmatpush1.bf16.msra.mxu0 0
        %569 = vmatprep.subr.bf16.mxu0 0
        %570 = vmatpush1.bf16.msra.mxu0 0
        %571 = vmatprep.subr.bf16.mxu0 0
        %572 = vmatpush1.bf16.msra.mxu0 0
        %573 = vmatprep.mubr.bf16.mxu0 0
        %574 = vmatmul.mubr.bf16.gmra.mrb[0].mxu0 %v469
        %v575 = vpop.f32.mrb[0].mxu0
        %v576 = vadd.f32 0.0, %v575
        %v577 = vpop.f32.mrb[0].mxu0
        %v578 = vpop.f32.mrb[0].mxu0
        %v579 = vadd.f32 0.0, %v578
        %v580 = vpop.f32.mrb[0].mxu0
        %581 = vmatprep.mubr.bf16.mxu0 0
        %582 = vmatmul.mubr.bf16.gmra.mrb[0].mxu0 %v470
        %v583 = vpop.f32.mrb[0].mxu0
        %v584 = vadd.f32 0.0, %v583
        %v585 = vpop.f32.mrb[0].mxu0
        %v586 = vpop.f32.mrb[0].mxu0
        %v587 = vadd.f32 0.0, %v586
        %v588 = vpop.f32.mrb[0].mxu0
        %589 = vmatprep.mubr.bf16.mxu0 0
        %590 = vmatmul.mubr.bf16.gmra.mrb[0].mxu0 %v471
        %v591 = vpop.f32.mrb[0].mxu0
        %v592 = vadd.f32 0.0, %v591
        %v593 = vpop.f32.mrb[0].mxu0
        %v594 = vpop.f32.mrb[0].mxu0
        %v595 = vadd.f32 0.0, %v594
        %v596 = vpop.f32.mrb[0].mxu0
        %597 = vmatprep.mubr.bf16.mxu0 0
        %598 = vmatmul.mubr.bf16.gmra.mrb[0].mxu0 %v472
        %v599 = vpop.f32.mrb[0].mxu0
        %v600 = vadd.f32 0.0, %v599
        %v601 = vpop.f32.mrb[0].mxu0
        %v602 = vpop.f32.mrb[0].mxu0
        %v603 = vadd.f32 0.0, %v602
        %v604 = vpop.f32.mrb[0].mxu0
        %605 = vdwg.mxu0
        %v606 = vadd.f32 %v380, %v576
        %v607 = vadd.f32 %v381, %v579
        %v608 = vadd.f32 %v382, %v584
        %v609 = vadd.f32 %v383, %v587
        %v610 = vadd.f32 %v384, %v592
        %v611 = vadd.f32 %v385, %v595
        %v612 = vadd.f32 %v386, %v600
        %v613 = vadd.f32 %v387, %v603
        %v614 = vld [vmem:[%s180] sm:$0xe]
        %v615 = vld [vmem:[%s180 + $0x8] sm:$0xe]
        %v616 = vld [vmem:[%s180 + $0x10] sm:$0xe]
        %v617 = vld [vmem:[%s180 + $0x18] sm:$0xe]
        %v618 = vld [vmem:[%s180 + $0x20] sm:$0xe]
        %v619 = vld [vmem:[%s180 + $0x28] sm:$0xe]
        %v620 = vld [vmem:[%s180 + $0x30] sm:$0xe]
        %v621 = vld [vmem:[%s180 + $0x38] sm:$0xe]
        %v622 = vunpack.c.l.bf16 %v614
        %v623 = vunpack.c.l.bf16 %v615
        %v624 = vunpack.c.l.bf16 %v616
        %v625 = vunpack.c.l.bf16 %v617
        %v626 = vunpack.c.l.bf16 %v618
        %v627 = vunpack.c.l.bf16 %v619
        %v628 = vunpack.c.l.bf16 %v620
        %v629 = vunpack.c.l.bf16 %v621
        %vm638 = vcmask 1045504
        %v639 = vrot.slane %v622, 2
        %v640 = vrot.slane %v405, 2
        %v641 = vsel %vm638, %v639, %v640
        %v642 = vrot.slane %v623, 2
        %v643 = vrot.slane %v407, 2
        %v644 = vsel %vm638, %v642, %v643
        %v645 = vrot.slane %v624, 2
        %v646 = vrot.slane %v409, 2
        %v647 = vsel %vm638, %v645, %v646
        %v648 = vrot.slane %v625, 2
        %v649 = vrot.slane %v411, 2
        %v650 = vsel %vm638, %v648, %v649
        %v651 = vrot.slane %v626, 2
        %v652 = vrot.slane %v413, 2
        %v653 = vsel %vm638, %v651, %v652
        %v654 = vrot.slane %v627, 2
        %v655 = vrot.slane %v415, 2
        %v656 = vsel %vm638, %v654, %v655
        %v657 = vrot.slane %v628, 2
        %v658 = vrot.slane %v417, 2
        %v659 = vsel %vm638, %v657, %v658
        %v660 = vrot.slane %v629, 2
        %v661 = vrot.slane %v419, 2
        %v662 = vsel %vm638, %v660, %v661
        %v671 = vpack.c.bf16 %v644, %v641
        %v672 = vpack.c.bf16 %v650, %v647
        %v673 = vpack.c.bf16 %v656, %v653
        %v674 = vpack.c.bf16 %v662, %v659
        %s675 = sadd.s32 %s219, 2
        %s676 = smul.u32 %s675, 16
        %s677 = smul.addr %s676, 4
        %s678 = scalar_lea.vmem [#allocation6], %s677
        %v679 = vld [vmem:[%s678] sm:$0xf]
        %v680 = vld [vmem:[%s678 + $0x4] sm:$0xf]
        %v681 = vld [vmem:[%s678 + $0x8] sm:$0xf]
        %v682 = vld [vmem:[%s678 + $0xc] sm:$0xf]
        %v683 = vld [vmem:[%s678 + $0x10] sm:$0xf]
        %v684 = vld [vmem:[%s678 + $0x14] sm:$0xf]
        %v685 = vld [vmem:[%s678 + $0x18] sm:$0xf]
        %v686 = vld [vmem:[%s678 + $0x1c] sm:$0xf]
        %v687 = vld [vmem:[%s678 + $0x20] sm:$0xf]
        %v688 = vld [vmem:[%s678 + $0x24] sm:$0xf]
        %v689 = vld [vmem:[%s678 + $0x28] sm:$0xf]
        %v690 = vld [vmem:[%s678 + $0x2c] sm:$0xf]
        %v691 = vld [vmem:[%s678 + $0x30] sm:$0xf]
        %v692 = vld [vmem:[%s678 + $0x34] sm:$0xf]
        %v693 = vld [vmem:[%s678 + $0x38] sm:$0xf]
        %v694 = vld [vmem:[%s678 + $0x3c] sm:$0xf]
        %v711 = vunpack.c.l.b16 %v679
        %v712 = vunpack.c.l.b16 %v680
        %v713 = vunpack.c.l.b16 %v681
        %v714 = vunpack.c.l.b16 %v682
        %v715 = vunpack.c.l.b16 %v683
        %v716 = vunpack.c.l.b16 %v684
        %v717 = vunpack.c.l.b16 %v685
        %v718 = vunpack.c.l.b16 %v686
        %v719 = vunpack.c.l.b16 %v687
        %v720 = vunpack.c.l.b16 %v688
        %v721 = vunpack.c.l.b16 %v689
        %v722 = vunpack.c.l.b16 %v690
        %v723 = vunpack.c.l.b16 %v691
        %v724 = vunpack.c.l.b16 %v692
        %v725 = vunpack.c.l.b16 %v693
        %v726 = vunpack.c.l.b16 %v694
        %v727 = vpack.c.b16 %v712, %v711
        %v728 = vpack.c.b16 %v714, %v713
        %v729 = vpack.c.b16 %v716, %v715
        %v730 = vpack.c.b16 %v718, %v717
        %v731 = vpack.c.b16 %v720, %v719
        %v732 = vpack.c.b16 %v722, %v721
        %v733 = vpack.c.b16 %v724, %v723
        %v734 = vpack.c.b16 %v726, %v725
        %743 = vmatprep.subr.bf16.mxu0 0
        %744 = vmatpush1.bf16.msra.mxu0 %v727
        %745 = vmatprep.subr.bf16.mxu0 0
        %746 = vmatpush1.bf16.msra.mxu0 %v728
        %747 = vmatprep.subr.bf16.mxu0 0
        %748 = vmatpush1.bf16.msra.mxu0 %v729
        %749 = vmatprep.subr.bf16.mxu0 0
        %750 = vmatpush1.bf16.msra.mxu0 %v730
        %751 = vmatprep.subr.bf16.mxu0 0
        %752 = vmatpush1.bf16.msra.mxu0 %v731
        %753 = vmatprep.subr.bf16.mxu0 0
        %754 = vmatpush1.bf16.msra.mxu0 %v732
        %755 = vmatprep.subr.bf16.mxu0 0
        %756 = vmatpush1.bf16.msra.mxu0 %v733
        %757 = vmatprep.subr.bf16.mxu0 0
        %758 = vmatpush1.bf16.msra.mxu0 %v734
        %759 = vmatprep.subr.bf16.mxu0 0
        %760 = vmatpush1.bf16.msra.mxu0 0
        %761 = vmatprep.subr.bf16.mxu0 0
        %762 = vmatpush1.bf16.msra.mxu0 0
        %763 = vmatprep.subr.bf16.mxu0 0
        %764 = vmatpush1.bf16.msra.mxu0 0
        %765 = vmatprep.subr.bf16.mxu0 0
        %766 = vmatpush1.bf16.msra.mxu0 0
        %767 = vmatprep.subr.bf16.mxu0 0
        %768 = vmatpush1.bf16.msra.mxu0 0
        %769 = vmatprep.subr.bf16.mxu0 0
        %770 = vmatpush1.bf16.msra.mxu0 0
        %771 = vmatprep.subr.bf16.mxu0 0
        %772 = vmatpush1.bf16.msra.mxu0 0
        %773 = vmatprep.subr.bf16.mxu0 0
        %774 = vmatpush1.bf16.msra.mxu0 0
        %775 = vmatprep.mubr.bf16.mxu0 0
        %776 = vmatmul.mubr.bf16.gmra.mrb[0].mxu0 %v671
        %v777 = vpop.f32.mrb[0].mxu0
        %v778 = vadd.f32 0.0, %v777
        %v779 = vpop.f32.mrb[0].mxu0
        %v780 = vpop.f32.mrb[0].mxu0
        %v781 = vadd.f32 0.0, %v780
        %v782 = vpop.f32.mrb[0].mxu0
        %783 = vmatprep.mubr.bf16.mxu0 0
        %784 = vmatmul.mubr.bf16.gmra.mrb[0].mxu0 %v672
        %v785 = vpop.f32.mrb[0].mxu0
        %v786 = vadd.f32 0.0, %v785
        %v787 = vpop.f32.mrb[0].mxu0
        %v788 = vpop.f32.mrb[0].mxu0
        %v789 = vadd.f32 0.0, %v788
        %v790 = vpop.f32.mrb[0].mxu0
        %791 = vmatprep.mubr.bf16.mxu0 0
        %792 = vmatmul.mubr.bf16.gmra.mrb[0].mxu0 %v673
        %v793 = vpop.f32.mrb[0].mxu0
        %v794 = vadd.f32 0.0, %v793
        %v795 = vpop.f32.mrb[0].mxu0
        %v796 = vpop.f32.mrb[0].mxu0
        %v797 = vadd.f32 0.0, %v796
        %v798 = vpop.f32.mrb[0].mxu0
        %799 = vmatprep.mubr.bf16.mxu0 0
        %800 = vmatmul.mubr.bf16.gmra.mrb[0].mxu0 %v674
        %v801 = vpop.f32.mrb[0].mxu0
        %v802 = vadd.f32 0.0, %v801
        %v803 = vpop.f32.mrb[0].mxu0
        %v804 = vpop.f32.mrb[0].mxu0
        %v805 = vadd.f32 0.0, %v804
        %v806 = vpop.f32.mrb[0].mxu0
        %807 = vdwg.mxu0
        %v808 = vadd.f32 %v606, %v778
        %v809 = vadd.f32 %v607, %v781
        %v810 = vadd.f32 %v608, %v786
        %v811 = vadd.f32 %v609, %v789
        %v812 = vadd.f32 %v610, %v794
        %v813 = vadd.f32 %v611, %v797
        %v814 = vadd.f32 %v612, %v802
        %v815 = vadd.f32 %v613, %v805
        %s816 = scalar_lea.vmem %s180, 8 [#allocation3]
        %v817 = vld [vmem:[%s816] sm:$0xf]
        %v818 = vld [vmem:[%s816 + $0x8] sm:$0xf]
        %v819 = vld [vmem:[%s816 + $0x10] sm:$0xf]
        %v820 = vld [vmem:[%s816 + $0x18] sm:$0xf]
        %v821 = vld [vmem:[%s816 + $0x20] sm:$0xf]
        %v822 = vld [vmem:[%s816 + $0x28] sm:$0xf]
        %v823 = vld [vmem:[%s816 + $0x30] sm:$0xf]
        %v824 = vld [vmem:[%s816 + $0x38] sm:$0xf]
        %v825 = vunpack.c.l.bf16 %v817
        %v826 = vunpack.c.l.bf16 %v818
        %v827 = vunpack.c.l.bf16 %v819
        %v828 = vunpack.c.l.bf16 %v820
        %v829 = vunpack.c.l.bf16 %v821
        %v830 = vunpack.c.l.bf16 %v822
        %v831 = vunpack.c.l.bf16 %v823
        %v832 = vunpack.c.l.bf16 %v824
        %v833 = vpack.c.bf16 %v826, %v825
        %v834 = vpack.c.bf16 %v828, %v827
        %v835 = vpack.c.bf16 %v830, %v829
        %v836 = vpack.c.bf16 %v832, %v831
        %s837 = sadd.s32 %s219, 3
        %s838 = smul.u32 %s837, 16
        %s839 = smul.addr %s838, 4
        %s840 = scalar_lea.vmem [#allocation6], %s839
        %v841 = vld [vmem:[%s840] sm:$0xf]
        %v842 = vld [vmem:[%s840 + $0x4] sm:$0xf]
        %v843 = vld [vmem:[%s840 + $0x8] sm:$0xf]
        %v844 = vld [vmem:[%s840 + $0xc] sm:$0xf]
        %v845 = vld [vmem:[%s840 + $0x10] sm:$0xf]
        %v846 = vld [vmem:[%s840 + $0x14] sm:$0xf]
        %v847 = vld [vmem:[%s840 + $0x18] sm:$0xf]
        %v848 = vld [vmem:[%s840 + $0x1c] sm:$0xf]
        %v849 = vld [vmem:[%s840 + $0x20] sm:$0xf]
        %v850 = vld [vmem:[%s840 + $0x24] sm:$0xf]
        %v851 = vld [vmem:[%s840 + $0x28] sm:$0xf]
        %v852 = vld [vmem:[%s840 + $0x2c] sm:$0xf]
        %v853 = vld [vmem:[%s840 + $0x30] sm:$0xf]
        %v854 = vld [vmem:[%s840 + $0x34] sm:$0xf]
        %v855 = vld [vmem:[%s840 + $0x38] sm:$0xf]
        %v856 = vld [vmem:[%s840 + $0x3c] sm:$0xf]
        %v873 = vunpack.c.l.b16 %v841
        %v874 = vunpack.c.l.b16 %v842
        %v875 = vunpack.c.l.b16 %v843
        %v876 = vunpack.c.l.b16 %v844
        %v877 = vunpack.c.l.b16 %v845
        %v878 = vunpack.c.l.b16 %v846
        %v879 = vunpack.c.l.b16 %v847
        %v880 = vunpack.c.l.b16 %v848
        %v881 = vunpack.c.l.b16 %v849
        %v882 = vunpack.c.l.b16 %v850
        %v883 = vunpack.c.l.b16 %v851
        %v884 = vunpack.c.l.b16 %v852
        %v885 = vunpack.c.l.b16 %v853
        %v886 = vunpack.c.l.b16 %v854
        %v887 = vunpack.c.l.b16 %v855
        %v888 = vunpack.c.l.b16 %v856
        %v889 = vpack.c.b16 %v874, %v873
        %v890 = vpack.c.b16 %v876, %v875
        %v891 = vpack.c.b16 %v878, %v877
        %v892 = vpack.c.b16 %v880, %v879
        %v893 = vpack.c.b16 %v882, %v881
        %v894 = vpack.c.b16 %v884, %v883
        %v895 = vpack.c.b16 %v886, %v885
        %v896 = vpack.c.b16 %v888, %v887
        %905 = vmatprep.subr.bf16.mxu0 0
        %906 = vmatpush1.bf16.msra.mxu0 %v889
        %907 = vmatprep.subr.bf16.mxu0 0
        %908 = vmatpush1.bf16.msra.mxu0 %v890
        %909 = vmatprep.subr.bf16.mxu0 0
        %910 = vmatpush1.bf16.msra.mxu0 %v891
        %911 = vmatprep.subr.bf16.mxu0 0
        %912 = vmatpush1.bf16.msra.mxu0 %v892
        %913 = vmatprep.subr.bf16.mxu0 0
        %914 = vmatpush1.bf16.msra.mxu0 %v893
        %915 = vmatprep.subr.bf16.mxu0 0
        %916 = vmatpush1.bf16.msra.mxu0 %v894
        %917 = vmatprep.subr.bf16.mxu0 0
        %918 = vmatpush1.bf16.msra.mxu0 %v895
        %919 = vmatprep.subr.bf16.mxu0 0
        %920 = vmatpush1.bf16.msra.mxu0 %v896
        %921 = vmatprep.subr.bf16.mxu0 0
        %922 = vmatpush1.bf16.msra.mxu0 0
        %923 = vmatprep.subr.bf16.mxu0 0
        %924 = vmatpush1.bf16.msra.mxu0 0
        %925 = vmatprep.subr.bf16.mxu0 0
        %926 = vmatpush1.bf16.msra.mxu0 0
        %927 = vmatprep.subr.bf16.mxu0 0
        %928 = vmatpush1.bf16.msra.mxu0 0
        %929 = vmatprep.subr.bf16.mxu0 0
        %930 = vmatpush1.bf16.msra.mxu0 0
        %931 = vmatprep.subr.bf16.mxu0 0
        %932 = vmatpush1.bf16.msra.mxu0 0
        %933 = vmatprep.subr.bf16.mxu0 0
        %934 = vmatpush1.bf16.msra.mxu0 0
        %935 = vmatprep.subr.bf16.mxu0 0
        %936 = vmatpush1.bf16.msra.mxu0 0
        %937 = vmatprep.mubr.bf16.mxu0 0
        %938 = vmatmul.mubr.bf16.gmra.mrb[0].mxu0 %v833
        %v939 = vpop.f32.mrb[0].mxu0
        %v940 = vadd.f32 0.0, %v939
        %v941 = vpop.f32.mrb[0].mxu0
        %v942 = vpop.f32.mrb[0].mxu0
        %v943 = vadd.f32 0.0, %v942
        %v944 = vpop.f32.mrb[0].mxu0
        %945 = vmatprep.mubr.bf16.mxu0 0
        %946 = vmatmul.mubr.bf16.gmra.mrb[0].mxu0 %v834
        %v947 = vpop.f32.mrb[0].mxu0
        %v948 = vadd.f32 0.0, %v947
        %v949 = vpop.f32.mrb[0].mxu0
        %v950 = vpop.f32.mrb[0].mxu0
        %v951 = vadd.f32 0.0, %v950
        %v952 = vpop.f32.mrb[0].mxu0
        %953 = vmatprep.mubr.bf16.mxu0 0
        %954 = vmatmul.mubr.bf16.gmra.mrb[0].mxu0 %v835
        %v955 = vpop.f32.mrb[0].mxu0
        %v956 = vadd.f32 0.0, %v955
        %v957 = vpop.f32.mrb[0].mxu0
        %v958 = vpop.f32.mrb[0].mxu0
        %v959 = vadd.f32 0.0, %v958
        %v960 = vpop.f32.mrb[0].mxu0
        %961 = vmatprep.mubr.bf16.mxu0 0
        %962 = vmatmul.mubr.bf16.gmra.mrb[0].mxu0 %v836
        %v963 = vpop.f32.mrb[0].mxu0
        %v964 = vadd.f32 0.0, %v963
        %v965 = vpop.f32.mrb[0].mxu0
        %v966 = vpop.f32.mrb[0].mxu0
        %v967 = vadd.f32 0.0, %v966
        %v968 = vpop.f32.mrb[0].mxu0
        %969 = vdwg.mxu0
        %v970 = vadd.f32 %v808, %v940
        %v971 = vadd.f32 %v809, %v943
        %v972 = vadd.f32 %v810, %v948
        %v973 = vadd.f32 %v811, %v951
        %v974 = vadd.f32 %v812, %v956
        %v975 = vadd.f32 %v813, %v959
        %v976 = vadd.f32 %v814, %v964
        %v977 = vadd.f32 %v815, %v967
        %v978 = vld [vmem:[%s816] sm:$0xf]
        %v979 = vld [vmem:[%s816 + $0x4] sm:$0x1]
        %v980 = vld [vmem:[%s816 + $0x8] sm:$0xf]
        %v981 = vld [vmem:[%s816 + $0xc] sm:$0x1]
        %v982 = vld [vmem:[%s816 + $0x10] sm:$0xf]
        %v983 = vld [vmem:[%s816 + $0x14] sm:$0x1]
        %v984 = vld [vmem:[%s816 + $0x18] sm:$0xf]
        %v985 = vld [vmem:[%s816 + $0x1c] sm:$0x1]
        %v986 = vld [vmem:[%s816 + $0x20] sm:$0xf]
        %v987 = vld [vmem:[%s816 + $0x24] sm:$0x1]
        %v988 = vld [vmem:[%s816 + $0x28] sm:$0xf]
        %v989 = vld [vmem:[%s816 + $0x2c] sm:$0x1]
        %v990 = vld [vmem:[%s816 + $0x30] sm:$0xf]
        %v991 = vld [vmem:[%s816 + $0x34] sm:$0x1]
        %v992 = vld [vmem:[%s816 + $0x38] sm:$0xf]
        %v993 = vld [vmem:[%s816 + $0x3c] sm:$0x1]
        %v994 = vunpack.c.l.bf16 %v978
        %v995 = vunpack.c.l.bf16 %v979
        %v996 = vunpack.c.l.bf16 %v980
        %v997 = vunpack.c.l.bf16 %v981
        %v998 = vunpack.c.l.bf16 %v982
        %v999 = vunpack.c.l.bf16 %v983
        %v1000 = vunpack.c.l.bf16 %v984
        %v1001 = vunpack.c.l.bf16 %v985
        %v1002 = vunpack.c.l.bf16 %v986
        %v1003 = vunpack.c.l.bf16 %v987
        %v1004 = vunpack.c.l.bf16 %v988
        %v1005 = vunpack.c.l.bf16 %v989
        %v1006 = vunpack.c.l.bf16 %v990
        %v1007 = vunpack.c.l.bf16 %v991
        %v1008 = vunpack.c.l.bf16 %v992
        %v1009 = vunpack.c.l.bf16 %v993
        %v1026 = vrot.slane %v994, 1
        %v1027 = vrot.slane %v995, 1
        %v1028 = vsel %vm436, %v1026, %v1027
        %v1029 = vrot.slane %v996, 1
        %v1030 = vrot.slane %v997, 1
        %v1031 = vsel %vm436, %v1029, %v1030
        %v1032 = vrot.slane %v998, 1
        %v1033 = vrot.slane %v999, 1
        %v1034 = vsel %vm436, %v1032, %v1033
        %v1035 = vrot.slane %v1000, 1
        %v1036 = vrot.slane %v1001, 1
        %v1037 = vsel %vm436, %v1035, %v1036
        %v1038 = vrot.slane %v1002, 1
        %v1039 = vrot.slane %v1003, 1
        %v1040 = vsel %vm436, %v1038, %v1039
        %v1041 = vrot.slane %v1004, 1
        %v1042 = vrot.slane %v1005, 1
        %v1043 = vsel %vm436, %v1041, %v1042
        %v1044 = vrot.slane %v1006, 1
        %v1045 = vrot.slane %v1007, 1
        %v1046 = vsel %vm436, %v1044, %v1045
        %v1047 = vrot.slane %v1008, 1
        %v1048 = vrot.slane %v1009, 1
        %v1049 = vsel %vm436, %v1047, %v1048
        %v1058 = vpack.c.bf16 %v1031, %v1028
        %v1059 = vpack.c.bf16 %v1037, %v1034
        %v1060 = vpack.c.bf16 %v1043, %v1040
        %v1061 = vpack.c.bf16 %v1049, %v1046
        %s1062 = sadd.s32 %s219, 4
        %s1063 = smul.u32 %s1062, 16
        %s1064 = smul.addr %s1063, 4
        %s1065 = scalar_lea.vmem [#allocation6], %s1064
        %v1066 = vld [vmem:[%s1065] sm:$0xf]
        %v1067 = vld [vmem:[%s1065 + $0x4] sm:$0xf]
        %v1068 = vld [vmem:[%s1065 + $0x8] sm:$0xf]
        %v1069 = vld [vmem:[%s1065 + $0xc] sm:$0xf]
        %v1070 = vld [vmem:[%s1065 + $0x10] sm:$0xf]
        %v1071 = vld [vmem:[%s1065 + $0x14] sm:$0xf]
        %v1072 = vld [vmem:[%s1065 + $0x18] sm:$0xf]
        %v1073 = vld [vmem:[%s1065 + $0x1c] sm:$0xf]
        %v1074 = vld [vmem:[%s1065 + $0x20] sm:$0xf]
        %v1075 = vld [vmem:[%s1065 + $0x24] sm:$0xf]
        %v1076 = vld [vmem:[%s1065 + $0x28] sm:$0xf]
        %v1077 = vld [vmem:[%s1065 + $0x2c] sm:$0xf]
        %v1078 = vld [vmem:[%s1065 + $0x30] sm:$0xf]
        %v1079 = vld [vmem:[%s1065 + $0x34] sm:$0xf]
        %v1080 = vld [vmem:[%s1065 + $0x38] sm:$0xf]
        %v1081 = vld [vmem:[%s1065 + $0x3c] sm:$0xf]
        %v1098 = vunpack.c.l.b16 %v1066
        %v1099 = vunpack.c.l.b16 %v1067
        %v1100 = vunpack.c.l.b16 %v1068
        %v1101 = vunpack.c.l.b16 %v1069
        %v1102 = vunpack.c.l.b16 %v1070
        %v1103 = vunpack.c.l.b16 %v1071
        %v1104 = vunpack.c.l.b16 %v1072
        %v1105 = vunpack.c.l.b16 %v1073
        %v1106 = vunpack.c.l.b16 %v1074
        %v1107 = vunpack.c.l.b16 %v1075
        %v1108 = vunpack.c.l.b16 %v1076
        %v1109 = vunpack.c.l.b16 %v1077
        %v1110 = vunpack.c.l.b16 %v1078
        %v1111 = vunpack.c.l.b16 %v1079
        %v1112 = vunpack.c.l.b16 %v1080
        %v1113 = vunpack.c.l.b16 %v1081
        %v1114 = vpack.c.b16 %v1099, %v1098
        %v1115 = vpack.c.b16 %v1101, %v1100
        %v1116 = vpack.c.b16 %v1103, %v1102
        %v1117 = vpack.c.b16 %v1105, %v1104
        %v1118 = vpack.c.b16 %v1107, %v1106
        %v1119 = vpack.c.b16 %v1109, %v1108
        %v1120 = vpack.c.b16 %v1111, %v1110
        %v1121 = vpack.c.b16 %v1113, %v1112
        %1130 = vmatprep.subr.bf16.mxu0 0
        %1131 = vmatpush1.bf16.msra.mxu0 %v1114
        %1132 = vmatprep.subr.bf16.mxu0 0
        %1133 = vmatpush1.bf16.msra.mxu0 %v1115
        %1134 = vmatprep.subr.bf16.mxu0 0
        %1135 = vmatpush1.bf16.msra.mxu0 %v1116
        %1136 = vmatprep.subr.bf16.mxu0 0
        %1137 = vmatpush1.bf16.msra.mxu0 %v1117
        %1138 = vmatprep.subr.bf16.mxu0 0
        %1139 = vmatpush1.bf16.msra.mxu0 %v1118
        %1140 = vmatprep.subr.bf16.mxu0 0
        %1141 = vmatpush1.bf16.msra.mxu0 %v1119
        %1142 = vmatprep.subr.bf16.mxu0 0
        %1143 = vmatpush1.bf16.msra.mxu0 %v1120
        %1144 = vmatprep.subr.bf16.mxu0 0
        %1145 = vmatpush1.bf16.msra.mxu0 %v1121
        %1146 = vmatprep.subr.bf16.mxu0 0
        %1147 = vmatpush1.bf16.msra.mxu0 0
        %1148 = vmatprep.subr.bf16.mxu0 0
        %1149 = vmatpush1.bf16.msra.mxu0 0
        %1150 = vmatprep.subr.bf16.mxu0 0
        %1151 = vmatpush1.bf16.msra.mxu0 0
        %1152 = vmatprep.subr.bf16.mxu0 0
        %1153 = vmatpush1.bf16.msra.mxu0 0
        %1154 = vmatprep.subr.bf16.mxu0 0
        %1155 = vmatpush1.bf16.msra.mxu0 0
        %1156 = vmatprep.subr.bf16.mxu0 0
        %1157 = vmatpush1.bf16.msra.mxu0 0
        %1158 = vmatprep.subr.bf16.mxu0 0
        %1159 = vmatpush1.bf16.msra.mxu0 0
        %1160 = vmatprep.subr.bf16.mxu0 0
        %1161 = vmatpush1.bf16.msra.mxu0 0
        %1162 = vmatprep.mubr.bf16.mxu0 0
        %1163 = vmatmul.mubr.bf16.gmra.mrb[0].mxu0 %v1058
        %v1164 = vpop.f32.mrb[0].mxu0
        %v1165 = vadd.f32 0.0, %v1164
        %v1166 = vpop.f32.mrb[0].mxu0
        %v1167 = vpop.f32.mrb[0].mxu0
        %v1168 = vadd.f32 0.0, %v1167
        %v1169 = vpop.f32.mrb[0].mxu0
        %1170 = vmatprep.mubr.bf16.mxu0 0
        %1171 = vmatmul.mubr.bf16.gmra.mrb[0].mxu0 %v1059
        %v1172 = vpop.f32.mrb[0].mxu0
        %v1173 = vadd.f32 0.0, %v1172
        %v1174 = vpop.f32.mrb[0].mxu0
        %v1175 = vpop.f32.mrb[0].mxu0
        %v1176 = vadd.f32 0.0, %v1175
        %v1177 = vpop.f32.mrb[0].mxu0
        %1178 = vmatprep.mubr.bf16.mxu0 0
        %1179 = vmatmul.mubr.bf16.gmra.mrb[0].mxu0 %v1060
        %v1180 = vpop.f32.mrb[0].mxu0
        %v1181 = vadd.f32 0.0, %v1180
        %v1182 = vpop.f32.mrb[0].mxu0
        %v1183 = vpop.f32.mrb[0].mxu0
        %v1184 = vadd.f32 0.0, %v1183
        %v1185 = vpop.f32.mrb[0].mxu0
        %1186 = vmatprep.mubr.bf16.mxu0 0
        %1187 = vmatmul.mubr.bf16.gmra.mrb[0].mxu0 %v1061
        %v1188 = vpop.f32.mrb[0].mxu0
        %v1189 = vadd.f32 0.0, %v1188
        %v1190 = vpop.f32.mrb[0].mxu0
        %v1191 = vpop.f32.mrb[0].mxu0
        %v1192 = vadd.f32 0.0, %v1191
        %v1193 = vpop.f32.mrb[0].mxu0
        %1194 = vdwg.mxu0
        %v1195 = vadd.f32 %v970, %v1165
        %v1196 = vadd.f32 %v971, %v1168
        %v1197 = vadd.f32 %v972, %v1173
        %v1198 = vadd.f32 %v973, %v1176
        %v1199 = vadd.f32 %v974, %v1181
        %v1200 = vadd.f32 %v975, %v1184
        %v1201 = vadd.f32 %v976, %v1189
        %v1202 = vadd.f32 %v977, %v1192
        %v1203 = vld [vmem:[%s816] sm:$0xe]
        %v1204 = vld [vmem:[%s816 + $0x8] sm:$0xe]
        %v1205 = vld [vmem:[%s816 + $0x10] sm:$0xe]
        %v1206 = vld [vmem:[%s816 + $0x18] sm:$0xe]
        %v1207 = vld [vmem:[%s816 + $0x20] sm:$0xe]
        %v1208 = vld [vmem:[%s816 + $0x28] sm:$0xe]
        %v1209 = vld [vmem:[%s816 + $0x30] sm:$0xe]
        %v1210 = vld [vmem:[%s816 + $0x38] sm:$0xe]
        %v1211 = vunpack.c.l.bf16 %v1203
        %v1212 = vunpack.c.l.bf16 %v1204
        %v1213 = vunpack.c.l.bf16 %v1205
        %v1214 = vunpack.c.l.bf16 %v1206
        %v1215 = vunpack.c.l.bf16 %v1207
        %v1216 = vunpack.c.l.bf16 %v1208
        %v1217 = vunpack.c.l.bf16 %v1209
        %v1218 = vunpack.c.l.bf16 %v1210
        %v1227 = vrot.slane %v1211, 2
        %v1228 = vrot.slane %v995, 2
        %v1229 = vsel %vm638, %v1227, %v1228
        %v1230 = vrot.slane %v1212, 2
        %v1231 = vrot.slane %v997, 2
        %v1232 = vsel %vm638, %v1230, %v1231
        %v1233 = vrot.slane %v1213, 2
        %v1234 = vrot.slane %v999, 2
        %v1235 = vsel %vm638, %v1233, %v1234
        %v1236 = vrot.slane %v1214, 2
        %v1237 = vrot.slane %v1001, 2
        %v1238 = vsel %vm638, %v1236, %v1237
        %v1239 = vrot.slane %v1215, 2
        %v1240 = vrot.slane %v1003, 2
        %v1241 = vsel %vm638, %v1239, %v1240
        %v1242 = vrot.slane %v1216, 2
        %v1243 = vrot.slane %v1005, 2
        %v1244 = vsel %vm638, %v1242, %v1243
        %v1245 = vrot.slane %v1217, 2
        %v1246 = vrot.slane %v1007, 2
        %v1247 = vsel %vm638, %v1245, %v1246
        %v1248 = vrot.slane %v1218, 2
        %v1249 = vrot.slane %v1009, 2
        %v1250 = vsel %vm638, %v1248, %v1249
        %v1259 = vpack.c.bf16 %v1232, %v1229
        %v1260 = vpack.c.bf16 %v1238, %v1235
        %v1261 = vpack.c.bf16 %v1244, %v1241
        %v1262 = vpack.c.bf16 %v1250, %v1247
        %s1263 = sadd.s32 %s219, 5
        %s1264 = smul.u32 %s1263, 16
        %s1265 = smul.addr %s1264, 4
        %s1266 = scalar_lea.vmem [#allocation6], %s1265
        %v1267 = vld [vmem:[%s1266] sm:$0xf]
        %v1268 = vld [vmem:[%s1266 + $0x4] sm:$0xf]
        %v1269 = vld [vmem:[%s1266 + $0x8] sm:$0xf]
        %v1270 = vld [vmem:[%s1266 + $0xc] sm:$0xf]
        %v1271 = vld [vmem:[%s1266 + $0x10] sm:$0xf]
        %v1272 = vld [vmem:[%s1266 + $0x14] sm:$0xf]
        %v1273 = vld [vmem:[%s1266 + $0x18] sm:$0xf]
        %v1274 = vld [vmem:[%s1266 + $0x1c] sm:$0xf]
        %v1275 = vld [vmem:[%s1266 + $0x20] sm:$0xf]
        %v1276 = vld [vmem:[%s1266 + $0x24] sm:$0xf]
        %v1277 = vld [vmem:[%s1266 + $0x28] sm:$0xf]
        %v1278 = vld [vmem:[%s1266 + $0x2c] sm:$0xf]
        %v1279 = vld [vmem:[%s1266 + $0x30] sm:$0xf]
        %v1280 = vld [vmem:[%s1266 + $0x34] sm:$0xf]
        %v1281 = vld [vmem:[%s1266 + $0x38] sm:$0xf]
        %v1282 = vld [vmem:[%s1266 + $0x3c] sm:$0xf]
        %v1299 = vunpack.c.l.b16 %v1267
        %v1300 = vunpack.c.l.b16 %v1268
        %v1301 = vunpack.c.l.b16 %v1269
        %v1302 = vunpack.c.l.b16 %v1270
        %v1303 = vunpack.c.l.b16 %v1271
        %v1304 = vunpack.c.l.b16 %v1272
        %v1305 = vunpack.c.l.b16 %v1273
        %v1306 = vunpack.c.l.b16 %v1274
        %v1307 = vunpack.c.l.b16 %v1275
        %v1308 = vunpack.c.l.b16 %v1276
        %v1309 = vunpack.c.l.b16 %v1277
        %v1310 = vunpack.c.l.b16 %v1278
        %v1311 = vunpack.c.l.b16 %v1279
        %v1312 = vunpack.c.l.b16 %v1280
        %v1313 = vunpack.c.l.b16 %v1281
        %v1314 = vunpack.c.l.b16 %v1282
        %v1315 = vpack.c.b16 %v1300, %v1299
        %v1316 = vpack.c.b16 %v1302, %v1301
        %v1317 = vpack.c.b16 %v1304, %v1303
        %v1318 = vpack.c.b16 %v1306, %v1305
        %v1319 = vpack.c.b16 %v1308, %v1307
        %v1320 = vpack.c.b16 %v1310, %v1309
        %v1321 = vpack.c.b16 %v1312, %v1311
        %v1322 = vpack.c.b16 %v1314, %v1313
        %1331 = vmatprep.subr.bf16.mxu0 0
        %1332 = vmatpush1.bf16.msra.mxu0 %v1315
        %1333 = vmatprep.subr.bf16.mxu0 0
        %1334 = vmatpush1.bf16.msra.mxu0 %v1316
        %1335 = vmatprep.subr.bf16.mxu0 0
        %1336 = vmatpush1.bf16.msra.mxu0 %v1317
        %1337 = vmatprep.subr.bf16.mxu0 0
        %1338 = vmatpush1.bf16.msra.mxu0 %v1318
        %1339 = vmatprep.subr.bf16.mxu0 0
        %1340 = vmatpush1.bf16.msra.mxu0 %v1319
        %1341 = vmatprep.subr.bf16.mxu0 0
        %1342 = vmatpush1.bf16.msra.mxu0 %v1320
        %1343 = vmatprep.subr.bf16.mxu0 0
        %1344 = vmatpush1.bf16.msra.mxu0 %v1321
        %1345 = vmatprep.subr.bf16.mxu0 0
        %1346 = vmatpush1.bf16.msra.mxu0 %v1322
        %1347 = vmatprep.subr.bf16.mxu0 0
        %1348 = vmatpush1.bf16.msra.mxu0 0
        %1349 = vmatprep.subr.bf16.mxu0 0
        %1350 = vmatpush1.bf16.msra.mxu0 0
        %1351 = vmatprep.subr.bf16.mxu0 0
        %1352 = vmatpush1.bf16.msra.mxu0 0
        %1353 = vmatprep.subr.bf16.mxu0 0
        %1354 = vmatpush1.bf16.msra.mxu0 0
        %1355 = vmatprep.subr.bf16.mxu0 0
        %1356 = vmatpush1.bf16.msra.mxu0 0
        %1357 = vmatprep.subr.bf16.mxu0 0
        %1358 = vmatpush1.bf16.msra.mxu0 0
        %1359 = vmatprep.subr.bf16.mxu0 0
        %1360 = vmatpush1.bf16.msra.mxu0 0
        %1361 = vmatprep.subr.bf16.mxu0 0
        %1362 = vmatpush1.bf16.msra.mxu0 0
        %1363 = vmatprep.mubr.bf16.mxu0 0
        %1364 = vmatmul.mubr.bf16.gmra.mrb[0].mxu0 %v1259
        %v1365 = vpop.f32.mrb[0].mxu0
        %v1366 = vadd.f32 0.0, %v1365
        %v1367 = vpop.f32.mrb[0].mxu0
        %v1368 = vpop.f32.mrb[0].mxu0
        %v1369 = vadd.f32 0.0, %v1368
        %v1370 = vpop.f32.mrb[0].mxu0
        %1371 = vmatprep.mubr.bf16.mxu0 0
        %1372 = vmatmul.mubr.bf16.gmra.mrb[0].mxu0 %v1260
        %v1373 = vpop.f32.mrb[0].mxu0
        %v1374 = vadd.f32 0.0, %v1373
        %v1375 = vpop.f32.mrb[0].mxu0
        %v1376 = vpop.f32.mrb[0].mxu0
        %v1377 = vadd.f32 0.0, %v1376
        %v1378 = vpop.f32.mrb[0].mxu0
        %1379 = vmatprep.mubr.bf16.mxu0 0
        %1380 = vmatmul.mubr.bf16.gmra.mrb[0].mxu0 %v1261
        %v1381 = vpop.f32.mrb[0].mxu0
        %v1382 = vadd.f32 0.0, %v1381
        %v1383 = vpop.f32.mrb[0].mxu0
        %v1384 = vpop.f32.mrb[0].mxu0
        %v1385 = vadd.f32 0.0, %v1384
        %v1386 = vpop.f32.mrb[0].mxu0
        %1387 = vmatprep.mubr.bf16.mxu0 0
        %1388 = vmatmul.mubr.bf16.gmra.mrb[0].mxu0 %v1262
        %v1389 = vpop.f32.mrb[0].mxu0
        %v1390 = vadd.f32 0.0, %v1389
        %v1391 = vpop.f32.mrb[0].mxu0
        %v1392 = vpop.f32.mrb[0].mxu0
        %v1393 = vadd.f32 0.0, %v1392
        %v1394 = vpop.f32.mrb[0].mxu0
        %1395 = vdwg.mxu0
        %v1396 = vadd.f32 %v1195, %v1366
        %v1397 = vadd.f32 %v1196, %v1369
        %v1398 = vadd.f32 %v1197, %v1374
        %v1399 = vadd.f32 %v1198, %v1377
        %v1400 = vadd.f32 %v1199, %v1382
        %v1401 = vadd.f32 %v1200, %v1385
        %v1402 = vadd.f32 %v1201, %v1390
        %v1403 = vadd.f32 %v1202, %v1393
        %s1404 = scalar_lea.vmem %s180, 16 [#allocation3]
        %v1405 = vld [vmem:[%s1404] sm:$0xf]
        %v1406 = vld [vmem:[%s1404 + $0x8] sm:$0xf]
        %v1407 = vld [vmem:[%s1404 + $0x10] sm:$0xf]
        %v1408 = vld [vmem:[%s1404 + $0x18] sm:$0xf]
        %v1409 = vld [vmem:[%s1404 + $0x20] sm:$0xf]
        %v1410 = vld [vmem:[%s1404 + $0x28] sm:$0xf]
        %v1411 = vld [vmem:[%s1404 + $0x30] sm:$0xf]
        %v1412 = vld [vmem:[%s1404 + $0x38] sm:$0xf]
        %v1413 = vunpack.c.l.bf16 %v1405
        %v1414 = vunpack.c.l.bf16 %v1406
        %v1415 = vunpack.c.l.bf16 %v1407
        %v1416 = vunpack.c.l.bf16 %v1408
        %v1417 = vunpack.c.l.bf16 %v1409
        %v1418 = vunpack.c.l.bf16 %v1410
        %v1419 = vunpack.c.l.bf16 %v1411
        %v1420 = vunpack.c.l.bf16 %v1412
        %v1421 = vpack.c.bf16 %v1414, %v1413
        %v1422 = vpack.c.bf16 %v1416, %v1415
        %v1423 = vpack.c.bf16 %v1418, %v1417
        %v1424 = vpack.c.bf16 %v1420, %v1419
        %s1425 = sadd.s32 %s219, 6
        %s1426 = smul.u32 %s1425, 16
        %s1427 = smul.addr %s1426, 4
        %s1428 = scalar_lea.vmem [#allocation6], %s1427
        %v1429 = vld [vmem:[%s1428] sm:$0xf]
        %v1430 = vld [vmem:[%s1428 + $0x4] sm:$0xf]
        %v1431 = vld [vmem:[%s1428 + $0x8] sm:$0xf]
        %v1432 = vld [vmem:[%s1428 + $0xc] sm:$0xf]
        %v1433 = vld [vmem:[%s1428 + $0x10] sm:$0xf]
        %v1434 = vld [vmem:[%s1428 + $0x14] sm:$0xf]
        %v1435 = vld [vmem:[%s1428 + $0x18] sm:$0xf]
        %v1436 = vld [vmem:[%s1428 + $0x1c] sm:$0xf]
        %v1437 = vld [vmem:[%s1428 + $0x20] sm:$0xf]
        %v1438 = vld [vmem:[%s1428 + $0x24] sm:$0xf]
        %v1439 = vld [vmem:[%s1428 + $0x28] sm:$0xf]
        %v1440 = vld [vmem:[%s1428 + $0x2c] sm:$0xf]
        %v1441 = vld [vmem:[%s1428 + $0x30] sm:$0xf]
        %v1442 = vld [vmem:[%s1428 + $0x34] sm:$0xf]
        %v1443 = vld [vmem:[%s1428 + $0x38] sm:$0xf]
        %v1444 = vld [vmem:[%s1428 + $0x3c] sm:$0xf]
        %v1461 = vunpack.c.l.b16 %v1429
        %v1462 = vunpack.c.l.b16 %v1430
        %v1463 = vunpack.c.l.b16 %v1431
        %v1464 = vunpack.c.l.b16 %v1432
        %v1465 = vunpack.c.l.b16 %v1433
        %v1466 = vunpack.c.l.b16 %v1434
        %v1467 = vunpack.c.l.b16 %v1435
        %v1468 = vunpack.c.l.b16 %v1436
        %v1469 = vunpack.c.l.b16 %v1437
        %v1470 = vunpack.c.l.b16 %v1438
        %v1471 = vunpack.c.l.b16 %v1439
        %v1472 = vunpack.c.l.b16 %v1440
        %v1473 = vunpack.c.l.b16 %v1441
        %v1474 = vunpack.c.l.b16 %v1442
        %v1475 = vunpack.c.l.b16 %v1443
        %v1476 = vunpack.c.l.b16 %v1444
        %v1477 = vpack.c.b16 %v1462, %v1461
        %v1478 = vpack.c.b16 %v1464, %v1463
        %v1479 = vpack.c.b16 %v1466, %v1465
        %v1480 = vpack.c.b16 %v1468, %v1467
        %v1481 = vpack.c.b16 %v1470, %v1469
        %v1482 = vpack.c.b16 %v1472, %v1471
        %v1483 = vpack.c.b16 %v1474, %v1473
        %v1484 = vpack.c.b16 %v1476, %v1475
        %1493 = vmatprep.subr.bf16.mxu0 0
        %1494 = vmatpush1.bf16.msra.mxu0 %v1477
        %1495 = vmatprep.subr.bf16.mxu0 0
        %1496 = vmatpush1.bf16.msra.mxu0 %v1478
        %1497 = vmatprep.subr.bf16.mxu0 0
        %1498 = vmatpush1.bf16.msra.mxu0 %v1479
        %1499 = vmatprep.subr.bf16.mxu0 0
        %1500 = vmatpush1.bf16.msra.mxu0 %v1480
        %1501 = vmatprep.subr.bf16.mxu0 0
        %1502 = vmatpush1.bf16.msra.mxu0 %v1481
        %1503 = vmatprep.subr.bf16.mxu0 0
        %1504 = vmatpush1.bf16.msra.mxu0 %v1482
        %1505 = vmatprep.subr.bf16.mxu0 0
        %1506 = vmatpush1.bf16.msra.mxu0 %v1483
        %1507 = vmatprep.subr.bf16.mxu0 0
        %1508 = vmatpush1.bf16.msra.mxu0 %v1484
        %1509 = vmatprep.subr.bf16.mxu0 0
        %1510 = vmatpush1.bf16.msra.mxu0 0
        %1511 = vmatprep.subr.bf16.mxu0 0
        %1512 = vmatpush1.bf16.msra.mxu0 0
        %1513 = vmatprep.subr.bf16.mxu0 0
        %1514 = vmatpush1.bf16.msra.mxu0 0
        %1515 = vmatprep.subr.bf16.mxu0 0
        %1516 = vmatpush1.bf16.msra.mxu0 0
        %1517 = vmatprep.subr.bf16.mxu0 0
        %1518 = vmatpush1.bf16.msra.mxu0 0
        %1519 = vmatprep.subr.bf16.mxu0 0
        %1520 = vmatpush1.bf16.msra.mxu0 0
        %1521 = vmatprep.subr.bf16.mxu0 0
        %1522 = vmatpush1.bf16.msra.mxu0 0
        %1523 = vmatprep.subr.bf16.mxu0 0
        %1524 = vmatpush1.bf16.msra.mxu0 0
        %1525 = vmatprep.mubr.bf16.mxu0 0
        %1526 = vmatmul.mubr.bf16.gmra.mrb[0].mxu0 %v1421
        %v1527 = vpop.f32.mrb[0].mxu0
        %v1528 = vadd.f32 0.0, %v1527
        %v1529 = vpop.f32.mrb[0].mxu0
        %v1530 = vpop.f32.mrb[0].mxu0
        %v1531 = vadd.f32 0.0, %v1530
        %v1532 = vpop.f32.mrb[0].mxu0
        %1533 = vmatprep.mubr.bf16.mxu0 0
        %1534 = vmatmul.mubr.bf16.gmra.mrb[0].mxu0 %v1422
        %v1535 = vpop.f32.mrb[0].mxu0
        %v1536 = vadd.f32 0.0, %v1535
        %v1537 = vpop.f32.mrb[0].mxu0
        %v1538 = vpop.f32.mrb[0].mxu0
        %v1539 = vadd.f32 0.0, %v1538
        %v1540 = vpop.f32.mrb[0].mxu0
        %1541 = vmatprep.mubr.bf16.mxu0 0
        %1542 = vmatmul.mubr.bf16.gmra.mrb[0].mxu0 %v1423
        %v1543 = vpop.f32.mrb[0].mxu0
        %v1544 = vadd.f32 0.0, %v1543
        %v1545 = vpop.f32.mrb[0].mxu0
        %v1546 = vpop.f32.mrb[0].mxu0
        %v1547 = vadd.f32 0.0, %v1546
        %v1548 = vpop.f32.mrb[0].mxu0
        %1549 = vmatprep.mubr.bf16.mxu0 0
        %1550 = vmatmul.mubr.bf16.gmra.mrb[0].mxu0 %v1424
        %v1551 = vpop.f32.mrb[0].mxu0
        %v1552 = vadd.f32 0.0, %v1551
        %v1553 = vpop.f32.mrb[0].mxu0
        %v1554 = vpop.f32.mrb[0].mxu0
        %v1555 = vadd.f32 0.0, %v1554
        %v1556 = vpop.f32.mrb[0].mxu0
        %1557 = vdwg.mxu0
        %v1558 = vadd.f32 %v1396, %v1528
        %v1559 = vadd.f32 %v1397, %v1531
        %v1560 = vadd.f32 %v1398, %v1536
        %v1561 = vadd.f32 %v1399, %v1539
        %v1562 = vadd.f32 %v1400, %v1544
        %v1563 = vadd.f32 %v1401, %v1547
        %v1564 = vadd.f32 %v1402, %v1552
        %v1565 = vadd.f32 %v1403, %v1555
        %v1566 = vld [vmem:[%s1404] sm:$0xf]
        %v1567 = vld [vmem:[%s1404 + $0x4] sm:$0x1]
        %v1568 = vld [vmem:[%s1404 + $0x8] sm:$0xf]
        %v1569 = vld [vmem:[%s1404 + $0xc] sm:$0x1]
        %v1570 = vld [vmem:[%s1404 + $0x10] sm:$0xf]
        %v1571 = vld [vmem:[%s1404 + $0x14] sm:$0x1]
        %v1572 = vld [vmem:[%s1404 + $0x18] sm:$0xf]
        %v1573 = vld [vmem:[%s1404 + $0x1c] sm:$0x1]
        %v1574 = vld [vmem:[%s1404 + $0x20] sm:$0xf]
        %v1575 = vld [vmem:[%s1404 + $0x24] sm:$0x1]
        %v1576 = vld [vmem:[%s1404 + $0x28] sm:$0xf]
        %v1577 = vld [vmem:[%s1404 + $0x2c] sm:$0x1]
        %v1578 = vld [vmem:[%s1404 + $0x30] sm:$0xf]
        %v1579 = vld [vmem:[%s1404 + $0x34] sm:$0x1]
        %v1580 = vld [vmem:[%s1404 + $0x38] sm:$0xf]
        %v1581 = vld [vmem:[%s1404 + $0x3c] sm:$0x1]
        %v1582 = vunpack.c.l.bf16 %v1566
        %v1583 = vunpack.c.l.bf16 %v1567
        %v1584 = vunpack.c.l.bf16 %v1568
        %v1585 = vunpack.c.l.bf16 %v1569
        %v1586 = vunpack.c.l.bf16 %v1570
        %v1587 = vunpack.c.l.bf16 %v1571
        %v1588 = vunpack.c.l.bf16 %v1572
        %v1589 = vunpack.c.l.bf16 %v1573
        %v1590 = vunpack.c.l.bf16 %v1574
        %v1591 = vunpack.c.l.bf16 %v1575
        %v1592 = vunpack.c.l.bf16 %v1576
        %v1593 = vunpack.c.l.bf16 %v1577
        %v1594 = vunpack.c.l.bf16 %v1578
        %v1595 = vunpack.c.l.bf16 %v1579
        %v1596 = vunpack.c.l.bf16 %v1580
        %v1597 = vunpack.c.l.bf16 %v1581
        %v1614 = vrot.slane %v1582, 1
        %v1615 = vrot.slane %v1583, 1
        %v1616 = vsel %vm436, %v1614, %v1615
        %v1617 = vrot.slane %v1584, 1
        %v1618 = vrot.slane %v1585, 1
        %v1619 = vsel %vm436, %v1617, %v1618
        %v1620 = vrot.slane %v1586, 1
        %v1621 = vrot.slane %v1587, 1
        %v1622 = vsel %vm436, %v1620, %v1621
        %v1623 = vrot.slane %v1588, 1
        %v1624 = vrot.slane %v1589, 1
        %v1625 = vsel %vm436, %v1623, %v1624
        %v1626 = vrot.slane %v1590, 1
        %v1627 = vrot.slane %v1591, 1
        %v1628 = vsel %vm436, %v1626, %v1627
        %v1629 = vrot.slane %v1592, 1
        %v1630 = vrot.slane %v1593, 1
        %v1631 = vsel %vm436, %v1629, %v1630
        %v1632 = vrot.slane %v1594, 1
        %v1633 = vrot.slane %v1595, 1
        %v1634 = vsel %vm436, %v1632, %v1633
        %v1635 = vrot.slane %v1596, 1
        %v1636 = vrot.slane %v1597, 1
        %v1637 = vsel %vm436, %v1635, %v1636
        %v1646 = vpack.c.bf16 %v1619, %v1616
        %v1647 = vpack.c.bf16 %v1625, %v1622
        %v1648 = vpack.c.bf16 %v1631, %v1628
        %v1649 = vpack.c.bf16 %v1637, %v1634
        %s1650 = sadd.s32 %s219, 7
        %s1651 = smul.u32 %s1650, 16
        %s1652 = smul.addr %s1651, 4
        %s1653 = scalar_lea.vmem [#allocation6], %s1652
        %v1654 = vld [vmem:[%s1653] sm:$0xf]
        %v1655 = vld [vmem:[%s1653 + $0x4] sm:$0xf]
        %v1656 = vld [vmem:[%s1653 + $0x8] sm:$0xf]
        %v1657 = vld [vmem:[%s1653 + $0xc] sm:$0xf]
        %v1658 = vld [vmem:[%s1653 + $0x10] sm:$0xf]
        %v1659 = vld [vmem:[%s1653 + $0x14] sm:$0xf]
        %v1660 = vld [vmem:[%s1653 + $0x18] sm:$0xf]
        %v1661 = vld [vmem:[%s1653 + $0x1c] sm:$0xf]
        %v1662 = vld [vmem:[%s1653 + $0x20] sm:$0xf]
        %v1663 = vld [vmem:[%s1653 + $0x24] sm:$0xf]
        %v1664 = vld [vmem:[%s1653 + $0x28] sm:$0xf]
        %v1665 = vld [vmem:[%s1653 + $0x2c] sm:$0xf]
        %v1666 = vld [vmem:[%s1653 + $0x30] sm:$0xf]
        %v1667 = vld [vmem:[%s1653 + $0x34] sm:$0xf]
        %v1668 = vld [vmem:[%s1653 + $0x38] sm:$0xf]
        %v1669 = vld [vmem:[%s1653 + $0x3c] sm:$0xf]
        %v1686 = vunpack.c.l.b16 %v1654
        %v1687 = vunpack.c.l.b16 %v1655
        %v1688 = vunpack.c.l.b16 %v1656
        %v1689 = vunpack.c.l.b16 %v1657
        %v1690 = vunpack.c.l.b16 %v1658
        %v1691 = vunpack.c.l.b16 %v1659
        %v1692 = vunpack.c.l.b16 %v1660
        %v1693 = vunpack.c.l.b16 %v1661
        %v1694 = vunpack.c.l.b16 %v1662
        %v1695 = vunpack.c.l.b16 %v1663
        %v1696 = vunpack.c.l.b16 %v1664
        %v1697 = vunpack.c.l.b16 %v1665
        %v1698 = vunpack.c.l.b16 %v1666
        %v1699 = vunpack.c.l.b16 %v1667
        %v1700 = vunpack.c.l.b16 %v1668
        %v1701 = vunpack.c.l.b16 %v1669
        %v1702 = vpack.c.b16 %v1687, %v1686
        %v1703 = vpack.c.b16 %v1689, %v1688
        %v1704 = vpack.c.b16 %v1691, %v1690
        %v1705 = vpack.c.b16 %v1693, %v1692
        %v1706 = vpack.c.b16 %v1695, %v1694
        %v1707 = vpack.c.b16 %v1697, %v1696
        %v1708 = vpack.c.b16 %v1699, %v1698
        %v1709 = vpack.c.b16 %v1701, %v1700
        %1718 = vmatprep.subr.bf16.mxu0 0
        %1719 = vmatpush1.bf16.msra.mxu0 %v1702
        %1720 = vmatprep.subr.bf16.mxu0 0
        %1721 = vmatpush1.bf16.msra.mxu0 %v1703
        %1722 = vmatprep.subr.bf16.mxu0 0
        %1723 = vmatpush1.bf16.msra.mxu0 %v1704
        %1724 = vmatprep.subr.bf16.mxu0 0
        %1725 = vmatpush1.bf16.msra.mxu0 %v1705
        %1726 = vmatprep.subr.bf16.mxu0 0
        %1727 = vmatpush1.bf16.msra.mxu0 %v1706
        %1728 = vmatprep.subr.bf16.mxu0 0
        %1729 = vmatpush1.bf16.msra.mxu0 %v1707
        %1730 = vmatprep.subr.bf16.mxu0 0
        %1731 = vmatpush1.bf16.msra.mxu0 %v1708
        %1732 = vmatprep.subr.bf16.mxu0 0
        %1733 = vmatpush1.bf16.msra.mxu0 %v1709
        %1734 = vmatprep.subr.bf16.mxu0 0
        %1735 = vmatpush1.bf16.msra.mxu0 0
        %1736 = vmatprep.subr.bf16.mxu0 0
        %1737 = vmatpush1.bf16.msra.mxu0 0
        %1738 = vmatprep.subr.bf16.mxu0 0
        %1739 = vmatpush1.bf16.msra.mxu0 0
        %1740 = vmatprep.subr.bf16.mxu0 0
        %1741 = vmatpush1.bf16.msra.mxu0 0
        %1742 = vmatprep.subr.bf16.mxu0 0
        %1743 = vmatpush1.bf16.msra.mxu0 0
        %1744 = vmatprep.subr.bf16.mxu0 0
        %1745 = vmatpush1.bf16.msra.mxu0 0
        %1746 = vmatprep.subr.bf16.mxu0 0
        %1747 = vmatpush1.bf16.msra.mxu0 0
        %1748 = vmatprep.subr.bf16.mxu0 0
        %1749 = vmatpush1.bf16.msra.mxu0 0
        %1750 = vmatprep.mubr.bf16.mxu0 0
        %1751 = vmatmul.mubr.bf16.gmra.mrb[0].mxu0 %v1646
        %v1752 = vpop.f32.mrb[0].mxu0
        %v1753 = vadd.f32 0.0, %v1752
        %v1754 = vpop.f32.mrb[0].mxu0
        %v1755 = vpop.f32.mrb[0].mxu0
        %v1756 = vadd.f32 0.0, %v1755
        %v1757 = vpop.f32.mrb[0].mxu0
        %1758 = vmatprep.mubr.bf16.mxu0 0
        %1759 = vmatmul.mubr.bf16.gmra.mrb[0].mxu0 %v1647
        %v1760 = vpop.f32.mrb[0].mxu0
        %v1761 = vadd.f32 0.0, %v1760
        %v1762 = vpop.f32.mrb[0].mxu0
        %v1763 = vpop.f32.mrb[0].mxu0
        %v1764 = vadd.f32 0.0, %v1763
        %v1765 = vpop.f32.mrb[0].mxu0
        %1766 = vmatprep.mubr.bf16.mxu0 0
        %1767 = vmatmul.mubr.bf16.gmra.mrb[0].mxu0 %v1648
        %v1768 = vpop.f32.mrb[0].mxu0
        %v1769 = vadd.f32 0.0, %v1768
        %v1770 = vpop.f32.mrb[0].mxu0
        %v1771 = vpop.f32.mrb[0].mxu0
        %v1772 = vadd.f32 0.0, %v1771
        %v1773 = vpop.f32.mrb[0].mxu0
        %1774 = vmatprep.mubr.bf16.mxu0 0
        %1775 = vmatmul.mubr.bf16.gmra.mrb[0].mxu0 %v1649
        %v1776 = vpop.f32.mrb[0].mxu0
        %v1777 = vadd.f32 0.0, %v1776
        %v1778 = vpop.f32.mrb[0].mxu0
        %v1779 = vpop.f32.mrb[0].mxu0
        %v1780 = vadd.f32 0.0, %v1779
        %v1781 = vpop.f32.mrb[0].mxu0
        %1782 = vdwg.mxu0
        %v1783 = vadd.f32 %v1558, %v1753
        %v1784 = vadd.f32 %v1559, %v1756
        %v1785 = vadd.f32 %v1560, %v1761
        %v1786 = vadd.f32 %v1561, %v1764
        %v1787 = vadd.f32 %v1562, %v1769
        %v1788 = vadd.f32 %v1563, %v1772
        %v1789 = vadd.f32 %v1564, %v1777
        %v1790 = vadd.f32 %v1565, %v1780
        %v1791 = vld [vmem:[%s1404] sm:$0xe]
        %v1792 = vld [vmem:[%s1404 + $0x8] sm:$0xe]
        %v1793 = vld [vmem:[%s1404 + $0x10] sm:$0xe]
        %v1794 = vld [vmem:[%s1404 + $0x18] sm:$0xe]
        %v1795 = vld [vmem:[%s1404 + $0x20] sm:$0xe]
        %v1796 = vld [vmem:[%s1404 + $0x28] sm:$0xe]
        %v1797 = vld [vmem:[%s1404 + $0x30] sm:$0xe]
        %v1798 = vld [vmem:[%s1404 + $0x38] sm:$0xe]
        %v1799 = vunpack.c.l.bf16 %v1791
        %v1800 = vunpack.c.l.bf16 %v1792
        %v1801 = vunpack.c.l.bf16 %v1793
        %v1802 = vunpack.c.l.bf16 %v1794
        %v1803 = vunpack.c.l.bf16 %v1795
        %v1804 = vunpack.c.l.bf16 %v1796
        %v1805 = vunpack.c.l.bf16 %v1797
        %v1806 = vunpack.c.l.bf16 %v1798
        %v1815 = vrot.slane %v1799, 2
        %v1816 = vrot.slane %v1583, 2
        %v1817 = vsel %vm638, %v1815, %v1816
        %v1818 = vrot.slane %v1800, 2
        %v1819 = vrot.slane %v1585, 2
        %v1820 = vsel %vm638, %v1818, %v1819
        %v1821 = vrot.slane %v1801, 2
        %v1822 = vrot.slane %v1587, 2
        %v1823 = vsel %vm638, %v1821, %v1822
        %v1824 = vrot.slane %v1802, 2
        %v1825 = vrot.slane %v1589, 2
        %v1826 = vsel %vm638, %v1824, %v1825
        %v1827 = vrot.slane %v1803, 2
        %v1828 = vrot.slane %v1591, 2
        %v1829 = vsel %vm638, %v1827, %v1828
        %v1830 = vrot.slane %v1804, 2
        %v1831 = vrot.slane %v1593, 2
        %v1832 = vsel %vm638, %v1830, %v1831
        %v1833 = vrot.slane %v1805, 2
        %v1834 = vrot.slane %v1595, 2
        %v1835 = vsel %vm638, %v1833, %v1834
        %v1836 = vrot.slane %v1806, 2
        %v1837 = vrot.slane %v1597, 2
        %v1838 = vsel %vm638, %v1836, %v1837
        %v1847 = vpack.c.bf16 %v1820, %v1817
        %v1848 = vpack.c.bf16 %v1826, %v1823
        %v1849 = vpack.c.bf16 %v1832, %v1829
        %v1850 = vpack.c.bf16 %v1838, %v1835
        %s1851 = sadd.s32 %s219, 8
        %s1852 = smul.u32 %s1851, 16
        %s1853 = smul.addr %s1852, 4
        %s1854 = scalar_lea.vmem [#allocation6], %s1853
        %v1855 = vld [vmem:[%s1854] sm:$0xf]
        %v1856 = vld [vmem:[%s1854 + $0x4] sm:$0xf]
        %v1857 = vld [vmem:[%s1854 + $0x8] sm:$0xf]
        %v1858 = vld [vmem:[%s1854 + $0xc] sm:$0xf]
        %v1859 = vld [vmem:[%s1854 + $0x10] sm:$0xf]
        %v1860 = vld [vmem:[%s1854 + $0x14] sm:$0xf]
        %v1861 = vld [vmem:[%s1854 + $0x18] sm:$0xf]
        %v1862 = vld [vmem:[%s1854 + $0x1c] sm:$0xf]
        %v1863 = vld [vmem:[%s1854 + $0x20] sm:$0xf]
        %v1864 = vld [vmem:[%s1854 + $0x24] sm:$0xf]
        %v1865 = vld [vmem:[%s1854 + $0x28] sm:$0xf]
        %v1866 = vld [vmem:[%s1854 + $0x2c] sm:$0xf]
        %v1867 = vld [vmem:[%s1854 + $0x30] sm:$0xf]
        %v1868 = vld [vmem:[%s1854 + $0x34] sm:$0xf]
        %v1869 = vld [vmem:[%s1854 + $0x38] sm:$0xf]
        %v1870 = vld [vmem:[%s1854 + $0x3c] sm:$0xf]
        %v1887 = vunpack.c.l.b16 %v1855
        %v1888 = vunpack.c.l.b16 %v1856
        %v1889 = vunpack.c.l.b16 %v1857
        %v1890 = vunpack.c.l.b16 %v1858
        %v1891 = vunpack.c.l.b16 %v1859
        %v1892 = vunpack.c.l.b16 %v1860
        %v1893 = vunpack.c.l.b16 %v1861
        %v1894 = vunpack.c.l.b16 %v1862
        %v1895 = vunpack.c.l.b16 %v1863
        %v1896 = vunpack.c.l.b16 %v1864
        %v1897 = vunpack.c.l.b16 %v1865
        %v1898 = vunpack.c.l.b16 %v1866
        %v1899 = vunpack.c.l.b16 %v1867
        %v1900 = vunpack.c.l.b16 %v1868
        %v1901 = vunpack.c.l.b16 %v1869
        %v1902 = vunpack.c.l.b16 %v1870
        %v1903 = vpack.c.b16 %v1888, %v1887
        %v1904 = vpack.c.b16 %v1890, %v1889
        %v1905 = vpack.c.b16 %v1892, %v1891
        %v1906 = vpack.c.b16 %v1894, %v1893
        %v1907 = vpack.c.b16 %v1896, %v1895
        %v1908 = vpack.c.b16 %v1898, %v1897
        %v1909 = vpack.c.b16 %v1900, %v1899
        %v1910 = vpack.c.b16 %v1902, %v1901
        %1919 = vmatprep.subr.bf16.mxu0 0
        %1920 = vmatpush1.bf16.msra.mxu0 %v1903
        %1921 = vmatprep.subr.bf16.mxu0 0
        %1922 = vmatpush1.bf16.msra.mxu0 %v1904
        %1923 = vmatprep.subr.bf16.mxu0 0
        %1924 = vmatpush1.bf16.msra.mxu0 %v1905
        %1925 = vmatprep.subr.bf16.mxu0 0
        %1926 = vmatpush1.bf16.msra.mxu0 %v1906
        %1927 = vmatprep.subr.bf16.mxu0 0
        %1928 = vmatpush1.bf16.msra.mxu0 %v1907
        %1929 = vmatprep.subr.bf16.mxu0 0
        %1930 = vmatpush1.bf16.msra.mxu0 %v1908
        %1931 = vmatprep.subr.bf16.mxu0 0
        %1932 = vmatpush1.bf16.msra.mxu0 %v1909
        %1933 = vmatprep.subr.bf16.mxu0 0
        %1934 = vmatpush1.bf16.msra.mxu0 %v1910
        %1935 = vmatprep.subr.bf16.mxu0 0
        %1936 = vmatpush1.bf16.msra.mxu0 0
        %1937 = vmatprep.subr.bf16.mxu0 0
        %1938 = vmatpush1.bf16.msra.mxu0 0
        %1939 = vmatprep.subr.bf16.mxu0 0
        %1940 = vmatpush1.bf16.msra.mxu0 0
        %1941 = vmatprep.subr.bf16.mxu0 0
        %1942 = vmatpush1.bf16.msra.mxu0 0
        %1943 = vmatprep.subr.bf16.mxu0 0
        %1944 = vmatpush1.bf16.msra.mxu0 0
        %1945 = vmatprep.subr.bf16.mxu0 0
        %1946 = vmatpush1.bf16.msra.mxu0 0
        %1947 = vmatprep.subr.bf16.mxu0 0
        %1948 = vmatpush1.bf16.msra.mxu0 0
        %1949 = vmatprep.subr.bf16.mxu0 0
        %1950 = vmatpush1.bf16.msra.mxu0 0
        %1951 = vmatprep.mubr.bf16.mxu0 0
        %1952 = vmatmul.mubr.bf16.gmra.mrb[0].mxu0 %v1847
        %v1953 = vpop.f32.mrb[0].mxu0
        %v1954 = vadd.f32 0.0, %v1953
        %v1955 = vpop.f32.mrb[0].mxu0
        %v1956 = vpop.f32.mrb[0].mxu0
        %v1957 = vadd.f32 0.0, %v1956
        %v1958 = vpop.f32.mrb[0].mxu0
        %1959 = vmatprep.mubr.bf16.mxu0 0
        %1960 = vmatmul.mubr.bf16.gmra.mrb[0].mxu0 %v1848
        %v1961 = vpop.f32.mrb[0].mxu0
        %v1962 = vadd.f32 0.0, %v1961
        %v1963 = vpop.f32.mrb[0].mxu0
        %v1964 = vpop.f32.mrb[0].mxu0
        %v1965 = vadd.f32 0.0, %v1964
        %v1966 = vpop.f32.mrb[0].mxu0
        %1967 = vmatprep.mubr.bf16.mxu0 0
        %1968 = vmatmul.mubr.bf16.gmra.mrb[0].mxu0 %v1849
        %v1969 = vpop.f32.mrb[0].mxu0
        %v1970 = vadd.f32 0.0, %v1969
        %v1971 = vpop.f32.mrb[0].mxu0
        %v1972 = vpop.f32.mrb[0].mxu0
        %v1973 = vadd.f32 0.0, %v1972
        %v1974 = vpop.f32.mrb[0].mxu0
        %1975 = vmatprep.mubr.bf16.mxu0 0
        %1976 = vmatmul.mubr.bf16.gmra.mrb[0].mxu0 %v1850
        %v1977 = vpop.f32.mrb[0].mxu0
        %v1978 = vadd.f32 0.0, %v1977
        %v1979 = vpop.f32.mrb[0].mxu0
        %v1980 = vpop.f32.mrb[0].mxu0
        %v1981 = vadd.f32 0.0, %v1980
        %v1982 = vpop.f32.mrb[0].mxu0
        %1983 = vdwg.mxu0
        %v1984 = vadd.f32 %v1783, %v1954
        %v1985 = vadd.f32 %v1784, %v1957
        %v1986 = vadd.f32 %v1785, %v1962
        %v1987 = vadd.f32 %v1786, %v1965
        %v1988 = vadd.f32 %v1787, %v1970
        %v1989 = vadd.f32 %v1788, %v1973
        %v1990 = vadd.f32 %v1789, %v1978
        %v1991 = vadd.f32 %v1790, %v1981
        %1992 = vst [vmem:[#allocation2] sm:$0xff] %v1984
        %1993 = vst [vmem:[#allocation2 + $0x8] sm:$0xff] %v1985
        %1994 = vst [vmem:[#allocation2 + $0x10] sm:$0xff] %v1986
        %1995 = vst [vmem:[#allocation2 + $0x18] sm:$0xff] %v1987
        %1996 = vst [vmem:[#allocation2 + $0x20] sm:$0xff] %v1988
        %1997 = vst [vmem:[#allocation2 + $0x28] sm:$0xff] %v1989
        %1998 = vst [vmem:[#allocation2 + $0x30] sm:$0xff] %v1990
        %1999 = vst [vmem:[#allocation2 + $0x38] sm:$0xff] %v1991
        %p2000 = scmp.eq.s32.totalorder %s27, 2
        // Predicated region
        $region41: #{resnet_block_forward.10} parent=27 // pred_check
          %p2001 = pneg %p2000
        $region42: #{resnet_block_forward.10} parent=27 // pred_check_branch
          %2003 = sbr.rel (%p2001) target = $region44
        $region43: #{resnet_block_forward.10} parent=27 // pred_region
          %v2004 = vld [vmem:[#allocation2] sm:$0xff]
          %v2005 = vld [vmem:[#allocation2 + $0x8] sm:$0xff]
          %v2006 = vld [vmem:[#allocation2 + $0x10] sm:$0xff]
          %v2007 = vld [vmem:[#allocation2 + $0x18] sm:$0xff]
          %v2008 = vld [vmem:[#allocation2 + $0x20] sm:$0xff]
          %v2009 = vld [vmem:[#allocation2 + $0x28] sm:$0xff]
          %v2010 = vld [vmem:[#allocation2 + $0x30] sm:$0xff]
          %v2011 = vld [vmem:[#allocation2 + $0x38] sm:$0xff]
          %2012 = vst [vmem:[%s204] sm:$0xff] %v2004
          %2013 = vst [vmem:[%s204 + $0x8] sm:$0xff] %v2005
          %2014 = vst [vmem:[%s204 + $0x10] sm:$0xff] %v2006
          %2015 = vst [vmem:[%s204 + $0x18] sm:$0xff] %v2007
          %2016 = vst [vmem:[%s204 + $0x20] sm:$0xff] %v2008
          %2017 = vst [vmem:[%s204 + $0x28] sm:$0xff] %v2009
          %2018 = vst [vmem:[%s204 + $0x30] sm:$0xff] %v2010
          %2019 = vst [vmem:[%s204 + $0x38] sm:$0xff] %v2011
        $region44: #{resnet_block_forward.10} parent=27 // pred_fallthru
          _
        %s2020 = sand.u32 %s100, 1
        %s2021 = scalar_lea.sflag [#allocation5], %s2020
        %s2022 = sand.u32 %s100, 1
        %s2023 = smul.addr %s2022, 64
        %s2024 = scalar_lea.vmem [#allocation8], %s2023
        // Predicated region
        $region45: #{resnet_block_forward.10} parent=27 // pred_check
          %p2025 = pneg %p110
        $region46: #{resnet_block_forward.10} parent=27 // pred_check_branch
          %2027 = sbr.rel (%p2025) target = $region48
        $region47: #{resnet_block_forward.10} parent=27 // pred_region
          %s2029 = ssub.s32 1024, 1024
          %2030 = vsyncadd %s2021, %s2029
          %s2031 = smul.addr %s26, 8
          %s2032 = smul.addr %s25, 64
          %s2033 = sadd.s32 %s2031, %s2032
          %s2034 = smul.addr %s2033, 128
          %s2035 = scalar_lea.hbm %s2, %s2034
          %s2036 = sshll.u32 %s2024, 4
          %s2037 = int_to_ptr.vmem [resolvable:$true] %s2036
          %2042 = dma.vmem_to_hbm [thread:$0]  %s2037, 1024, %s2035, %s2021, 128, 128, 8
        $region48: #{resnet_block_forward.10} parent=27 // pred_fallthru
          _
      $region28: #{resnet_block_forward.10} parent=5 // pred_fallthru
        _
      %p2043 = scmp.le.s32.totalorder 2, %s15
      // Predicated region
      $region49: #{resnet_block_forward.10} parent=5 // pred_check
        %p2044 = pneg %p2043
      $region50: #{resnet_block_forward.10} parent=5 // pred_check_branch
        %2046 = sbr.rel (%p2044) target = $region52
      $region51: #{resnet_block_forward.10} parent=5 // pred_region
        %s2047 = ssub.s32 %s15, 2
        // Predicated region
        $region53: #{resnet_block_forward.10} parent=51 // pred_check
          %p2048 = pneg %p116
        $region54: #{resnet_block_forward.10} parent=51 // pred_check_branch
          %2050 = sbr.rel (%p2048) target = $region56
        $region55: #{resnet_block_forward.10} parent=51 // pred_region
          %s2051 = sand.u32 %s101, 1
          %s2052 = scalar_lea.sflag [#allocation5], %s2051
          %s2053 = sand.u32 %s101, 1
          %s2054 = smul.addr %s2053, 64
          %s2055 = scalar_lea.vmem [#allocation8], %s2054
          %2056 = dma.done %s2052, 1024
        $region56: #{resnet_block_forward.10} parent=51 // pred_fallthru
          _
      $region52: #{resnet_block_forward.10} parent=5 // pred_fallthru
        _
    $region6: #{resnet_block_forward.10} parent=1 // loop_footer
      %s19 = sadd.s32 1, %s15
    $region7: #{resnet_block_forward.10} parent=1 // loop_footer_branch
      %14 = sbr.rel target = $region3
    $region8: #{resnet_block_forward.10} parent=1 // loop_exit
      _
    %2057 = vsyncpa [#allocation4], 1
    %s2058 = scalar_lea.sflag [#allocation4], 1
    %2059 = vsyncpa %s2058, 1
    %2060 = vsyncpa [#allocation7], 1
    %2061 = vsyncpa [#allocation5], 1
    %s2062 = scalar_lea.sflag [#allocation5], 1
    %2063 = vsyncpa %s2062, 1

// kernel: resnet_block_forward.15
$region0: #{resnet_block_forward.15}
  #allocation0 [shape = 'u32[]', space=smem, size = 0x4, offset = 0x4, fixed_abs, tag = 'smem constant byte address 0x4 - core index']
  #allocation1 [shape = 'u32[144,128]{1,0:T(1,128)}', space=vmem, size = 0x12000, scoped, tag = 'internal scratch']
  #allocation2 [shape = 'f32[64,128]{1,0:T(8,128)}', space=vmem, size = 0x8000, scoped, tag = 'scratch operand']
  %s0 = inlined_call_operand.hbm [shape: bf16[2,10,10,10,128], index: 0, kind: input, shape index: {}]
  %s1 = inlined_call_operand.hbm [shape: bf16[27,128,128], index: 1, kind: input, shape index: {}]
  %s2 = inlined_call_operand.hbm [shape: f32[2,8,64,128], index: 2, kind: input, shape index: {}]
  %s3 = inlined_call_operand.hbm [shape: f32[2,8,64,128], index: 3, kind: output, shape index: {}]
  %s4 = sld [smem:[#allocation0]]
  $region65: #{resnet_block_forward.15} parent=0
    _
  %s6 = ssub.s32 1, %s4
  %s7 = scalar_select 0, %s6, %s4
  $region1: #{resnet_block_forward.15} parent=0
    #allocation3 [shape = 'u8[81920]{0}', space=vmem, size = 0x14000, scoped, tag = 'input window, operand 0']
    #allocation4 [shape = 's32[2]{0}', space=sflag, size = 0x8, scoped, tag = 'scoped memory for resnet_block_forward.15']
    #allocation5 [shape = 's32[2]{0}', space=sflag, size = 0x8, scoped, tag = 'scoped memory for resnet_block_forward.15']
    #allocation6 [shape = 'u8[884736]{0}', space=vmem, size = 0xd8000, scoped, tag = 'input window, operand 1, single buffered']
    #allocation7 [shape = 's32[1]{0}', space=sflag, size = 0x4, scoped, tag = 'scoped memory for resnet_block_forward.15']
    #allocation8 [shape = 'u8[65536]{0}', space=vmem, size = 0x10000, scoped, tag = 'input window, operand 2']
    #allocation9 [shape = 'u8[65536]{0}', space=vmem, size = 0x10000, scoped, tag = 'output window, operand 0']
    %8 = vsyncpa [#allocation4], 0
    %s9 = scalar_lea.sflag [#allocation4], 1
    %10 = vsyncpa %s9, 0
    %11 = vsyncpa [#allocation7], 0
    %12 = vsyncpa [#allocation5], 0
    %s13 = scalar_lea.sflag [#allocation5], 1
    %14 = vsyncpa %s13, 0
    loop: start=0, step=1, limit=50
    $region2: #{resnet_block_forward.15} parent=1 // loop_pre_header
      _
    $region3: #{resnet_block_forward.15} parent=1 // loop_header
      %s16 = sphi 0, %s20
      %p17 = scmp.ge.s32.totalorder %s16, 50
      %s23 = sphi 0, %s42
      %s24 = sphi 0, %s38
      %s25 = sphi 0, %s34
      %s26 = sphi 0, %s23
      %s27 = sphi 0, %s24
      %s28 = sphi 0, %s25
      %s29 = sphi 0, %s26
      %s30 = sphi 0, %s27
      %s31 = sphi 0, %s28
      %s49 = sphi 0, %s51
      %s52 = sphi 0, %s49
      %s53 = sphi 0, %s52
      %s69 = sphi 0, %s53
      %s73 = sphi 0, %s73
      %s75 = sphi 0, %s73
      %s76 = sphi 0, %s75
      %s90 = sphi 0, %s76
      %s98 = sphi 0, %s100
      %s101 = sphi 0, %s98
      %s102 = sphi 0, %s101
      %s118 = sphi 0, %s102
      %s126 = sphi 0, %s128
      %s129 = sphi 0, %s126
      %s130 = sphi 0, %s129
      %s146 = sphi 0, %s130
    $region4: #{resnet_block_forward.15} parent=1 // loop_header_branch
      %19 = sbr.rel (%p17) target = $region8
    $region5: #{resnet_block_forward.15} parent=1 // loop_body
      %s21 = ssub.s32 %s16, 1
      %s22 = ssub.s32 %s16, 2
      %s32 = sadd.s32 1, %s25
      %p33 = scmp.ge.s32.totalorder %s32, 3
      %s34 = scalar_select %p33, 0, %s32
      %s35 = sadd.s32 1, %s24
      %s36 = scalar_select %p33, %s35, %s24
      %p37 = scmp.ge.s32.totalorder %s36, 8
      %s38 = scalar_select %p37, 0, %s36
      %s39 = sadd.s32 1, %s23
      %s40 = scalar_select %p37, %s39, %s23
      %p41 = scmp.ge.s32.totalorder %s40, 2
      %s42 = scalar_select %p41, 0, %s40
      %s43 = sadd.s32 %s24, %s25
      %s44 = sadd.s32 %s38, %s34
      %s45 = ssub.s32 %s23, %s42
      %s46 = ssub.s32 %s43, %s44
      %s47 = sor.u32 %s45, %s46
      %p48 = scmp.eq.s32.totalorder %s47, 0
      %s50 = sadd.s32 %s49, 1
      %s51 = scalar_select %p48, %s49, %s50
      %p54 = pneg %p48
      %p55 = scmp.eq.s32.totalorder %s16, 47
      %p56 = por %p54, %p55
      %p57 = scmp.ne.s32.totalorder %s49, %s52
      %p58 = scmp.eq.s32.totalorder %s16, 0
      %p59 = por %p57, %p58
      %p60 = scmp.ne.s32.totalorder %s49, %s52
      %p61 = scmp.eq.s32.totalorder %s21, 47
      %p62 = por %p60, %p61
      %p63 = scmp.ne.s32.totalorder %s52, %s53
      %p64 = scmp.eq.s32.totalorder %s21, 0
      %p65 = por %p63, %p64
      %p66 = scmp.ne.s32.totalorder %s52, %s53
      %p67 = scmp.eq.s32.totalorder %s22, 47
      %p68 = por %p66, %p67
      %p70 = scmp.ne.s32.totalorder %s53, %s69
      %p71 = scmp.eq.s32.totalorder %s22, 0
      %p72 = por %p70, %p71
      %s74 = sadd.s32 %s73, 1
      %p77 = scmp.eq.s32.totalorder %s16, 47
      %p78 = scmp.ne.s32.totalorder %s73, %s75
      %p79 = scmp.eq.s32.totalorder %s16, 0
      %p80 = por %p78, %p79
      %p81 = scmp.ne.s32.totalorder %s73, %s75
      %p82 = scmp.eq.s32.totalorder %s21, 47
      %p83 = por %p81, %p82
      %p84 = scmp.ne.s32.totalorder %s75, %s76
      %p85 = scmp.eq.s32.totalorder %s21, 0
      %p86 = por %p84, %p85
      %p87 = scmp.ne.s32.totalorder %s75, %s76
      %p88 = scmp.eq.s32.totalorder %s22, 47
      %p89 = por %p87, %p88
      %p91 = scmp.ne.s32.totalorder %s76, %s90
      %p92 = scmp.eq.s32.totalorder %s22, 0
      %p93 = por %p91, %p92
      %s94 = ssub.s32 %s23, %s42
      %s95 = ssub.s32 %s24, %s38
      %s96 = sor.u32 %s94, %s95
      %p97 = scmp.eq.s32.totalorder %s96, 0
      %s99 = sadd.s32 %s98, 1
      %s100 = scalar_select %p97, %s98, %s99
      %p103 = pneg %p97
      %p104 = scmp.eq.s32.totalorder %s16, 47
      %p105 = por %p103, %p104
      %p106 = scmp.ne.s32.totalorder %s98, %s101
      %p107 = scmp.eq.s32.totalorder %s16, 0
      %p108 = por %p106, %p107
      %p109 = scmp.ne.s32.totalorder %s98, %s101
      %p110 = scmp.eq.s32.totalorder %s21, 47
      %p111 = por %p109, %p110
      %p112 = scmp.ne.s32.totalorder %s101, %s102
      %p113 = scmp.eq.s32.totalorder %s21, 0
      %p114 = por %p112, %p113
      %p115 = scmp.ne.s32.totalorder %s101, %s102
      %p116 = scmp.eq.s32.totalorder %s22, 47
      %p117 = por %p115, %p116
      %p119 = scmp.ne.s32.totalorder %s102, %s118
      %p120 = scmp.eq.s32.totalorder %s22, 0
      %p121 = por %p119, %p120
      %s122 = ssub.s32 %s23, %s42
      %s123 = ssub.s32 %s24, %s38
      %s124 = sor.u32 %s122, %s123
      %p125 = scmp.eq.s32.totalorder %s124, 0
      %s127 = sadd.s32 %s126, 1
      %s128 = scalar_select %p125, %s126, %s127
      %p131 = pneg %p125
      %p132 = scmp.eq.s32.totalorder %s16, 47
      %p133 = por %p131, %p132
      %p134 = scmp.ne.s32.totalorder %s126, %s129
      %p135 = scmp.eq.s32.totalorder %s16, 0
      %p136 = por %p134, %p135
      %p137 = scmp.ne.s32.totalorder %s126, %s129
      %p138 = scmp.eq.s32.totalorder %s21, 47
      %p139 = por %p137, %p138
      %p140 = scmp.ne.s32.totalorder %s129, %s130
      %p141 = scmp.eq.s32.totalorder %s21, 0
      %p142 = por %p140, %p141
      %p143 = scmp.ne.s32.totalorder %s129, %s130
      %p144 = scmp.eq.s32.totalorder %s22, 47
      %p145 = por %p143, %p144
      %p147 = scmp.ne.s32.totalorder %s130, %s146
      %p148 = scmp.eq.s32.totalorder %s22, 0
      %p149 = por %p147, %p148
      %p150 = scmp.le.s32.totalorder 1, %s16
      %p151 = scmp.lt.s32.totalorder %s16, 49
      %p152 = pnand %p150, %p151
      %p153 = pneg %p152
      // Predicated region
      $region9: #{resnet_block_forward.15} parent=5 // pred_check
        _
      $region10: #{resnet_block_forward.15} parent=5 // pred_check_branch
        %155 = sbr.rel (%p152) target = $region12
      $region11: #{resnet_block_forward.15} parent=5 // pred_region
        %s156 = ssub.s32 %s16, 1
        // Predicated region
        $region13: #{resnet_block_forward.15} parent=11 // pred_check
          %p157 = pneg %p86
        $region14: #{resnet_block_forward.15} parent=11 // pred_check_branch
          %159 = sbr.rel (%p157) target = $region16
        $region15: #{resnet_block_forward.15} parent=11 // pred_region
          %s161 = ssub.s32 27648, 27648
          %162 = vsyncadd [#allocation7], %s161
          %s163 = sshll.u32 [#allocation6], 4
          %s164 = int_to_ptr.vmem [resolvable:$true] %s163
          %169 = dma.hbm_to_vmem [thread:$0]  %s1, 27648, %s164, [#allocation7], 64, 64, 4
        $region16: #{resnet_block_forward.15} parent=11 // pred_fallthru
          _
      $region12: #{resnet_block_forward.15} parent=5 // pred_fallthru
        _
      %p170 = scmp.lt.s32.totalorder %s16, 48
      // Predicated region
      $region17: #{resnet_block_forward.15} parent=5 // pred_check
        %p171 = pneg %p170
      $region18: #{resnet_block_forward.15} parent=5 // pred_check_branch
        %173 = sbr.rel (%p171) target = $region20
      $region19: #{resnet_block_forward.15} parent=5 // pred_region
        // Predicated region
        $region21: #{resnet_block_forward.15} parent=19 // pred_check
          %p174 = pneg %p59
        $region22: #{resnet_block_forward.15} parent=19 // pred_check_branch
          %176 = sbr.rel (%p174) target = $region24
        $region23: #{resnet_block_forward.15} parent=19 // pred_region
          %s177 = sand.u32 %s16, 1
          %s178 = scalar_lea.sflag [#allocation4], %s177
          %s179 = sand.u32 %s49, 1
          %s180 = smul.addr %s179, 80
          %s181 = scalar_lea.vmem [#allocation3], %s180
          %s182 = sadd.s32 %s24, %s25
          %s184 = ssub.s32 1280, 1280
          %185 = vsyncadd %s178, %s184
          %s186 = smul.addr %s182, 20
          %s187 = smul.addr %s23, 200
          %s188 = sadd.s32 %s186, %s187
          %s189 = smul.addr %s188, 64
          %s190 = scalar_lea.hbm %s0, %s189
          %s191 = sshll.u32 %s181, 4
          %s192 = int_to_ptr.vmem [resolvable:$true] %s191
          %197 = dma.hbm_to_vmem [thread:$0]  %s190, 1280, %s192, %s178, 64, 64, 4
        $region24: #{resnet_block_forward.15} parent=19 // pred_fallthru
          _
        // Predicated region
        $region25: #{resnet_block_forward.15} parent=19 // pred_check
          %p198 = pneg %p108
        $region26: #{resnet_block_forward.15} parent=19 // pred_check_branch
          %200 = sbr.rel (%p198) target = $region28
        $region27: #{resnet_block_forward.15} parent=19 // pred_region
          %s201 = sand.u32 %s16, 1
          %s202 = scalar_lea.sflag [#allocation4], %s201
          %s203 = sand.u32 %s98, 1
          %s204 = smul.addr %s203, 64
          %s205 = scalar_lea.vmem [#allocation8], %s204
          %s207 = ssub.s32 1024, 1024
          %208 = vsyncadd %s202, %s207
          %s209 = smul.addr %s24, 8
          %s210 = smul.addr %s23, 64
          %s211 = sadd.s32 %s209, %s210
          %s212 = smul.addr %s211, 128
          %s213 = scalar_lea.hbm %s2, %s212
          %s214 = sshll.u32 %s205, 4
          %s215 = int_to_ptr.vmem [resolvable:$true] %s214
          %220 = dma.hbm_to_vmem [thread:$0]  %s213, 1024, %s215, %s202, 128, 128, 8
        $region28: #{resnet_block_forward.15} parent=19 // pred_fallthru
          _
      $region20: #{resnet_block_forward.15} parent=5 // pred_fallthru
        _
      %p221 = scmp.le.s32.totalorder 1, %s16
      %p222 = scmp.lt.s32.totalorder %s16, 49
      %p223 = pnand %p221, %p222
      %p224 = pneg %p223
      // Predicated region
      $region29: #{resnet_block_forward.15} parent=5 // pred_check
        _
      $region30: #{resnet_block_forward.15} parent=5 // pred_check_branch
        %226 = sbr.rel (%p223) target = $region32
      $region31: #{resnet_block_forward.15} parent=5 // pred_region
        %s227 = ssub.s32 %s16, 1
        %s228 = sand.u32 %s21, 1
        %s229 = scalar_lea.sflag [#allocation4], %s228
        %s230 = sand.u32 %s52, 1
        %s231 = smul.addr %s230, 80
        %s232 = scalar_lea.vmem [#allocation3], %s231
        // Predicated region
        $region33: #{resnet_block_forward.15} parent=31 // pred_check
          %p233 = pneg %p65
        $region34: #{resnet_block_forward.15} parent=31 // pred_check_branch
          %235 = sbr.rel (%p233) target = $region36
        $region35: #{resnet_block_forward.15} parent=31 // pred_region
          %236 = dma.done %s229, 1280
        $region36: #{resnet_block_forward.15} parent=31 // pred_fallthru
          _
        // Predicated region
        $region37: #{resnet_block_forward.15} parent=31 // pred_check
          %p237 = pneg %p86
        $region38: #{resnet_block_forward.15} parent=31 // pred_check_branch
          %239 = sbr.rel (%p237) target = $region40
        $region39: #{resnet_block_forward.15} parent=31 // pred_region
          %240 = dma.done [#allocation7], 27648
        $region40: #{resnet_block_forward.15} parent=31 // pred_fallthru
          _
        %s241 = sand.u32 %s21, 1
        %s242 = scalar_lea.sflag [#allocation4], %s241
        %s243 = sand.u32 %s101, 1
        %s244 = smul.addr %s243, 64
        %s245 = scalar_lea.vmem [#allocation8], %s244
        // Predicated region
        $region41: #{resnet_block_forward.15} parent=31 // pred_check
          %p246 = pneg %p114
        $region42: #{resnet_block_forward.15} parent=31 // pred_check_branch
          %248 = sbr.rel (%p246) target = $region44
        $region43: #{resnet_block_forward.15} parent=31 // pred_region
          %249 = dma.done %s242, 1024
        $region44: #{resnet_block_forward.15} parent=31 // pred_fallthru
          _
        %s250 = sand.u32 %s21, 1
        %s251 = scalar_lea.sflag [#allocation4], %s250
        %s252 = sand.u32 %s52, 1
        %s253 = smul.addr %s252, 80
        %s254 = scalar_lea.vmem [#allocation3], %s253
        %p255 = pneg %p65
        %p256 = pneg %p62
        %p257 = pneg %p86
        %p258 = pneg %p83
        %s259 = sand.u32 %s21, 1
        %s260 = scalar_lea.sflag [#allocation4], %s259
        %s261 = sand.u32 %s101, 1
        %s262 = smul.addr %s261, 64
        %s263 = scalar_lea.vmem [#allocation8], %s262
        %p264 = pneg %p114
        %p265 = pneg %p111
        %p266 = pneg %p142
        %p267 = pneg %p139
        %s268 = sand.u32 %s129, 1
        %s269 = scalar_lea.sflag [#allocation5], %s268
        %s270 = sand.u32 %s129, 1
        %s271 = smul.addr %s270, 64
        %s272 = scalar_lea.vmem [#allocation9], %s271
        %s273 = sadd.s32 %s27, %s28
        %p275 = scmp.eq.s32.totalorder %s28, 0
        // Predicated region
        $region45: #{resnet_block_forward.15} parent=31 // pred_check
          %p276 = pneg %p275
        $region46: #{resnet_block_forward.15} parent=31 // pred_check_branch
          %278 = sbr.rel (%p276) target = $region48
        $region47: #{resnet_block_forward.15} parent=31 // pred_region
          %279 = vst [vmem:[#allocation2] sm:$0xff] 0.0
          %280 = vst [vmem:[#allocation2 + $0x8] sm:$0xff] 0.0
          %281 = vst [vmem:[#allocation2 + $0x10] sm:$0xff] 0.0
          %282 = vst [vmem:[#allocation2 + $0x18] sm:$0xff] 0.0
          %283 = vst [vmem:[#allocation2 + $0x20] sm:$0xff] 0.0
          %284 = vst [vmem:[#allocation2 + $0x28] sm:$0xff] 0.0
          %285 = vst [vmem:[#allocation2 + $0x30] sm:$0xff] 0.0
          %286 = vst [vmem:[#allocation2 + $0x38] sm:$0xff] 0.0
        $region48: #{resnet_block_forward.15} parent=31 // pred_fallthru
          _
        %s287 = smul.u32 %s28, 9
        %v288 = vld [vmem:[#allocation2] sm:$0xff]
        %v289 = vld [vmem:[#allocation2 + $0x8] sm:$0xff]
        %v290 = vld [vmem:[#allocation2 + $0x10] sm:$0xff]
        %v291 = vld [vmem:[#allocation2 + $0x18] sm:$0xff]
        %v292 = vld [vmem:[#allocation2 + $0x20] sm:$0xff]
        %v293 = vld [vmem:[#allocation2 + $0x28] sm:$0xff]
        %v294 = vld [vmem:[#allocation2 + $0x30] sm:$0xff]
        %v295 = vld [vmem:[#allocation2 + $0x38] sm:$0xff]
        %v296 = vld [vmem:[%s232] sm:$0xf]
        %v297 = vld [vmem:[%s232 + $0x8] sm:$0xf]
        %v298 = vld [vmem:[%s232 + $0x10] sm:$0xf]
        %v299 = vld [vmem:[%s232 + $0x18] sm:$0xf]
        %v300 = vld [vmem:[%s232 + $0x20] sm:$0xf]
        %v301 = vld [vmem:[%s232 + $0x28] sm:$0xf]
        %v302 = vld [vmem:[%s232 + $0x30] sm:$0xf]
        %v303 = vld [vmem:[%s232 + $0x38] sm:$0xf]
        %v304 = vunpack.c.l.bf16 %v296
        %v305 = vunpack.c.l.bf16 %v297
        %v306 = vunpack.c.l.bf16 %v298
        %v307 = vunpack.c.l.bf16 %v299
        %v308 = vunpack.c.l.bf16 %v300
        %v309 = vunpack.c.l.bf16 %v301
        %v310 = vunpack.c.l.bf16 %v302
        %v311 = vunpack.c.l.bf16 %v303
        %v312 = vpack.c.bf16 %v305, %v304
        %v313 = vpack.c.bf16 %v307, %v306
        %v314 = vpack.c.bf16 %v309, %v308
        %v315 = vpack.c.bf16 %v311, %v310
        %s316 = smul.u32 %s287, 16
        %s317 = smul.addr %s316, 4
        %s318 = scalar_lea.vmem [#allocation6], %s317
        %v319 = vld [vmem:[%s318] sm:$0xf]
        %v320 = vld [vmem:[%s318 + $0x4] sm:$0xf]
        %v321 = vld [vmem:[%s318 + $0x8] sm:$0xf]
        %v322 = vld [vmem:[%s318 + $0xc] sm:$0xf]
        %v323 = vld [vmem:[%s318 + $0x10] sm:$0xf]
        %v324 = vld [vmem:[%s318 + $0x14] sm:$0xf]
        %v325 = vld [vmem:[%s318 + $0x18] sm:$0xf]
        %v326 = vld [vmem:[%s318 + $0x1c] sm:$0xf]
        %v327 = vld [vmem:[%s318 + $0x20] sm:$0xf]
        %v328 = vld [vmem:[%s318 + $0x24] sm:$0xf]
        %v329 = vld [vmem:[%s318 + $0x28] sm:$0xf]
        %v330 = vld [vmem:[%s318 + $0x2c] sm:$0xf]
        %v331 = vld [vmem:[%s318 + $0x30] sm:$0xf]
        %v332 = vld [vmem:[%s318 + $0x34] sm:$0xf]
        %v333 = vld [vmem:[%s318 + $0x38] sm:$0xf]
        %v334 = vld [vmem:[%s318 + $0x3c] sm:$0xf]
        %v351 = vunpack.c.l.b16 %v319
        %v352 = vunpack.c.l.b16 %v320
        %v353 = vunpack.c.l.b16 %v321
        %v354 = vunpack.c.l.b16 %v322
        %v355 = vunpack.c.l.b16 %v323
        %v356 = vunpack.c.l.b16 %v324
        %v357 = vunpack.c.l.b16 %v325
        %v358 = vunpack.c.l.b16 %v326
        %v359 = vunpack.c.l.b16 %v327
        %v360 = vunpack.c.l.b16 %v328
        %v361 = vunpack.c.l.b16 %v329
        %v362 = vunpack.c.l.b16 %v330
        %v363 = vunpack.c.l.b16 %v331
        %v364 = vunpack.c.l.b16 %v332
        %v365 = vunpack.c.l.b16 %v333
        %v366 = vunpack.c.l.b16 %v334
        %v367 = vpack.c.b16 %v352, %v351
        %v368 = vpack.c.b16 %v354, %v353
        %v369 = vpack.c.b16 %v356, %v355
        %v370 = vpack.c.b16 %v358, %v357
        %v371 = vpack.c.b16 %v360, %v359
        %v372 = vpack.c.b16 %v362, %v361
        %v373 = vpack.c.b16 %v364, %v363
        %v374 = vpack.c.b16 %v366, %v365
        %383 = vmatprep.subr.bf16.mxu0 0
        %384 = vmatpush1.bf16.msra.mxu0 %v367
        %385 = vmatprep.subr.bf16.mxu0 0
        %386 = vmatpush1.bf16.msra.mxu0 %v368
        %387 = vmatprep.subr.bf16.mxu0 0
        %388 = vmatpush1.bf16.msra.mxu0 %v369
        %389 = vmatprep.subr.bf16.mxu0 0
        %390 = vmatpush1.bf16.msra.mxu0 %v370
        %391 = vmatprep.subr.bf16.mxu0 0
        %392 = vmatpush1.bf16.msra.mxu0 %v371
        %393 = vmatprep.subr.bf16.mxu0 0
        %394 = vmatpush1.bf16.msra.mxu0 %v372
        %395 = vmatprep.subr.bf16.mxu0 0
        %396 = vmatpush1.bf16.msra.mxu0 %v373
        %397 = vmatprep.subr.bf16.mxu0 0
        %398 = vmatpush1.bf16.msra.mxu0 %v374
        %399 = vmatprep.subr.bf16.mxu0 0
        %400 = vmatpush1.bf16.msra.mxu0 0
        %401 = vmatprep.subr.bf16.mxu0 0
        %402 = vmatpush1.bf16.msra.mxu0 0
        %403 = vmatprep.subr.bf16.mxu0 0
        %404 = vmatpush1.bf16.msra.mxu0 0
        %405 = vmatprep.subr.bf16.mxu0 0
        %406 = vmatpush1.bf16.msra.mxu0 0
        %407 = vmatprep.subr.bf16.mxu0 0
        %408 = vmatpush1.bf16.msra.mxu0 0
        %409 = vmatprep.subr.bf16.mxu0 0
        %410 = vmatpush1.bf16.msra.mxu0 0
        %411 = vmatprep.subr.bf16.mxu0 0
        %412 = vmatpush1.bf16.msra.mxu0 0
        %413 = vmatprep.subr.bf16.mxu0 0
        %414 = vmatpush1.bf16.msra.mxu0 0
        %415 = vmatprep.mubr.bf16.mxu0 0
        %416 = vmatmul.mubr.bf16.gmra.mrb[0].mxu0 %v312
        %v417 = vpop.f32.mrb[0].mxu0
        %v418 = vadd.f32 0.0, %v417
        %v419 = vpop.f32.mrb[0].mxu0
        %v420 = vpop.f32.mrb[0].mxu0
        %v421 = vadd.f32 0.0, %v420
        %v422 = vpop.f32.mrb[0].mxu0
        %423 = vmatprep.mubr.bf16.mxu0 0
        %424 = vmatmul.mubr.bf16.gmra.mrb[0].mxu0 %v313
        %v425 = vpop.f32.mrb[0].mxu0
        %v426 = vadd.f32 0.0, %v425
        %v427 = vpop.f32.mrb[0].mxu0
        %v428 = vpop.f32.mrb[0].mxu0
        %v429 = vadd.f32 0.0, %v428
        %v430 = vpop.f32.mrb[0].mxu0
        %431 = vmatprep.mubr.bf16.mxu0 0
        %432 = vmatmul.mubr.bf16.gmra.mrb[0].mxu0 %v314
        %v433 = vpop.f32.mrb[0].mxu0
        %v434 = vadd.f32 0.0, %v433
        %v435 = vpop.f32.mrb[0].mxu0
        %v436 = vpop.f32.mrb[0].mxu0
        %v437 = vadd.f32 0.0, %v436
        %v438 = vpop.f32.mrb[0].mxu0
        %439 = vmatprep.mubr.bf16.mxu0 0
        %440 = vmatmul.mubr.bf16.gmra.mrb[0].mxu0 %v315
        %v441 = vpop.f32.mrb[0].mxu0
        %v442 = vadd.f32 0.0, %v441
        %v443 = vpop.f32.mrb[0].mxu0
        %v444 = vpop.f32.mrb[0].mxu0
        %v445 = vadd.f32 0.0, %v444
        %v446 = vpop.f32.mrb[0].mxu0
        %447 = vdwg.mxu0
        %v448 = vadd.f32 %v288, %v418
        %v449 = vadd.f32 %v289, %v421
        %v450 = vadd.f32 %v290, %v426
        %v451 = vadd.f32 %v291, %v429
        %v452 = vadd.f32 %v292, %v434
        %v453 = vadd.f32 %v293, %v437
        %v454 = vadd.f32 %v294, %v442
        %v455 = vadd.f32 %v295, %v445
        %v456 = vld [vmem:[%s232] sm:$0xf]
        %v457 = vld [vmem:[%s232 + $0x4] sm:$0x1]
        %v458 = vld [vmem:[%s232 + $0x8] sm:$0xf]
        %v459 = vld [vmem:[%s232 + $0xc] sm:$0x1]
        %v460 = vld [vmem:[%s232 + $0x10] sm:$0xf]
        %v461 = vld [vmem:[%s232 + $0x14] sm:$0x1]
        %v462 = vld [vmem:[%s232 + $0x18] sm:$0xf]
        %v463 = vld [vmem:[%s232 + $0x1c] sm:$0x1]
        %v464 = vld [vmem:[%s232 + $0x20] sm:$0xf]
        %v465 = vld [vmem:[%s232 + $0x24] sm:$0x1]
        %v466 = vld [vmem:[%s232 + $0x28] sm:$0xf]
        %v467 = vld [vmem:[%s232 + $0x2c] sm:$0x1]
        %v468 = vld [vmem:[%s232 + $0x30] sm:$0xf]
        %v469 = vld [vmem:[%s232 + $0x34] sm:$0x1]
        %v470 = vld [vmem:[%s232 + $0x38] sm:$0xf]
        %v471 = vld [vmem:[%s232 + $0x3c] sm:$0x1]
        %v472 = vunpack.c.l.bf16 %v456
        %v473 = vunpack.c.l.bf16 %v457
        %v474 = vunpack.c.l.bf16 %v458
        %v475 = vunpack.c.l.bf16 %v459
        %v476 = vunpack.c.l.bf16 %v460
        %v477 = vunpack.c.l.bf16 %v461
        %v478 = vunpack.c.l.bf16 %v462
        %v479 = vunpack.c.l.bf16 %v463
        %v480 = vunpack.c.l.bf16 %v464
        %v481 = vunpack.c.l.bf16 %v465
        %v482 = vunpack.c.l.bf16 %v466
        %v483 = vunpack.c.l.bf16 %v467
        %v484 = vunpack.c.l.bf16 %v468
        %v485 = vunpack.c.l.bf16 %v469
        %v486 = vunpack.c.l.bf16 %v470
        %v487 = vunpack.c.l.bf16 %v471
        %vm504 = vcmask 1046528
        %v505 = vrot.slane %v472, 1
        %v506 = vrot.slane %v473, 1
        %v507 = vsel %vm504, %v505, %v506
        %v508 = vrot.slane %v474, 1
        %v509 = vrot.slane %v475, 1
        %v510 = vsel %vm504, %v508, %v509
        %v511 = vrot.slane %v476, 1
        %v512 = vrot.slane %v477, 1
        %v513 = vsel %vm504, %v511, %v512
        %v514 = vrot.slane %v478, 1
        %v515 = vrot.slane %v479, 1
        %v516 = vsel %vm504, %v514, %v515
        %v517 = vrot.slane %v480, 1
        %v518 = vrot.slane %v481, 1
        %v519 = vsel %vm504, %v517, %v518
        %v520 = vrot.slane %v482, 1
        %v521 = vrot.slane %v483, 1
        %v522 = vsel %vm504, %v520, %v521
        %v523 = vrot.slane %v484, 1
        %v524 = vrot.slane %v485, 1
        %v525 = vsel %vm504, %v523, %v524
        %v526 = vrot.slane %v486, 1
        %v527 = vrot.slane %v487, 1
        %v528 = vsel %vm504, %v526, %v527
        %v537 = vpack.c.bf16 %v510, %v507
        %v538 = vpack.c.bf16 %v516, %v513
        %v539 = vpack.c.bf16 %v522, %v519
        %v540 = vpack.c.bf16 %v528, %v525
        %s541 = sadd.s32 %s287, 1
        %s542 = smul.u32 %s541, 16
        %s543 = smul.addr %s542, 4
        %s544 = scalar_lea.vmem [#allocation6], %s543
        %v545 = vld [vmem:[%s544] sm:$0xf]
        %v546 = vld [vmem:[%s544 + $0x4] sm:$0xf]
        %v547 = vld [vmem:[%s544 + $0x8] sm:$0xf]
        %v548 = vld [vmem:[%s544 + $0xc] sm:$0xf]
        %v549 = vld [vmem:[%s544 + $0x10] sm:$0xf]
        %v550 = vld [vmem:[%s544 + $0x14] sm:$0xf]
        %v551 = vld [vmem:[%s544 + $0x18] sm:$0xf]
        %v552 = vld [vmem:[%s544 + $0x1c] sm:$0xf]
        %v553 = vld [vmem:[%s544 + $0x20] sm:$0xf]
        %v554 = vld [vmem:[%s544 + $0x24] sm:$0xf]
        %v555 = vld [vmem:[%s544 + $0x28] sm:$0xf]
        %v556 = vld [vmem:[%s544 + $0x2c] sm:$0xf]
        %v557 = vld [vmem:[%s544 + $0x30] sm:$0xf]
        %v558 = vld [vmem:[%s544 + $0x34] sm:$0xf]
        %v559 = vld [vmem:[%s544 + $0x38] sm:$0xf]
        %v560 = vld [vmem:[%s544 + $0x3c] sm:$0xf]
        %v577 = vunpack.c.l.b16 %v545
        %v578 = vunpack.c.l.b16 %v546
        %v579 = vunpack.c.l.b16 %v547
        %v580 = vunpack.c.l.b16 %v548
        %v581 = vunpack.c.l.b16 %v549
        %v582 = vunpack.c.l.b16 %v550
        %v583 = vunpack.c.l.b16 %v551
        %v584 = vunpack.c.l.b16 %v552
        %v585 = vunpack.c.l.b16 %v553
        %v586 = vunpack.c.l.b16 %v554
        %v587 = vunpack.c.l.b16 %v555
        %v588 = vunpack.c.l.b16 %v556
        %v589 = vunpack.c.l.b16 %v557
        %v590 = vunpack.c.l.b16 %v558
        %v591 = vunpack.c.l.b16 %v559
        %v592 = vunpack.c.l.b16 %v560
        %v593 = vpack.c.b16 %v578, %v577
        %v594 = vpack.c.b16 %v580, %v579
        %v595 = vpack.c.b16 %v582, %v581
        %v596 = vpack.c.b16 %v584, %v583
        %v597 = vpack.c.b16 %v586, %v585
        %v598 = vpack.c.b16 %v588, %v587
        %v599 = vpack.c.b16 %v590, %v589
        %v600 = vpack.c.b16 %v592, %v591
        %609 = vmatprep.subr.bf16.mxu0 0
        %610 = vmatpush1.bf16.msra.mxu0 %v593
        %611 = vmatprep.subr.bf16.mxu0 0
        %612 = vmatpush1.bf16.msra.mxu0 %v594
        %613 = vmatprep.subr.bf16.mxu0 0
        %614 = vmatpush1.bf16.msra.mxu0 %v595
        %615 = vmatprep.subr.bf16.mxu0 0
        %616 = vmatpush1.bf16.msra.mxu0 %v596
        %617 = vmatprep.subr.bf16.mxu0 0
        %618 = vmatpush1.bf16.msra.mxu0 %v597
        %619 = vmatprep.subr.bf16.mxu0 0
        %620 = vmatpush1.bf16.msra.mxu0 %v598
        %621 = vmatprep.subr.bf16.mxu0 0
        %622 = vmatpush1.bf16.msra.mxu0 %v599
        %623 = vmatprep.subr.bf16.mxu0 0
        %624 = vmatpush1.bf16.msra.mxu0 %v600
        %625 = vmatprep.subr.bf16.mxu0 0
        %626 = vmatpush1.bf16.msra.mxu0 0
        %627 = vmatprep.subr.bf16.mxu0 0
        %628 = vmatpush1.bf16.msra.mxu0 0
        %629 = vmatprep.subr.bf16.mxu0 0
        %630 = vmatpush1.bf16.msra.mxu0 0
        %631 = vmatprep.subr.bf16.mxu0 0
        %632 = vmatpush1.bf16.msra.mxu0 0
        %633 = vmatprep.subr.bf16.mxu0 0
        %634 = vmatpush1.bf16.msra.mxu0 0
        %635 = vmatprep.subr.bf16.mxu0 0
        %636 = vmatpush1.bf16.msra.mxu0 0
        %637 = vmatprep.subr.bf16.mxu0 0
        %638 = vmatpush1.bf16.msra.mxu0 0
        %639 = vmatprep.subr.bf16.mxu0 0
        %640 = vmatpush1.bf16.msra.mxu0 0
        %641 = vmatprep.mubr.bf16.mxu0 0
        %642 = vmatmul.mubr.bf16.gmra.mrb[0].mxu0 %v537
        %v643 = vpop.f32.mrb[0].mxu0
        %v644 = vadd.f32 0.0, %v643
        %v645 = vpop.f32.mrb[0].mxu0
        %v646 = vpop.f32.mrb[0].mxu0
        %v647 = vadd.f32 0.0, %v646
        %v648 = vpop.f32.mrb[0].mxu0
        %649 = vmatprep.mubr.bf16.mxu0 0
        %650 = vmatmul.mubr.bf16.gmra.mrb[0].mxu0 %v538
        %v651 = vpop.f32.mrb[0].mxu0
        %v652 = vadd.f32 0.0, %v651
        %v653 = vpop.f32.mrb[0].mxu0
        %v654 = vpop.f32.mrb[0].mxu0
        %v655 = vadd.f32 0.0, %v654
        %v656 = vpop.f32.mrb[0].mxu0
        %657 = vmatprep.mubr.bf16.mxu0 0
        %658 = vmatmul.mubr.bf16.gmra.mrb[0].mxu0 %v539
        %v659 = vpop.f32.mrb[0].mxu0
        %v660 = vadd.f32 0.0, %v659
        %v661 = vpop.f32.mrb[0].mxu0
        %v662 = vpop.f32.mrb[0].mxu0
        %v663 = vadd.f32 0.0, %v662
        %v664 = vpop.f32.mrb[0].mxu0
        %665 = vmatprep.mubr.bf16.mxu0 0
        %666 = vmatmul.mubr.bf16.gmra.mrb[0].mxu0 %v540
        %v667 = vpop.f32.mrb[0].mxu0
        %v668 = vadd.f32 0.0, %v667
        %v669 = vpop.f32.mrb[0].mxu0
        %v670 = vpop.f32.mrb[0].mxu0
        %v671 = vadd.f32 0.0, %v670
        %v672 = vpop.f32.mrb[0].mxu0
        %673 = vdwg.mxu0
        %v674 = vadd.f32 %v448, %v644
        %v675 = vadd.f32 %v449, %v647
        %v676 = vadd.f32 %v450, %v652
        %v677 = vadd.f32 %v451, %v655
        %v678 = vadd.f32 %v452, %v660
        %v679 = vadd.f32 %v453, %v663
        %v680 = vadd.f32 %v454, %v668
        %v681 = vadd.f32 %v455, %v671
        %v682 = vld [vmem:[%s232] sm:$0xe]
        %v683 = vld [vmem:[%s232 + $0x8] sm:$0xe]
        %v684 = vld [vmem:[%s232 + $0x10] sm:$0xe]
        %v685 = vld [vmem:[%s232 + $0x18] sm:$0xe]
        %v686 = vld [vmem:[%s232 + $0x20] sm:$0xe]
        %v687 = vld [vmem:[%s232 + $0x28] sm:$0xe]
        %v688 = vld [vmem:[%s232 + $0x30] sm:$0xe]
        %v689 = vld [vmem:[%s232 + $0x38] sm:$0xe]
        %v690 = vunpack.c.l.bf16 %v682
        %v691 = vunpack.c.l.bf16 %v683
        %v692 = vunpack.c.l.bf16 %v684
        %v693 = vunpack.c.l.bf16 %v685
        %v694 = vunpack.c.l.bf16 %v686
        %v695 = vunpack.c.l.bf16 %v687
        %v696 = vunpack.c.l.bf16 %v688
        %v697 = vunpack.c.l.bf16 %v689
        %vm706 = vcmask 1045504
        %v707 = vrot.slane %v690, 2
        %v708 = vrot.slane %v473, 2
        %v709 = vsel %vm706, %v707, %v708
        %v710 = vrot.slane %v691, 2
        %v711 = vrot.slane %v475, 2
        %v712 = vsel %vm706, %v710, %v711
        %v713 = vrot.slane %v692, 2
        %v714 = vrot.slane %v477, 2
        %v715 = vsel %vm706, %v713, %v714
        %v716 = vrot.slane %v693, 2
        %v717 = vrot.slane %v479, 2
        %v718 = vsel %vm706, %v716, %v717
        %v719 = vrot.slane %v694, 2
        %v720 = vrot.slane %v481, 2
        %v721 = vsel %vm706, %v719, %v720
        %v722 = vrot.slane %v695, 2
        %v723 = vrot.slane %v483, 2
        %v724 = vsel %vm706, %v722, %v723
        %v725 = vrot.slane %v696, 2
        %v726 = vrot.slane %v485, 2
        %v727 = vsel %vm706, %v725, %v726
        %v728 = vrot.slane %v697, 2
        %v729 = vrot.slane %v487, 2
        %v730 = vsel %vm706, %v728, %v729
        %v739 = vpack.c.bf16 %v712, %v709
        %v740 = vpack.c.bf16 %v718, %v715
        %v741 = vpack.c.bf16 %v724, %v721
        %v742 = vpack.c.bf16 %v730, %v727
        %s743 = sadd.s32 %s287, 2
        %s744 = smul.u32 %s743, 16
        %s745 = smul.addr %s744, 4
        %s746 = scalar_lea.vmem [#allocation6], %s745
        %v747 = vld [vmem:[%s746] sm:$0xf]
        %v748 = vld [vmem:[%s746 + $0x4] sm:$0xf]
        %v749 = vld [vmem:[%s746 + $0x8] sm:$0xf]
        %v750 = vld [vmem:[%s746 + $0xc] sm:$0xf]
        %v751 = vld [vmem:[%s746 + $0x10] sm:$0xf]
        %v752 = vld [vmem:[%s746 + $0x14] sm:$0xf]
        %v753 = vld [vmem:[%s746 + $0x18] sm:$0xf]
        %v754 = vld [vmem:[%s746 + $0x1c] sm:$0xf]
        %v755 = vld [vmem:[%s746 + $0x20] sm:$0xf]
        %v756 = vld [vmem:[%s746 + $0x24] sm:$0xf]
        %v757 = vld [vmem:[%s746 + $0x28] sm:$0xf]
        %v758 = vld [vmem:[%s746 + $0x2c] sm:$0xf]
        %v759 = vld [vmem:[%s746 + $0x30] sm:$0xf]
        %v760 = vld [vmem:[%s746 + $0x34] sm:$0xf]
        %v761 = vld [vmem:[%s746 + $0x38] sm:$0xf]
        %v762 = vld [vmem:[%s746 + $0x3c] sm:$0xf]
        %v779 = vunpack.c.l.b16 %v747
        %v780 = vunpack.c.l.b16 %v748
        %v781 = vunpack.c.l.b16 %v749
        %v782 = vunpack.c.l.b16 %v750
        %v783 = vunpack.c.l.b16 %v751
        %v784 = vunpack.c.l.b16 %v752
        %v785 = vunpack.c.l.b16 %v753
        %v786 = vunpack.c.l.b16 %v754
        %v787 = vunpack.c.l.b16 %v755
        %v788 = vunpack.c.l.b16 %v756
        %v789 = vunpack.c.l.b16 %v757
        %v790 = vunpack.c.l.b16 %v758
        %v791 = vunpack.c.l.b16 %v759
        %v792 = vunpack.c.l.b16 %v760
        %v793 = vunpack.c.l.b16 %v761
        %v794 = vunpack.c.l.b16 %v762
        %v795 = vpack.c.b16 %v780, %v779
        %v796 = vpack.c.b16 %v782, %v781
        %v797 = vpack.c.b16 %v784, %v783
        %v798 = vpack.c.b16 %v786, %v785
        %v799 = vpack.c.b16 %v788, %v787
        %v800 = vpack.c.b16 %v790, %v789
        %v801 = vpack.c.b16 %v792, %v791
        %v802 = vpack.c.b16 %v794, %v793
        %811 = vmatprep.subr.bf16.mxu0 0
        %812 = vmatpush1.bf16.msra.mxu0 %v795
        %813 = vmatprep.subr.bf16.mxu0 0
        %814 = vmatpush1.bf16.msra.mxu0 %v796
        %815 = vmatprep.subr.bf16.mxu0 0
        %816 = vmatpush1.bf16.msra.mxu0 %v797
        %817 = vmatprep.subr.bf16.mxu0 0
        %818 = vmatpush1.bf16.msra.mxu0 %v798
        %819 = vmatprep.subr.bf16.mxu0 0
        %820 = vmatpush1.bf16.msra.mxu0 %v799
        %821 = vmatprep.subr.bf16.mxu0 0
        %822 = vmatpush1.bf16.msra.mxu0 %v800
        %823 = vmatprep.subr.bf16.mxu0 0
        %824 = vmatpush1.bf16.msra.mxu0 %v801
        %825 = vmatprep.subr.bf16.mxu0 0
        %826 = vmatpush1.bf16.msra.mxu0 %v802
        %827 = vmatprep.subr.bf16.mxu0 0
        %828 = vmatpush1.bf16.msra.mxu0 0
        %829 = vmatprep.subr.bf16.mxu0 0
        %830 = vmatpush1.bf16.msra.mxu0 0
        %831 = vmatprep.subr.bf16.mxu0 0
        %832 = vmatpush1.bf16.msra.mxu0 0
        %833 = vmatprep.subr.bf16.mxu0 0
        %834 = vmatpush1.bf16.msra.mxu0 0
        %835 = vmatprep.subr.bf16.mxu0 0
        %836 = vmatpush1.bf16.msra.mxu0 0
        %837 = vmatprep.subr.bf16.mxu0 0
        %838 = vmatpush1.bf16.msra.mxu0 0
        %839 = vmatprep.subr.bf16.mxu0 0
        %840 = vmatpush1.bf16.msra.mxu0 0
        %841 = vmatprep.subr.bf16.mxu0 0
        %842 = vmatpush1.bf16.msra.mxu0 0
        %843 = vmatprep.mubr.bf16.mxu0 0
        %844 = vmatmul.mubr.bf16.gmra.mrb[0].mxu0 %v739
        %v845 = vpop.f32.mrb[0].mxu0
        %v846 = vadd.f32 0.0, %v845
        %v847 = vpop.f32.mrb[0].mxu0
        %v848 = vpop.f32.mrb[0].mxu0
        %v849 = vadd.f32 0.0, %v848
        %v850 = vpop.f32.mrb[0].mxu0
        %851 = vmatprep.mubr.bf16.mxu0 0
        %852 = vmatmul.mubr.bf16.gmra.mrb[0].mxu0 %v740
        %v853 = vpop.f32.mrb[0].mxu0
        %v854 = vadd.f32 0.0, %v853
        %v855 = vpop.f32.mrb[0].mxu0
        %v856 = vpop.f32.mrb[0].mxu0
        %v857 = vadd.f32 0.0, %v856
        %v858 = vpop.f32.mrb[0].mxu0
        %859 = vmatprep.mubr.bf16.mxu0 0
        %860 = vmatmul.mubr.bf16.gmra.mrb[0].mxu0 %v741
        %v861 = vpop.f32.mrb[0].mxu0
        %v862 = vadd.f32 0.0, %v861
        %v863 = vpop.f32.mrb[0].mxu0
        %v864 = vpop.f32.mrb[0].mxu0
        %v865 = vadd.f32 0.0, %v864
        %v866 = vpop.f32.mrb[0].mxu0
        %867 = vmatprep.mubr.bf16.mxu0 0
        %868 = vmatmul.mubr.bf16.gmra.mrb[0].mxu0 %v742
        %v869 = vpop.f32.mrb[0].mxu0
        %v870 = vadd.f32 0.0, %v869
        %v871 = vpop.f32.mrb[0].mxu0
        %v872 = vpop.f32.mrb[0].mxu0
        %v873 = vadd.f32 0.0, %v872
        %v874 = vpop.f32.mrb[0].mxu0
        %875 = vdwg.mxu0
        %v876 = vadd.f32 %v674, %v846
        %v877 = vadd.f32 %v675, %v849
        %v878 = vadd.f32 %v676, %v854
        %v879 = vadd.f32 %v677, %v857
        %v880 = vadd.f32 %v678, %v862
        %v881 = vadd.f32 %v679, %v865
        %v882 = vadd.f32 %v680, %v870
        %v883 = vadd.f32 %v681, %v873
        %s884 = scalar_lea.vmem %s232, 8 [#allocation3]
        %v885 = vld [vmem:[%s884] sm:$0xf]
        %v886 = vld [vmem:[%s884 + $0x8] sm:$0xf]
        %v887 = vld [vmem:[%s884 + $0x10] sm:$0xf]
        %v888 = vld [vmem:[%s884 + $0x18] sm:$0xf]
        %v889 = vld [vmem:[%s884 + $0x20] sm:$0xf]
        %v890 = vld [vmem:[%s884 + $0x28] sm:$0xf]
        %v891 = vld [vmem:[%s884 + $0x30] sm:$0xf]
        %v892 = vld [vmem:[%s884 + $0x38] sm:$0xf]
        %v893 = vunpack.c.l.bf16 %v885
        %v894 = vunpack.c.l.bf16 %v886
        %v895 = vunpack.c.l.bf16 %v887
        %v896 = vunpack.c.l.bf16 %v888
        %v897 = vunpack.c.l.bf16 %v889
        %v898 = vunpack.c.l.bf16 %v890
        %v899 = vunpack.c.l.bf16 %v891
        %v900 = vunpack.c.l.bf16 %v892
        %v901 = vpack.c.bf16 %v894, %v893
        %v902 = vpack.c.bf16 %v896, %v895
        %v903 = vpack.c.bf16 %v898, %v897
        %v904 = vpack.c.bf16 %v900, %v899
        %s905 = sadd.s32 %s287, 3
        %s906 = smul.u32 %s905, 16
        %s907 = smul.addr %s906, 4
        %s908 = scalar_lea.vmem [#allocation6], %s907
        %v909 = vld [vmem:[%s908] sm:$0xf]
        %v910 = vld [vmem:[%s908 + $0x4] sm:$0xf]
        %v911 = vld [vmem:[%s908 + $0x8] sm:$0xf]
        %v912 = vld [vmem:[%s908 + $0xc] sm:$0xf]
        %v913 = vld [vmem:[%s908 + $0x10] sm:$0xf]
        %v914 = vld [vmem:[%s908 + $0x14] sm:$0xf]
        %v915 = vld [vmem:[%s908 + $0x18] sm:$0xf]
        %v916 = vld [vmem:[%s908 + $0x1c] sm:$0xf]
        %v917 = vld [vmem:[%s908 + $0x20] sm:$0xf]
        %v918 = vld [vmem:[%s908 + $0x24] sm:$0xf]
        %v919 = vld [vmem:[%s908 + $0x28] sm:$0xf]
        %v920 = vld [vmem:[%s908 + $0x2c] sm:$0xf]
        %v921 = vld [vmem:[%s908 + $0x30] sm:$0xf]
        %v922 = vld [vmem:[%s908 + $0x34] sm:$0xf]
        %v923 = vld [vmem:[%s908 + $0x38] sm:$0xf]
        %v924 = vld [vmem:[%s908 + $0x3c] sm:$0xf]
        %v941 = vunpack.c.l.b16 %v909
        %v942 = vunpack.c.l.b16 %v910
        %v943 = vunpack.c.l.b16 %v911
        %v944 = vunpack.c.l.b16 %v912
        %v945 = vunpack.c.l.b16 %v913
        %v946 = vunpack.c.l.b16 %v914
        %v947 = vunpack.c.l.b16 %v915
        %v948 = vunpack.c.l.b16 %v916
        %v949 = vunpack.c.l.b16 %v917
        %v950 = vunpack.c.l.b16 %v918
        %v951 = vunpack.c.l.b16 %v919
        %v952 = vunpack.c.l.b16 %v920
        %v953 = vunpack.c.l.b16 %v921
        %v954 = vunpack.c.l.b16 %v922
        %v955 = vunpack.c.l.b16 %v923
        %v956 = vunpack.c.l.b16 %v924
        %v957 = vpack.c.b16 %v942, %v941
        %v958 = vpack.c.b16 %v944, %v943
        %v959 = vpack.c.b16 %v946, %v945
        %v960 = vpack.c.b16 %v948, %v947
        %v961 = vpack.c.b16 %v950, %v949
        %v962 = vpack.c.b16 %v952, %v951
        %v963 = vpack.c.b16 %v954, %v953
        %v964 = vpack.c.b16 %v956, %v955
        %973 = vmatprep.subr.bf16.mxu0 0
        %974 = vmatpush1.bf16.msra.mxu0 %v957
        %975 = vmatprep.subr.bf16.mxu0 0
        %976 = vmatpush1.bf16.msra.mxu0 %v958
        %977 = vmatprep.subr.bf16.mxu0 0
        %978 = vmatpush1.bf16.msra.mxu0 %v959
        %979 = vmatprep.subr.bf16.mxu0 0
        %980 = vmatpush1.bf16.msra.mxu0 %v960
        %981 = vmatprep.subr.bf16.mxu0 0
        %982 = vmatpush1.bf16.msra.mxu0 %v961
        %983 = vmatprep.subr.bf16.mxu0 0
        %984 = vmatpush1.bf16.msra.mxu0 %v962
        %985 = vmatprep.subr.bf16.mxu0 0
        %986 = vmatpush1.bf16.msra.mxu0 %v963
        %987 = vmatprep.subr.bf16.mxu0 0
        %988 = vmatpush1.bf16.msra.mxu0 %v964
        %989 = vmatprep.subr.bf16.mxu0 0
        %990 = vmatpush1.bf16.msra.mxu0 0
        %991 = vmatprep.subr.bf16.mxu0 0
        %992 = vmatpush1.bf16.msra.mxu0 0
        %993 = vmatprep.subr.bf16.mxu0 0
        %994 = vmatpush1.bf16.msra.mxu0 0
        %995 = vmatprep.subr.bf16.mxu0 0
        %996 = vmatpush1.bf16.msra.mxu0 0
        %997 = vmatprep.subr.bf16.mxu0 0
        %998 = vmatpush1.bf16.msra.mxu0 0
        %999 = vmatprep.subr.bf16.mxu0 0
        %1000 = vmatpush1.bf16.msra.mxu0 0
        %1001 = vmatprep.subr.bf16.mxu0 0
        %1002 = vmatpush1.bf16.msra.mxu0 0
        %1003 = vmatprep.subr.bf16.mxu0 0
        %1004 = vmatpush1.bf16.msra.mxu0 0
        %1005 = vmatprep.mubr.bf16.mxu0 0
        %1006 = vmatmul.mubr.bf16.gmra.mrb[0].mxu0 %v901
        %v1007 = vpop.f32.mrb[0].mxu0
        %v1008 = vadd.f32 0.0, %v1007
        %v1009 = vpop.f32.mrb[0].mxu0
        %v1010 = vpop.f32.mrb[0].mxu0
        %v1011 = vadd.f32 0.0, %v1010
        %v1012 = vpop.f32.mrb[0].mxu0
        %1013 = vmatprep.mubr.bf16.mxu0 0
        %1014 = vmatmul.mubr.bf16.gmra.mrb[0].mxu0 %v902
        %v1015 = vpop.f32.mrb[0].mxu0
        %v1016 = vadd.f32 0.0, %v1015
        %v1017 = vpop.f32.mrb[0].mxu0
        %v1018 = vpop.f32.mrb[0].mxu0
        %v1019 = vadd.f32 0.0, %v1018
        %v1020 = vpop.f32.mrb[0].mxu0
        %1021 = vmatprep.mubr.bf16.mxu0 0
        %1022 = vmatmul.mubr.bf16.gmra.mrb[0].mxu0 %v903
        %v1023 = vpop.f32.mrb[0].mxu0
        %v1024 = vadd.f32 0.0, %v1023
        %v1025 = vpop.f32.mrb[0].mxu0
        %v1026 = vpop.f32.mrb[0].mxu0
        %v1027 = vadd.f32 0.0, %v1026
        %v1028 = vpop.f32.mrb[0].mxu0
        %1029 = vmatprep.mubr.bf16.mxu0 0
        %1030 = vmatmul.mubr.bf16.gmra.mrb[0].mxu0 %v904
        %v1031 = vpop.f32.mrb[0].mxu0
        %v1032 = vadd.f32 0.0, %v1031
        %v1033 = vpop.f32.mrb[0].mxu0
        %v1034 = vpop.f32.mrb[0].mxu0
        %v1035 = vadd.f32 0.0, %v1034
        %v1036 = vpop.f32.mrb[0].mxu0
        %1037 = vdwg.mxu0
        %v1038 = vadd.f32 %v876, %v1008
        %v1039 = vadd.f32 %v877, %v1011
        %v1040 = vadd.f32 %v878, %v1016
        %v1041 = vadd.f32 %v879, %v1019
        %v1042 = vadd.f32 %v880, %v1024
        %v1043 = vadd.f32 %v881, %v1027
        %v1044 = vadd.f32 %v882, %v1032
        %v1045 = vadd.f32 %v883, %v1035
        %v1046 = vld [vmem:[%s884] sm:$0xf]
        %v1047 = vld [vmem:[%s884 + $0x4] sm:$0x1]
        %v1048 = vld [vmem:[%s884 + $0x8] sm:$0xf]
        %v1049 = vld [vmem:[%s884 + $0xc] sm:$0x1]
        %v1050 = vld [vmem:[%s884 + $0x10] sm:$0xf]
        %v1051 = vld [vmem:[%s884 + $0x14] sm:$0x1]
        %v1052 = vld [vmem:[%s884 + $0x18] sm:$0xf]
        %v1053 = vld [vmem:[%s884 + $0x1c] sm:$0x1]
        %v1054 = vld [vmem:[%s884 + $0x20] sm:$0xf]
        %v1055 = vld [vmem:[%s884 + $0x24] sm:$0x1]
        %v1056 = vld [vmem:[%s884 + $0x28] sm:$0xf]
        %v1057 = vld [vmem:[%s884 + $0x2c] sm:$0x1]
        %v1058 = vld [vmem:[%s884 + $0x30] sm:$0xf]
        %v1059 = vld [vmem:[%s884 + $0x34] sm:$0x1]
        %v1060 = vld [vmem:[%s884 + $0x38] sm:$0xf]
        %v1061 = vld [vmem:[%s884 + $0x3c] sm:$0x1]
        %v1062 = vunpack.c.l.bf16 %v1046
        %v1063 = vunpack.c.l.bf16 %v1047
        %v1064 = vunpack.c.l.bf16 %v1048
        %v1065 = vunpack.c.l.bf16 %v1049
        %v1066 = vunpack.c.l.bf16 %v1050
        %v1067 = vunpack.c.l.bf16 %v1051
        %v1068 = vunpack.c.l.bf16 %v1052
        %v1069 = vunpack.c.l.bf16 %v1053
        %v1070 = vunpack.c.l.bf16 %v1054
        %v1071 = vunpack.c.l.bf16 %v1055
        %v1072 = vunpack.c.l.bf16 %v1056
        %v1073 = vunpack.c.l.bf16 %v1057
        %v1074 = vunpack.c.l.bf16 %v1058
        %v1075 = vunpack.c.l.bf16 %v1059
        %v1076 = vunpack.c.l.bf16 %v1060
        %v1077 = vunpack.c.l.bf16 %v1061
        %v1094 = vrot.slane %v1062, 1
        %v1095 = vrot.slane %v1063, 1
        %v1096 = vsel %vm504, %v1094, %v1095
        %v1097 = vrot.slane %v1064, 1
        %v1098 = vrot.slane %v1065, 1
        %v1099 = vsel %vm504, %v1097, %v1098
        %v1100 = vrot.slane %v1066, 1
        %v1101 = vrot.slane %v1067, 1
        %v1102 = vsel %vm504, %v1100, %v1101
        %v1103 = vrot.slane %v1068, 1
        %v1104 = vrot.slane %v1069, 1
        %v1105 = vsel %vm504, %v1103, %v1104
        %v1106 = vrot.slane %v1070, 1
        %v1107 = vrot.slane %v1071, 1
        %v1108 = vsel %vm504, %v1106, %v1107
        %v1109 = vrot.slane %v1072, 1
        %v1110 = vrot.slane %v1073, 1
        %v1111 = vsel %vm504, %v1109, %v1110
        %v1112 = vrot.slane %v1074, 1
        %v1113 = vrot.slane %v1075, 1
        %v1114 = vsel %vm504, %v1112, %v1113
        %v1115 = vrot.slane %v1076, 1
        %v1116 = vrot.slane %v1077, 1
        %v1117 = vsel %vm504, %v1115, %v1116
        %v1126 = vpack.c.bf16 %v1099, %v1096
        %v1127 = vpack.c.bf16 %v1105, %v1102
        %v1128 = vpack.c.bf16 %v1111, %v1108
        %v1129 = vpack.c.bf16 %v1117, %v1114
        %s1130 = sadd.s32 %s287, 4
        %s1131 = smul.u32 %s1130, 16
        %s1132 = smul.addr %s1131, 4
        %s1133 = scalar_lea.vmem [#allocation6], %s1132
        %v1134 = vld [vmem:[%s1133] sm:$0xf]
        %v1135 = vld [vmem:[%s1133 + $0x4] sm:$0xf]
        %v1136 = vld [vmem:[%s1133 + $0x8] sm:$0xf]
        %v1137 = vld [vmem:[%s1133 + $0xc] sm:$0xf]
        %v1138 = vld [vmem:[%s1133 + $0x10] sm:$0xf]
        %v1139 = vld [vmem:[%s1133 + $0x14] sm:$0xf]
        %v1140 = vld [vmem:[%s1133 + $0x18] sm:$0xf]
        %v1141 = vld [vmem:[%s1133 + $0x1c] sm:$0xf]
        %v1142 = vld [vmem:[%s1133 + $0x20] sm:$0xf]
        %v1143 = vld [vmem:[%s1133 + $0x24] sm:$0xf]
        %v1144 = vld [vmem:[%s1133 + $0x28] sm:$0xf]
        %v1145 = vld [vmem:[%s1133 + $0x2c] sm:$0xf]
        %v1146 = vld [vmem:[%s1133 + $0x30] sm:$0xf]
        %v1147 = vld [vmem:[%s1133 + $0x34] sm:$0xf]
        %v1148 = vld [vmem:[%s1133 + $0x38] sm:$0xf]
        %v1149 = vld [vmem:[%s1133 + $0x3c] sm:$0xf]
        %v1166 = vunpack.c.l.b16 %v1134
        %v1167 = vunpack.c.l.b16 %v1135
        %v1168 = vunpack.c.l.b16 %v1136
        %v1169 = vunpack.c.l.b16 %v1137
        %v1170 = vunpack.c.l.b16 %v1138
        %v1171 = vunpack.c.l.b16 %v1139
        %v1172 = vunpack.c.l.b16 %v1140
        %v1173 = vunpack.c.l.b16 %v1141
        %v1174 = vunpack.c.l.b16 %v1142
        %v1175 = vunpack.c.l.b16 %v1143
        %v1176 = vunpack.c.l.b16 %v1144
        %v1177 = vunpack.c.l.b16 %v1145
        %v1178 = vunpack.c.l.b16 %v1146
        %v1179 = vunpack.c.l.b16 %v1147
        %v1180 = vunpack.c.l.b16 %v1148
        %v1181 = vunpack.c.l.b16 %v1149
        %v1182 = vpack.c.b16 %v1167, %v1166
        %v1183 = vpack.c.b16 %v1169, %v1168
        %v1184 = vpack.c.b16 %v1171, %v1170
        %v1185 = vpack.c.b16 %v1173, %v1172
        %v1186 = vpack.c.b16 %v1175, %v1174
        %v1187 = vpack.c.b16 %v1177, %v1176
        %v1188 = vpack.c.b16 %v1179, %v1178
        %v1189 = vpack.c.b16 %v1181, %v1180
        %1198 = vmatprep.subr.bf16.mxu0 0
        %1199 = vmatpush1.bf16.msra.mxu0 %v1182
        %1200 = vmatprep.subr.bf16.mxu0 0
        %1201 = vmatpush1.bf16.msra.mxu0 %v1183
        %1202 = vmatprep.subr.bf16.mxu0 0
        %1203 = vmatpush1.bf16.msra.mxu0 %v1184
        %1204 = vmatprep.subr.bf16.mxu0 0
        %1205 = vmatpush1.bf16.msra.mxu0 %v1185
        %1206 = vmatprep.subr.bf16.mxu0 0
        %1207 = vmatpush1.bf16.msra.mxu0 %v1186
        %1208 = vmatprep.subr.bf16.mxu0 0
        %1209 = vmatpush1.bf16.msra.mxu0 %v1187
        %1210 = vmatprep.subr.bf16.mxu0 0
        %1211 = vmatpush1.bf16.msra.mxu0 %v1188
        %1212 = vmatprep.subr.bf16.mxu0 0
        %1213 = vmatpush1.bf16.msra.mxu0 %v1189
        %1214 = vmatprep.subr.bf16.mxu0 0
        %1215 = vmatpush1.bf16.msra.mxu0 0
        %1216 = vmatprep.subr.bf16.mxu0 0
        %1217 = vmatpush1.bf16.msra.mxu0 0
        %1218 = vmatprep.subr.bf16.mxu0 0
        %1219 = vmatpush1.bf16.msra.mxu0 0
        %1220 = vmatprep.subr.bf16.mxu0 0
        %1221 = vmatpush1.bf16.msra.mxu0 0
        %1222 = vmatprep.subr.bf16.mxu0 0
        %1223 = vmatpush1.bf16.msra.mxu0 0
        %1224 = vmatprep.subr.bf16.mxu0 0
        %1225 = vmatpush1.bf16.msra.mxu0 0
        %1226 = vmatprep.subr.bf16.mxu0 0
        %1227 = vmatpush1.bf16.msra.mxu0 0
        %1228 = vmatprep.subr.bf16.mxu0 0
        %1229 = vmatpush1.bf16.msra.mxu0 0
        %1230 = vmatprep.mubr.bf16.mxu0 0
        %1231 = vmatmul.mubr.bf16.gmra.mrb[0].mxu0 %v1126
        %v1232 = vpop.f32.mrb[0].mxu0
        %v1233 = vadd.f32 0.0, %v1232
        %v1234 = vpop.f32.mrb[0].mxu0
        %v1235 = vpop.f32.mrb[0].mxu0
        %v1236 = vadd.f32 0.0, %v1235
        %v1237 = vpop.f32.mrb[0].mxu0
        %1238 = vmatprep.mubr.bf16.mxu0 0
        %1239 = vmatmul.mubr.bf16.gmra.mrb[0].mxu0 %v1127
        %v1240 = vpop.f32.mrb[0].mxu0
        %v1241 = vadd.f32 0.0, %v1240
        %v1242 = vpop.f32.mrb[0].mxu0
        %v1243 = vpop.f32.mrb[0].mxu0
        %v1244 = vadd.f32 0.0, %v1243
        %v1245 = vpop.f32.mrb[0].mxu0
        %1246 = vmatprep.mubr.bf16.mxu0 0
        %1247 = vmatmul.mubr.bf16.gmra.mrb[0].mxu0 %v1128
        %v1248 = vpop.f32.mrb[0].mxu0
        %v1249 = vadd.f32 0.0, %v1248
        %v1250 = vpop.f32.mrb[0].mxu0
        %v1251 = vpop.f32.mrb[0].mxu0
        %v1252 = vadd.f32 0.0, %v1251
        %v1253 = vpop.f32.mrb[0].mxu0
        %1254 = vmatprep.mubr.bf16.mxu0 0
        %1255 = vmatmul.mubr.bf16.gmra.mrb[0].mxu0 %v1129
        %v1256 = vpop.f32.mrb[0].mxu0
        %v1257 = vadd.f32 0.0, %v1256
        %v1258 = vpop.f32.mrb[0].mxu0
        %v1259 = vpop.f32.mrb[0].mxu0
        %v1260 = vadd.f32 0.0, %v1259
        %v1261 = vpop.f32.mrb[0].mxu0
        %1262 = vdwg.mxu0
        %v1263 = vadd.f32 %v1038, %v1233
        %v1264 = vadd.f32 %v1039, %v1236
        %v1265 = vadd.f32 %v1040, %v1241
        %v1266 = vadd.f32 %v1041, %v1244
        %v1267 = vadd.f32 %v1042, %v1249
        %v1268 = vadd.f32 %v1043, %v1252
        %v1269 = vadd.f32 %v1044, %v1257
        %v1270 = vadd.f32 %v1045, %v1260
        %v1271 = vld [vmem:[%s884] sm:$0xe]
        %v1272 = vld [vmem:[%s884 + $0x8] sm:$0xe]
        %v1273 = vld [vmem:[%s884 + $0x10] sm:$0xe]
        %v1274 = vld [vmem:[%s884 + $0x18] sm:$0xe]
        %v1275 = vld [vmem:[%s884 + $0x20] sm:$0xe]
        %v1276 = vld [vmem:[%s884 + $0x28] sm:$0xe]
        %v1277 = vld [vmem:[%s884 + $0x30] sm:$0xe]
        %v1278 = vld [vmem:[%s884 + $0x38] sm:$0xe]
        %v1279 = vunpack.c.l.bf16 %v1271
        %v1280 = vunpack.c.l.bf16 %v1272
        %v1281 = vunpack.c.l.bf16 %v1273
        %v1282 = vunpack.c.l.bf16 %v1274
        %v1283 = vunpack.c.l.bf16 %v1275
        %v1284 = vunpack.c.l.bf16 %v1276
        %v1285 = vunpack.c.l.bf16 %v1277
        %v1286 = vunpack.c.l.bf16 %v1278
        %v1295 = vrot.slane %v1279, 2
        %v1296 = vrot.slane %v1063, 2
        %v1297 = vsel %vm706, %v1295, %v1296
        %v1298 = vrot.slane %v1280, 2
        %v1299 = vrot.slane %v1065, 2
        %v1300 = vsel %vm706, %v1298, %v1299
        %v1301 = vrot.slane %v1281, 2
        %v1302 = vrot.slane %v1067, 2
        %v1303 = vsel %vm706, %v1301, %v1302
        %v1304 = vrot.slane %v1282, 2
        %v1305 = vrot.slane %v1069, 2
        %v1306 = vsel %vm706, %v1304, %v1305
        %v1307 = vrot.slane %v1283, 2
        %v1308 = vrot.slane %v1071, 2
        %v1309 = vsel %vm706, %v1307, %v1308
        %v1310 = vrot.slane %v1284, 2
        %v1311 = vrot.slane %v1073, 2
        %v1312 = vsel %vm706, %v1310, %v1311
        %v1313 = vrot.slane %v1285, 2
        %v1314 = vrot.slane %v1075, 2
        %v1315 = vsel %vm706, %v1313, %v1314
        %v1316 = vrot.slane %v1286, 2
        %v1317 = vrot.slane %v1077, 2
        %v1318 = vsel %vm706, %v1316, %v1317
        %v1327 = vpack.c.bf16 %v1300, %v1297
        %v1328 = vpack.c.bf16 %v1306, %v1303
        %v1329 = vpack.c.bf16 %v1312, %v1309
        %v1330 = vpack.c.bf16 %v1318, %v1315
        %s1331 = sadd.s32 %s287, 5
        %s1332 = smul.u32 %s1331, 16
        %s1333 = smul.addr %s1332, 4
        %s1334 = scalar_lea.vmem [#allocation6], %s1333
        %v1335 = vld [vmem:[%s1334] sm:$0xf]
        %v1336 = vld [vmem:[%s1334 + $0x4] sm:$0xf]
        %v1337 = vld [vmem:[%s1334 + $0x8] sm:$0xf]
        %v1338 = vld [vmem:[%s1334 + $0xc] sm:$0xf]
        %v1339 = vld [vmem:[%s1334 + $0x10] sm:$0xf]
        %v1340 = vld [vmem:[%s1334 + $0x14] sm:$0xf]
        %v1341 = vld [vmem:[%s1334 + $0x18] sm:$0xf]
        %v1342 = vld [vmem:[%s1334 + $0x1c] sm:$0xf]
        %v1343 = vld [vmem:[%s1334 + $0x20] sm:$0xf]
        %v1344 = vld [vmem:[%s1334 + $0x24] sm:$0xf]
        %v1345 = vld [vmem:[%s1334 + $0x28] sm:$0xf]
        %v1346 = vld [vmem:[%s1334 + $0x2c] sm:$0xf]
        %v1347 = vld [vmem:[%s1334 + $0x30] sm:$0xf]
        %v1348 = vld [vmem:[%s1334 + $0x34] sm:$0xf]
        %v1349 = vld [vmem:[%s1334 + $0x38] sm:$0xf]
        %v1350 = vld [vmem:[%s1334 + $0x3c] sm:$0xf]
        %v1367 = vunpack.c.l.b16 %v1335
        %v1368 = vunpack.c.l.b16 %v1336
        %v1369 = vunpack.c.l.b16 %v1337
        %v1370 = vunpack.c.l.b16 %v1338
        %v1371 = vunpack.c.l.b16 %v1339
        %v1372 = vunpack.c.l.b16 %v1340
        %v1373 = vunpack.c.l.b16 %v1341
        %v1374 = vunpack.c.l.b16 %v1342
        %v1375 = vunpack.c.l.b16 %v1343
        %v1376 = vunpack.c.l.b16 %v1344
        %v1377 = vunpack.c.l.b16 %v1345
        %v1378 = vunpack.c.l.b16 %v1346
        %v1379 = vunpack.c.l.b16 %v1347
        %v1380 = vunpack.c.l.b16 %v1348
        %v1381 = vunpack.c.l.b16 %v1349
        %v1382 = vunpack.c.l.b16 %v1350
        %v1383 = vpack.c.b16 %v1368, %v1367
        %v1384 = vpack.c.b16 %v1370, %v1369
        %v1385 = vpack.c.b16 %v1372, %v1371
        %v1386 = vpack.c.b16 %v1374, %v1373
        %v1387 = vpack.c.b16 %v1376, %v1375
        %v1388 = vpack.c.b16 %v1378, %v1377
        %v1389 = vpack.c.b16 %v1380, %v1379
        %v1390 = vpack.c.b16 %v1382, %v1381
        %1399 = vmatprep.subr.bf16.mxu0 0
        %1400 = vmatpush1.bf16.msra.mxu0 %v1383
        %1401 = vmatprep.subr.bf16.mxu0 0
        %1402 = vmatpush1.bf16.msra.mxu0 %v1384
        %1403 = vmatprep.subr.bf16.mxu0 0
        %1404 = vmatpush1.bf16.msra.mxu0 %v1385
        %1405 = vmatprep.subr.bf16.mxu0 0
        %1406 = vmatpush1.bf16.msra.mxu0 %v1386
        %1407 = vmatprep.subr.bf16.mxu0 0
        %1408 = vmatpush1.bf16.msra.mxu0 %v1387
        %1409 = vmatprep.subr.bf16.mxu0 0
        %1410 = vmatpush1.bf16.msra.mxu0 %v1388
        %1411 = vmatprep.subr.bf16.mxu0 0
        %1412 = vmatpush1.bf16.msra.mxu0 %v1389
        %1413 = vmatprep.subr.bf16.mxu0 0
        %1414 = vmatpush1.bf16.msra.mxu0 %v1390
        %1415 = vmatprep.subr.bf16.mxu0 0
        %1416 = vmatpush1.bf16.msra.mxu0 0
        %1417 = vmatprep.subr.bf16.mxu0 0
        %1418 = vmatpush1.bf16.msra.mxu0 0
        %1419 = vmatprep.subr.bf16.mxu0 0
        %1420 = vmatpush1.bf16.msra.mxu0 0
        %1421 = vmatprep.subr.bf16.mxu0 0
        %1422 = vmatpush1.bf16.msra.mxu0 0
        %1423 = vmatprep.subr.bf16.mxu0 0
        %1424 = vmatpush1.bf16.msra.mxu0 0
        %1425 = vmatprep.subr.bf16.mxu0 0
        %1426 = vmatpush1.bf16.msra.mxu0 0
        %1427 = vmatprep.subr.bf16.mxu0 0
        %1428 = vmatpush1.bf16.msra.mxu0 0
        %1429 = vmatprep.subr.bf16.mxu0 0
        %1430 = vmatpush1.bf16.msra.mxu0 0
        %1431 = vmatprep.mubr.bf16.mxu0 0
        %1432 = vmatmul.mubr.bf16.gmra.mrb[0].mxu0 %v1327
        %v1433 = vpop.f32.mrb[0].mxu0
        %v1434 = vadd.f32 0.0, %v1433
        %v1435 = vpop.f32.mrb[0].mxu0
        %v1436 = vpop.f32.mrb[0].mxu0
        %v1437 = vadd.f32 0.0, %v1436
        %v1438 = vpop.f32.mrb[0].mxu0
        %1439 = vmatprep.mubr.bf16.mxu0 0
        %1440 = vmatmul.mubr.bf16.gmra.mrb[0].mxu0 %v1328
        %v1441 = vpop.f32.mrb[0].mxu0
        %v1442 = vadd.f32 0.0, %v1441
        %v1443 = vpop.f32.mrb[0].mxu0
        %v1444 = vpop.f32.mrb[0].mxu0
        %v1445 = vadd.f32 0.0, %v1444
        %v1446 = vpop.f32.mrb[0].mxu0
        %1447 = vmatprep.mubr.bf16.mxu0 0
        %1448 = vmatmul.mubr.bf16.gmra.mrb[0].mxu0 %v1329
        %v1449 = vpop.f32.mrb[0].mxu0
        %v1450 = vadd.f32 0.0, %v1449
        %v1451 = vpop.f32.mrb[0].mxu0
        %v1452 = vpop.f32.mrb[0].mxu0
        %v1453 = vadd.f32 0.0, %v1452
        %v1454 = vpop.f32.mrb[0].mxu0
        %1455 = vmatprep.mubr.bf16.mxu0 0
        %1456 = vmatmul.mubr.bf16.gmra.mrb[0].mxu0 %v1330
        %v1457 = vpop.f32.mrb[0].mxu0
        %v1458 = vadd.f32 0.0, %v1457
        %v1459 = vpop.f32.mrb[0].mxu0
        %v1460 = vpop.f32.mrb[0].mxu0
        %v1461 = vadd.f32 0.0, %v1460
        %v1462 = vpop.f32.mrb[0].mxu0
        %1463 = vdwg.mxu0
        %v1464 = vadd.f32 %v1263, %v1434
        %v1465 = vadd.f32 %v1264, %v1437
        %v1466 = vadd.f32 %v1265, %v1442
        %v1467 = vadd.f32 %v1266, %v1445
        %v1468 = vadd.f32 %v1267, %v1450
        %v1469 = vadd.f32 %v1268, %v1453
        %v1470 = vadd.f32 %v1269, %v1458
        %v1471 = vadd.f32 %v1270, %v1461
        %s1472 = scalar_lea.vmem %s232, 16 [#allocation3]
        %v1473 = vld [vmem:[%s1472] sm:$0xf]
        %v1474 = vld [vmem:[%s1472 + $0x8] sm:$0xf]
        %v1475 = vld [vmem:[%s1472 + $0x10] sm:$0xf]
        %v1476 = vld [vmem:[%s1472 + $0x18] sm:$0xf]
        %v1477 = vld [vmem:[%s1472 + $0x20] sm:$0xf]
        %v1478 = vld [vmem:[%s1472 + $0x28] sm:$0xf]
        %v1479 = vld [vmem:[%s1472 + $0x30] sm:$0xf]
        %v1480 = vld [vmem:[%s1472 + $0x38] sm:$0xf]
        %v1481 = vunpack.c.l.bf16 %v1473
        %v1482 = vunpack.c.l.bf16 %v1474
        %v1483 = vunpack.c.l.bf16 %v1475
        %v1484 = vunpack.c.l.bf16 %v1476
        %v1485 = vunpack.c.l.bf16 %v1477
        %v1486 = vunpack.c.l.bf16 %v1478
        %v1487 = vunpack.c.l.bf16 %v1479
        %v1488 = vunpack.c.l.bf16 %v1480
        %v1489 = vpack.c.bf16 %v1482, %v1481
        %v1490 = vpack.c.bf16 %v1484, %v1483
        %v1491 = vpack.c.bf16 %v1486, %v1485
        %v1492 = vpack.c.bf16 %v1488, %v1487
        %s1493 = sadd.s32 %s287, 6
        %s1494 = smul.u32 %s1493, 16
        %s1495 = smul.addr %s1494, 4
        %s1496 = scalar_lea.vmem [#allocation6], %s1495
        %v1497 = vld [vmem:[%s1496] sm:$0xf]
        %v1498 = vld [vmem:[%s1496 + $0x4] sm:$0xf]
        %v1499 = vld [vmem:[%s1496 + $0x8] sm:$0xf]
        %v1500 = vld [vmem:[%s1496 + $0xc] sm:$0xf]
        %v1501 = vld [vmem:[%s1496 + $0x10] sm:$0xf]
        %v1502 = vld [vmem:[%s1496 + $0x14] sm:$0xf]
        %v1503 = vld [vmem:[%s1496 + $0x18] sm:$0xf]
        %v1504 = vld [vmem:[%s1496 + $0x1c] sm:$0xf]
        %v1505 = vld [vmem:[%s1496 + $0x20] sm:$0xf]
        %v1506 = vld [vmem:[%s1496 + $0x24] sm:$0xf]
        %v1507 = vld [vmem:[%s1496 + $0x28] sm:$0xf]
        %v1508 = vld [vmem:[%s1496 + $0x2c] sm:$0xf]
        %v1509 = vld [vmem:[%s1496 + $0x30] sm:$0xf]
        %v1510 = vld [vmem:[%s1496 + $0x34] sm:$0xf]
        %v1511 = vld [vmem:[%s1496 + $0x38] sm:$0xf]
        %v1512 = vld [vmem:[%s1496 + $0x3c] sm:$0xf]
        %v1529 = vunpack.c.l.b16 %v1497
        %v1530 = vunpack.c.l.b16 %v1498
        %v1531 = vunpack.c.l.b16 %v1499
        %v1532 = vunpack.c.l.b16 %v1500
        %v1533 = vunpack.c.l.b16 %v1501
        %v1534 = vunpack.c.l.b16 %v1502
        %v1535 = vunpack.c.l.b16 %v1503
        %v1536 = vunpack.c.l.b16 %v1504
        %v1537 = vunpack.c.l.b16 %v1505
        %v1538 = vunpack.c.l.b16 %v1506
        %v1539 = vunpack.c.l.b16 %v1507
        %v1540 = vunpack.c.l.b16 %v1508
        %v1541 = vunpack.c.l.b16 %v1509
        %v1542 = vunpack.c.l.b16 %v1510
        %v1543 = vunpack.c.l.b16 %v1511
        %v1544 = vunpack.c.l.b16 %v1512
        %v1545 = vpack.c.b16 %v1530, %v1529
        %v1546 = vpack.c.b16 %v1532, %v1531
        %v1547 = vpack.c.b16 %v1534, %v1533
        %v1548 = vpack.c.b16 %v1536, %v1535
        %v1549 = vpack.c.b16 %v1538, %v1537
        %v1550 = vpack.c.b16 %v1540, %v1539
        %v1551 = vpack.c.b16 %v1542, %v1541
        %v1552 = vpack.c.b16 %v1544, %v1543
        %1561 = vmatprep.subr.bf16.mxu0 0
        %1562 = vmatpush1.bf16.msra.mxu0 %v1545
        %1563 = vmatprep.subr.bf16.mxu0 0
        %1564 = vmatpush1.bf16.msra.mxu0 %v1546
        %1565 = vmatprep.subr.bf16.mxu0 0
        %1566 = vmatpush1.bf16.msra.mxu0 %v1547
        %1567 = vmatprep.subr.bf16.mxu0 0
        %1568 = vmatpush1.bf16.msra.mxu0 %v1548
        %1569 = vmatprep.subr.bf16.mxu0 0
        %1570 = vmatpush1.bf16.msra.mxu0 %v1549
        %1571 = vmatprep.subr.bf16.mxu0 0
        %1572 = vmatpush1.bf16.msra.mxu0 %v1550
        %1573 = vmatprep.subr.bf16.mxu0 0
        %1574 = vmatpush1.bf16.msra.mxu0 %v1551
        %1575 = vmatprep.subr.bf16.mxu0 0
        %1576 = vmatpush1.bf16.msra.mxu0 %v1552
        %1577 = vmatprep.subr.bf16.mxu0 0
        %1578 = vmatpush1.bf16.msra.mxu0 0
        %1579 = vmatprep.subr.bf16.mxu0 0
        %1580 = vmatpush1.bf16.msra.mxu0 0
        %1581 = vmatprep.subr.bf16.mxu0 0
        %1582 = vmatpush1.bf16.msra.mxu0 0
        %1583 = vmatprep.subr.bf16.mxu0 0
        %1584 = vmatpush1.bf16.msra.mxu0 0
        %1585 = vmatprep.subr.bf16.mxu0 0
        %1586 = vmatpush1.bf16.msra.mxu0 0
        %1587 = vmatprep.subr.bf16.mxu0 0
        %1588 = vmatpush1.bf16.msra.mxu0 0
        %1589 = vmatprep.subr.bf16.mxu0 0
        %1590 = vmatpush1.bf16.msra.mxu0 0
        %1591 = vmatprep.subr.bf16.mxu0 0
        %1592 = vmatpush1.bf16.msra.mxu0 0
        %1593 = vmatprep.mubr.bf16.mxu0 0
        %1594 = vmatmul.mubr.bf16.gmra.mrb[0].mxu0 %v1489
        %v1595 = vpop.f32.mrb[0].mxu0
        %v1596 = vadd.f32 0.0, %v1595
        %v1597 = vpop.f32.mrb[0].mxu0
        %v1598 = vpop.f32.mrb[0].mxu0
        %v1599 = vadd.f32 0.0, %v1598
        %v1600 = vpop.f32.mrb[0].mxu0
        %1601 = vmatprep.mubr.bf16.mxu0 0
        %1602 = vmatmul.mubr.bf16.gmra.mrb[0].mxu0 %v1490
        %v1603 = vpop.f32.mrb[0].mxu0
        %v1604 = vadd.f32 0.0, %v1603
        %v1605 = vpop.f32.mrb[0].mxu0
        %v1606 = vpop.f32.mrb[0].mxu0
        %v1607 = vadd.f32 0.0, %v1606
        %v1608 = vpop.f32.mrb[0].mxu0
        %1609 = vmatprep.mubr.bf16.mxu0 0
        %1610 = vmatmul.mubr.bf16.gmra.mrb[0].mxu0 %v1491
        %v1611 = vpop.f32.mrb[0].mxu0
        %v1612 = vadd.f32 0.0, %v1611
        %v1613 = vpop.f32.mrb[0].mxu0
        %v1614 = vpop.f32.mrb[0].mxu0
        %v1615 = vadd.f32 0.0, %v1614
        %v1616 = vpop.f32.mrb[0].mxu0
        %1617 = vmatprep.mubr.bf16.mxu0 0
        %1618 = vmatmul.mubr.bf16.gmra.mrb[0].mxu0 %v1492
        %v1619 = vpop.f32.mrb[0].mxu0
        %v1620 = vadd.f32 0.0, %v1619
        %v1621 = vpop.f32.mrb[0].mxu0
        %v1622 = vpop.f32.mrb[0].mxu0
        %v1623 = vadd.f32 0.0, %v1622
        %v1624 = vpop.f32.mrb[0].mxu0
        %1625 = vdwg.mxu0
        %v1626 = vadd.f32 %v1464, %v1596
        %v1627 = vadd.f32 %v1465, %v1599
        %v1628 = vadd.f32 %v1466, %v1604
        %v1629 = vadd.f32 %v1467, %v1607
        %v1630 = vadd.f32 %v1468, %v1612
        %v1631 = vadd.f32 %v1469, %v1615
        %v1632 = vadd.f32 %v1470, %v1620
        %v1633 = vadd.f32 %v1471, %v1623
        %v1634 = vld [vmem:[%s1472] sm:$0xf]
        %v1635 = vld [vmem:[%s1472 + $0x4] sm:$0x1]
        %v1636 = vld [vmem:[%s1472 + $0x8] sm:$0xf]
        %v1637 = vld [vmem:[%s1472 + $0xc] sm:$0x1]
        %v1638 = vld [vmem:[%s1472 + $0x10] sm:$0xf]
        %v1639 = vld [vmem:[%s1472 + $0x14] sm:$0x1]
        %v1640 = vld [vmem:[%s1472 + $0x18] sm:$0xf]
        %v1641 = vld [vmem:[%s1472 + $0x1c] sm:$0x1]
        %v1642 = vld [vmem:[%s1472 + $0x20] sm:$0xf]
        %v1643 = vld [vmem:[%s1472 + $0x24] sm:$0x1]
        %v1644 = vld [vmem:[%s1472 + $0x28] sm:$0xf]
        %v1645 = vld [vmem:[%s1472 + $0x2c] sm:$0x1]
        %v1646 = vld [vmem:[%s1472 + $0x30] sm:$0xf]
        %v1647 = vld [vmem:[%s1472 + $0x34] sm:$0x1]
        %v1648 = vld [vmem:[%s1472 + $0x38] sm:$0xf]
        %v1649 = vld [vmem:[%s1472 + $0x3c] sm:$0x1]
        %v1650 = vunpack.c.l.bf16 %v1634
        %v1651 = vunpack.c.l.bf16 %v1635
        %v1652 = vunpack.c.l.bf16 %v1636
        %v1653 = vunpack.c.l.bf16 %v1637
        %v1654 = vunpack.c.l.bf16 %v1638
        %v1655 = vunpack.c.l.bf16 %v1639
        %v1656 = vunpack.c.l.bf16 %v1640
        %v1657 = vunpack.c.l.bf16 %v1641
        %v1658 = vunpack.c.l.bf16 %v1642
        %v1659 = vunpack.c.l.bf16 %v1643
        %v1660 = vunpack.c.l.bf16 %v1644
        %v1661 = vunpack.c.l.bf16 %v1645
        %v1662 = vunpack.c.l.bf16 %v1646
        %v1663 = vunpack.c.l.bf16 %v1647
        %v1664 = vunpack.c.l.bf16 %v1648
        %v1665 = vunpack.c.l.bf16 %v1649
        %v1682 = vrot.slane %v1650, 1
        %v1683 = vrot.slane %v1651, 1
        %v1684 = vsel %vm504, %v1682, %v1683
        %v1685 = vrot.slane %v1652, 1
        %v1686 = vrot.slane %v1653, 1
        %v1687 = vsel %vm504, %v1685, %v1686
        %v1688 = vrot.slane %v1654, 1
        %v1689 = vrot.slane %v1655, 1
        %v1690 = vsel %vm504, %v1688, %v1689
        %v1691 = vrot.slane %v1656, 1
        %v1692 = vrot.slane %v1657, 1
        %v1693 = vsel %vm504, %v1691, %v1692
        %v1694 = vrot.slane %v1658, 1
        %v1695 = vrot.slane %v1659, 1
        %v1696 = vsel %vm504, %v1694, %v1695
        %v1697 = vrot.slane %v1660, 1
        %v1698 = vrot.slane %v1661, 1
        %v1699 = vsel %vm504, %v1697, %v1698
        %v1700 = vrot.slane %v1662, 1
        %v1701 = vrot.slane %v1663, 1
        %v1702 = vsel %vm504, %v1700, %v1701
        %v1703 = vrot.slane %v1664, 1
        %v1704 = vrot.slane %v1665, 1
        %v1705 = vsel %vm504, %v1703, %v1704
        %v1714 = vpack.c.bf16 %v1687, %v1684
        %v1715 = vpack.c.bf16 %v1693, %v1690
        %v1716 = vpack.c.bf16 %v1699, %v1696
        %v1717 = vpack.c.bf16 %v1705, %v1702
        %s1718 = sadd.s32 %s287, 7
        %s1719 = smul.u32 %s1718, 16
        %s1720 = smul.addr %s1719, 4
        %s1721 = scalar_lea.vmem [#allocation6], %s1720
        %v1722 = vld [vmem:[%s1721] sm:$0xf]
        %v1723 = vld [vmem:[%s1721 + $0x4] sm:$0xf]
        %v1724 = vld [vmem:[%s1721 + $0x8] sm:$0xf]
        %v1725 = vld [vmem:[%s1721 + $0xc] sm:$0xf]
        %v1726 = vld [vmem:[%s1721 + $0x10] sm:$0xf]
        %v1727 = vld [vmem:[%s1721 + $0x14] sm:$0xf]
        %v1728 = vld [vmem:[%s1721 + $0x18] sm:$0xf]
        %v1729 = vld [vmem:[%s1721 + $0x1c] sm:$0xf]
        %v1730 = vld [vmem:[%s1721 + $0x20] sm:$0xf]
        %v1731 = vld [vmem:[%s1721 + $0x24] sm:$0xf]
        %v1732 = vld [vmem:[%s1721 + $0x28] sm:$0xf]
        %v1733 = vld [vmem:[%s1721 + $0x2c] sm:$0xf]
        %v1734 = vld [vmem:[%s1721 + $0x30] sm:$0xf]
        %v1735 = vld [vmem:[%s1721 + $0x34] sm:$0xf]
        %v1736 = vld [vmem:[%s1721 + $0x38] sm:$0xf]
        %v1737 = vld [vmem:[%s1721 + $0x3c] sm:$0xf]
        %v1754 = vunpack.c.l.b16 %v1722
        %v1755 = vunpack.c.l.b16 %v1723
        %v1756 = vunpack.c.l.b16 %v1724
        %v1757 = vunpack.c.l.b16 %v1725
        %v1758 = vunpack.c.l.b16 %v1726
        %v1759 = vunpack.c.l.b16 %v1727
        %v1760 = vunpack.c.l.b16 %v1728
        %v1761 = vunpack.c.l.b16 %v1729
        %v1762 = vunpack.c.l.b16 %v1730
        %v1763 = vunpack.c.l.b16 %v1731
        %v1764 = vunpack.c.l.b16 %v1732
        %v1765 = vunpack.c.l.b16 %v1733
        %v1766 = vunpack.c.l.b16 %v1734
        %v1767 = vunpack.c.l.b16 %v1735
        %v1768 = vunpack.c.l.b16 %v1736
        %v1769 = vunpack.c.l.b16 %v1737
        %v1770 = vpack.c.b16 %v1755, %v1754
        %v1771 = vpack.c.b16 %v1757, %v1756
        %v1772 = vpack.c.b16 %v1759, %v1758
        %v1773 = vpack.c.b16 %v1761, %v1760
        %v1774 = vpack.c.b16 %v1763, %v1762
        %v1775 = vpack.c.b16 %v1765, %v1764
        %v1776 = vpack.c.b16 %v1767, %v1766
        %v1777 = vpack.c.b16 %v1769, %v1768
        %1786 = vmatprep.subr.bf16.mxu0 0
        %1787 = vmatpush1.bf16.msra.mxu0 %v1770
        %1788 = vmatprep.subr.bf16.mxu0 0
        %1789 = vmatpush1.bf16.msra.mxu0 %v1771
        %1790 = vmatprep.subr.bf16.mxu0 0
        %1791 = vmatpush1.bf16.msra.mxu0 %v1772
        %1792 = vmatprep.subr.bf16.mxu0 0
        %1793 = vmatpush1.bf16.msra.mxu0 %v1773
        %1794 = vmatprep.subr.bf16.mxu0 0
        %1795 = vmatpush1.bf16.msra.mxu0 %v1774
        %1796 = vmatprep.subr.bf16.mxu0 0
        %1797 = vmatpush1.bf16.msra.mxu0 %v1775
        %1798 = vmatprep.subr.bf16.mxu0 0
        %1799 = vmatpush1.bf16.msra.mxu0 %v1776
        %1800 = vmatprep.subr.bf16.mxu0 0
        %1801 = vmatpush1.bf16.msra.mxu0 %v1777
        %1802 = vmatprep.subr.bf16.mxu0 0
        %1803 = vmatpush1.bf16.msra.mxu0 0
        %1804 = vmatprep.subr.bf16.mxu0 0
        %1805 = vmatpush1.bf16.msra.mxu0 0
        %1806 = vmatprep.subr.bf16.mxu0 0
        %1807 = vmatpush1.bf16.msra.mxu0 0
        %1808 = vmatprep.subr.bf16.mxu0 0
        %1809 = vmatpush1.bf16.msra.mxu0 0
        %1810 = vmatprep.subr.bf16.mxu0 0
        %1811 = vmatpush1.bf16.msra.mxu0 0
        %1812 = vmatprep.subr.bf16.mxu0 0
        %1813 = vmatpush1.bf16.msra.mxu0 0
        %1814 = vmatprep.subr.bf16.mxu0 0
        %1815 = vmatpush1.bf16.msra.mxu0 0
        %1816 = vmatprep.subr.bf16.mxu0 0
        %1817 = vmatpush1.bf16.msra.mxu0 0
        %1818 = vmatprep.mubr.bf16.mxu0 0
        %1819 = vmatmul.mubr.bf16.gmra.mrb[0].mxu0 %v1714
        %v1820 = vpop.f32.mrb[0].mxu0
        %v1821 = vadd.f32 0.0, %v1820
        %v1822 = vpop.f32.mrb[0].mxu0
        %v1823 = vpop.f32.mrb[0].mxu0
        %v1824 = vadd.f32 0.0, %v1823
        %v1825 = vpop.f32.mrb[0].mxu0
        %1826 = vmatprep.mubr.bf16.mxu0 0
        %1827 = vmatmul.mubr.bf16.gmra.mrb[0].mxu0 %v1715
        %v1828 = vpop.f32.mrb[0].mxu0
        %v1829 = vadd.f32 0.0, %v1828
        %v1830 = vpop.f32.mrb[0].mxu0
        %v1831 = vpop.f32.mrb[0].mxu0
        %v1832 = vadd.f32 0.0, %v1831
        %v1833 = vpop.f32.mrb[0].mxu0
        %1834 = vmatprep.mubr.bf16.mxu0 0
        %1835 = vmatmul.mubr.bf16.gmra.mrb[0].mxu0 %v1716
        %v1836 = vpop.f32.mrb[0].mxu0
        %v1837 = vadd.f32 0.0, %v1836
        %v1838 = vpop.f32.mrb[0].mxu0
        %v1839 = vpop.f32.mrb[0].mxu0
        %v1840 = vadd.f32 0.0, %v1839
        %v1841 = vpop.f32.mrb[0].mxu0
        %1842 = vmatprep.mubr.bf16.mxu0 0
        %1843 = vmatmul.mubr.bf16.gmra.mrb[0].mxu0 %v1717
        %v1844 = vpop.f32.mrb[0].mxu0
        %v1845 = vadd.f32 0.0, %v1844
        %v1846 = vpop.f32.mrb[0].mxu0
        %v1847 = vpop.f32.mrb[0].mxu0
        %v1848 = vadd.f32 0.0, %v1847
        %v1849 = vpop.f32.mrb[0].mxu0
        %1850 = vdwg.mxu0
        %v1851 = vadd.f32 %v1626, %v1821
        %v1852 = vadd.f32 %v1627, %v1824
        %v1853 = vadd.f32 %v1628, %v1829
        %v1854 = vadd.f32 %v1629, %v1832
        %v1855 = vadd.f32 %v1630, %v1837
        %v1856 = vadd.f32 %v1631, %v1840
        %v1857 = vadd.f32 %v1632, %v1845
        %v1858 = vadd.f32 %v1633, %v1848
        %v1859 = vld [vmem:[%s1472] sm:$0xe]
        %v1860 = vld [vmem:[%s1472 + $0x8] sm:$0xe]
        %v1861 = vld [vmem:[%s1472 + $0x10] sm:$0xe]
        %v1862 = vld [vmem:[%s1472 + $0x18] sm:$0xe]
        %v1863 = vld [vmem:[%s1472 + $0x20] sm:$0xe]
        %v1864 = vld [vmem:[%s1472 + $0x28] sm:$0xe]
        %v1865 = vld [vmem:[%s1472 + $0x30] sm:$0xe]
        %v1866 = vld [vmem:[%s1472 + $0x38] sm:$0xe]
        %v1867 = vunpack.c.l.bf16 %v1859
        %v1868 = vunpack.c.l.bf16 %v1860
        %v1869 = vunpack.c.l.bf16 %v1861
        %v1870 = vunpack.c.l.bf16 %v1862
        %v1871 = vunpack.c.l.bf16 %v1863
        %v1872 = vunpack.c.l.bf16 %v1864
        %v1873 = vunpack.c.l.bf16 %v1865
        %v1874 = vunpack.c.l.bf16 %v1866
        %v1883 = vrot.slane %v1867, 2
        %v1884 = vrot.slane %v1651, 2
        %v1885 = vsel %vm706, %v1883, %v1884
        %v1886 = vrot.slane %v1868, 2
        %v1887 = vrot.slane %v1653, 2
        %v1888 = vsel %vm706, %v1886, %v1887
        %v1889 = vrot.slane %v1869, 2
        %v1890 = vrot.slane %v1655, 2
        %v1891 = vsel %vm706, %v1889, %v1890
        %v1892 = vrot.slane %v1870, 2
        %v1893 = vrot.slane %v1657, 2
        %v1894 = vsel %vm706, %v1892, %v1893
        %v1895 = vrot.slane %v1871, 2
        %v1896 = vrot.slane %v1659, 2
        %v1897 = vsel %vm706, %v1895, %v1896
        %v1898 = vrot.slane %v1872, 2
        %v1899 = vrot.slane %v1661, 2
        %v1900 = vsel %vm706, %v1898, %v1899
        %v1901 = vrot.slane %v1873, 2
        %v1902 = vrot.slane %v1663, 2
        %v1903 = vsel %vm706, %v1901, %v1902
        %v1904 = vrot.slane %v1874, 2
        %v1905 = vrot.slane %v1665, 2
        %v1906 = vsel %vm706, %v1904, %v1905
        %v1915 = vpack.c.bf16 %v1888, %v1885
        %v1916 = vpack.c.bf16 %v1894, %v1891
        %v1917 = vpack.c.bf16 %v1900, %v1897
        %v1918 = vpack.c.bf16 %v1906, %v1903
        %s1919 = sadd.s32 %s287, 8
        %s1920 = smul.u32 %s1919, 16
        %s1921 = smul.addr %s1920, 4
        %s1922 = scalar_lea.vmem [#allocation6], %s1921
        %v1923 = vld [vmem:[%s1922] sm:$0xf]
        %v1924 = vld [vmem:[%s1922 + $0x4] sm:$0xf]
        %v1925 = vld [vmem:[%s1922 + $0x8] sm:$0xf]
        %v1926 = vld [vmem:[%s1922 + $0xc] sm:$0xf]
        %v1927 = vld [vmem:[%s1922 + $0x10] sm:$0xf]
        %v1928 = vld [vmem:[%s1922 + $0x14] sm:$0xf]
        %v1929 = vld [vmem:[%s1922 + $0x18] sm:$0xf]
        %v1930 = vld [vmem:[%s1922 + $0x1c] sm:$0xf]
        %v1931 = vld [vmem:[%s1922 + $0x20] sm:$0xf]
        %v1932 = vld [vmem:[%s1922 + $0x24] sm:$0xf]
        %v1933 = vld [vmem:[%s1922 + $0x28] sm:$0xf]
        %v1934 = vld [vmem:[%s1922 + $0x2c] sm:$0xf]
        %v1935 = vld [vmem:[%s1922 + $0x30] sm:$0xf]
        %v1936 = vld [vmem:[%s1922 + $0x34] sm:$0xf]
        %v1937 = vld [vmem:[%s1922 + $0x38] sm:$0xf]
        %v1938 = vld [vmem:[%s1922 + $0x3c] sm:$0xf]
        %v1955 = vunpack.c.l.b16 %v1923
        %v1956 = vunpack.c.l.b16 %v1924
        %v1957 = vunpack.c.l.b16 %v1925
        %v1958 = vunpack.c.l.b16 %v1926
        %v1959 = vunpack.c.l.b16 %v1927
        %v1960 = vunpack.c.l.b16 %v1928
        %v1961 = vunpack.c.l.b16 %v1929
        %v1962 = vunpack.c.l.b16 %v1930
        %v1963 = vunpack.c.l.b16 %v1931
        %v1964 = vunpack.c.l.b16 %v1932
        %v1965 = vunpack.c.l.b16 %v1933
        %v1966 = vunpack.c.l.b16 %v1934
        %v1967 = vunpack.c.l.b16 %v1935
        %v1968 = vunpack.c.l.b16 %v1936
        %v1969 = vunpack.c.l.b16 %v1937
        %v1970 = vunpack.c.l.b16 %v1938
        %v1971 = vpack.c.b16 %v1956, %v1955
        %v1972 = vpack.c.b16 %v1958, %v1957
        %v1973 = vpack.c.b16 %v1960, %v1959
        %v1974 = vpack.c.b16 %v1962, %v1961
        %v1975 = vpack.c.b16 %v1964, %v1963
        %v1976 = vpack.c.b16 %v1966, %v1965
        %v1977 = vpack.c.b16 %v1968, %v1967
        %v1978 = vpack.c.b16 %v1970, %v1969
        %1987 = vmatprep.subr.bf16.mxu0 0
        %1988 = vmatpush1.bf16.msra.mxu0 %v1971
        %1989 = vmatprep.subr.bf16.mxu0 0
        %1990 = vmatpush1.bf16.msra.mxu0 %v1972
        %1991 = vmatprep.subr.bf16.mxu0 0
        %1992 = vmatpush1.bf16.msra.mxu0 %v1973
        %1993 = vmatprep.subr.bf16.mxu0 0
        %1994 = vmatpush1.bf16.msra.mxu0 %v1974
        %1995 = vmatprep.subr.bf16.mxu0 0
        %1996 = vmatpush1.bf16.msra.mxu0 %v1975
        %1997 = vmatprep.subr.bf16.mxu0 0
        %1998 = vmatpush1.bf16.msra.mxu0 %v1976
        %1999 = vmatprep.subr.bf16.mxu0 0
        %2000 = vmatpush1.bf16.msra.mxu0 %v1977
        %2001 = vmatprep.subr.bf16.mxu0 0
        %2002 = vmatpush1.bf16.msra.mxu0 %v1978
        %2003 = vmatprep.subr.bf16.mxu0 0
        %2004 = vmatpush1.bf16.msra.mxu0 0
        %2005 = vmatprep.subr.bf16.mxu0 0
        %2006 = vmatpush1.bf16.msra.mxu0 0
        %2007 = vmatprep.subr.bf16.mxu0 0
        %2008 = vmatpush1.bf16.msra.mxu0 0
        %2009 = vmatprep.subr.bf16.mxu0 0
        %2010 = vmatpush1.bf16.msra.mxu0 0
        %2011 = vmatprep.subr.bf16.mxu0 0
        %2012 = vmatpush1.bf16.msra.mxu0 0
        %2013 = vmatprep.subr.bf16.mxu0 0
        %2014 = vmatpush1.bf16.msra.mxu0 0
        %2015 = vmatprep.subr.bf16.mxu0 0
        %2016 = vmatpush1.bf16.msra.mxu0 0
        %2017 = vmatprep.subr.bf16.mxu0 0
        %2018 = vmatpush1.bf16.msra.mxu0 0
        %2019 = vmatprep.mubr.bf16.mxu0 0
        %2020 = vmatmul.mubr.bf16.gmra.mrb[0].mxu0 %v1915
        %v2021 = vpop.f32.mrb[0].mxu0
        %v2022 = vadd.f32 0.0, %v2021
        %v2023 = vpop.f32.mrb[0].mxu0
        %v2024 = vpop.f32.mrb[0].mxu0
        %v2025 = vadd.f32 0.0, %v2024
        %v2026 = vpop.f32.mrb[0].mxu0
        %2027 = vmatprep.mubr.bf16.mxu0 0
        %2028 = vmatmul.mubr.bf16.gmra.mrb[0].mxu0 %v1916
        %v2029 = vpop.f32.mrb[0].mxu0
        %v2030 = vadd.f32 0.0, %v2029
        %v2031 = vpop.f32.mrb[0].mxu0
        %v2032 = vpop.f32.mrb[0].mxu0
        %v2033 = vadd.f32 0.0, %v2032
        %v2034 = vpop.f32.mrb[0].mxu0
        %2035 = vmatprep.mubr.bf16.mxu0 0
        %2036 = vmatmul.mubr.bf16.gmra.mrb[0].mxu0 %v1917
        %v2037 = vpop.f32.mrb[0].mxu0
        %v2038 = vadd.f32 0.0, %v2037
        %v2039 = vpop.f32.mrb[0].mxu0
        %v2040 = vpop.f32.mrb[0].mxu0
        %v2041 = vadd.f32 0.0, %v2040
        %v2042 = vpop.f32.mrb[0].mxu0
        %2043 = vmatprep.mubr.bf16.mxu0 0
        %2044 = vmatmul.mubr.bf16.gmra.mrb[0].mxu0 %v1918
        %v2045 = vpop.f32.mrb[0].mxu0
        %v2046 = vadd.f32 0.0, %v2045
        %v2047 = vpop.f32.mrb[0].mxu0
        %v2048 = vpop.f32.mrb[0].mxu0
        %v2049 = vadd.f32 0.0, %v2048
        %v2050 = vpop.f32.mrb[0].mxu0
        %2051 = vdwg.mxu0
        %v2052 = vadd.f32 %v1851, %v2022
        %v2053 = vadd.f32 %v1852, %v2025
        %v2054 = vadd.f32 %v1853, %v2030
        %v2055 = vadd.f32 %v1854, %v2033
        %v2056 = vadd.f32 %v1855, %v2038
        %v2057 = vadd.f32 %v1856, %v2041
        %v2058 = vadd.f32 %v1857, %v2046
        %v2059 = vadd.f32 %v1858, %v2049
        %2060 = vst [vmem:[#allocation2] sm:$0xff] %v2052
        %2061 = vst [vmem:[#allocation2 + $0x8] sm:$0xff] %v2053
        %2062 = vst [vmem:[#allocation2 + $0x10] sm:$0xff] %v2054
        %2063 = vst [vmem:[#allocation2 + $0x18] sm:$0xff] %v2055
        %2064 = vst [vmem:[#allocation2 + $0x20] sm:$0xff] %v2056
        %2065 = vst [vmem:[#allocation2 + $0x28] sm:$0xff] %v2057
        %2066 = vst [vmem:[#allocation2 + $0x30] sm:$0xff] %v2058
        %2067 = vst [vmem:[#allocation2 + $0x38] sm:$0xff] %v2059
        %p2068 = scmp.eq.s32.totalorder %s28, 2
        // Predicated region
        $region49: #{resnet_block_forward.15} parent=31 // pred_check
          %p2069 = pneg %p2068
        $region50: #{resnet_block_forward.15} parent=31 // pred_check_branch
          %2071 = sbr.rel (%p2069) target = $region52
        $region51: #{resnet_block_forward.15} parent=31 // pred_region
          %v2072 = vld [vmem:[%s245] sm:$0xff]
          %v2073 = vld [vmem:[%s245 + $0x8] sm:$0xff]
          %v2074 = vld [vmem:[%s245 + $0x10] sm:$0xff]
          %v2075 = vld [vmem:[%s245 + $0x18] sm:$0xff]
          %v2076 = vld [vmem:[%s245 + $0x20] sm:$0xff]
          %v2077 = vld [vmem:[%s245 + $0x28] sm:$0xff]
          %v2078 = vld [vmem:[%s245 + $0x30] sm:$0xff]
          %v2079 = vld [vmem:[%s245 + $0x38] sm:$0xff]
          %v2080 = vld [vmem:[#allocation2] sm:$0xff]
          %v2081 = vld [vmem:[#allocation2 + $0x8] sm:$0xff]
          %v2082 = vld [vmem:[#allocation2 + $0x10] sm:$0xff]
          %v2083 = vld [vmem:[#allocation2 + $0x18] sm:$0xff]
          %v2084 = vld [vmem:[#allocation2 + $0x20] sm:$0xff]
          %v2085 = vld [vmem:[#allocation2 + $0x28] sm:$0xff]
          %v2086 = vld [vmem:[#allocation2 + $0x30] sm:$0xff]
          %v2087 = vld [vmem:[#allocation2 + $0x38] sm:$0xff]
          %v2088 = vadd.f32 %v2080, %v2072
          %v2089 = vadd.f32 %v2081, %v2073
          %v2090 = vadd.f32 %v2082, %v2074
          %v2091 = vadd.f32 %v2083, %v2075
          %v2092 = vadd.f32 %v2084, %v2076
          %v2093 = vadd.f32 %v2085, %v2077
          %v2094 = vadd.f32 %v2086, %v2078
          %v2095 = vadd.f32 %v2087, %v2079
          %2096 = vst [vmem:[%s272] sm:$0xff] %v2088
          %2097 = vst [vmem:[%s272 + $0x8] sm:$0xff] %v2089
          %2098 = vst [vmem:[%s272 + $0x10] sm:$0xff] %v2090
          %2099 = vst [vmem:[%s272 + $0x18] sm:$0xff] %v2091
          %2100 = vst [vmem:[%s272 + $0x20] sm:$0xff] %v2092
          %2101 = vst [vmem:[%s272 + $0x28] sm:$0xff] %v2093
          %2102 = vst [vmem:[%s272 + $0x30] sm:$0xff] %v2094
          %2103 = vst [vmem:[%s272 + $0x38] sm:$0xff] %v2095
        $region52: #{resnet_block_forward.15} parent=31 // pred_fallthru
          _
        %s2104 = sand.u32 %s129, 1
        %s2105 = scalar_lea.sflag [#allocation5], %s2104
        %s2106 = sand.u32 %s129, 1
        %s2107 = smul.addr %s2106, 64
        %s2108 = scalar_lea.vmem [#allocation9], %s2107
        // Predicated region
        $region53: #{resnet_block_forward.15} parent=31 // pred_check
          %p2109 = pneg %p139
        $region54: #{resnet_block_forward.15} parent=31 // pred_check_branch
          %2111 = sbr.rel (%p2109) target = $region56
        $region55: #{resnet_block_forward.15} parent=31 // pred_region
          %s2113 = ssub.s32 1024, 1024
          %2114 = vsyncadd %s2105, %s2113
          %s2115 = smul.addr %s27, 8
          %s2116 = smul.addr %s26, 64
          %s2117 = sadd.s32 %s2115, %s2116
          %s2118 = smul.addr %s2117, 128
          %s2119 = scalar_lea.hbm %s3, %s2118
          %s2120 = sshll.u32 %s2108, 4
          %s2121 = int_to_ptr.vmem [resolvable:$true] %s2120
          %2126 = dma.vmem_to_hbm [thread:$0]  %s2121, 1024, %s2119, %s2105, 128, 128, 8
        $region56: #{resnet_block_forward.15} parent=31 // pred_fallthru
          _
      $region32: #{resnet_block_forward.15} parent=5 // pred_fallthru
        _
      %p2127 = scmp.le.s32.totalorder 2, %s16
      // Predicated region
      $region57: #{resnet_block_forward.15} parent=5 // pred_check
        %p2128 = pneg %p2127
      $region58: #{resnet_block_forward.15} parent=5 // pred_check_branch
        %2130 = sbr.rel (%p2128) target = $region60
      $region59: #{resnet_block_forward.15} parent=5 // pred_region
        %s2131 = ssub.s32 %s16, 2
        // Predicated region
        $region61: #{resnet_block_forward.15} parent=59 // pred_check
          %p2132 = pneg %p145
        $region62: #{resnet_block_forward.15} parent=59 // pred_check_branch
          %2134 = sbr.rel (%p2132) target = $region64
        $region63: #{resnet_block_forward.15} parent=59 // pred_region
          %s2135 = sand.u32 %s130, 1
          %s2136 = scalar_lea.sflag [#allocation5], %s2135
          %s2137 = sand.u32 %s130, 1
          %s2138 = smul.addr %s2137, 64
          %s2139 = scalar_lea.vmem [#allocation9], %s2138
          %2140 = dma.done %s2136, 1024
        $region64: #{resnet_block_forward.15} parent=59 // pred_fallthru
          _
      $region60: #{resnet_block_forward.15} parent=5 // pred_fallthru
        _
    $region6: #{resnet_block_forward.15} parent=1 // loop_footer
      %s20 = sadd.s32 1, %s16
    $region7: #{resnet_block_forward.15} parent=1 // loop_footer_branch
      %15 = sbr.rel target = $region3
    $region8: #{resnet_block_forward.15} parent=1 // loop_exit
      _
    %2141 = vsyncpa [#allocation4], 1
    %s2142 = scalar_lea.sflag [#allocation4], 1
    %2143 = vsyncpa %s2142, 1
    %2144 = vsyncpa [#allocation7], 1
    %2145 = vsyncpa [#allocation5], 1
    %s2146 = scalar_lea.sflag [#allocation5], 1
    %2147 = vsyncpa %s2146, 1

</llo_original>
